<compile_context>
chip_gen: v7x
topology: tpu7x:2x2x1
jax: 0.10.0
libtpu: 0.0.40
codegen_flags: <defaults>
</compile_context>

<pallas_src>
import jax
import jax.numpy as jnp
from jax.experimental import pallas as pl
from jax.experimental.pallas import tpu as pltpu


def _vmem_spec():
    # Whole (small) array resident in VMEM, kernel invoked once (grid=()).
    return pl.BlockSpec(memory_space=pltpu.MemorySpace.VMEM)


def _sigmoid(x):
    # Exact identity sigmoid(x) == 0.5*(tanh(x/2)+1): single EUP op, no VPU divide.
    return 0.5 * (jnp.tanh(0.5 * x) + 1.0)


def _dot(a, b):
    return jnp.dot(a, b, preferred_element_type=jnp.float32)


# ---------------------------------------------------------------------------
# One bidirectional GRU layer: both directions in one fully-unrolled time loop.
# ---------------------------------------------------------------------------
def _bidir_gru_layer(gx_f, gx_b, whh_f, bhh_f, whh_b, bhh_b, out_f_ref, out_b_ref):
    """gx_f / gx_b : (T, 3H) hoisted input contributions (x @ Wih + bih), gate order [r,z,n]
    whh_* : (H, 3H) hidden weights;  bhh_* : (1, 3H) hidden biases
    out_f_ref / out_b_ref : (T, H) VMEM scratch; backward states are stored at the
    ORIGINAL time index, so no flips are needed anywhere.
    """
    T = gx_f.shape[0]
    H = whh_f.shape[0]

    # Gate-split the hidden weights once (hoisted out of the recurrence).
    wf_r, wf_z, wf_n = whh_f[:, 0:H], whh_f[:, H:2 * H], whh_f[:, 2 * H:3 * H]
    wb_r, wb_z, wb_n = whh_b[:, 0:H], whh_b[:, H:2 * H], whh_b[:, 2 * H:3 * H]

    # Fold the hidden biases of the r/z gates into the hoisted gx; only the n-gate's
    # hidden bias must stay inside the r * (.) term (PyTorch GRU semantics).
    gxf_r = gx_f[:, 0:H] + bhh_f[:, 0:H]
    gxf_z = gx_f[:, H:2 * H] + bhh_f[:, H:2 * H]
    gxf_n = gx_f[:, 2 * H:3 * H]
    bf_n = bhh_f[:, 2 * H:3 * H]

    gxb_r = gx_b[:, 0:H] + bhh_b[:, 0:H]
    gxb_z = gx_b[:, H:2 * H] + bhh_b[:, H:2 * H]
    gxb_n = gx_b[:, 2 * H:3 * H]
    bb_n = bhh_b[:, 2 * H:3 * H]

    h_f = jnp.zeros((1, H), dtype=jnp.float32)
    h_b = jnp.zeros((1, H), dtype=jnp.float32)

    for t in range(T):  # T is a compile-time constant -> fully unrolled
        tb = T - 1 - t
        # Hidden matmuls of both (independent) directions issued back-to-back so the
        # scheduler can overlap MXU pushes with the EUP/VPU gate math.
        ghf_r = _dot(h_f, wf_r)
        ghf_z = _dot(h_f, wf_z)
        ghf_n = _dot(h_f, wf_n)
        ghb_r = _dot(h_b, wb_r)
        ghb_z = _dot(h_b, wb_z)
        ghb_n = _dot(h_b, wb_n)

        r_f = _sigmoid(gxf_r[t:t + 1, :] + ghf_r)
        z_f = _sigmoid(gxf_z[t:t + 1, :] + ghf_z)
        n_f = jnp.tanh(gxf_n[t:t + 1, :] + r_f * (ghf_n + bf_n))
        h_f = (1.0 - z_f) * n_f + z_f * h_f

        r_b = _sigmoid(gxb_r[tb:tb + 1, :] + ghb_r)
        z_b = _sigmoid(gxb_z[tb:tb + 1, :] + ghb_z)
        n_b = jnp.tanh(gxb_n[tb:tb + 1, :] + r_b * (ghb_n + bb_n))
        h_b = (1.0 - z_b) * n_b + z_b * h_b

        out_f_ref[t:t + 1, :] = h_f
        out_b_ref[tb:tb + 1, :] = h_b


# ---------------------------------------------------------------------------
# Fully fused network kernel: GRU layer 0 + GRU layer 1 + head, one invocation.
# ---------------------------------------------------------------------------
def fused_network_kernel(
    x_ref,
    wih0f_ref, whh0f_ref, bih0f_ref, bhh0f_ref,
    wih0b_ref, whh0b_ref, bih0b_ref, bhh0b_ref,
    wih1f_ref, whh1f_ref, bih1f_ref, bhh1f_ref,
    wih1b_ref, whh1b_ref, bih1b_ref, bhh1b_ref,
    wlin_ref, blin_ref, wsq_ref, bsq_ref,
    out_ref,
    f0_ref, b0_ref, f1_ref, b1_ref,          # (T, H) VMEM scratch
):
    H = whh0f_ref.shape[0]
    x = x_ref[...]                                            # (T, I)

    # ----- GRU layer 0 (bidirectional), hoisted input-to-hidden matmuls -----
    gx0f = _dot(x, wih0f_ref[...]) + bih0f_ref[...]           # (T, 3H)
    gx0b = _dot(x, wih0b_ref[...]) + bih0b_ref[...]
    _bidir_gru_layer(gx0f, gx0b, whh0f_ref[...], bhh0f_ref[...],
                     whh0b_ref[...], bhh0b_ref[...], f0_ref, b0_ref)

    # ----- GRU layer 1 (bidirectional) -----
    # TODO(synk): nn.GRU dropout=0.5 between layers applies only in training mode; eval
    # (no dropout) is implemented.
    # Layer-1 input is concat([fwd0, bwd0]); implemented as a split-weight sum so the
    # concat never materialises.
    f0 = f0_ref[...]
    b0 = b0_ref[...]
    wih1f = wih1f_ref[...]                                    # (2H, 3H)
    wih1b = wih1b_ref[...]
    gx1f = _dot(f0, wih1f[0:H, :]) + _dot(b0, wih1f[H:2 * H, :]) + bih1f_ref[...]
    gx1b = _dot(f0, wih1b[0:H, :]) + _dot(b0, wih1b[H:2 * H, :]) + bih1b_ref[...]
    _bidir_gru_layer(gx1f, gx1b, whh1f_ref[...], bhh1f_ref[...],
                     whh1b_ref[...], bhh1b_ref[...], f1_ref, b1_ref)

    # ----- head: sum directions, linear, transpose+squeeze linear, sigmoid -----
    r = f1_ref[...] + b1_ref[...]                             # (T, H)
    lin = _dot(r, wlin_ref[...]) + blin_ref[...]              # (T, O)
    s = _dot(wsq_ref[...], lin) + bsq_ref[...]                # (1, O)
    out_ref[...] = _sigmoid(s)


# ---------------------------------------------------------------------------
# Parameter init (deterministic, PyTorch-style uniform(-1/sqrt(fan_in), 1/sqrt(fan_in)))
# ---------------------------------------------------------------------------
def _uniform(key, shape, scale):
    return jax.random.uniform(key, shape, jnp.float32, -scale, scale)


def init_params(key, input_size, hidden_size, output_size, seq_len):
    H = hidden_size
    scale = H ** -0.5
    keys = iter(jax.random.split(key, 24))

    def gru_dir(in_size):
        wih = _uniform(next(keys), (3 * H, in_size), scale)
        whh = _uniform(next(keys), (3 * H, H), scale)
        bih = _uniform(next(keys), (3 * H,), scale)
        bhh = _uniform(next(keys), (3 * H,), scale)
        # pre-transpose to x @ W layout (parameter setup, outside the kernel)
        return (wih.T, whh.T, bih.reshape(1, 3 * H), bhh.reshape(1, 3 * H))

    return {
        "l0_fwd": gru_dir(input_size),
        "l0_bwd": gru_dir(input_size),
        "l1_fwd": gru_dir(2 * H),
        "l1_bwd": gru_dir(2 * H),
        "w_lin_t": _uniform(next(keys), (output_size, H), scale).T,           # (H, O)
        "b_lin": _uniform(next(keys), (output_size,), scale).reshape(1, output_size),
        "w_sq": _uniform(next(keys), (1, seq_len), seq_len ** -0.5),          # (1, T)
        "b_sq": _uniform(next(keys), (1,), seq_len ** -0.5).reshape(1, 1),
    }


# ---------------------------------------------------------------------------
# Forward pass matching Network.forward (eval semantics): ONE pallas_call total.
# ---------------------------------------------------------------------------
def network_forward(params, x):
    B, T, _ = x.shape
    assert B == 1, "PyTorch forward does .view(1, 1); batch must be 1"
    x0 = x[0]                                   # (T, I)
    H = params["l0_fwd"][1].shape[0]
    O = params["w_lin_t"].shape[1]

    out = pl.pallas_call(
        fused_network_kernel,
        out_shape=jax.ShapeDtypeStruct((1, O), jnp.float32),
        in_specs=[_vmem_spec()] * 21,
        out_specs=_vmem_spec(),
        scratch_shapes=[pltpu.VMEM((T, H), jnp.float32)] * 4,
    )(
        x0,
        *params["l0_fwd"], *params["l0_bwd"],
        *params["l1_fwd"], *params["l1_bwd"],
        params["w_lin_t"], params["b_lin"], params["w_sq"], params["b_sq"],
    )
    return out.reshape(1, 1)


if __name__ == "__main__":
    input_size, hidden_size, output_size, seq_len = 16, 32, 1, 8
    key = jax.random.PRNGKey(0)
    pkey, xkey = jax.random.split(key)

    params = init_params(pkey, input_size, hidden_size, output_size, seq_len)
    x = jax.random.normal(xkey, (1, seq_len, input_size), jnp.float32)

    fwd = jax.jit(network_forward)
    out = fwd(params, x)
    out = jax.block_until_ready(out)
    assert out.shape == (1, 1)
    assert bool(jnp.all(jnp.isfinite(out)))
    print("KERNEL_OK")
</pallas_src>

<mosaic_0001>
module attributes {stable_mosaic.version = 11 : i64} {
  func.func @fused_network_kernel(%arg0: memref<8x16xf32, #tpu.memory_space<vmem>>, %arg1: memref<16x96xf32, #tpu.memory_space<vmem>>, %arg2: memref<32x96xf32, #tpu.memory_space<vmem>>, %arg3: memref<1x96xf32, #tpu.memory_space<vmem>>, %arg4: memref<1x96xf32, #tpu.memory_space<vmem>>, %arg5: memref<16x96xf32, #tpu.memory_space<vmem>>, %arg6: memref<32x96xf32, #tpu.memory_space<vmem>>, %arg7: memref<1x96xf32, #tpu.memory_space<vmem>>, %arg8: memref<1x96xf32, #tpu.memory_space<vmem>>, %arg9: memref<64x96xf32, #tpu.memory_space<vmem>>, %arg10: memref<32x96xf32, #tpu.memory_space<vmem>>, %arg11: memref<1x96xf32, #tpu.memory_space<vmem>>, %arg12: memref<1x96xf32, #tpu.memory_space<vmem>>, %arg13: memref<64x96xf32, #tpu.memory_space<vmem>>, %arg14: memref<32x96xf32, #tpu.memory_space<vmem>>, %arg15: memref<1x96xf32, #tpu.memory_space<vmem>>, %arg16: memref<1x96xf32, #tpu.memory_space<vmem>>, %arg17: memref<32x1xf32, #tpu.memory_space<vmem>>, %arg18: memref<1x1xf32, #tpu.memory_space<vmem>>, %arg19: memref<1x8xf32, #tpu.memory_space<vmem>>, %arg20: memref<1x1xf32, #tpu.memory_space<vmem>>, %arg21: memref<1x1xf32, #tpu.memory_space<vmem>>, %arg22: memref<8x32xf32, #tpu.memory_space<vmem>>, %arg23: memref<8x32xf32, #tpu.memory_space<vmem>>, %arg24: memref<8x32xf32, #tpu.memory_space<vmem>>, %arg25: memref<8x32xf32, #tpu.memory_space<vmem>>) attributes {dimension_semantics = [], scalar_prefetch = 0 : i64, scratch_operands = 4 : i64, tpu.core_type = #tpu.core_type<tc>} {
    %c0 = arith.constant 0 : index
    %c0_0 = arith.constant 0 : index
    %0 = vector.load %arg0[%c0, %c0_0] : memref<8x16xf32, #tpu.memory_space<vmem>>, vector<8x16xf32>
    %c0_1 = arith.constant 0 : index
    %c0_2 = arith.constant 0 : index
    %1 = vector.load %arg1[%c0_1, %c0_2] : memref<16x96xf32, #tpu.memory_space<vmem>>, vector<16x96xf32>
    %cst = arith.constant dense<0.000000e+00> : vector<8x96xf32>
    %2 = tpu.matmul %0, %1, %cst {dimension_numbers = #tpu.dot_dimension_numbers<[1], [0], [0], [1], [0, 0, 1, 1], [], []>} : vector<8x16xf32>, vector<16x96xf32>, vector<8x96xf32> -> vector<8x96xf32>
    %c0_3 = arith.constant 0 : index
    %c0_4 = arith.constant 0 : index
    %3 = vector.load %arg3[%c0_3, %c0_4] : memref<1x96xf32, #tpu.memory_space<vmem>>, vector<1x96xf32>
    %4 = vector.broadcast %3 : vector<1x96xf32> to vector<8x96xf32>
    %5 = arith.addf %2, %4 : vector<8x96xf32>
    %c0_5 = arith.constant 0 : index
    %c0_6 = arith.constant 0 : index
    %6 = vector.load %arg5[%c0_5, %c0_6] : memref<16x96xf32, #tpu.memory_space<vmem>>, vector<16x96xf32>
    %cst_7 = arith.constant dense<0.000000e+00> : vector<8x96xf32>
    %7 = tpu.matmul %0, %6, %cst_7 {dimension_numbers = #tpu.dot_dimension_numbers<[1], [0], [0], [1], [0, 0, 1, 1], [], []>} : vector<8x16xf32>, vector<16x96xf32>, vector<8x96xf32> -> vector<8x96xf32>
    %c0_8 = arith.constant 0 : index
    %c0_9 = arith.constant 0 : index
    %8 = vector.load %arg7[%c0_8, %c0_9] : memref<1x96xf32, #tpu.memory_space<vmem>>, vector<1x96xf32>
    %9 = vector.broadcast %8 : vector<1x96xf32> to vector<8x96xf32>
    %10 = arith.addf %7, %9 : vector<8x96xf32>
    %c0_10 = arith.constant 0 : index
    %c0_11 = arith.constant 0 : index
    %11 = vector.load %arg2[%c0_10, %c0_11] : memref<32x96xf32, #tpu.memory_space<vmem>>, vector<32x96xf32>
    %c0_12 = arith.constant 0 : index
    %c0_13 = arith.constant 0 : index
    %12 = vector.load %arg4[%c0_12, %c0_13] : memref<1x96xf32, #tpu.memory_space<vmem>>, vector<1x96xf32>
    %c0_14 = arith.constant 0 : index
    %c0_15 = arith.constant 0 : index
    %13 = vector.load %arg6[%c0_14, %c0_15] : memref<32x96xf32, #tpu.memory_space<vmem>>, vector<32x96xf32>
    %c0_16 = arith.constant 0 : index
    %c0_17 = arith.constant 0 : index
    %14 = vector.load %arg8[%c0_16, %c0_17] : memref<1x96xf32, #tpu.memory_space<vmem>>, vector<1x96xf32>
    %15 = vector.extract_strided_slice %11 {offsets = [0, 0], sizes = [32, 32], strides = [1, 1]} : vector<32x96xf32> to vector<32x32xf32>
    %16 = vector.extract_strided_slice %11 {offsets = [0, 32], sizes = [32, 32], strides = [1, 1]} : vector<32x96xf32> to vector<32x32xf32>
    %17 = vector.extract_strided_slice %11 {offsets = [0, 64], sizes = [32, 32], strides = [1, 1]} : vector<32x96xf32> to vector<32x32xf32>
    %18 = vector.extract_strided_slice %13 {offsets = [0, 0], sizes = [32, 32], strides = [1, 1]} : vector<32x96xf32> to vector<32x32xf32>
    %19 = vector.extract_strided_slice %13 {offsets = [0, 32], sizes = [32, 32], strides = [1, 1]} : vector<32x96xf32> to vector<32x32xf32>
    %20 = vector.extract_strided_slice %13 {offsets = [0, 64], sizes = [32, 32], strides = [1, 1]} : vector<32x96xf32> to vector<32x32xf32>
    %21 = vector.extract_strided_slice %5 {offsets = [0, 0], sizes = [8, 32], strides = [1, 1]} : vector<8x96xf32> to vector<8x32xf32>
    %22 = vector.extract_strided_slice %12 {offsets = [0, 0], sizes = [1, 32], strides = [1, 1]} : vector<1x96xf32> to vector<1x32xf32>
    %23 = vector.broadcast %22 : vector<1x32xf32> to vector<8x32xf32>
    %24 = arith.addf %21, %23 : vector<8x32xf32>
    %25 = vector.extract_strided_slice %5 {offsets = [0, 32], sizes = [8, 32], strides = [1, 1]} : vector<8x96xf32> to vector<8x32xf32>
    %26 = vector.extract_strided_slice %12 {offsets = [0, 32], sizes = [1, 32], strides = [1, 1]} : vector<1x96xf32> to vector<1x32xf32>
    %27 = vector.broadcast %26 : vector<1x32xf32> to vector<8x32xf32>
    %28 = arith.addf %25, %27 : vector<8x32xf32>
    %29 = vector.extract_strided_slice %5 {offsets = [0, 64], sizes = [8, 32], strides = [1, 1]} : vector<8x96xf32> to vector<8x32xf32>
    %30 = vector.extract_strided_slice %12 {offsets = [0, 64], sizes = [1, 32], strides = [1, 1]} : vector<1x96xf32> to vector<1x32xf32>
    %31 = vector.extract_strided_slice %10 {offsets = [0, 0], sizes = [8, 32], strides = [1, 1]} : vector<8x96xf32> to vector<8x32xf32>
    %32 = vector.extract_strided_slice %14 {offsets = [0, 0], sizes = [1, 32], strides = [1, 1]} : vector<1x96xf32> to vector<1x32xf32>
    %33 = vector.broadcast %32 : vector<1x32xf32> to vector<8x32xf32>
    %34 = arith.addf %31, %33 : vector<8x32xf32>
    %35 = vector.extract_strided_slice %10 {offsets = [0, 32], sizes = [8, 32], strides = [1, 1]} : vector<8x96xf32> to vector<8x32xf32>
    %36 = vector.extract_strided_slice %14 {offsets = [0, 32], sizes = [1, 32], strides = [1, 1]} : vector<1x96xf32> to vector<1x32xf32>
    %37 = vector.broadcast %36 : vector<1x32xf32> to vector<8x32xf32>
    %38 = arith.addf %35, %37 : vector<8x32xf32>
    %39 = vector.extract_strided_slice %10 {offsets = [0, 64], sizes = [8, 32], strides = [1, 1]} : vector<8x96xf32> to vector<8x32xf32>
    %40 = vector.extract_strided_slice %14 {offsets = [0, 64], sizes = [1, 32], strides = [1, 1]} : vector<1x96xf32> to vector<1x32xf32>
    %cst_18 = arith.constant 0.000000e+00 : f32
    %41 = vector.broadcast %cst_18 : f32 to vector<1x32xf32>
    %cst_19 = arith.constant 0.000000e+00 : f32
    %42 = vector.broadcast %cst_19 : f32 to vector<1x32xf32>
    %cst_20 = arith.constant dense<0.000000e+00> : vector<1x32xf32>
    %43 = tpu.matmul %41, %15, %cst_20 {dimension_numbers = #tpu.dot_dimension_numbers<[1], [0], [0], [1], [0, 0, 1, 1], [], []>} : vector<1x32xf32>, vector<32x32xf32>, vector<1x32xf32> -> vector<1x32xf32>
    %cst_21 = arith.constant dense<0.000000e+00> : vector<1x32xf32>
    %44 = tpu.matmul %41, %16, %cst_21 {dimension_numbers = #tpu.dot_dimension_numbers<[1], [0], [0], [1], [0, 0, 1, 1], [], []>} : vector<1x32xf32>, vector<32x32xf32>, vector<1x32xf32> -> vector<1x32xf32>
    %cst_22 = arith.constant dense<0.000000e+00> : vector<1x32xf32>
    %45 = tpu.matmul %41, %17, %cst_22 {dimension_numbers = #tpu.dot_dimension_numbers<[1], [0], [0], [1], [0, 0, 1, 1], [], []>} : vector<1x32xf32>, vector<32x32xf32>, vector<1x32xf32> -> vector<1x32xf32>
    %cst_23 = arith.constant dense<0.000000e+00> : vector<1x32xf32>
    %46 = tpu.matmul %42, %18, %cst_23 {dimension_numbers = #tpu.dot_dimension_numbers<[1], [0], [0], [1], [0, 0, 1, 1], [], []>} : vector<1x32xf32>, vector<32x32xf32>, vector<1x32xf32> -> vector<1x32xf32>
    %cst_24 = arith.constant dense<0.000000e+00> : vector<1x32xf32>
    %47 = tpu.matmul %42, %19, %cst_24 {dimension_numbers = #tpu.dot_dimension_numbers<[1], [0], [0], [1], [0, 0, 1, 1], [], []>} : vector<1x32xf32>, vector<32x32xf32>, vector<1x32xf32> -> vector<1x32xf32>
    %cst_25 = arith.constant dense<0.000000e+00> : vector<1x32xf32>
    %48 = tpu.matmul %42, %20, %cst_25 {dimension_numbers = #tpu.dot_dimension_numbers<[1], [0], [0], [1], [0, 0, 1, 1], [], []>} : vector<1x32xf32>, vector<32x32xf32>, vector<1x32xf32> -> vector<1x32xf32>
    %49 = vector.extract_strided_slice %24 {offsets = [0, 0], sizes = [1, 32], strides = [1, 1]} : vector<8x32xf32> to vector<1x32xf32>
    %50 = arith.addf %49, %43 : vector<1x32xf32>
    %cst_26 = arith.constant 5.000000e-01 : f32
    %51 = vector.broadcast %cst_26 : f32 to vector<1x32xf32>
    %52 = arith.mulf %51, %50 : vector<1x32xf32>
    %53 = math.tanh %52 : vector<1x32xf32>
    %cst_27 = arith.constant 1.000000e+00 : f32
    %54 = vector.broadcast %cst_27 : f32 to vector<1x32xf32>
    %55 = arith.addf %53, %54 : vector<1x32xf32>
    %cst_28 = arith.constant 5.000000e-01 : f32
    %56 = vector.broadcast %cst_28 : f32 to vector<1x32xf32>
    %57 = arith.mulf %56, %55 : vector<1x32xf32>
    %58 = vector.extract_strided_slice %28 {offsets = [0, 0], sizes = [1, 32], strides = [1, 1]} : vector<8x32xf32> to vector<1x32xf32>
    %59 = arith.addf %58, %44 : vector<1x32xf32>
    %cst_29 = arith.constant 5.000000e-01 : f32
    %60 = vector.broadcast %cst_29 : f32 to vector<1x32xf32>
    %61 = arith.mulf %60, %59 : vector<1x32xf32>
    %62 = math.tanh %61 : vector<1x32xf32>
    %cst_30 = arith.constant 1.000000e+00 : f32
    %63 = vector.broadcast %cst_30 : f32 to vector<1x32xf32>
    %64 = arith.addf %62, %63 : vector<1x32xf32>
    %cst_31 = arith.constant 5.000000e-01 : f32
    %65 = vector.broadcast %cst_31 : f32 to vector<1x32xf32>
    %66 = arith.mulf %65, %64 : vector<1x32xf32>
    %67 = vector.extract_strided_slice %29 {offsets = [0, 0], sizes = [1, 32], strides = [1, 1]} : vector<8x32xf32> to vector<1x32xf32>
    %68 = arith.addf %45, %30 : vector<1x32xf32>
    %69 = arith.mulf %57, %68 : vector<1x32xf32>
    %70 = arith.addf %67, %69 : vector<1x32xf32>
    %71 = math.tanh %70 : vector<1x32xf32>
    %cst_32 = arith.constant 1.000000e+00 : f32
    %72 = vector.broadcast %cst_32 : f32 to vector<1x32xf32>
    %73 = arith.subf %72, %66 : vector<1x32xf32>
    %74 = arith.mulf %73, %71 : vector<1x32xf32>
    %75 = arith.mulf %66, %41 : vector<1x32xf32>
    %76 = arith.addf %74, %75 : vector<1x32xf32>
    %77 = vector.extract_strided_slice %34 {offsets = [7, 0], sizes = [1, 32], strides = [1, 1]} : vector<8x32xf32> to vector<1x32xf32>
    %78 = arith.addf %77, %46 : vector<1x32xf32>
    %cst_33 = arith.constant 5.000000e-01 : f32
    %79 = vector.broadcast %cst_33 : f32 to vector<1x32xf32>
    %80 = arith.mulf %79, %78 : vector<1x32xf32>
    %81 = math.tanh %80 : vector<1x32xf32>
    %cst_34 = arith.constant 1.000000e+00 : f32
    %82 = vector.broadcast %cst_34 : f32 to vector<1x32xf32>
    %83 = arith.addf %81, %82 : vector<1x32xf32>
    %cst_35 = arith.constant 5.000000e-01 : f32
    %84 = vector.broadcast %cst_35 : f32 to vector<1x32xf32>
    %85 = arith.mulf %84, %83 : vector<1x32xf32>
    %86 = vector.extract_strided_slice %38 {offsets = [7, 0], sizes = [1, 32], strides = [1, 1]} : vector<8x32xf32> to vector<1x32xf32>
    %87 = arith.addf %86, %47 : vector<1x32xf32>
    %cst_36 = arith.constant 5.000000e-01 : f32
    %88 = vector.broadcast %cst_36 : f32 to vector<1x32xf32>
    %89 = arith.mulf %88, %87 : vector<1x32xf32>
    %90 = math.tanh %89 : vector<1x32xf32>
    %cst_37 = arith.constant 1.000000e+00 : f32
    %91 = vector.broadcast %cst_37 : f32 to vector<1x32xf32>
    %92 = arith.addf %90, %91 : vector<1x32xf32>
    %cst_38 = arith.constant 5.000000e-01 : f32
    %93 = vector.broadcast %cst_38 : f32 to vector<1x32xf32>
    %94 = arith.mulf %93, %92 : vector<1x32xf32>
    %95 = vector.extract_strided_slice %39 {offsets = [7, 0], sizes = [1, 32], strides = [1, 1]} : vector<8x32xf32> to vector<1x32xf32>
    %96 = arith.addf %48, %40 : vector<1x32xf32>
    %97 = arith.mulf %85, %96 : vector<1x32xf32>
    %98 = arith.addf %95, %97 : vector<1x32xf32>
    %99 = math.tanh %98 : vector<1x32xf32>
    %cst_39 = arith.constant 1.000000e+00 : f32
    %100 = vector.broadcast %cst_39 : f32 to vector<1x32xf32>
    %101 = arith.subf %100, %94 : vector<1x32xf32>
    %102 = arith.mulf %101, %99 : vector<1x32xf32>
    %103 = arith.mulf %94, %42 : vector<1x32xf32>
    %104 = arith.addf %102, %103 : vector<1x32xf32>
    %c0_40 = arith.constant 0 : index
    %c0_41 = arith.constant 0 : index
    %105 = vector.load %arg22[%c0_40, %c0_41] : memref<8x32xf32, #tpu.memory_space<vmem>>, vector<1x32xf32>
    tpu.vector_store %arg22[%c0_40, %c0_41], %76 {strides = array<i32>} : memref<8x32xf32, #tpu.memory_space<vmem>>, vector<1x32xf32>,
    %c7 = arith.constant 7 : index
    %c0_42 = arith.constant 0 : index
    %106 = vector.load %arg23[%c7, %c0_42] : memref<8x32xf32, #tpu.memory_space<vmem>>, vector<1x32xf32>
    tpu.vector_store %arg23[%c7, %c0_42], %104 {strides = array<i32>} : memref<8x32xf32, #tpu.memory_space<vmem>>, vector<1x32xf32>,
    %cst_43 = arith.constant dense<0.000000e+00> : vector<1x32xf32>
    %107 = tpu.matmul %76, %15, %cst_43 {dimension_numbers = #tpu.dot_dimension_numbers<[1], [0], [0], [1], [0, 0, 1, 1], [], []>} : vector<1x32xf32>, vector<32x32xf32>, vector<1x32xf32> -> vector<1x32xf32>
    %cst_44 = arith.constant dense<0.000000e+00> : vector<1x32xf32>
    %108 = tpu.matmul %76, %16, %cst_44 {dimension_numbers = #tpu.dot_dimension_numbers<[1], [0], [0], [1], [0, 0, 1, 1], [], []>} : vector<1x32xf32>, vector<32x32xf32>, vector<1x32xf32> -> vector<1x32xf32>
    %cst_45 = arith.constant dense<0.000000e+00> : vector<1x32xf32>
    %109 = tpu.matmul %76, %17, %cst_45 {dimension_numbers = #tpu.dot_dimension_numbers<[1], [0], [0], [1], [0, 0, 1, 1], [], []>} : vector<1x32xf32>, vector<32x32xf32>, vector<1x32xf32> -> vector<1x32xf32>
    %cst_46 = arith.constant dense<0.000000e+00> : vector<1x32xf32>
    %110 = tpu.matmul %104, %18, %cst_46 {dimension_numbers = #tpu.dot_dimension_numbers<[1], [0], [0], [1], [0, 0, 1, 1], [], []>} : vector<1x32xf32>, vector<32x32xf32>, vector<1x32xf32> -> vector<1x32xf32>
    %cst_47 = arith.constant dense<0.000000e+00> : vector<1x32xf32>
    %111 = tpu.matmul %104, %19, %cst_47 {dimension_numbers = #tpu.dot_dimension_numbers<[1], [0], [0], [1], [0, 0, 1, 1], [], []>} : vector<1x32xf32>, vector<32x32xf32>, vector<1x32xf32> -> vector<1x32xf32>
    %cst_48 = arith.constant dense<0.000000e+00> : vector<1x32xf32>
    %112 = tpu.matmul %104, %20, %cst_48 {dimension_numbers = #tpu.dot_dimension_numbers<[1], [0], [0], [1], [0, 0, 1, 1], [], []>} : vector<1x32xf32>, vector<32x32xf32>, vector<1x32xf32> -> vector<1x32xf32>
    %113 = vector.extract_strided_slice %24 {offsets = [1, 0], sizes = [1, 32], strides = [1, 1]} : vector<8x32xf32> to vector<1x32xf32>
    %114 = arith.addf %113, %107 : vector<1x32xf32>
    %cst_49 = arith.constant 5.000000e-01 : f32
    %115 = vector.broadcast %cst_49 : f32 to vector<1x32xf32>
    %116 = arith.mulf %115, %114 : vector<1x32xf32>
    %117 = math.tanh %116 : vector<1x32xf32>
    %cst_50 = arith.constant 1.000000e+00 : f32
    %118 = vector.broadcast %cst_50 : f32 to vector<1x32xf32>
    %119 = arith.addf %117, %118 : vector<1x32xf32>
    %cst_51 = arith.constant 5.000000e-01 : f32
    %120 = vector.broadcast %cst_51 : f32 to vector<1x32xf32>
    %121 = arith.mulf %120, %119 : vector<1x32xf32>
    %122 = vector.extract_strided_slice %28 {offsets = [1, 0], sizes = [1, 32], strides = [1, 1]} : vector<8x32xf32> to vector<1x32xf32>
    %123 = arith.addf %122, %108 : vector<1x32xf32>
    %cst_52 = arith.constant 5.000000e-01 : f32
    %124 = vector.broadcast %cst_52 : f32 to vector<1x32xf32>
    %125 = arith.mulf %124, %123 : vector<1x32xf32>
    %126 = math.tanh %125 : vector<1x32xf32>
    %cst_53 = arith.constant 1.000000e+00 : f32
    %127 = vector.broadcast %cst_53 : f32 to vector<1x32xf32>
    %128 = arith.addf %126, %127 : vector<1x32xf32>
    %cst_54 = arith.constant 5.000000e-01 : f32
    %129 = vector.broadcast %cst_54 : f32 to vector<1x32xf32>
    %130 = arith.mulf %129, %128 : vector<1x32xf32>
    %131 = vector.extract_strided_slice %29 {offsets = [1, 0], sizes = [1, 32], strides = [1, 1]} : vector<8x32xf32> to vector<1x32xf32>
    %132 = arith.addf %109, %30 : vector<1x32xf32>
    %133 = arith.mulf %121, %132 : vector<1x32xf32>
    %134 = arith.addf %131, %133 : vector<1x32xf32>
    %135 = math.tanh %134 : vector<1x32xf32>
    %cst_55 = arith.constant 1.000000e+00 : f32
    %136 = vector.broadcast %cst_55 : f32 to vector<1x32xf32>
    %137 = arith.subf %136, %130 : vector<1x32xf32>
    %138 = arith.mulf %137, %135 : vector<1x32xf32>
    %139 = arith.mulf %130, %76 : vector<1x32xf32>
    %140 = arith.addf %138, %139 : vector<1x32xf32>
    %141 = vector.extract_strided_slice %34 {offsets = [6, 0], sizes = [1, 32], strides = [1, 1]} : vector<8x32xf32> to vector<1x32xf32>
    %142 = arith.addf %141, %110 : vector<1x32xf32>
    %cst_56 = arith.constant 5.000000e-01 : f32
    %143 = vector.broadcast %cst_56 : f32 to vector<1x32xf32>
    %144 = arith.mulf %143, %142 : vector<1x32xf32>
    %145 = math.tanh %144 : vector<1x32xf32>
    %cst_57 = arith.constant 1.000000e+00 : f32
    %146 = vector.broadcast %cst_57 : f32 to vector<1x32xf32>
    %147 = arith.addf %145, %146 : vector<1x32xf32>
    %cst_58 = arith.constant 5.000000e-01 : f32
    %148 = vector.broadcast %cst_58 : f32 to vector<1x32xf32>
    %149 = arith.mulf %148, %147 : vector<1x32xf32>
    %150 = vector.extract_strided_slice %38 {offsets = [6, 0], sizes = [1, 32], strides = [1, 1]} : vector<8x32xf32> to vector<1x32xf32>
    %151 = arith.addf %150, %111 : vector<1x32xf32>
    %cst_59 = arith.constant 5.000000e-01 : f32
    %152 = vector.broadcast %cst_59 : f32 to vector<1x32xf32>
    %153 = arith.mulf %152, %151 : vector<1x32xf32>
    %154 = math.tanh %153 : vector<1x32xf32>
    %cst_60 = arith.constant 1.000000e+00 : f32
    %155 = vector.broadcast %cst_60 : f32 to vector<1x32xf32>
    %156 = arith.addf %154, %155 : vector<1x32xf32>
    %cst_61 = arith.constant 5.000000e-01 : f32
    %157 = vector.broadcast %cst_61 : f32 to vector<1x32xf32>
    %158 = arith.mulf %157, %156 : vector<1x32xf32>
    %159 = vector.extract_strided_slice %39 {offsets = [6, 0], sizes = [1, 32], strides = [1, 1]} : vector<8x32xf32> to vector<1x32xf32>
    %160 = arith.addf %112, %40 : vector<1x32xf32>
    %161 = arith.mulf %149, %160 : vector<1x32xf32>
    %162 = arith.addf %159, %161 : vector<1x32xf32>
    %163 = math.tanh %162 : vector<1x32xf32>
    %cst_62 = arith.constant 1.000000e+00 : f32
    %164 = vector.broadcast %cst_62 : f32 to vector<1x32xf32>
    %165 = arith.subf %164, %158 : vector<1x32xf32>
    %166 = arith.mulf %165, %163 : vector<1x32xf32>
    %167 = arith.mulf %158, %104 : vector<1x32xf32>
    %168 = arith.addf %166, %167 : vector<1x32xf32>
    %c1 = arith.constant 1 : index
    %c0_63 = arith.constant 0 : index
    %169 = vector.load %arg22[%c1, %c0_63] : memref<8x32xf32, #tpu.memory_space<vmem>>, vector<1x32xf32>
    tpu.vector_store %arg22[%c1, %c0_63], %140 {strides = array<i32>} : memref<8x32xf32, #tpu.memory_space<vmem>>, vector<1x32xf32>,
    %c6 = arith.constant 6 : index
    %c0_64 = arith.constant 0 : index
    %170 = vector.load %arg23[%c6, %c0_64] : memref<8x32xf32, #tpu.memory_space<vmem>>, vector<1x32xf32>
    tpu.vector_store %arg23[%c6, %c0_64], %168 {strides = array<i32>} : memref<8x32xf32, #tpu.memory_space<vmem>>, vector<1x32xf32>,
    %cst_65 = arith.constant dense<0.000000e+00> : vector<1x32xf32>
    %171 = tpu.matmul %140, %15, %cst_65 {dimension_numbers = #tpu.dot_dimension_numbers<[1], [0], [0], [1], [0, 0, 1, 1], [], []>} : vector<1x32xf32>, vector<32x32xf32>, vector<1x32xf32> -> vector<1x32xf32>
    %cst_66 = arith.constant dense<0.000000e+00> : vector<1x32xf32>
    %172 = tpu.matmul %140, %16, %cst_66 {dimension_numbers = #tpu.dot_dimension_numbers<[1], [0], [0], [1], [0, 0, 1, 1], [], []>} : vector<1x32xf32>, vector<32x32xf32>, vector<1x32xf32> -> vector<1x32xf32>
    %cst_67 = arith.constant dense<0.000000e+00> : vector<1x32xf32>
    %173 = tpu.matmul %140, %17, %cst_67 {dimension_numbers = #tpu.dot_dimension_numbers<[1], [0], [0], [1], [0, 0, 1, 1], [], []>} : vector<1x32xf32>, vector<32x32xf32>, vector<1x32xf32> -> vector<1x32xf32>
    %cst_68 = arith.constant dense<0.000000e+00> : vector<1x32xf32>
    %174 = tpu.matmul %168, %18, %cst_68 {dimension_numbers = #tpu.dot_dimension_numbers<[1], [0], [0], [1], [0, 0, 1, 1], [], []>} : vector<1x32xf32>, vector<32x32xf32>, vector<1x32xf32> -> vector<1x32xf32>
    %cst_69 = arith.constant dense<0.000000e+00> : vector<1x32xf32>
    %175 = tpu.matmul %168, %19, %cst_69 {dimension_numbers = #tpu.dot_dimension_numbers<[1], [0], [0], [1], [0, 0, 1, 1], [], []>} : vector<1x32xf32>, vector<32x32xf32>, vector<1x32xf32> -> vector<1x32xf32>
    %cst_70 = arith.constant dense<0.000000e+00> : vector<1x32xf32>
    %176 = tpu.matmul %168, %20, %cst_70 {dimension_numbers = #tpu.dot_dimension_numbers<[1], [0], [0], [1], [0, 0, 1, 1], [], []>} : vector<1x32xf32>, vector<32x32xf32>, vector<1x32xf32> -> vector<1x32xf32>
    %177 = vector.extract_strided_slice %24 {offsets = [2, 0], sizes = [1, 32], strides = [1, 1]} : vector<8x32xf32> to vector<1x32xf32>
    %178 = arith.addf %177, %171 : vector<1x32xf32>
    %cst_71 = arith.constant 5.000000e-01 : f32
    %179 = vector.broadcast %cst_71 : f32 to vector<1x32xf32>
    %180 = arith.mulf %179, %178 : vector<1x32xf32>
    %181 = math.tanh %180 : vector<1x32xf32>
    %cst_72 = arith.constant 1.000000e+00 : f32
    %182 = vector.broadcast %cst_72 : f32 to vector<1x32xf32>
    %183 = arith.addf %181, %182 : vector<1x32xf32>
    %cst_73 = arith.constant 5.000000e-01 : f32
    %184 = vector.broadcast %cst_73 : f32 to vector<1x32xf32>
    %185 = arith.mulf %184, %183 : vector<1x32xf32>
    %186 = vector.extract_strided_slice %28 {offsets = [2, 0], sizes = [1, 32], strides = [1, 1]} : vector<8x32xf32> to vector<1x32xf32>
    %187 = arith.addf %186, %172 : vector<1x32xf32>
    %cst_74 = arith.constant 5.000000e-01 : f32
    %188 = vector.broadcast %cst_74 : f32 to vector<1x32xf32>
    %189 = arith.mulf %188, %187 : vector<1x32xf32>
    %190 = math.tanh %189 : vector<1x32xf32>
    %cst_75 = arith.constant 1.000000e+00 : f32
    %191 = vector.broadcast %cst_75 : f32 to vector<1x32xf32>
    %192 = arith.addf %190, %191 : vector<1x32xf32>
    %cst_76 = arith.constant 5.000000e-01 : f32
    %193 = vector.broadcast %cst_76 : f32 to vector<1x32xf32>
    %194 = arith.mulf %193, %192 : vector<1x32xf32>
    %195 = vector.extract_strided_slice %29 {offsets = [2, 0], sizes = [1, 32], strides = [1, 1]} : vector<8x32xf32> to vector<1x32xf32>
    %196 = arith.addf %173, %30 : vector<1x32xf32>
    %197 = arith.mulf %185, %196 : vector<1x32xf32>
    %198 = arith.addf %195, %197 : vector<1x32xf32>
    %199 = math.tanh %198 : vector<1x32xf32>
    %cst_77 = arith.constant 1.000000e+00 : f32
    %200 = vector.broadcast %cst_77 : f32 to vector<1x32xf32>
    %201 = arith.subf %200, %194 : vector<1x32xf32>
    %202 = arith.mulf %201, %199 : vector<1x32xf32>
    %203 = arith.mulf %194, %140 : vector<1x32xf32>
    %204 = arith.addf %202, %203 : vector<1x32xf32>
    %205 = vector.extract_strided_slice %34 {offsets = [5, 0], sizes = [1, 32], strides = [1, 1]} : vector<8x32xf32> to vector<1x32xf32>
    %206 = arith.addf %205, %174 : vector<1x32xf32>
    %cst_78 = arith.constant 5.000000e-01 : f32
    %207 = vector.broadcast %cst_78 : f32 to vector<1x32xf32>
    %208 = arith.mulf %207, %206 : vector<1x32xf32>
    %209 = math.tanh %208 : vector<1x32xf32>
    %cst_79 = arith.constant 1.000000e+00 : f32
    %210 = vector.broadcast %cst_79 : f32 to vector<1x32xf32>
    %211 = arith.addf %209, %210 : vector<1x32xf32>
    %cst_80 = arith.constant 5.000000e-01 : f32
    %212 = vector.broadcast %cst_80 : f32 to vector<1x32xf32>
    %213 = arith.mulf %212, %211 : vector<1x32xf32>
    %214 = vector.extract_strided_slice %38 {offsets = [5, 0], sizes = [1, 32], strides = [1, 1]} : vector<8x32xf32> to vector<1x32xf32>
    %215 = arith.addf %214, %175 : vector<1x32xf32>
    %cst_81 = arith.constant 5.000000e-01 : f32
    %216 = vector.broadcast %cst_81 : f32 to vector<1x32xf32>
    %217 = arith.mulf %216, %215 : vector<1x32xf32>
    %218 = math.tanh %217 : vector<1x32xf32>
    %cst_82 = arith.constant 1.000000e+00 : f32
    %219 = vector.broadcast %cst_82 : f32 to vector<1x32xf32>
    %220 = arith.addf %218, %219 : vector<1x32xf32>
    %cst_83 = arith.constant 5.000000e-01 : f32
    %221 = vector.broadcast %cst_83 : f32 to vector<1x32xf32>
    %222 = arith.mulf %221, %220 : vector<1x32xf32>
    %223 = vector.extract_strided_slice %39 {offsets = [5, 0], sizes = [1, 32], strides = [1, 1]} : vector<8x32xf32> to vector<1x32xf32>
    %224 = arith.addf %176, %40 : vector<1x32xf32>
    %225 = arith.mulf %213, %224 : vector<1x32xf32>
    %226 = arith.addf %223, %225 : vector<1x32xf32>
    %227 = math.tanh %226 : vector<1x32xf32>
    %cst_84 = arith.constant 1.000000e+00 : f32
    %228 = vector.broadcast %cst_84 : f32 to vector<1x32xf32>
    %229 = arith.subf %228, %222 : vector<1x32xf32>
    %230 = arith.mulf %229, %227 : vector<1x32xf32>
    %231 = arith.mulf %222, %168 : vector<1x32xf32>
    %232 = arith.addf %230, %231 : vector<1x32xf32>
    %c2 = arith.constant 2 : index
    %c0_85 = arith.constant 0 : index
    %233 = vector.load %arg22[%c2, %c0_85] : memref<8x32xf32, #tpu.memory_space<vmem>>, vector<1x32xf32>
    tpu.vector_store %arg22[%c2, %c0_85], %204 {strides = array<i32>} : memref<8x32xf32, #tpu.memory_space<vmem>>, vector<1x32xf32>,
    %c5 = arith.constant 5 : index
    %c0_86 = arith.constant 0 : index
    %234 = vector.load %arg23[%c5, %c0_86] : memref<8x32xf32, #tpu.memory_space<vmem>>, vector<1x32xf32>
    tpu.vector_store %arg23[%c5, %c0_86], %232 {strides = array<i32>} : memref<8x32xf32, #tpu.memory_space<vmem>>, vector<1x32xf32>,
    %cst_87 = arith.constant dense<0.000000e+00> : vector<1x32xf32>
    %235 = tpu.matmul %204, %15, %cst_87 {dimension_numbers = #tpu.dot_dimension_numbers<[1], [0], [0], [1], [0, 0, 1, 1], [], []>} : vector<1x32xf32>, vector<32x32xf32>, vector<1x32xf32> -> vector<1x32xf32>
    %cst_88 = arith.constant dense<0.000000e+00> : vector<1x32xf32>
    %236 = tpu.matmul %204, %16, %cst_88 {dimension_numbers = #tpu.dot_dimension_numbers<[1], [0], [0], [1], [0, 0, 1, 1], [], []>} : vector<1x32xf32>, vector<32x32xf32>, vector<1x32xf32> -> vector<1x32xf32>
    %cst_89 = arith.constant dense<0.000000e+00> : vector<1x32xf32>
    %237 = tpu.matmul %204, %17, %cst_89 {dimension_numbers = #tpu.dot_dimension_numbers<[1], [0], [0], [1], [0, 0, 1, 1], [], []>} : vector<1x32xf32>, vector<32x32xf32>, vector<1x32xf32> -> vector<1x32xf32>
    %cst_90 = arith.constant dense<0.000000e+00> : vector<1x32xf32>
    %238 = tpu.matmul %232, %18, %cst_90 {dimension_numbers = #tpu.dot_dimension_numbers<[1], [0], [0], [1], [0, 0, 1, 1], [], []>} : vector<1x32xf32>, vector<32x32xf32>, vector<1x32xf32> -> vector<1x32xf32>
    %cst_91 = arith.constant dense<0.000000e+00> : vector<1x32xf32>
    %239 = tpu.matmul %232, %19, %cst_91 {dimension_numbers = #tpu.dot_dimension_numbers<[1], [0], [0], [1], [0, 0, 1, 1], [], []>} : vector<1x32xf32>, vector<32x32xf32>, vector<1x32xf32> -> vector<1x32xf32>
    %cst_92 = arith.constant dense<0.000000e+00> : vector<1x32xf32>
    %240 = tpu.matmul %232, %20, %cst_92 {dimension_numbers = #tpu.dot_dimension_numbers<[1], [0], [0], [1], [0, 0, 1, 1], [], []>} : vector<1x32xf32>, vector<32x32xf32>, vector<1x32xf32> -> vector<1x32xf32>
    %241 = vector.extract_strided_slice %24 {offsets = [3, 0], sizes = [1, 32], strides = [1, 1]} : vector<8x32xf32> to vector<1x32xf32>
    %242 = arith.addf %241, %235 : vector<1x32xf32>
    %cst_93 = arith.constant 5.000000e-01 : f32
    %243 = vector.broadcast %cst_93 : f32 to vector<1x32xf32>
    %244 = arith.mulf %243, %242 : vector<1x32xf32>
    %245 = math.tanh %244 : vector<1x32xf32>
    %cst_94 = arith.constant 1.000000e+00 : f32
    %246 = vector.broadcast %cst_94 : f32 to vector<1x32xf32>
    %247 = arith.addf %245, %246 : vector<1x32xf32>
    %cst_95 = arith.constant 5.000000e-01 : f32
    %248 = vector.broadcast %cst_95 : f32 to vector<1x32xf32>
    %249 = arith.mulf %248, %247 : vector<1x32xf32>
    %250 = vector.extract_strided_slice %28 {offsets = [3, 0], sizes = [1, 32], strides = [1, 1]} : vector<8x32xf32> to vector<1x32xf32>
    %251 = arith.addf %250, %236 : vector<1x32xf32>
    %cst_96 = arith.constant 5.000000e-01 : f32
    %252 = vector.broadcast %cst_96 : f32 to vector<1x32xf32>
    %253 = arith.mulf %252, %251 : vector<1x32xf32>
    %254 = math.tanh %253 : vector<1x32xf32>
    %cst_97 = arith.constant 1.000000e+00 : f32
    %255 = vector.broadcast %cst_97 : f32 to vector<1x32xf32>
    %256 = arith.addf %254, %255 : vector<1x32xf32>
    %cst_98 = arith.constant 5.000000e-01 : f32
    %257 = vector.broadcast %cst_98 : f32 to vector<1x32xf32>
    %258 = arith.mulf %257, %256 : vector<1x32xf32>
    %259 = vector.extract_strided_slice %29 {offsets = [3, 0], sizes = [1, 32], strides = [1, 1]} : vector<8x32xf32> to vector<1x32xf32>
    %260 = arith.addf %237, %30 : vector<1x32xf32>
    %261 = arith.mulf %249, %260 : vector<1x32xf32>
    %262 = arith.addf %259, %261 : vector<1x32xf32>
    %263 = math.tanh %262 : vector<1x32xf32>
    %cst_99 = arith.constant 1.000000e+00 : f32
    %264 = vector.broadcast %cst_99 : f32 to vector<1x32xf32>
    %265 = arith.subf %264, %258 : vector<1x32xf32>
    %266 = arith.mulf %265, %263 : vector<1x32xf32>
    %267 = arith.mulf %258, %204 : vector<1x32xf32>
    %268 = arith.addf %266, %267 : vector<1x32xf32>
    %269 = vector.extract_strided_slice %34 {offsets = [4, 0], sizes = [1, 32], strides = [1, 1]} : vector<8x32xf32> to vector<1x32xf32>
    %270 = arith.addf %269, %238 : vector<1x32xf32>
    %cst_100 = arith.constant 5.000000e-01 : f32
    %271 = vector.broadcast %cst_100 : f32 to vector<1x32xf32>
    %272 = arith.mulf %271, %270 : vector<1x32xf32>
    %273 = math.tanh %272 : vector<1x32xf32>
    %cst_101 = arith.constant 1.000000e+00 : f32
    %274 = vector.broadcast %cst_101 : f32 to vector<1x32xf32>
    %275 = arith.addf %273, %274 : vector<1x32xf32>
    %cst_102 = arith.constant 5.000000e-01 : f32
    %276 = vector.broadcast %cst_102 : f32 to vector<1x32xf32>
    %277 = arith.mulf %276, %275 : vector<1x32xf32>
    %278 = vector.extract_strided_slice %38 {offsets = [4, 0], sizes = [1, 32], strides = [1, 1]} : vector<8x32xf32> to vector<1x32xf32>
    %279 = arith.addf %278, %239 : vector<1x32xf32>
    %cst_103 = arith.constant 5.000000e-01 : f32
    %280 = vector.broadcast %cst_103 : f32 to vector<1x32xf32>
    %281 = arith.mulf %280, %279 : vector<1x32xf32>
    %282 = math.tanh %281 : vector<1x32xf32>
    %cst_104 = arith.constant 1.000000e+00 : f32
    %283 = vector.broadcast %cst_104 : f32 to vector<1x32xf32>
    %284 = arith.addf %282, %283 : vector<1x32xf32>
    %cst_105 = arith.constant 5.000000e-01 : f32
    %285 = vector.broadcast %cst_105 : f32 to vector<1x32xf32>
    %286 = arith.mulf %285, %284 : vector<1x32xf32>
    %287 = vector.extract_strided_slice %39 {offsets = [4, 0], sizes = [1, 32], strides = [1, 1]} : vector<8x32xf32> to vector<1x32xf32>
    %288 = arith.addf %240, %40 : vector<1x32xf32>
    %289 = arith.mulf %277, %288 : vector<1x32xf32>
    %290 = arith.addf %287, %289 : vector<1x32xf32>
    %291 = math.tanh %290 : vector<1x32xf32>
    %cst_106 = arith.constant 1.000000e+00 : f32
    %292 = vector.broadcast %cst_106 : f32 to vector<1x32xf32>
    %293 = arith.subf %292, %286 : vector<1x32xf32>
    %294 = arith.mulf %293, %291 : vector<1x32xf32>
    %295 = arith.mulf %286, %232 : vector<1x32xf32>
    %296 = arith.addf %294, %295 : vector<1x32xf32>
    %c3 = arith.constant 3 : index
    %c0_107 = arith.constant 0 : index
    %297 = vector.load %arg22[%c3, %c0_107] : memref<8x32xf32, #tpu.memory_space<vmem>>, vector<1x32xf32>
    tpu.vector_store %arg22[%c3, %c0_107], %268 {strides = array<i32>} : memref<8x32xf32, #tpu.memory_space<vmem>>, vector<1x32xf32>,
    %c4 = arith.constant 4 : index
    %c0_108 = arith.constant 0 : index
    %298 = vector.load %arg23[%c4, %c0_108] : memref<8x32xf32, #tpu.memory_space<vmem>>, vector<1x32xf32>
    tpu.vector_store %arg23[%c4, %c0_108], %296 {strides = array<i32>} : memref<8x32xf32, #tpu.memory_space<vmem>>, vector<1x32xf32>,
    %cst_109 = arith.constant dense<0.000000e+00> : vector<1x32xf32>
    %299 = tpu.matmul %268, %15, %cst_109 {dimension_numbers = #tpu.dot_dimension_numbers<[1], [0], [0], [1], [0, 0, 1, 1], [], []>} : vector<1x32xf32>, vector<32x32xf32>, vector<1x32xf32> -> vector<1x32xf32>
    %cst_110 = arith.constant dense<0.000000e+00> : vector<1x32xf32>
    %300 = tpu.matmul %268, %16, %cst_110 {dimension_numbers = #tpu.dot_dimension_numbers<[1], [0], [0], [1], [0, 0, 1, 1], [], []>} : vector<1x32xf32>, vector<32x32xf32>, vector<1x32xf32> -> vector<1x32xf32>
    %cst_111 = arith.constant dense<0.000000e+00> : vector<1x32xf32>
    %301 = tpu.matmul %268, %17, %cst_111 {dimension_numbers = #tpu.dot_dimension_numbers<[1], [0], [0], [1], [0, 0, 1, 1], [], []>} : vector<1x32xf32>, vector<32x32xf32>, vector<1x32xf32> -> vector<1x32xf32>
    %cst_112 = arith.constant dense<0.000000e+00> : vector<1x32xf32>
    %302 = tpu.matmul %296, %18, %cst_112 {dimension_numbers = #tpu.dot_dimension_numbers<[1], [0], [0], [1], [0, 0, 1, 1], [], []>} : vector<1x32xf32>, vector<32x32xf32>, vector<1x32xf32> -> vector<1x32xf32>
    %cst_113 = arith.constant dense<0.000000e+00> : vector<1x32xf32>
    %303 = tpu.matmul %296, %19, %cst_113 {dimension_numbers = #tpu.dot_dimension_numbers<[1], [0], [0], [1], [0, 0, 1, 1], [], []>} : vector<1x32xf32>, vector<32x32xf32>, vector<1x32xf32> -> vector<1x32xf32>
    %cst_114 = arith.constant dense<0.000000e+00> : vector<1x32xf32>
    %304 = tpu.matmul %296, %20, %cst_114 {dimension_numbers = #tpu.dot_dimension_numbers<[1], [0], [0], [1], [0, 0, 1, 1], [], []>} : vector<1x32xf32>, vector<32x32xf32>, vector<1x32xf32> -> vector<1x32xf32>
    %305 = vector.extract_strided_slice %24 {offsets = [4, 0], sizes = [1, 32], strides = [1, 1]} : vector<8x32xf32> to vector<1x32xf32>
    %306 = arith.addf %305, %299 : vector<1x32xf32>
    %cst_115 = arith.constant 5.000000e-01 : f32
    %307 = vector.broadcast %cst_115 : f32 to vector<1x32xf32>
    %308 = arith.mulf %307, %306 : vector<1x32xf32>
    %309 = math.tanh %308 : vector<1x32xf32>
    %cst_116 = arith.constant 1.000000e+00 : f32
    %310 = vector.broadcast %cst_116 : f32 to vector<1x32xf32>
    %311 = arith.addf %309, %310 : vector<1x32xf32>
    %cst_117 = arith.constant 5.000000e-01 : f32
    %312 = vector.broadcast %cst_117 : f32 to vector<1x32xf32>
    %313 = arith.mulf %312, %311 : vector<1x32xf32>
    %314 = vector.extract_strided_slice %28 {offsets = [4, 0], sizes = [1, 32], strides = [1, 1]} : vector<8x32xf32> to vector<1x32xf32>
    %315 = arith.addf %314, %300 : vector<1x32xf32>
    %cst_118 = arith.constant 5.000000e-01 : f32
    %316 = vector.broadcast %cst_118 : f32 to vector<1x32xf32>
    %317 = arith.mulf %316, %315 : vector<1x32xf32>
    %318 = math.tanh %317 : vector<1x32xf32>
    %cst_119 = arith.constant 1.000000e+00 : f32
    %319 = vector.broadcast %cst_119 : f32 to vector<1x32xf32>
    %320 = arith.addf %318, %319 : vector<1x32xf32>
    %cst_120 = arith.constant 5.000000e-01 : f32
    %321 = vector.broadcast %cst_120 : f32 to vector<1x32xf32>
    %322 = arith.mulf %321, %320 : vector<1x32xf32>
    %323 = vector.extract_strided_slice %29 {offsets = [4, 0], sizes = [1, 32], strides = [1, 1]} : vector<8x32xf32> to vector<1x32xf32>
    %324 = arith.addf %301, %30 : vector<1x32xf32>
    %325 = arith.mulf %313, %324 : vector<1x32xf32>
    %326 = arith.addf %323, %325 : vector<1x32xf32>
    %327 = math.tanh %326 : vector<1x32xf32>
    %cst_121 = arith.constant 1.000000e+00 : f32
    %328 = vector.broadcast %cst_121 : f32 to vector<1x32xf32>
    %329 = arith.subf %328, %322 : vector<1x32xf32>
    %330 = arith.mulf %329, %327 : vector<1x32xf32>
    %331 = arith.mulf %322, %268 : vector<1x32xf32>
    %332 = arith.addf %330, %331 : vector<1x32xf32>
    %333 = vector.extract_strided_slice %34 {offsets = [3, 0], sizes = [1, 32], strides = [1, 1]} : vector<8x32xf32> to vector<1x32xf32>
    %334 = arith.addf %333, %302 : vector<1x32xf32>
    %cst_122 = arith.constant 5.000000e-01 : f32
    %335 = vector.broadcast %cst_122 : f32 to vector<1x32xf32>
    %336 = arith.mulf %335, %334 : vector<1x32xf32>
    %337 = math.tanh %336 : vector<1x32xf32>
    %cst_123 = arith.constant 1.000000e+00 : f32
    %338 = vector.broadcast %cst_123 : f32 to vector<1x32xf32>
    %339 = arith.addf %337, %338 : vector<1x32xf32>
    %cst_124 = arith.constant 5.000000e-01 : f32
    %340 = vector.broadcast %cst_124 : f32 to vector<1x32xf32>
    %341 = arith.mulf %340, %339 : vector<1x32xf32>
    %342 = vector.extract_strided_slice %38 {offsets = [3, 0], sizes = [1, 32], strides = [1, 1]} : vector<8x32xf32> to vector<1x32xf32>
    %343 = arith.addf %342, %303 : vector<1x32xf32>
    %cst_125 = arith.constant 5.000000e-01 : f32
    %344 = vector.broadcast %cst_125 : f32 to vector<1x32xf32>
    %345 = arith.mulf %344, %343 : vector<1x32xf32>
    %346 = math.tanh %345 : vector<1x32xf32>
    %cst_126 = arith.constant 1.000000e+00 : f32
    %347 = vector.broadcast %cst_126 : f32 to vector<1x32xf32>
    %348 = arith.addf %346, %347 : vector<1x32xf32>
    %cst_127 = arith.constant 5.000000e-01 : f32
    %349 = vector.broadcast %cst_127 : f32 to vector<1x32xf32>
    %350 = arith.mulf %349, %348 : vector<1x32xf32>
    %351 = vector.extract_strided_slice %39 {offsets = [3, 0], sizes = [1, 32], strides = [1, 1]} : vector<8x32xf32> to vector<1x32xf32>
    %352 = arith.addf %304, %40 : vector<1x32xf32>
    %353 = arith.mulf %341, %352 : vector<1x32xf32>
    %354 = arith.addf %351, %353 : vector<1x32xf32>
    %355 = math.tanh %354 : vector<1x32xf32>
    %cst_128 = arith.constant 1.000000e+00 : f32
    %356 = vector.broadcast %cst_128 : f32 to vector<1x32xf32>
    %357 = arith.subf %356, %350 : vector<1x32xf32>
    %358 = arith.mulf %357, %355 : vector<1x32xf32>
    %359 = arith.mulf %350, %296 : vector<1x32xf32>
    %360 = arith.addf %358, %359 : vector<1x32xf32>
    %c4_129 = arith.constant 4 : index
    %c0_130 = arith.constant 0 : index
    %361 = vector.load %arg22[%c4_129, %c0_130] : memref<8x32xf32, #tpu.memory_space<vmem>>, vector<1x32xf32>
    tpu.vector_store %arg22[%c4_129, %c0_130], %332 {strides = array<i32>} : memref<8x32xf32, #tpu.memory_space<vmem>>, vector<1x32xf32>,
    %c3_131 = arith.constant 3 : index
    %c0_132 = arith.constant 0 : index
    %362 = vector.load %arg23[%c3_131, %c0_132] : memref<8x32xf32, #tpu.memory_space<vmem>>, vector<1x32xf32>
    tpu.vector_store %arg23[%c3_131, %c0_132], %360 {strides = array<i32>} : memref<8x32xf32, #tpu.memory_space<vmem>>, vector<1x32xf32>,
    %cst_133 = arith.constant dense<0.000000e+00> : vector<1x32xf32>
    %363 = tpu.matmul %332, %15, %cst_133 {dimension_numbers = #tpu.dot_dimension_numbers<[1], [0], [0], [1], [0, 0, 1, 1], [], []>} : vector<1x32xf32>, vector<32x32xf32>, vector<1x32xf32> -> vector<1x32xf32>
    %cst_134 = arith.constant dense<0.000000e+00> : vector<1x32xf32>
    %364 = tpu.matmul %332, %16, %cst_134 {dimension_numbers = #tpu.dot_dimension_numbers<[1], [0], [0], [1], [0, 0, 1, 1], [], []>} : vector<1x32xf32>, vector<32x32xf32>, vector<1x32xf32> -> vector<1x32xf32>
    %cst_135 = arith.constant dense<0.000000e+00> : vector<1x32xf32>
    %365 = tpu.matmul %332, %17, %cst_135 {dimension_numbers = #tpu.dot_dimension_numbers<[1], [0], [0], [1], [0, 0, 1, 1], [], []>} : vector<1x32xf32>, vector<32x32xf32>, vector<1x32xf32> -> vector<1x32xf32>
    %cst_136 = arith.constant dense<0.000000e+00> : vector<1x32xf32>
    %366 = tpu.matmul %360, %18, %cst_136 {dimension_numbers = #tpu.dot_dimension_numbers<[1], [0], [0], [1], [0, 0, 1, 1], [], []>} : vector<1x32xf32>, vector<32x32xf32>, vector<1x32xf32> -> vector<1x32xf32>
    %cst_137 = arith.constant dense<0.000000e+00> : vector<1x32xf32>
    %367 = tpu.matmul %360, %19, %cst_137 {dimension_numbers = #tpu.dot_dimension_numbers<[1], [0], [0], [1], [0, 0, 1, 1], [], []>} : vector<1x32xf32>, vector<32x32xf32>, vector<1x32xf32> -> vector<1x32xf32>
    %cst_138 = arith.constant dense<0.000000e+00> : vector<1x32xf32>
    %368 = tpu.matmul %360, %20, %cst_138 {dimension_numbers = #tpu.dot_dimension_numbers<[1], [0], [0], [1], [0, 0, 1, 1], [], []>} : vector<1x32xf32>, vector<32x32xf32>, vector<1x32xf32> -> vector<1x32xf32>
    %369 = vector.extract_strided_slice %24 {offsets = [5, 0], sizes = [1, 32], strides = [1, 1]} : vector<8x32xf32> to vector<1x32xf32>
    %370 = arith.addf %369, %363 : vector<1x32xf32>
    %cst_139 = arith.constant 5.000000e-01 : f32
    %371 = vector.broadcast %cst_139 : f32 to vector<1x32xf32>
    %372 = arith.mulf %371, %370 : vector<1x32xf32>
    %373 = math.tanh %372 : vector<1x32xf32>
    %cst_140 = arith.constant 1.000000e+00 : f32
    %374 = vector.broadcast %cst_140 : f32 to vector<1x32xf32>
    %375 = arith.addf %373, %374 : vector<1x32xf32>
    %cst_141 = arith.constant 5.000000e-01 : f32
    %376 = vector.broadcast %cst_141 : f32 to vector<1x32xf32>
    %377 = arith.mulf %376, %375 : vector<1x32xf32>
    %378 = vector.extract_strided_slice %28 {offsets = [5, 0], sizes = [1, 32], strides = [1, 1]} : vector<8x32xf32> to vector<1x32xf32>
    %379 = arith.addf %378, %364 : vector<1x32xf32>
    %cst_142 = arith.constant 5.000000e-01 : f32
    %380 = vector.broadcast %cst_142 : f32 to vector<1x32xf32>
    %381 = arith.mulf %380, %379 : vector<1x32xf32>
    %382 = math.tanh %381 : vector<1x32xf32>
    %cst_143 = arith.constant 1.000000e+00 : f32
    %383 = vector.broadcast %cst_143 : f32 to vector<1x32xf32>
    %384 = arith.addf %382, %383 : vector<1x32xf32>
    %cst_144 = arith.constant 5.000000e-01 : f32
    %385 = vector.broadcast %cst_144 : f32 to vector<1x32xf32>
    %386 = arith.mulf %385, %384 : vector<1x32xf32>
    %387 = vector.extract_strided_slice %29 {offsets = [5, 0], sizes = [1, 32], strides = [1, 1]} : vector<8x32xf32> to vector<1x32xf32>
    %388 = arith.addf %365, %30 : vector<1x32xf32>
    %389 = arith.mulf %377, %388 : vector<1x32xf32>
    %390 = arith.addf %387, %389 : vector<1x32xf32>
    %391 = math.tanh %390 : vector<1x32xf32>
    %cst_145 = arith.constant 1.000000e+00 : f32
    %392 = vector.broadcast %cst_145 : f32 to vector<1x32xf32>
    %393 = arith.subf %392, %386 : vector<1x32xf32>
    %394 = arith.mulf %393, %391 : vector<1x32xf32>
    %395 = arith.mulf %386, %332 : vector<1x32xf32>
    %396 = arith.addf %394, %395 : vector<1x32xf32>
    %397 = vector.extract_strided_slice %34 {offsets = [2, 0], sizes = [1, 32], strides = [1, 1]} : vector<8x32xf32> to vector<1x32xf32>
    %398 = arith.addf %397, %366 : vector<1x32xf32>
    %cst_146 = arith.constant 5.000000e-01 : f32
    %399 = vector.broadcast %cst_146 : f32 to vector<1x32xf32>
    %400 = arith.mulf %399, %398 : vector<1x32xf32>
    %401 = math.tanh %400 : vector<1x32xf32>
    %cst_147 = arith.constant 1.000000e+00 : f32
    %402 = vector.broadcast %cst_147 : f32 to vector<1x32xf32>
    %403 = arith.addf %401, %402 : vector<1x32xf32>
    %cst_148 = arith.constant 5.000000e-01 : f32
    %404 = vector.broadcast %cst_148 : f32 to vector<1x32xf32>
    %405 = arith.mulf %404, %403 : vector<1x32xf32>
    %406 = vector.extract_strided_slice %38 {offsets = [2, 0], sizes = [1, 32], strides = [1, 1]} : vector<8x32xf32> to vector<1x32xf32>
    %407 = arith.addf %406, %367 : vector<1x32xf32>
    %cst_149 = arith.constant 5.000000e-01 : f32
    %408 = vector.broadcast %cst_149 : f32 to vector<1x32xf32>
    %409 = arith.mulf %408, %407 : vector<1x32xf32>
    %410 = math.tanh %409 : vector<1x32xf32>
    %cst_150 = arith.constant 1.000000e+00 : f32
    %411 = vector.broadcast %cst_150 : f32 to vector<1x32xf32>
    %412 = arith.addf %410, %411 : vector<1x32xf32>
    %cst_151 = arith.constant 5.000000e-01 : f32
    %413 = vector.broadcast %cst_151 : f32 to vector<1x32xf32>
    %414 = arith.mulf %413, %412 : vector<1x32xf32>
    %415 = vector.extract_strided_slice %39 {offsets = [2, 0], sizes = [1, 32], strides = [1, 1]} : vector<8x32xf32> to vector<1x32xf32>
    %416 = arith.addf %368, %40 : vector<1x32xf32>
    %417 = arith.mulf %405, %416 : vector<1x32xf32>
    %418 = arith.addf %415, %417 : vector<1x32xf32>
    %419 = math.tanh %418 : vector<1x32xf32>
    %cst_152 = arith.constant 1.000000e+00 : f32
    %420 = vector.broadcast %cst_152 : f32 to vector<1x32xf32>
    %421 = arith.subf %420, %414 : vector<1x32xf32>
    %422 = arith.mulf %421, %419 : vector<1x32xf32>
    %423 = arith.mulf %414, %360 : vector<1x32xf32>
    %424 = arith.addf %422, %423 : vector<1x32xf32>
    %c5_153 = arith.constant 5 : index
    %c0_154 = arith.constant 0 : index
    %425 = vector.load %arg22[%c5_153, %c0_154] : memref<8x32xf32, #tpu.memory_space<vmem>>, vector<1x32xf32>
    tpu.vector_store %arg22[%c5_153, %c0_154], %396 {strides = array<i32>} : memref<8x32xf32, #tpu.memory_space<vmem>>, vector<1x32xf32>,
    %c2_155 = arith.constant 2 : index
    %c0_156 = arith.constant 0 : index
    %426 = vector.load %arg23[%c2_155, %c0_156] : memref<8x32xf32, #tpu.memory_space<vmem>>, vector<1x32xf32>
    tpu.vector_store %arg23[%c2_155, %c0_156], %424 {strides = array<i32>} : memref<8x32xf32, #tpu.memory_space<vmem>>, vector<1x32xf32>,
    %cst_157 = arith.constant dense<0.000000e+00> : vector<1x32xf32>
    %427 = tpu.matmul %396, %15, %cst_157 {dimension_numbers = #tpu.dot_dimension_numbers<[1], [0], [0], [1], [0, 0, 1, 1], [], []>} : vector<1x32xf32>, vector<32x32xf32>, vector<1x32xf32> -> vector<1x32xf32>
    %cst_158 = arith.constant dense<0.000000e+00> : vector<1x32xf32>
    %428 = tpu.matmul %396, %16, %cst_158 {dimension_numbers = #tpu.dot_dimension_numbers<[1], [0], [0], [1], [0, 0, 1, 1], [], []>} : vector<1x32xf32>, vector<32x32xf32>, vector<1x32xf32> -> vector<1x32xf32>
    %cst_159 = arith.constant dense<0.000000e+00> : vector<1x32xf32>
    %429 = tpu.matmul %396, %17, %cst_159 {dimension_numbers = #tpu.dot_dimension_numbers<[1], [0], [0], [1], [0, 0, 1, 1], [], []>} : vector<1x32xf32>, vector<32x32xf32>, vector<1x32xf32> -> vector<1x32xf32>
    %cst_160 = arith.constant dense<0.000000e+00> : vector<1x32xf32>
    %430 = tpu.matmul %424, %18, %cst_160 {dimension_numbers = #tpu.dot_dimension_numbers<[1], [0], [0], [1], [0, 0, 1, 1], [], []>} : vector<1x32xf32>, vector<32x32xf32>, vector<1x32xf32> -> vector<1x32xf32>
    %cst_161 = arith.constant dense<0.000000e+00> : vector<1x32xf32>
    %431 = tpu.matmul %424, %19, %cst_161 {dimension_numbers = #tpu.dot_dimension_numbers<[1], [0], [0], [1], [0, 0, 1, 1], [], []>} : vector<1x32xf32>, vector<32x32xf32>, vector<1x32xf32> -> vector<1x32xf32>
    %cst_162 = arith.constant dense<0.000000e+00> : vector<1x32xf32>
    %432 = tpu.matmul %424, %20, %cst_162 {dimension_numbers = #tpu.dot_dimension_numbers<[1], [0], [0], [1], [0, 0, 1, 1], [], []>} : vector<1x32xf32>, vector<32x32xf32>, vector<1x32xf32> -> vector<1x32xf32>
    %433 = vector.extract_strided_slice %24 {offsets = [6, 0], sizes = [1, 32], strides = [1, 1]} : vector<8x32xf32> to vector<1x32xf32>
    %434 = arith.addf %433, %427 : vector<1x32xf32>
    %cst_163 = arith.constant 5.000000e-01 : f32
    %435 = vector.broadcast %cst_163 : f32 to vector<1x32xf32>
    %436 = arith.mulf %435, %434 : vector<1x32xf32>
    %437 = math.tanh %436 : vector<1x32xf32>
    %cst_164 = arith.constant 1.000000e+00 : f32
    %438 = vector.broadcast %cst_164 : f32 to vector<1x32xf32>
    %439 = arith.addf %437, %438 : vector<1x32xf32>
    %cst_165 = arith.constant 5.000000e-01 : f32
    %440 = vector.broadcast %cst_165 : f32 to vector<1x32xf32>
    %441 = arith.mulf %440, %439 : vector<1x32xf32>
    %442 = vector.extract_strided_slice %28 {offsets = [6, 0], sizes = [1, 32], strides = [1, 1]} : vector<8x32xf32> to vector<1x32xf32>
    %443 = arith.addf %442, %428 : vector<1x32xf32>
    %cst_166 = arith.constant 5.000000e-01 : f32
    %444 = vector.broadcast %cst_166 : f32 to vector<1x32xf32>
    %445 = arith.mulf %444, %443 : vector<1x32xf32>
    %446 = math.tanh %445 : vector<1x32xf32>
    %cst_167 = arith.constant 1.000000e+00 : f32
    %447 = vector.broadcast %cst_167 : f32 to vector<1x32xf32>
    %448 = arith.addf %446, %447 : vector<1x32xf32>
    %cst_168 = arith.constant 5.000000e-01 : f32
    %449 = vector.broadcast %cst_168 : f32 to vector<1x32xf32>
    %450 = arith.mulf %449, %448 : vector<1x32xf32>
    %451 = vector.extract_strided_slice %29 {offsets = [6, 0], sizes = [1, 32], strides = [1, 1]} : vector<8x32xf32> to vector<1x32xf32>
    %452 = arith.addf %429, %30 : vector<1x32xf32>
    %453 = arith.mulf %441, %452 : vector<1x32xf32>
    %454 = arith.addf %451, %453 : vector<1x32xf32>
    %455 = math.tanh %454 : vector<1x32xf32>
    %cst_169 = arith.constant 1.000000e+00 : f32
    %456 = vector.broadcast %cst_169 : f32 to vector<1x32xf32>
    %457 = arith.subf %456, %450 : vector<1x32xf32>
    %458 = arith.mulf %457, %455 : vector<1x32xf32>
    %459 = arith.mulf %450, %396 : vector<1x32xf32>
    %460 = arith.addf %458, %459 : vector<1x32xf32>
    %461 = vector.extract_strided_slice %34 {offsets = [1, 0], sizes = [1, 32], strides = [1, 1]} : vector<8x32xf32> to vector<1x32xf32>
    %462 = arith.addf %461, %430 : vector<1x32xf32>
    %cst_170 = arith.constant 5.000000e-01 : f32
    %463 = vector.broadcast %cst_170 : f32 to vector<1x32xf32>
    %464 = arith.mulf %463, %462 : vector<1x32xf32>
    %465 = math.tanh %464 : vector<1x32xf32>
    %cst_171 = arith.constant 1.000000e+00 : f32
    %466 = vector.broadcast %cst_171 : f32 to vector<1x32xf32>
    %467 = arith.addf %465, %466 : vector<1x32xf32>
    %cst_172 = arith.constant 5.000000e-01 : f32
    %468 = vector.broadcast %cst_172 : f32 to vector<1x32xf32>
    %469 = arith.mulf %468, %467 : vector<1x32xf32>
    %470 = vector.extract_strided_slice %38 {offsets = [1, 0], sizes = [1, 32], strides = [1, 1]} : vector<8x32xf32> to vector<1x32xf32>
    %471 = arith.addf %470, %431 : vector<1x32xf32>
    %cst_173 = arith.constant 5.000000e-01 : f32
    %472 = vector.broadcast %cst_173 : f32 to vector<1x32xf32>
    %473 = arith.mulf %472, %471 : vector<1x32xf32>
    %474 = math.tanh %473 : vector<1x32xf32>
    %cst_174 = arith.constant 1.000000e+00 : f32
    %475 = vector.broadcast %cst_174 : f32 to vector<1x32xf32>
    %476 = arith.addf %474, %475 : vector<1x32xf32>
    %cst_175 = arith.constant 5.000000e-01 : f32
    %477 = vector.broadcast %cst_175 : f32 to vector<1x32xf32>
    %478 = arith.mulf %477, %476 : vector<1x32xf32>
    %479 = vector.extract_strided_slice %39 {offsets = [1, 0], sizes = [1, 32], strides = [1, 1]} : vector<8x32xf32> to vector<1x32xf32>
    %480 = arith.addf %432, %40 : vector<1x32xf32>
    %481 = arith.mulf %469, %480 : vector<1x32xf32>
    %482 = arith.addf %479, %481 : vector<1x32xf32>
    %483 = math.tanh %482 : vector<1x32xf32>
    %cst_176 = arith.constant 1.000000e+00 : f32
    %484 = vector.broadcast %cst_176 : f32 to vector<1x32xf32>
    %485 = arith.subf %484, %478 : vector<1x32xf32>
    %486 = arith.mulf %485, %483 : vector<1x32xf32>
    %487 = arith.mulf %478, %424 : vector<1x32xf32>
    %488 = arith.addf %486, %487 : vector<1x32xf32>
    %c6_177 = arith.constant 6 : index
    %c0_178 = arith.constant 0 : index
    %489 = vector.load %arg22[%c6_177, %c0_178] : memref<8x32xf32, #tpu.memory_space<vmem>>, vector<1x32xf32>
    tpu.vector_store %arg22[%c6_177, %c0_178], %460 {strides = array<i32>} : memref<8x32xf32, #tpu.memory_space<vmem>>, vector<1x32xf32>,
    %c1_179 = arith.constant 1 : index
    %c0_180 = arith.constant 0 : index
    %490 = vector.load %arg23[%c1_179, %c0_180] : memref<8x32xf32, #tpu.memory_space<vmem>>, vector<1x32xf32>
    tpu.vector_store %arg23[%c1_179, %c0_180], %488 {strides = array<i32>} : memref<8x32xf32, #tpu.memory_space<vmem>>, vector<1x32xf32>,
    %cst_181 = arith.constant dense<0.000000e+00> : vector<1x32xf32>
    %491 = tpu.matmul %460, %15, %cst_181 {dimension_numbers = #tpu.dot_dimension_numbers<[1], [0], [0], [1], [0, 0, 1, 1], [], []>} : vector<1x32xf32>, vector<32x32xf32>, vector<1x32xf32> -> vector<1x32xf32>
    %cst_182 = arith.constant dense<0.000000e+00> : vector<1x32xf32>
    %492 = tpu.matmul %460, %16, %cst_182 {dimension_numbers = #tpu.dot_dimension_numbers<[1], [0], [0], [1], [0, 0, 1, 1], [], []>} : vector<1x32xf32>, vector<32x32xf32>, vector<1x32xf32> -> vector<1x32xf32>
    %cst_183 = arith.constant dense<0.000000e+00> : vector<1x32xf32>
    %493 = tpu.matmul %460, %17, %cst_183 {dimension_numbers = #tpu.dot_dimension_numbers<[1], [0], [0], [1], [0, 0, 1, 1], [], []>} : vector<1x32xf32>, vector<32x32xf32>, vector<1x32xf32> -> vector<1x32xf32>
    %cst_184 = arith.constant dense<0.000000e+00> : vector<1x32xf32>
    %494 = tpu.matmul %488, %18, %cst_184 {dimension_numbers = #tpu.dot_dimension_numbers<[1], [0], [0], [1], [0, 0, 1, 1], [], []>} : vector<1x32xf32>, vector<32x32xf32>, vector<1x32xf32> -> vector<1x32xf32>
    %cst_185 = arith.constant dense<0.000000e+00> : vector<1x32xf32>
    %495 = tpu.matmul %488, %19, %cst_185 {dimension_numbers = #tpu.dot_dimension_numbers<[1], [0], [0], [1], [0, 0, 1, 1], [], []>} : vector<1x32xf32>, vector<32x32xf32>, vector<1x32xf32> -> vector<1x32xf32>
    %cst_186 = arith.constant dense<0.000000e+00> : vector<1x32xf32>
    %496 = tpu.matmul %488, %20, %cst_186 {dimension_numbers = #tpu.dot_dimension_numbers<[1], [0], [0], [1], [0, 0, 1, 1], [], []>} : vector<1x32xf32>, vector<32x32xf32>, vector<1x32xf32> -> vector<1x32xf32>
    %497 = vector.extract_strided_slice %24 {offsets = [7, 0], sizes = [1, 32], strides = [1, 1]} : vector<8x32xf32> to vector<1x32xf32>
    %498 = arith.addf %497, %491 : vector<1x32xf32>
    %cst_187 = arith.constant 5.000000e-01 : f32
    %499 = vector.broadcast %cst_187 : f32 to vector<1x32xf32>
    %500 = arith.mulf %499, %498 : vector<1x32xf32>
    %501 = math.tanh %500 : vector<1x32xf32>
    %cst_188 = arith.constant 1.000000e+00 : f32
    %502 = vector.broadcast %cst_188 : f32 to vector<1x32xf32>
    %503 = arith.addf %501, %502 : vector<1x32xf32>
    %cst_189 = arith.constant 5.000000e-01 : f32
    %504 = vector.broadcast %cst_189 : f32 to vector<1x32xf32>
    %505 = arith.mulf %504, %503 : vector<1x32xf32>
    %506 = vector.extract_strided_slice %28 {offsets = [7, 0], sizes = [1, 32], strides = [1, 1]} : vector<8x32xf32> to vector<1x32xf32>
    %507 = arith.addf %506, %492 : vector<1x32xf32>
    %cst_190 = arith.constant 5.000000e-01 : f32
    %508 = vector.broadcast %cst_190 : f32 to vector<1x32xf32>
    %509 = arith.mulf %508, %507 : vector<1x32xf32>
    %510 = math.tanh %509 : vector<1x32xf32>
    %cst_191 = arith.constant 1.000000e+00 : f32
    %511 = vector.broadcast %cst_191 : f32 to vector<1x32xf32>
    %512 = arith.addf %510, %511 : vector<1x32xf32>
    %cst_192 = arith.constant 5.000000e-01 : f32
    %513 = vector.broadcast %cst_192 : f32 to vector<1x32xf32>
    %514 = arith.mulf %513, %512 : vector<1x32xf32>
    %515 = vector.extract_strided_slice %29 {offsets = [7, 0], sizes = [1, 32], strides = [1, 1]} : vector<8x32xf32> to vector<1x32xf32>
    %516 = arith.addf %493, %30 : vector<1x32xf32>
    %517 = arith.mulf %505, %516 : vector<1x32xf32>
    %518 = arith.addf %515, %517 : vector<1x32xf32>
    %519 = math.tanh %518 : vector<1x32xf32>
    %cst_193 = arith.constant 1.000000e+00 : f32
    %520 = vector.broadcast %cst_193 : f32 to vector<1x32xf32>
    %521 = arith.subf %520, %514 : vector<1x32xf32>
    %522 = arith.mulf %521, %519 : vector<1x32xf32>
    %523 = arith.mulf %514, %460 : vector<1x32xf32>
    %524 = arith.addf %522, %523 : vector<1x32xf32>
    %525 = vector.extract_strided_slice %34 {offsets = [0, 0], sizes = [1, 32], strides = [1, 1]} : vector<8x32xf32> to vector<1x32xf32>
    %526 = arith.addf %525, %494 : vector<1x32xf32>
    %cst_194 = arith.constant 5.000000e-01 : f32
    %527 = vector.broadcast %cst_194 : f32 to vector<1x32xf32>
    %528 = arith.mulf %527, %526 : vector<1x32xf32>
    %529 = math.tanh %528 : vector<1x32xf32>
    %cst_195 = arith.constant 1.000000e+00 : f32
    %530 = vector.broadcast %cst_195 : f32 to vector<1x32xf32>
    %531 = arith.addf %529, %530 : vector<1x32xf32>
    %cst_196 = arith.constant 5.000000e-01 : f32
    %532 = vector.broadcast %cst_196 : f32 to vector<1x32xf32>
    %533 = arith.mulf %532, %531 : vector<1x32xf32>
    %534 = vector.extract_strided_slice %38 {offsets = [0, 0], sizes = [1, 32], strides = [1, 1]} : vector<8x32xf32> to vector<1x32xf32>
    %535 = arith.addf %534, %495 : vector<1x32xf32>
    %cst_197 = arith.constant 5.000000e-01 : f32
    %536 = vector.broadcast %cst_197 : f32 to vector<1x32xf32>
    %537 = arith.mulf %536, %535 : vector<1x32xf32>
    %538 = math.tanh %537 : vector<1x32xf32>
    %cst_198 = arith.constant 1.000000e+00 : f32
    %539 = vector.broadcast %cst_198 : f32 to vector<1x32xf32>
    %540 = arith.addf %538, %539 : vector<1x32xf32>
    %cst_199 = arith.constant 5.000000e-01 : f32
    %541 = vector.broadcast %cst_199 : f32 to vector<1x32xf32>
    %542 = arith.mulf %541, %540 : vector<1x32xf32>
    %543 = vector.extract_strided_slice %39 {offsets = [0, 0], sizes = [1, 32], strides = [1, 1]} : vector<8x32xf32> to vector<1x32xf32>
    %544 = arith.addf %496, %40 : vector<1x32xf32>
    %545 = arith.mulf %533, %544 : vector<1x32xf32>
    %546 = arith.addf %543, %545 : vector<1x32xf32>
    %547 = math.tanh %546 : vector<1x32xf32>
    %cst_200 = arith.constant 1.000000e+00 : f32
    %548 = vector.broadcast %cst_200 : f32 to vector<1x32xf32>
    %549 = arith.subf %548, %542 : vector<1x32xf32>
    %550 = arith.mulf %549, %547 : vector<1x32xf32>
    %551 = arith.mulf %542, %488 : vector<1x32xf32>
    %552 = arith.addf %550, %551 : vector<1x32xf32>
    %c7_201 = arith.constant 7 : index
    %c0_202 = arith.constant 0 : index
    %553 = vector.load %arg22[%c7_201, %c0_202] : memref<8x32xf32, #tpu.memory_space<vmem>>, vector<1x32xf32>
    tpu.vector_store %arg22[%c7_201, %c0_202], %524 {strides = array<i32>} : memref<8x32xf32, #tpu.memory_space<vmem>>, vector<1x32xf32>,
    %c0_203 = arith.constant 0 : index
    %c0_204 = arith.constant 0 : index
    %554 = vector.load %arg23[%c0_203, %c0_204] : memref<8x32xf32, #tpu.memory_space<vmem>>, vector<1x32xf32>
    tpu.vector_store %arg23[%c0_203, %c0_204], %552 {strides = array<i32>} : memref<8x32xf32, #tpu.memory_space<vmem>>, vector<1x32xf32>,
    %c0_205 = arith.constant 0 : index
    %c0_206 = arith.constant 0 : index
    %555 = vector.load %arg22[%c0_205, %c0_206] : memref<8x32xf32, #tpu.memory_space<vmem>>, vector<8x32xf32>
    %c0_207 = arith.constant 0 : index
    %c0_208 = arith.constant 0 : index
    %556 = vector.load %arg23[%c0_207, %c0_208] : memref<8x32xf32, #tpu.memory_space<vmem>>, vector<8x32xf32>
    %c0_209 = arith.constant 0 : index
    %c0_210 = arith.constant 0 : index
    %557 = vector.load %arg9[%c0_209, %c0_210] : memref<64x96xf32, #tpu.memory_space<vmem>>, vector<64x96xf32>
    %c0_211 = arith.constant 0 : index
    %c0_212 = arith.constant 0 : index
    %558 = vector.load %arg13[%c0_211, %c0_212] : memref<64x96xf32, #tpu.memory_space<vmem>>, vector<64x96xf32>
    %559 = vector.extract_strided_slice %557 {offsets = [0, 0], sizes = [32, 96], strides = [1, 1]} : vector<64x96xf32> to vector<32x96xf32>
    %cst_213 = arith.constant dense<0.000000e+00> : vector<8x96xf32>
    %560 = tpu.matmul %555, %559, %cst_213 {dimension_numbers = #tpu.dot_dimension_numbers<[1], [0], [0], [1], [0, 0, 1, 1], [], []>} : vector<8x32xf32>, vector<32x96xf32>, vector<8x96xf32> -> vector<8x96xf32>
    %561 = vector.extract_strided_slice %557 {offsets = [32, 0], sizes = [32, 96], strides = [1, 1]} : vector<64x96xf32> to vector<32x96xf32>
    %cst_214 = arith.constant dense<0.000000e+00> : vector<8x96xf32>
    %562 = tpu.matmul %556, %561, %cst_214 {dimension_numbers = #tpu.dot_dimension_numbers<[1], [0], [0], [1], [0, 0, 1, 1], [], []>} : vector<8x32xf32>, vector<32x96xf32>, vector<8x96xf32> -> vector<8x96xf32>
    %563 = arith.addf %560, %562 : vector<8x96xf32>
    %c0_215 = arith.constant 0 : index
    %c0_216 = arith.constant 0 : index
    %564 = vector.load %arg11[%c0_215, %c0_216] : memref<1x96xf32, #tpu.memory_space<vmem>>, vector<1x96xf32>
    %565 = vector.broadcast %564 : vector<1x96xf32> to vector<8x96xf32>
    %566 = arith.addf %563, %565 : vector<8x96xf32>
    %567 = vector.extract_strided_slice %558 {offsets = [0, 0], sizes = [32, 96], strides = [1, 1]} : vector<64x96xf32> to vector<32x96xf32>
    %cst_217 = arith.constant dense<0.000000e+00> : vector<8x96xf32>
    %568 = tpu.matmul %555, %567, %cst_217 {dimension_numbers = #tpu.dot_dimension_numbers<[1], [0], [0], [1], [0, 0, 1, 1], [], []>} : vector<8x32xf32>, vector<32x96xf32>, vector<8x96xf32> -> vector<8x96xf32>
    %569 = vector.extract_strided_slice %558 {offsets = [32, 0], sizes = [32, 96], strides = [1, 1]} : vector<64x96xf32> to vector<32x96xf32>
    %cst_218 = arith.constant dense<0.000000e+00> : vector<8x96xf32>
    %570 = tpu.matmul %556, %569, %cst_218 {dimension_numbers = #tpu.dot_dimension_numbers<[1], [0], [0], [1], [0, 0, 1, 1], [], []>} : vector<8x32xf32>, vector<32x96xf32>, vector<8x96xf32> -> vector<8x96xf32>
    %571 = arith.addf %568, %570 : vector<8x96xf32>
    %c0_219 = arith.constant 0 : index
    %c0_220 = arith.constant 0 : index
    %572 = vector.load %arg15[%c0_219, %c0_220] : memref<1x96xf32, #tpu.memory_space<vmem>>, vector<1x96xf32>
    %573 = vector.broadcast %572 : vector<1x96xf32> to vector<8x96xf32>
    %574 = arith.addf %571, %573 : vector<8x96xf32>
    %c0_221 = arith.constant 0 : index
    %c0_222 = arith.constant 0 : index
    %575 = vector.load %arg10[%c0_221, %c0_222] : memref<32x96xf32, #tpu.memory_space<vmem>>, vector<32x96xf32>
    %c0_223 = arith.constant 0 : index
    %c0_224 = arith.constant 0 : index
    %576 = vector.load %arg12[%c0_223, %c0_224] : memref<1x96xf32, #tpu.memory_space<vmem>>, vector<1x96xf32>
    %c0_225 = arith.constant 0 : index
    %c0_226 = arith.constant 0 : index
    %577 = vector.load %arg14[%c0_225, %c0_226] : memref<32x96xf32, #tpu.memory_space<vmem>>, vector<32x96xf32>
    %c0_227 = arith.constant 0 : index
    %c0_228 = arith.constant 0 : index
    %578 = vector.load %arg16[%c0_227, %c0_228] : memref<1x96xf32, #tpu.memory_space<vmem>>, vector<1x96xf32>
    %579 = vector.extract_strided_slice %575 {offsets = [0, 0], sizes = [32, 32], strides = [1, 1]} : vector<32x96xf32> to vector<32x32xf32>
    %580 = vector.extract_strided_slice %575 {offsets = [0, 32], sizes = [32, 32], strides = [1, 1]} : vector<32x96xf32> to vector<32x32xf32>
    %581 = vector.extract_strided_slice %575 {offsets = [0, 64], sizes = [32, 32], strides = [1, 1]} : vector<32x96xf32> to vector<32x32xf32>
    %582 = vector.extract_strided_slice %577 {offsets = [0, 0], sizes = [32, 32], strides = [1, 1]} : vector<32x96xf32> to vector<32x32xf32>
    %583 = vector.extract_strided_slice %577 {offsets = [0, 32], sizes = [32, 32], strides = [1, 1]} : vector<32x96xf32> to vector<32x32xf32>
    %584 = vector.extract_strided_slice %577 {offsets = [0, 64], sizes = [32, 32], strides = [1, 1]} : vector<32x96xf32> to vector<32x32xf32>
    %585 = vector.extract_strided_slice %566 {offsets = [0, 0], sizes = [8, 32], strides = [1, 1]} : vector<8x96xf32> to vector<8x32xf32>
    %586 = vector.extract_strided_slice %576 {offsets = [0, 0], sizes = [1, 32], strides = [1, 1]} : vector<1x96xf32> to vector<1x32xf32>
    %587 = vector.broadcast %586 : vector<1x32xf32> to vector<8x32xf32>
    %588 = arith.addf %585, %587 : vector<8x32xf32>
    %589 = vector.extract_strided_slice %566 {offsets = [0, 32], sizes = [8, 32], strides = [1, 1]} : vector<8x96xf32> to vector<8x32xf32>
    %590 = vector.extract_strided_slice %576 {offsets = [0, 32], sizes = [1, 32], strides = [1, 1]} : vector<1x96xf32> to vector<1x32xf32>
    %591 = vector.broadcast %590 : vector<1x32xf32> to vector<8x32xf32>
    %592 = arith.addf %589, %591 : vector<8x32xf32>
    %593 = vector.extract_strided_slice %566 {offsets = [0, 64], sizes = [8, 32], strides = [1, 1]} : vector<8x96xf32> to vector<8x32xf32>
    %594 = vector.extract_strided_slice %576 {offsets = [0, 64], sizes = [1, 32], strides = [1, 1]} : vector<1x96xf32> to vector<1x32xf32>
    %595 = vector.extract_strided_slice %574 {offsets = [0, 0], sizes = [8, 32], strides = [1, 1]} : vector<8x96xf32> to vector<8x32xf32>
    %596 = vector.extract_strided_slice %578 {offsets = [0, 0], sizes = [1, 32], strides = [1, 1]} : vector<1x96xf32> to vector<1x32xf32>
    %597 = vector.broadcast %596 : vector<1x32xf32> to vector<8x32xf32>
    %598 = arith.addf %595, %597 : vector<8x32xf32>
    %599 = vector.extract_strided_slice %574 {offsets = [0, 32], sizes = [8, 32], strides = [1, 1]} : vector<8x96xf32> to vector<8x32xf32>
    %600 = vector.extract_strided_slice %578 {offsets = [0, 32], sizes = [1, 32], strides = [1, 1]} : vector<1x96xf32> to vector<1x32xf32>
    %601 = vector.broadcast %600 : vector<1x32xf32> to vector<8x32xf32>
    %602 = arith.addf %599, %601 : vector<8x32xf32>
    %603 = vector.extract_strided_slice %574 {offsets = [0, 64], sizes = [8, 32], strides = [1, 1]} : vector<8x96xf32> to vector<8x32xf32>
    %604 = vector.extract_strided_slice %578 {offsets = [0, 64], sizes = [1, 32], strides = [1, 1]} : vector<1x96xf32> to vector<1x32xf32>
    %cst_229 = arith.constant 0.000000e+00 : f32
    %605 = vector.broadcast %cst_229 : f32 to vector<1x32xf32>
    %cst_230 = arith.constant 0.000000e+00 : f32
    %606 = vector.broadcast %cst_230 : f32 to vector<1x32xf32>
    %cst_231 = arith.constant dense<0.000000e+00> : vector<1x32xf32>
    %607 = tpu.matmul %605, %579, %cst_231 {dimension_numbers = #tpu.dot_dimension_numbers<[1], [0], [0], [1], [0, 0, 1, 1], [], []>} : vector<1x32xf32>, vector<32x32xf32>, vector<1x32xf32> -> vector<1x32xf32>
    %cst_232 = arith.constant dense<0.000000e+00> : vector<1x32xf32>
    %608 = tpu.matmul %605, %580, %cst_232 {dimension_numbers = #tpu.dot_dimension_numbers<[1], [0], [0], [1], [0, 0, 1, 1], [], []>} : vector<1x32xf32>, vector<32x32xf32>, vector<1x32xf32> -> vector<1x32xf32>
    %cst_233 = arith.constant dense<0.000000e+00> : vector<1x32xf32>
    %609 = tpu.matmul %605, %581, %cst_233 {dimension_numbers = #tpu.dot_dimension_numbers<[1], [0], [0], [1], [0, 0, 1, 1], [], []>} : vector<1x32xf32>, vector<32x32xf32>, vector<1x32xf32> -> vector<1x32xf32>
    %cst_234 = arith.constant dense<0.000000e+00> : vector<1x32xf32>
    %610 = tpu.matmul %606, %582, %cst_234 {dimension_numbers = #tpu.dot_dimension_numbers<[1], [0], [0], [1], [0, 0, 1, 1], [], []>} : vector<1x32xf32>, vector<32x32xf32>, vector<1x32xf32> -> vector<1x32xf32>
    %cst_235 = arith.constant dense<0.000000e+00> : vector<1x32xf32>
    %611 = tpu.matmul %606, %583, %cst_235 {dimension_numbers = #tpu.dot_dimension_numbers<[1], [0], [0], [1], [0, 0, 1, 1], [], []>} : vector<1x32xf32>, vector<32x32xf32>, vector<1x32xf32> -> vector<1x32xf32>
    %cst_236 = arith.constant dense<0.000000e+00> : vector<1x32xf32>
    %612 = tpu.matmul %606, %584, %cst_236 {dimension_numbers = #tpu.dot_dimension_numbers<[1], [0], [0], [1], [0, 0, 1, 1], [], []>} : vector<1x32xf32>, vector<32x32xf32>, vector<1x32xf32> -> vector<1x32xf32>
    %613 = vector.extract_strided_slice %588 {offsets = [0, 0], sizes = [1, 32], strides = [1, 1]} : vector<8x32xf32> to vector<1x32xf32>
    %614 = arith.addf %613, %607 : vector<1x32xf32>
    %cst_237 = arith.constant 5.000000e-01 : f32
    %615 = vector.broadcast %cst_237 : f32 to vector<1x32xf32>
    %616 = arith.mulf %615, %614 : vector<1x32xf32>
    %617 = math.tanh %616 : vector<1x32xf32>
    %cst_238 = arith.constant 1.000000e+00 : f32
    %618 = vector.broadcast %cst_238 : f32 to vector<1x32xf32>
    %619 = arith.addf %617, %618 : vector<1x32xf32>
    %cst_239 = arith.constant 5.000000e-01 : f32
    %620 = vector.broadcast %cst_239 : f32 to vector<1x32xf32>
    %621 = arith.mulf %620, %619 : vector<1x32xf32>
    %622 = vector.extract_strided_slice %592 {offsets = [0, 0], sizes = [1, 32], strides = [1, 1]} : vector<8x32xf32> to vector<1x32xf32>
    %623 = arith.addf %622, %608 : vector<1x32xf32>
    %cst_240 = arith.constant 5.000000e-01 : f32
    %624 = vector.broadcast %cst_240 : f32 to vector<1x32xf32>
    %625 = arith.mulf %624, %623 : vector<1x32xf32>
    %626 = math.tanh %625 : vector<1x32xf32>
    %cst_241 = arith.constant 1.000000e+00 : f32
    %627 = vector.broadcast %cst_241 : f32 to vector<1x32xf32>
    %628 = arith.addf %626, %627 : vector<1x32xf32>
    %cst_242 = arith.constant 5.000000e-01 : f32
    %629 = vector.broadcast %cst_242 : f32 to vector<1x32xf32>
    %630 = arith.mulf %629, %628 : vector<1x32xf32>
    %631 = vector.extract_strided_slice %593 {offsets = [0, 0], sizes = [1, 32], strides = [1, 1]} : vector<8x32xf32> to vector<1x32xf32>
    %632 = arith.addf %609, %594 : vector<1x32xf32>
    %633 = arith.mulf %621, %632 : vector<1x32xf32>
    %634 = arith.addf %631, %633 : vector<1x32xf32>
    %635 = math.tanh %634 : vector<1x32xf32>
    %cst_243 = arith.constant 1.000000e+00 : f32
    %636 = vector.broadcast %cst_243 : f32 to vector<1x32xf32>
    %637 = arith.subf %636, %630 : vector<1x32xf32>
    %638 = arith.mulf %637, %635 : vector<1x32xf32>
    %639 = arith.mulf %630, %605 : vector<1x32xf32>
    %640 = arith.addf %638, %639 : vector<1x32xf32>
    %641 = vector.extract_strided_slice %598 {offsets = [7, 0], sizes = [1, 32], strides = [1, 1]} : vector<8x32xf32> to vector<1x32xf32>
    %642 = arith.addf %641, %610 : vector<1x32xf32>
    %cst_244 = arith.constant 5.000000e-01 : f32
    %643 = vector.broadcast %cst_244 : f32 to vector<1x32xf32>
    %644 = arith.mulf %643, %642 : vector<1x32xf32>
    %645 = math.tanh %644 : vector<1x32xf32>
    %cst_245 = arith.constant 1.000000e+00 : f32
    %646 = vector.broadcast %cst_245 : f32 to vector<1x32xf32>
    %647 = arith.addf %645, %646 : vector<1x32xf32>
    %cst_246 = arith.constant 5.000000e-01 : f32
    %648 = vector.broadcast %cst_246 : f32 to vector<1x32xf32>
    %649 = arith.mulf %648, %647 : vector<1x32xf32>
    %650 = vector.extract_strided_slice %602 {offsets = [7, 0], sizes = [1, 32], strides = [1, 1]} : vector<8x32xf32> to vector<1x32xf32>
    %651 = arith.addf %650, %611 : vector<1x32xf32>
    %cst_247 = arith.constant 5.000000e-01 : f32
    %652 = vector.broadcast %cst_247 : f32 to vector<1x32xf32>
    %653 = arith.mulf %652, %651 : vector<1x32xf32>
    %654 = math.tanh %653 : vector<1x32xf32>
    %cst_248 = arith.constant 1.000000e+00 : f32
    %655 = vector.broadcast %cst_248 : f32 to vector<1x32xf32>
    %656 = arith.addf %654, %655 : vector<1x32xf32>
    %cst_249 = arith.constant 5.000000e-01 : f32
    %657 = vector.broadcast %cst_249 : f32 to vector<1x32xf32>
    %658 = arith.mulf %657, %656 : vector<1x32xf32>
    %659 = vector.extract_strided_slice %603 {offsets = [7, 0], sizes = [1, 32], strides = [1, 1]} : vector<8x32xf32> to vector<1x32xf32>
    %660 = arith.addf %612, %604 : vector<1x32xf32>
    %661 = arith.mulf %649, %660 : vector<1x32xf32>
    %662 = arith.addf %659, %661 : vector<1x32xf32>
    %663 = math.tanh %662 : vector<1x32xf32>
    %cst_250 = arith.constant 1.000000e+00 : f32
    %664 = vector.broadcast %cst_250 : f32 to vector<1x32xf32>
    %665 = arith.subf %664, %658 : vector<1x32xf32>
    %666 = arith.mulf %665, %663 : vector<1x32xf32>
    %667 = arith.mulf %658, %606 : vector<1x32xf32>
    %668 = arith.addf %666, %667 : vector<1x32xf32>
    %c0_251 = arith.constant 0 : index
    %c0_252 = arith.constant 0 : index
    %669 = vector.load %arg24[%c0_251, %c0_252] : memref<8x32xf32, #tpu.memory_space<vmem>>, vector<1x32xf32>
    tpu.vector_store %arg24[%c0_251, %c0_252], %640 {strides = array<i32>} : memref<8x32xf32, #tpu.memory_space<vmem>>, vector<1x32xf32>,
    %c7_253 = arith.constant 7 : index
    %c0_254 = arith.constant 0 : index
    %670 = vector.load %arg25[%c7_253, %c0_254] : memref<8x32xf32, #tpu.memory_space<vmem>>, vector<1x32xf32>
    tpu.vector_store %arg25[%c7_253, %c0_254], %668 {strides = array<i32>} : memref<8x32xf32, #tpu.memory_space<vmem>>, vector<1x32xf32>,
    %cst_255 = arith.constant dense<0.000000e+00> : vector<1x32xf32>
    %671 = tpu.matmul %640, %579, %cst_255 {dimension_numbers = #tpu.dot_dimension_numbers<[1], [0], [0], [1], [0, 0, 1, 1], [], []>} : vector<1x32xf32>, vector<32x32xf32>, vector<1x32xf32> -> vector<1x32xf32>
    %cst_256 = arith.constant dense<0.000000e+00> : vector<1x32xf32>
    %672 = tpu.matmul %640, %580, %cst_256 {dimension_numbers = #tpu.dot_dimension_numbers<[1], [0], [0], [1], [0, 0, 1, 1], [], []>} : vector<1x32xf32>, vector<32x32xf32>, vector<1x32xf32> -> vector<1x32xf32>
    %cst_257 = arith.constant dense<0.000000e+00> : vector<1x32xf32>
    %673 = tpu.matmul %640, %581, %cst_257 {dimension_numbers = #tpu.dot_dimension_numbers<[1], [0], [0], [1], [0, 0, 1, 1], [], []>} : vector<1x32xf32>, vector<32x32xf32>, vector<1x32xf32> -> vector<1x32xf32>
    %cst_258 = arith.constant dense<0.000000e+00> : vector<1x32xf32>
    %674 = tpu.matmul %668, %582, %cst_258 {dimension_numbers = #tpu.dot_dimension_numbers<[1], [0], [0], [1], [0, 0, 1, 1], [], []>} : vector<1x32xf32>, vector<32x32xf32>, vector<1x32xf32> -> vector<1x32xf32>
    %cst_259 = arith.constant dense<0.000000e+00> : vector<1x32xf32>
    %675 = tpu.matmul %668, %583, %cst_259 {dimension_numbers = #tpu.dot_dimension_numbers<[1], [0], [0], [1], [0, 0, 1, 1], [], []>} : vector<1x32xf32>, vector<32x32xf32>, vector<1x32xf32> -> vector<1x32xf32>
    %cst_260 = arith.constant dense<0.000000e+00> : vector<1x32xf32>
    %676 = tpu.matmul %668, %584, %cst_260 {dimension_numbers = #tpu.dot_dimension_numbers<[1], [0], [0], [1], [0, 0, 1, 1], [], []>} : vector<1x32xf32>, vector<32x32xf32>, vector<1x32xf32> -> vector<1x32xf32>
    %677 = vector.extract_strided_slice %588 {offsets = [1, 0], sizes = [1, 32], strides = [1, 1]} : vector<8x32xf32> to vector<1x32xf32>
    %678 = arith.addf %677, %671 : vector<1x32xf32>
    %cst_261 = arith.constant 5.000000e-01 : f32
    %679 = vector.broadcast %cst_261 : f32 to vector<1x32xf32>
    %680 = arith.mulf %679, %678 : vector<1x32xf32>
    %681 = math.tanh %680 : vector<1x32xf32>
    %cst_262 = arith.constant 1.000000e+00 : f32
    %682 = vector.broadcast %cst_262 : f32 to vector<1x32xf32>
    %683 = arith.addf %681, %682 : vector<1x32xf32>
    %cst_263 = arith.constant 5.000000e-01 : f32
    %684 = vector.broadcast %cst_263 : f32 to vector<1x32xf32>
    %685 = arith.mulf %684, %683 : vector<1x32xf32>
    %686 = vector.extract_strided_slice %592 {offsets = [1, 0], sizes = [1, 32], strides = [1, 1]} : vector<8x32xf32> to vector<1x32xf32>
    %687 = arith.addf %686, %672 : vector<1x32xf32>
    %cst_264 = arith.constant 5.000000e-01 : f32
    %688 = vector.broadcast %cst_264 : f32 to vector<1x32xf32>
    %689 = arith.mulf %688, %687 : vector<1x32xf32>
    %690 = math.tanh %689 : vector<1x32xf32>
    %cst_265 = arith.constant 1.000000e+00 : f32
    %691 = vector.broadcast %cst_265 : f32 to vector<1x32xf32>
    %692 = arith.addf %690, %691 : vector<1x32xf32>
    %cst_266 = arith.constant 5.000000e-01 : f32
    %693 = vector.broadcast %cst_266 : f32 to vector<1x32xf32>
    %694 = arith.mulf %693, %692 : vector<1x32xf32>
    %695 = vector.extract_strided_slice %593 {offsets = [1, 0], sizes = [1, 32], strides = [1, 1]} : vector<8x32xf32> to vector<1x32xf32>
    %696 = arith.addf %673, %594 : vector<1x32xf32>
    %697 = arith.mulf %685, %696 : vector<1x32xf32>
    %698 = arith.addf %695, %697 : vector<1x32xf32>
    %699 = math.tanh %698 : vector<1x32xf32>
    %cst_267 = arith.constant 1.000000e+00 : f32
    %700 = vector.broadcast %cst_267 : f32 to vector<1x32xf32>
    %701 = arith.subf %700, %694 : vector<1x32xf32>
    %702 = arith.mulf %701, %699 : vector<1x32xf32>
    %703 = arith.mulf %694, %640 : vector<1x32xf32>
    %704 = arith.addf %702, %703 : vector<1x32xf32>
    %705 = vector.extract_strided_slice %598 {offsets = [6, 0], sizes = [1, 32], strides = [1, 1]} : vector<8x32xf32> to vector<1x32xf32>
    %706 = arith.addf %705, %674 : vector<1x32xf32>
    %cst_268 = arith.constant 5.000000e-01 : f32
    %707 = vector.broadcast %cst_268 : f32 to vector<1x32xf32>
    %708 = arith.mulf %707, %706 : vector<1x32xf32>
    %709 = math.tanh %708 : vector<1x32xf32>
    %cst_269 = arith.constant 1.000000e+00 : f32
    %710 = vector.broadcast %cst_269 : f32 to vector<1x32xf32>
    %711 = arith.addf %709, %710 : vector<1x32xf32>
    %cst_270 = arith.constant 5.000000e-01 : f32
    %712 = vector.broadcast %cst_270 : f32 to vector<1x32xf32>
    %713 = arith.mulf %712, %711 : vector<1x32xf32>
    %714 = vector.extract_strided_slice %602 {offsets = [6, 0], sizes = [1, 32], strides = [1, 1]} : vector<8x32xf32> to vector<1x32xf32>
    %715 = arith.addf %714, %675 : vector<1x32xf32>
    %cst_271 = arith.constant 5.000000e-01 : f32
    %716 = vector.broadcast %cst_271 : f32 to vector<1x32xf32>
    %717 = arith.mulf %716, %715 : vector<1x32xf32>
    %718 = math.tanh %717 : vector<1x32xf32>
    %cst_272 = arith.constant 1.000000e+00 : f32
    %719 = vector.broadcast %cst_272 : f32 to vector<1x32xf32>
    %720 = arith.addf %718, %719 : vector<1x32xf32>
    %cst_273 = arith.constant 5.000000e-01 : f32
    %721 = vector.broadcast %cst_273 : f32 to vector<1x32xf32>
    %722 = arith.mulf %721, %720 : vector<1x32xf32>
    %723 = vector.extract_strided_slice %603 {offsets = [6, 0], sizes = [1, 32], strides = [1, 1]} : vector<8x32xf32> to vector<1x32xf32>
    %724 = arith.addf %676, %604 : vector<1x32xf32>
    %725 = arith.mulf %713, %724 : vector<1x32xf32>
    %726 = arith.addf %723, %725 : vector<1x32xf32>
    %727 = math.tanh %726 : vector<1x32xf32>
    %cst_274 = arith.constant 1.000000e+00 : f32
    %728 = vector.broadcast %cst_274 : f32 to vector<1x32xf32>
    %729 = arith.subf %728, %722 : vector<1x32xf32>
    %730 = arith.mulf %729, %727 : vector<1x32xf32>
    %731 = arith.mulf %722, %668 : vector<1x32xf32>
    %732 = arith.addf %730, %731 : vector<1x32xf32>
    %c1_275 = arith.constant 1 : index
    %c0_276 = arith.constant 0 : index
    %733 = vector.load %arg24[%c1_275, %c0_276] : memref<8x32xf32, #tpu.memory_space<vmem>>, vector<1x32xf32>
    tpu.vector_store %arg24[%c1_275, %c0_276], %704 {strides = array<i32>} : memref<8x32xf32, #tpu.memory_space<vmem>>, vector<1x32xf32>,
    %c6_277 = arith.constant 6 : index
    %c0_278 = arith.constant 0 : index
    %734 = vector.load %arg25[%c6_277, %c0_278] : memref<8x32xf32, #tpu.memory_space<vmem>>, vector<1x32xf32>
    tpu.vector_store %arg25[%c6_277, %c0_278], %732 {strides = array<i32>} : memref<8x32xf32, #tpu.memory_space<vmem>>, vector<1x32xf32>,
    %cst_279 = arith.constant dense<0.000000e+00> : vector<1x32xf32>
    %735 = tpu.matmul %704, %579, %cst_279 {dimension_numbers = #tpu.dot_dimension_numbers<[1], [0], [0], [1], [0, 0, 1, 1], [], []>} : vector<1x32xf32>, vector<32x32xf32>, vector<1x32xf32> -> vector<1x32xf32>
    %cst_280 = arith.constant dense<0.000000e+00> : vector<1x32xf32>
    %736 = tpu.matmul %704, %580, %cst_280 {dimension_numbers = #tpu.dot_dimension_numbers<[1], [0], [0], [1], [0, 0, 1, 1], [], []>} : vector<1x32xf32>, vector<32x32xf32>, vector<1x32xf32> -> vector<1x32xf32>
    %cst_281 = arith.constant dense<0.000000e+00> : vector<1x32xf32>
    %737 = tpu.matmul %704, %581, %cst_281 {dimension_numbers = #tpu.dot_dimension_numbers<[1], [0], [0], [1], [0, 0, 1, 1], [], []>} : vector<1x32xf32>, vector<32x32xf32>, vector<1x32xf32> -> vector<1x32xf32>
    %cst_282 = arith.constant dense<0.000000e+00> : vector<1x32xf32>
    %738 = tpu.matmul %732, %582, %cst_282 {dimension_numbers = #tpu.dot_dimension_numbers<[1], [0], [0], [1], [0, 0, 1, 1], [], []>} : vector<1x32xf32>, vector<32x32xf32>, vector<1x32xf32> -> vector<1x32xf32>
    %cst_283 = arith.constant dense<0.000000e+00> : vector<1x32xf32>
    %739 = tpu.matmul %732, %583, %cst_283 {dimension_numbers = #tpu.dot_dimension_numbers<[1], [0], [0], [1], [0, 0, 1, 1], [], []>} : vector<1x32xf32>, vector<32x32xf32>, vector<1x32xf32> -> vector<1x32xf32>
    %cst_284 = arith.constant dense<0.000000e+00> : vector<1x32xf32>
    %740 = tpu.matmul %732, %584, %cst_284 {dimension_numbers = #tpu.dot_dimension_numbers<[1], [0], [0], [1], [0, 0, 1, 1], [], []>} : vector<1x32xf32>, vector<32x32xf32>, vector<1x32xf32> -> vector<1x32xf32>
    %741 = vector.extract_strided_slice %588 {offsets = [2, 0], sizes = [1, 32], strides = [1, 1]} : vector<8x32xf32> to vector<1x32xf32>
    %742 = arith.addf %741, %735 : vector<1x32xf32>
    %cst_285 = arith.constant 5.000000e-01 : f32
    %743 = vector.broadcast %cst_285 : f32 to vector<1x32xf32>
    %744 = arith.mulf %743, %742 : vector<1x32xf32>
    %745 = math.tanh %744 : vector<1x32xf32>
    %cst_286 = arith.constant 1.000000e+00 : f32
    %746 = vector.broadcast %cst_286 : f32 to vector<1x32xf32>
    %747 = arith.addf %745, %746 : vector<1x32xf32>
    %cst_287 = arith.constant 5.000000e-01 : f32
    %748 = vector.broadcast %cst_287 : f32 to vector<1x32xf32>
    %749 = arith.mulf %748, %747 : vector<1x32xf32>
    %750 = vector.extract_strided_slice %592 {offsets = [2, 0], sizes = [1, 32], strides = [1, 1]} : vector<8x32xf32> to vector<1x32xf32>
    %751 = arith.addf %750, %736 : vector<1x32xf32>
    %cst_288 = arith.constant 5.000000e-01 : f32
    %752 = vector.broadcast %cst_288 : f32 to vector<1x32xf32>
    %753 = arith.mulf %752, %751 : vector<1x32xf32>
    %754 = math.tanh %753 : vector<1x32xf32>
    %cst_289 = arith.constant 1.000000e+00 : f32
    %755 = vector.broadcast %cst_289 : f32 to vector<1x32xf32>
    %756 = arith.addf %754, %755 : vector<1x32xf32>
    %cst_290 = arith.constant 5.000000e-01 : f32
    %757 = vector.broadcast %cst_290 : f32 to vector<1x32xf32>
    %758 = arith.mulf %757, %756 : vector<1x32xf32>
    %759 = vector.extract_strided_slice %593 {offsets = [2, 0], sizes = [1, 32], strides = [1, 1]} : vector<8x32xf32> to vector<1x32xf32>
    %760 = arith.addf %737, %594 : vector<1x32xf32>
    %761 = arith.mulf %749, %760 : vector<1x32xf32>
    %762 = arith.addf %759, %761 : vector<1x32xf32>
    %763 = math.tanh %762 : vector<1x32xf32>
    %cst_291 = arith.constant 1.000000e+00 : f32
    %764 = vector.broadcast %cst_291 : f32 to vector<1x32xf32>
    %765 = arith.subf %764, %758 : vector<1x32xf32>
    %766 = arith.mulf %765, %763 : vector<1x32xf32>
    %767 = arith.mulf %758, %704 : vector<1x32xf32>
    %768 = arith.addf %766, %767 : vector<1x32xf32>
    %769 = vector.extract_strided_slice %598 {offsets = [5, 0], sizes = [1, 32], strides = [1, 1]} : vector<8x32xf32> to vector<1x32xf32>
    %770 = arith.addf %769, %738 : vector<1x32xf32>
    %cst_292 = arith.constant 5.000000e-01 : f32
    %771 = vector.broadcast %cst_292 : f32 to vector<1x32xf32>
    %772 = arith.mulf %771, %770 : vector<1x32xf32>
    %773 = math.tanh %772 : vector<1x32xf32>
    %cst_293 = arith.constant 1.000000e+00 : f32
    %774 = vector.broadcast %cst_293 : f32 to vector<1x32xf32>
    %775 = arith.addf %773, %774 : vector<1x32xf32>
    %cst_294 = arith.constant 5.000000e-01 : f32
    %776 = vector.broadcast %cst_294 : f32 to vector<1x32xf32>
    %777 = arith.mulf %776, %775 : vector<1x32xf32>
    %778 = vector.extract_strided_slice %602 {offsets = [5, 0], sizes = [1, 32], strides = [1, 1]} : vector<8x32xf32> to vector<1x32xf32>
    %779 = arith.addf %778, %739 : vector<1x32xf32>
    %cst_295 = arith.constant 5.000000e-01 : f32
    %780 = vector.broadcast %cst_295 : f32 to vector<1x32xf32>
    %781 = arith.mulf %780, %779 : vector<1x32xf32>
    %782 = math.tanh %781 : vector<1x32xf32>
    %cst_296 = arith.constant 1.000000e+00 : f32
    %783 = vector.broadcast %cst_296 : f32 to vector<1x32xf32>
    %784 = arith.addf %782, %783 : vector<1x32xf32>
    %cst_297 = arith.constant 5.000000e-01 : f32
    %785 = vector.broadcast %cst_297 : f32 to vector<1x32xf32>
    %786 = arith.mulf %785, %784 : vector<1x32xf32>
    %787 = vector.extract_strided_slice %603 {offsets = [5, 0], sizes = [1, 32], strides = [1, 1]} : vector<8x32xf32> to vector<1x32xf32>
    %788 = arith.addf %740, %604 : vector<1x32xf32>
    %789 = arith.mulf %777, %788 : vector<1x32xf32>
    %790 = arith.addf %787, %789 : vector<1x32xf32>
    %791 = math.tanh %790 : vector<1x32xf32>
    %cst_298 = arith.constant 1.000000e+00 : f32
    %792 = vector.broadcast %cst_298 : f32 to vector<1x32xf32>
    %793 = arith.subf %792, %786 : vector<1x32xf32>
    %794 = arith.mulf %793, %791 : vector<1x32xf32>
    %795 = arith.mulf %786, %732 : vector<1x32xf32>
    %796 = arith.addf %794, %795 : vector<1x32xf32>
    %c2_299 = arith.constant 2 : index
    %c0_300 = arith.constant 0 : index
    %797 = vector.load %arg24[%c2_299, %c0_300] : memref<8x32xf32, #tpu.memory_space<vmem>>, vector<1x32xf32>
    tpu.vector_store %arg24[%c2_299, %c0_300], %768 {strides = array<i32>} : memref<8x32xf32, #tpu.memory_space<vmem>>, vector<1x32xf32>,
    %c5_301 = arith.constant 5 : index
    %c0_302 = arith.constant 0 : index
    %798 = vector.load %arg25[%c5_301, %c0_302] : memref<8x32xf32, #tpu.memory_space<vmem>>, vector<1x32xf32>
    tpu.vector_store %arg25[%c5_301, %c0_302], %796 {strides = array<i32>} : memref<8x32xf32, #tpu.memory_space<vmem>>, vector<1x32xf32>,
    %cst_303 = arith.constant dense<0.000000e+00> : vector<1x32xf32>
    %799 = tpu.matmul %768, %579, %cst_303 {dimension_numbers = #tpu.dot_dimension_numbers<[1], [0], [0], [1], [0, 0, 1, 1], [], []>} : vector<1x32xf32>, vector<32x32xf32>, vector<1x32xf32> -> vector<1x32xf32>
    %cst_304 = arith.constant dense<0.000000e+00> : vector<1x32xf32>
    %800 = tpu.matmul %768, %580, %cst_304 {dimension_numbers = #tpu.dot_dimension_numbers<[1], [0], [0], [1], [0, 0, 1, 1], [], []>} : vector<1x32xf32>, vector<32x32xf32>, vector<1x32xf32> -> vector<1x32xf32>
    %cst_305 = arith.constant dense<0.000000e+00> : vector<1x32xf32>
    %801 = tpu.matmul %768, %581, %cst_305 {dimension_numbers = #tpu.dot_dimension_numbers<[1], [0], [0], [1], [0, 0, 1, 1], [], []>} : vector<1x32xf32>, vector<32x32xf32>, vector<1x32xf32> -> vector<1x32xf32>
    %cst_306 = arith.constant dense<0.000000e+00> : vector<1x32xf32>
    %802 = tpu.matmul %796, %582, %cst_306 {dimension_numbers = #tpu.dot_dimension_numbers<[1], [0], [0], [1], [0, 0, 1, 1], [], []>} : vector<1x32xf32>, vector<32x32xf32>, vector<1x32xf32> -> vector<1x32xf32>
    %cst_307 = arith.constant dense<0.000000e+00> : vector<1x32xf32>
    %803 = tpu.matmul %796, %583, %cst_307 {dimension_numbers = #tpu.dot_dimension_numbers<[1], [0], [0], [1], [0, 0, 1, 1], [], []>} : vector<1x32xf32>, vector<32x32xf32>, vector<1x32xf32> -> vector<1x32xf32>
    %cst_308 = arith.constant dense<0.000000e+00> : vector<1x32xf32>
    %804 = tpu.matmul %796, %584, %cst_308 {dimension_numbers = #tpu.dot_dimension_numbers<[1], [0], [0], [1], [0, 0, 1, 1], [], []>} : vector<1x32xf32>, vector<32x32xf32>, vector<1x32xf32> -> vector<1x32xf32>
    %805 = vector.extract_strided_slice %588 {offsets = [3, 0], sizes = [1, 32], strides = [1, 1]} : vector<8x32xf32> to vector<1x32xf32>
    %806 = arith.addf %805, %799 : vector<1x32xf32>
    %cst_309 = arith.constant 5.000000e-01 : f32
    %807 = vector.broadcast %cst_309 : f32 to vector<1x32xf32>
    %808 = arith.mulf %807, %806 : vector<1x32xf32>
    %809 = math.tanh %808 : vector<1x32xf32>
    %cst_310 = arith.constant 1.000000e+00 : f32
    %810 = vector.broadcast %cst_310 : f32 to vector<1x32xf32>
    %811 = arith.addf %809, %810 : vector<1x32xf32>
    %cst_311 = arith.constant 5.000000e-01 : f32
    %812 = vector.broadcast %cst_311 : f32 to vector<1x32xf32>
    %813 = arith.mulf %812, %811 : vector<1x32xf32>
    %814 = vector.extract_strided_slice %592 {offsets = [3, 0], sizes = [1, 32], strides = [1, 1]} : vector<8x32xf32> to vector<1x32xf32>
    %815 = arith.addf %814, %800 : vector<1x32xf32>
    %cst_312 = arith.constant 5.000000e-01 : f32
    %816 = vector.broadcast %cst_312 : f32 to vector<1x32xf32>
    %817 = arith.mulf %816, %815 : vector<1x32xf32>
    %818 = math.tanh %817 : vector<1x32xf32>
    %cst_313 = arith.constant 1.000000e+00 : f32
    %819 = vector.broadcast %cst_313 : f32 to vector<1x32xf32>
    %820 = arith.addf %818, %819 : vector<1x32xf32>
    %cst_314 = arith.constant 5.000000e-01 : f32
    %821 = vector.broadcast %cst_314 : f32 to vector<1x32xf32>
    %822 = arith.mulf %821, %820 : vector<1x32xf32>
    %823 = vector.extract_strided_slice %593 {offsets = [3, 0], sizes = [1, 32], strides = [1, 1]} : vector<8x32xf32> to vector<1x32xf32>
    %824 = arith.addf %801, %594 : vector<1x32xf32>
    %825 = arith.mulf %813, %824 : vector<1x32xf32>
    %826 = arith.addf %823, %825 : vector<1x32xf32>
    %827 = math.tanh %826 : vector<1x32xf32>
    %cst_315 = arith.constant 1.000000e+00 : f32
    %828 = vector.broadcast %cst_315 : f32 to vector<1x32xf32>
    %829 = arith.subf %828, %822 : vector<1x32xf32>
    %830 = arith.mulf %829, %827 : vector<1x32xf32>
    %831 = arith.mulf %822, %768 : vector<1x32xf32>
    %832 = arith.addf %830, %831 : vector<1x32xf32>
    %833 = vector.extract_strided_slice %598 {offsets = [4, 0], sizes = [1, 32], strides = [1, 1]} : vector<8x32xf32> to vector<1x32xf32>
    %834 = arith.addf %833, %802 : vector<1x32xf32>
    %cst_316 = arith.constant 5.000000e-01 : f32
    %835 = vector.broadcast %cst_316 : f32 to vector<1x32xf32>
    %836 = arith.mulf %835, %834 : vector<1x32xf32>
    %837 = math.tanh %836 : vector<1x32xf32>
    %cst_317 = arith.constant 1.000000e+00 : f32
    %838 = vector.broadcast %cst_317 : f32 to vector<1x32xf32>
    %839 = arith.addf %837, %838 : vector<1x32xf32>
    %cst_318 = arith.constant 5.000000e-01 : f32
    %840 = vector.broadcast %cst_318 : f32 to vector<1x32xf32>
    %841 = arith.mulf %840, %839 : vector<1x32xf32>
    %842 = vector.extract_strided_slice %602 {offsets = [4, 0], sizes = [1, 32], strides = [1, 1]} : vector<8x32xf32> to vector<1x32xf32>
    %843 = arith.addf %842, %803 : vector<1x32xf32>
    %cst_319 = arith.constant 5.000000e-01 : f32
    %844 = vector.broadcast %cst_319 : f32 to vector<1x32xf32>
    %845 = arith.mulf %844, %843 : vector<1x32xf32>
    %846 = math.tanh %845 : vector<1x32xf32>
    %cst_320 = arith.constant 1.000000e+00 : f32
    %847 = vector.broadcast %cst_320 : f32 to vector<1x32xf32>
    %848 = arith.addf %846, %847 : vector<1x32xf32>
    %cst_321 = arith.constant 5.000000e-01 : f32
    %849 = vector.broadcast %cst_321 : f32 to vector<1x32xf32>
    %850 = arith.mulf %849, %848 : vector<1x32xf32>
    %851 = vector.extract_strided_slice %603 {offsets = [4, 0], sizes = [1, 32], strides = [1, 1]} : vector<8x32xf32> to vector<1x32xf32>
    %852 = arith.addf %804, %604 : vector<1x32xf32>
    %853 = arith.mulf %841, %852 : vector<1x32xf32>
    %854 = arith.addf %851, %853 : vector<1x32xf32>
    %855 = math.tanh %854 : vector<1x32xf32>
    %cst_322 = arith.constant 1.000000e+00 : f32
    %856 = vector.broadcast %cst_322 : f32 to vector<1x32xf32>
    %857 = arith.subf %856, %850 : vector<1x32xf32>
    %858 = arith.mulf %857, %855 : vector<1x32xf32>
    %859 = arith.mulf %850, %796 : vector<1x32xf32>
    %860 = arith.addf %858, %859 : vector<1x32xf32>
    %c3_323 = arith.constant 3 : index
    %c0_324 = arith.constant 0 : index
    %861 = vector.load %arg24[%c3_323, %c0_324] : memref<8x32xf32, #tpu.memory_space<vmem>>, vector<1x32xf32>
    tpu.vector_store %arg24[%c3_323, %c0_324], %832 {strides = array<i32>} : memref<8x32xf32, #tpu.memory_space<vmem>>, vector<1x32xf32>,
    %c4_325 = arith.constant 4 : index
    %c0_326 = arith.constant 0 : index
    %862 = vector.load %arg25[%c4_325, %c0_326] : memref<8x32xf32, #tpu.memory_space<vmem>>, vector<1x32xf32>
    tpu.vector_store %arg25[%c4_325, %c0_326], %860 {strides = array<i32>} : memref<8x32xf32, #tpu.memory_space<vmem>>, vector<1x32xf32>,
    %cst_327 = arith.constant dense<0.000000e+00> : vector<1x32xf32>
    %863 = tpu.matmul %832, %579, %cst_327 {dimension_numbers = #tpu.dot_dimension_numbers<[1], [0], [0], [1], [0, 0, 1, 1], [], []>} : vector<1x32xf32>, vector<32x32xf32>, vector<1x32xf32> -> vector<1x32xf32>
    %cst_328 = arith.constant dense<0.000000e+00> : vector<1x32xf32>
    %864 = tpu.matmul %832, %580, %cst_328 {dimension_numbers = #tpu.dot_dimension_numbers<[1], [0], [0], [1], [0, 0, 1, 1], [], []>} : vector<1x32xf32>, vector<32x32xf32>, vector<1x32xf32> -> vector<1x32xf32>
    %cst_329 = arith.constant dense<0.000000e+00> : vector<1x32xf32>
    %865 = tpu.matmul %832, %581, %cst_329 {dimension_numbers = #tpu.dot_dimension_numbers<[1], [0], [0], [1], [0, 0, 1, 1], [], []>} : vector<1x32xf32>, vector<32x32xf32>, vector<1x32xf32> -> vector<1x32xf32>
    %cst_330 = arith.constant dense<0.000000e+00> : vector<1x32xf32>
    %866 = tpu.matmul %860, %582, %cst_330 {dimension_numbers = #tpu.dot_dimension_numbers<[1], [0], [0], [1], [0, 0, 1, 1], [], []>} : vector<1x32xf32>, vector<32x32xf32>, vector<1x32xf32> -> vector<1x32xf32>
    %cst_331 = arith.constant dense<0.000000e+00> : vector<1x32xf32>
    %867 = tpu.matmul %860, %583, %cst_331 {dimension_numbers = #tpu.dot_dimension_numbers<[1], [0], [0], [1], [0, 0, 1, 1], [], []>} : vector<1x32xf32>, vector<32x32xf32>, vector<1x32xf32> -> vector<1x32xf32>
    %cst_332 = arith.constant dense<0.000000e+00> : vector<1x32xf32>
    %868 = tpu.matmul %860, %584, %cst_332 {dimension_numbers = #tpu.dot_dimension_numbers<[1], [0], [0], [1], [0, 0, 1, 1], [], []>} : vector<1x32xf32>, vector<32x32xf32>, vector<1x32xf32> -> vector<1x32xf32>
    %869 = vector.extract_strided_slice %588 {offsets = [4, 0], sizes = [1, 32], strides = [1, 1]} : vector<8x32xf32> to vector<1x32xf32>
    %870 = arith.addf %869, %863 : vector<1x32xf32>
    %cst_333 = arith.constant 5.000000e-01 : f32
    %871 = vector.broadcast %cst_333 : f32 to vector<1x32xf32>
    %872 = arith.mulf %871, %870 : vector<1x32xf32>
    %873 = math.tanh %872 : vector<1x32xf32>
    %cst_334 = arith.constant 1.000000e+00 : f32
    %874 = vector.broadcast %cst_334 : f32 to vector<1x32xf32>
    %875 = arith.addf %873, %874 : vector<1x32xf32>
    %cst_335 = arith.constant 5.000000e-01 : f32
    %876 = vector.broadcast %cst_335 : f32 to vector<1x32xf32>
    %877 = arith.mulf %876, %875 : vector<1x32xf32>
    %878 = vector.extract_strided_slice %592 {offsets = [4, 0], sizes = [1, 32], strides = [1, 1]} : vector<8x32xf32> to vector<1x32xf32>
    %879 = arith.addf %878, %864 : vector<1x32xf32>
    %cst_336 = arith.constant 5.000000e-01 : f32
    %880 = vector.broadcast %cst_336 : f32 to vector<1x32xf32>
    %881 = arith.mulf %880, %879 : vector<1x32xf32>
    %882 = math.tanh %881 : vector<1x32xf32>
    %cst_337 = arith.constant 1.000000e+00 : f32
    %883 = vector.broadcast %cst_337 : f32 to vector<1x32xf32>
    %884 = arith.addf %882, %883 : vector<1x32xf32>
    %cst_338 = arith.constant 5.000000e-01 : f32
    %885 = vector.broadcast %cst_338 : f32 to vector<1x32xf32>
    %886 = arith.mulf %885, %884 : vector<1x32xf32>
    %887 = vector.extract_strided_slice %593 {offsets = [4, 0], sizes = [1, 32], strides = [1, 1]} : vector<8x32xf32> to vector<1x32xf32>
    %888 = arith.addf %865, %594 : vector<1x32xf32>
    %889 = arith.mulf %877, %888 : vector<1x32xf32>
    %890 = arith.addf %887, %889 : vector<1x32xf32>
    %891 = math.tanh %890 : vector<1x32xf32>
    %cst_339 = arith.constant 1.000000e+00 : f32
    %892 = vector.broadcast %cst_339 : f32 to vector<1x32xf32>
    %893 = arith.subf %892, %886 : vector<1x32xf32>
    %894 = arith.mulf %893, %891 : vector<1x32xf32>
    %895 = arith.mulf %886, %832 : vector<1x32xf32>
    %896 = arith.addf %894, %895 : vector<1x32xf32>
    %897 = vector.extract_strided_slice %598 {offsets = [3, 0], sizes = [1, 32], strides = [1, 1]} : vector<8x32xf32> to vector<1x32xf32>
    %898 = arith.addf %897, %866 : vector<1x32xf32>
    %cst_340 = arith.constant 5.000000e-01 : f32
    %899 = vector.broadcast %cst_340 : f32 to vector<1x32xf32>
    %900 = arith.mulf %899, %898 : vector<1x32xf32>
    %901 = math.tanh %900 : vector<1x32xf32>
    %cst_341 = arith.constant 1.000000e+00 : f32
    %902 = vector.broadcast %cst_341 : f32 to vector<1x32xf32>
    %903 = arith.addf %901, %902 : vector<1x32xf32>
    %cst_342 = arith.constant 5.000000e-01 : f32
    %904 = vector.broadcast %cst_342 : f32 to vector<1x32xf32>
    %905 = arith.mulf %904, %903 : vector<1x32xf32>
    %906 = vector.extract_strided_slice %602 {offsets = [3, 0], sizes = [1, 32], strides = [1, 1]} : vector<8x32xf32> to vector<1x32xf32>
    %907 = arith.addf %906, %867 : vector<1x32xf32>
    %cst_343 = arith.constant 5.000000e-01 : f32
    %908 = vector.broadcast %cst_343 : f32 to vector<1x32xf32>
    %909 = arith.mulf %908, %907 : vector<1x32xf32>
    %910 = math.tanh %909 : vector<1x32xf32>
    %cst_344 = arith.constant 1.000000e+00 : f32
    %911 = vector.broadcast %cst_344 : f32 to vector<1x32xf32>
    %912 = arith.addf %910, %911 : vector<1x32xf32>
    %cst_345 = arith.constant 5.000000e-01 : f32
    %913 = vector.broadcast %cst_345 : f32 to vector<1x32xf32>
    %914 = arith.mulf %913, %912 : vector<1x32xf32>
    %915 = vector.extract_strided_slice %603 {offsets = [3, 0], sizes = [1, 32], strides = [1, 1]} : vector<8x32xf32> to vector<1x32xf32>
    %916 = arith.addf %868, %604 : vector<1x32xf32>
    %917 = arith.mulf %905, %916 : vector<1x32xf32>
    %918 = arith.addf %915, %917 : vector<1x32xf32>
    %919 = math.tanh %918 : vector<1x32xf32>
    %cst_346 = arith.constant 1.000000e+00 : f32
    %920 = vector.broadcast %cst_346 : f32 to vector<1x32xf32>
    %921 = arith.subf %920, %914 : vector<1x32xf32>
    %922 = arith.mulf %921, %919 : vector<1x32xf32>
    %923 = arith.mulf %914, %860 : vector<1x32xf32>
    %924 = arith.addf %922, %923 : vector<1x32xf32>
    %c4_347 = arith.constant 4 : index
    %c0_348 = arith.constant 0 : index
    %925 = vector.load %arg24[%c4_347, %c0_348] : memref<8x32xf32, #tpu.memory_space<vmem>>, vector<1x32xf32>
    tpu.vector_store %arg24[%c4_347, %c0_348], %896 {strides = array<i32>} : memref<8x32xf32, #tpu.memory_space<vmem>>, vector<1x32xf32>,
    %c3_349 = arith.constant 3 : index
    %c0_350 = arith.constant 0 : index
    %926 = vector.load %arg25[%c3_349, %c0_350] : memref<8x32xf32, #tpu.memory_space<vmem>>, vector<1x32xf32>
    tpu.vector_store %arg25[%c3_349, %c0_350], %924 {strides = array<i32>} : memref<8x32xf32, #tpu.memory_space<vmem>>, vector<1x32xf32>,
    %cst_351 = arith.constant dense<0.000000e+00> : vector<1x32xf32>
    %927 = tpu.matmul %896, %579, %cst_351 {dimension_numbers = #tpu.dot_dimension_numbers<[1], [0], [0], [1], [0, 0, 1, 1], [], []>} : vector<1x32xf32>, vector<32x32xf32>, vector<1x32xf32> -> vector<1x32xf32>
    %cst_352 = arith.constant dense<0.000000e+00> : vector<1x32xf32>
    %928 = tpu.matmul %896, %580, %cst_352 {dimension_numbers = #tpu.dot_dimension_numbers<[1], [0], [0], [1], [0, 0, 1, 1], [], []>} : vector<1x32xf32>, vector<32x32xf32>, vector<1x32xf32> -> vector<1x32xf32>
    %cst_353 = arith.constant dense<0.000000e+00> : vector<1x32xf32>
    %929 = tpu.matmul %896, %581, %cst_353 {dimension_numbers = #tpu.dot_dimension_numbers<[1], [0], [0], [1], [0, 0, 1, 1], [], []>} : vector<1x32xf32>, vector<32x32xf32>, vector<1x32xf32> -> vector<1x32xf32>
    %cst_354 = arith.constant dense<0.000000e+00> : vector<1x32xf32>
    %930 = tpu.matmul %924, %582, %cst_354 {dimension_numbers = #tpu.dot_dimension_numbers<[1], [0], [0], [1], [0, 0, 1, 1], [], []>} : vector<1x32xf32>, vector<32x32xf32>, vector<1x32xf32> -> vector<1x32xf32>
    %cst_355 = arith.constant dense<0.000000e+00> : vector<1x32xf32>
    %931 = tpu.matmul %924, %583, %cst_355 {dimension_numbers = #tpu.dot_dimension_numbers<[1], [0], [0], [1], [0, 0, 1, 1], [], []>} : vector<1x32xf32>, vector<32x32xf32>, vector<1x32xf32> -> vector<1x32xf32>
    %cst_356 = arith.constant dense<0.000000e+00> : vector<1x32xf32>
    %932 = tpu.matmul %924, %584, %cst_356 {dimension_numbers = #tpu.dot_dimension_numbers<[1], [0], [0], [1], [0, 0, 1, 1], [], []>} : vector<1x32xf32>, vector<32x32xf32>, vector<1x32xf32> -> vector<1x32xf32>
    %933 = vector.extract_strided_slice %588 {offsets = [5, 0], sizes = [1, 32], strides = [1, 1]} : vector<8x32xf32> to vector<1x32xf32>
    %934 = arith.addf %933, %927 : vector<1x32xf32>
    %cst_357 = arith.constant 5.000000e-01 : f32
    %935 = vector.broadcast %cst_357 : f32 to vector<1x32xf32>
    %936 = arith.mulf %935, %934 : vector<1x32xf32>
    %937 = math.tanh %936 : vector<1x32xf32>
    %cst_358 = arith.constant 1.000000e+00 : f32
    %938 = vector.broadcast %cst_358 : f32 to vector<1x32xf32>
    %939 = arith.addf %937, %938 : vector<1x32xf32>
    %cst_359 = arith.constant 5.000000e-01 : f32
    %940 = vector.broadcast %cst_359 : f32 to vector<1x32xf32>
    %941 = arith.mulf %940, %939 : vector<1x32xf32>
    %942 = vector.extract_strided_slice %592 {offsets = [5, 0], sizes = [1, 32], strides = [1, 1]} : vector<8x32xf32> to vector<1x32xf32>
    %943 = arith.addf %942, %928 : vector<1x32xf32>
    %cst_360 = arith.constant 5.000000e-01 : f32
    %944 = vector.broadcast %cst_360 : f32 to vector<1x32xf32>
    %945 = arith.mulf %944, %943 : vector<1x32xf32>
    %946 = math.tanh %945 : vector<1x32xf32>
    %cst_361 = arith.constant 1.000000e+00 : f32
    %947 = vector.broadcast %cst_361 : f32 to vector<1x32xf32>
    %948 = arith.addf %946, %947 : vector<1x32xf32>
    %cst_362 = arith.constant 5.000000e-01 : f32
    %949 = vector.broadcast %cst_362 : f32 to vector<1x32xf32>
    %950 = arith.mulf %949, %948 : vector<1x32xf32>
    %951 = vector.extract_strided_slice %593 {offsets = [5, 0], sizes = [1, 32], strides = [1, 1]} : vector<8x32xf32> to vector<1x32xf32>
    %952 = arith.addf %929, %594 : vector<1x32xf32>
    %953 = arith.mulf %941, %952 : vector<1x32xf32>
    %954 = arith.addf %951, %953 : vector<1x32xf32>
    %955 = math.tanh %954 : vector<1x32xf32>
    %cst_363 = arith.constant 1.000000e+00 : f32
    %956 = vector.broadcast %cst_363 : f32 to vector<1x32xf32>
    %957 = arith.subf %956, %950 : vector<1x32xf32>
    %958 = arith.mulf %957, %955 : vector<1x32xf32>
    %959 = arith.mulf %950, %896 : vector<1x32xf32>
    %960 = arith.addf %958, %959 : vector<1x32xf32>
    %961 = vector.extract_strided_slice %598 {offsets = [2, 0], sizes = [1, 32], strides = [1, 1]} : vector<8x32xf32> to vector<1x32xf32>
    %962 = arith.addf %961, %930 : vector<1x32xf32>
    %cst_364 = arith.constant 5.000000e-01 : f32
    %963 = vector.broadcast %cst_364 : f32 to vector<1x32xf32>
    %964 = arith.mulf %963, %962 : vector<1x32xf32>
    %965 = math.tanh %964 : vector<1x32xf32>
    %cst_365 = arith.constant 1.000000e+00 : f32
    %966 = vector.broadcast %cst_365 : f32 to vector<1x32xf32>
    %967 = arith.addf %965, %966 : vector<1x32xf32>
    %cst_366 = arith.constant 5.000000e-01 : f32
    %968 = vector.broadcast %cst_366 : f32 to vector<1x32xf32>
    %969 = arith.mulf %968, %967 : vector<1x32xf32>
    %970 = vector.extract_strided_slice %602 {offsets = [2, 0], sizes = [1, 32], strides = [1, 1]} : vector<8x32xf32> to vector<1x32xf32>
    %971 = arith.addf %970, %931 : vector<1x32xf32>
    %cst_367 = arith.constant 5.000000e-01 : f32
    %972 = vector.broadcast %cst_367 : f32 to vector<1x32xf32>
    %973 = arith.mulf %972, %971 : vector<1x32xf32>
    %974 = math.tanh %973 : vector<1x32xf32>
    %cst_368 = arith.constant 1.000000e+00 : f32
    %975 = vector.broadcast %cst_368 : f32 to vector<1x32xf32>
    %976 = arith.addf %974, %975 : vector<1x32xf32>
    %cst_369 = arith.constant 5.000000e-01 : f32
    %977 = vector.broadcast %cst_369 : f32 to vector<1x32xf32>
    %978 = arith.mulf %977, %976 : vector<1x32xf32>
    %979 = vector.extract_strided_slice %603 {offsets = [2, 0], sizes = [1, 32], strides = [1, 1]} : vector<8x32xf32> to vector<1x32xf32>
    %980 = arith.addf %932, %604 : vector<1x32xf32>
    %981 = arith.mulf %969, %980 : vector<1x32xf32>
    %982 = arith.addf %979, %981 : vector<1x32xf32>
    %983 = math.tanh %982 : vector<1x32xf32>
    %cst_370 = arith.constant 1.000000e+00 : f32
    %984 = vector.broadcast %cst_370 : f32 to vector<1x32xf32>
    %985 = arith.subf %984, %978 : vector<1x32xf32>
    %986 = arith.mulf %985, %983 : vector<1x32xf32>
    %987 = arith.mulf %978, %924 : vector<1x32xf32>
    %988 = arith.addf %986, %987 : vector<1x32xf32>
    %c5_371 = arith.constant 5 : index
    %c0_372 = arith.constant 0 : index
    %989 = vector.load %arg24[%c5_371, %c0_372] : memref<8x32xf32, #tpu.memory_space<vmem>>, vector<1x32xf32>
    tpu.vector_store %arg24[%c5_371, %c0_372], %960 {strides = array<i32>} : memref<8x32xf32, #tpu.memory_space<vmem>>, vector<1x32xf32>,
    %c2_373 = arith.constant 2 : index
    %c0_374 = arith.constant 0 : index
    %990 = vector.load %arg25[%c2_373, %c0_374] : memref<8x32xf32, #tpu.memory_space<vmem>>, vector<1x32xf32>
    tpu.vector_store %arg25[%c2_373, %c0_374], %988 {strides = array<i32>} : memref<8x32xf32, #tpu.memory_space<vmem>>, vector<1x32xf32>,
    %cst_375 = arith.constant dense<0.000000e+00> : vector<1x32xf32>
    %991 = tpu.matmul %960, %579, %cst_375 {dimension_numbers = #tpu.dot_dimension_numbers<[1], [0], [0], [1], [0, 0, 1, 1], [], []>} : vector<1x32xf32>, vector<32x32xf32>, vector<1x32xf32> -> vector<1x32xf32>
    %cst_376 = arith.constant dense<0.000000e+00> : vector<1x32xf32>
    %992 = tpu.matmul %960, %580, %cst_376 {dimension_numbers = #tpu.dot_dimension_numbers<[1], [0], [0], [1], [0, 0, 1, 1], [], []>} : vector<1x32xf32>, vector<32x32xf32>, vector<1x32xf32> -> vector<1x32xf32>
    %cst_377 = arith.constant dense<0.000000e+00> : vector<1x32xf32>
    %993 = tpu.matmul %960, %581, %cst_377 {dimension_numbers = #tpu.dot_dimension_numbers<[1], [0], [0], [1], [0, 0, 1, 1], [], []>} : vector<1x32xf32>, vector<32x32xf32>, vector<1x32xf32> -> vector<1x32xf32>
    %cst_378 = arith.constant dense<0.000000e+00> : vector<1x32xf32>
    %994 = tpu.matmul %988, %582, %cst_378 {dimension_numbers = #tpu.dot_dimension_numbers<[1], [0], [0], [1], [0, 0, 1, 1], [], []>} : vector<1x32xf32>, vector<32x32xf32>, vector<1x32xf32> -> vector<1x32xf32>
    %cst_379 = arith.constant dense<0.000000e+00> : vector<1x32xf32>
    %995 = tpu.matmul %988, %583, %cst_379 {dimension_numbers = #tpu.dot_dimension_numbers<[1], [0], [0], [1], [0, 0, 1, 1], [], []>} : vector<1x32xf32>, vector<32x32xf32>, vector<1x32xf32> -> vector<1x32xf32>
    %cst_380 = arith.constant dense<0.000000e+00> : vector<1x32xf32>
    %996 = tpu.matmul %988, %584, %cst_380 {dimension_numbers = #tpu.dot_dimension_numbers<[1], [0], [0], [1], [0, 0, 1, 1], [], []>} : vector<1x32xf32>, vector<32x32xf32>, vector<1x32xf32> -> vector<1x32xf32>
    %997 = vector.extract_strided_slice %588 {offsets = [6, 0], sizes = [1, 32], strides = [1, 1]} : vector<8x32xf32> to vector<1x32xf32>
    %998 = arith.addf %997, %991 : vector<1x32xf32>
    %cst_381 = arith.constant 5.000000e-01 : f32
    %999 = vector.broadcast %cst_381 : f32 to vector<1x32xf32>
    %1000 = arith.mulf %999, %998 : vector<1x32xf32>
    %1001 = math.tanh %1000 : vector<1x32xf32>
    %cst_382 = arith.constant 1.000000e+00 : f32
    %1002 = vector.broadcast %cst_382 : f32 to vector<1x32xf32>
    %1003 = arith.addf %1001, %1002 : vector<1x32xf32>
    %cst_383 = arith.constant 5.000000e-01 : f32
    %1004 = vector.broadcast %cst_383 : f32 to vector<1x32xf32>
    %1005 = arith.mulf %1004, %1003 : vector<1x32xf32>
    %1006 = vector.extract_strided_slice %592 {offsets = [6, 0], sizes = [1, 32], strides = [1, 1]} : vector<8x32xf32> to vector<1x32xf32>
    %1007 = arith.addf %1006, %992 : vector<1x32xf32>
    %cst_384 = arith.constant 5.000000e-01 : f32
    %1008 = vector.broadcast %cst_384 : f32 to vector<1x32xf32>
    %1009 = arith.mulf %1008, %1007 : vector<1x32xf32>
    %1010 = math.tanh %1009 : vector<1x32xf32>
    %cst_385 = arith.constant 1.000000e+00 : f32
    %1011 = vector.broadcast %cst_385 : f32 to vector<1x32xf32>
    %1012 = arith.addf %1010, %1011 : vector<1x32xf32>
    %cst_386 = arith.constant 5.000000e-01 : f32
    %1013 = vector.broadcast %cst_386 : f32 to vector<1x32xf32>
    %1014 = arith.mulf %1013, %1012 : vector<1x32xf32>
    %1015 = vector.extract_strided_slice %593 {offsets = [6, 0], sizes = [1, 32], strides = [1, 1]} : vector<8x32xf32> to vector<1x32xf32>
    %1016 = arith.addf %993, %594 : vector<1x32xf32>
    %1017 = arith.mulf %1005, %1016 : vector<1x32xf32>
    %1018 = arith.addf %1015, %1017 : vector<1x32xf32>
    %1019 = math.tanh %1018 : vector<1x32xf32>
    %cst_387 = arith.constant 1.000000e+00 : f32
    %1020 = vector.broadcast %cst_387 : f32 to vector<1x32xf32>
    %1021 = arith.subf %1020, %1014 : vector<1x32xf32>
    %1022 = arith.mulf %1021, %1019 : vector<1x32xf32>
    %1023 = arith.mulf %1014, %960 : vector<1x32xf32>
    %1024 = arith.addf %1022, %1023 : vector<1x32xf32>
    %1025 = vector.extract_strided_slice %598 {offsets = [1, 0], sizes = [1, 32], strides = [1, 1]} : vector<8x32xf32> to vector<1x32xf32>
    %1026 = arith.addf %1025, %994 : vector<1x32xf32>
    %cst_388 = arith.constant 5.000000e-01 : f32
    %1027 = vector.broadcast %cst_388 : f32 to vector<1x32xf32>
    %1028 = arith.mulf %1027, %1026 : vector<1x32xf32>
    %1029 = math.tanh %1028 : vector<1x32xf32>
    %cst_389 = arith.constant 1.000000e+00 : f32
    %1030 = vector.broadcast %cst_389 : f32 to vector<1x32xf32>
    %1031 = arith.addf %1029, %1030 : vector<1x32xf32>
    %cst_390 = arith.constant 5.000000e-01 : f32
    %1032 = vector.broadcast %cst_390 : f32 to vector<1x32xf32>
    %1033 = arith.mulf %1032, %1031 : vector<1x32xf32>
    %1034 = vector.extract_strided_slice %602 {offsets = [1, 0], sizes = [1, 32], strides = [1, 1]} : vector<8x32xf32> to vector<1x32xf32>
    %1035 = arith.addf %1034, %995 : vector<1x32xf32>
    %cst_391 = arith.constant 5.000000e-01 : f32
    %1036 = vector.broadcast %cst_391 : f32 to vector<1x32xf32>
    %1037 = arith.mulf %1036, %1035 : vector<1x32xf32>
    %1038 = math.tanh %1037 : vector<1x32xf32>
    %cst_392 = arith.constant 1.000000e+00 : f32
    %1039 = vector.broadcast %cst_392 : f32 to vector<1x32xf32>
    %1040 = arith.addf %1038, %1039 : vector<1x32xf32>
    %cst_393 = arith.constant 5.000000e-01 : f32
    %1041 = vector.broadcast %cst_393 : f32 to vector<1x32xf32>
    %1042 = arith.mulf %1041, %1040 : vector<1x32xf32>
    %1043 = vector.extract_strided_slice %603 {offsets = [1, 0], sizes = [1, 32], strides = [1, 1]} : vector<8x32xf32> to vector<1x32xf32>
    %1044 = arith.addf %996, %604 : vector<1x32xf32>
    %1045 = arith.mulf %1033, %1044 : vector<1x32xf32>
    %1046 = arith.addf %1043, %1045 : vector<1x32xf32>
    %1047 = math.tanh %1046 : vector<1x32xf32>
    %cst_394 = arith.constant 1.000000e+00 : f32
    %1048 = vector.broadcast %cst_394 : f32 to vector<1x32xf32>
    %1049 = arith.subf %1048, %1042 : vector<1x32xf32>
    %1050 = arith.mulf %1049, %1047 : vector<1x32xf32>
    %1051 = arith.mulf %1042, %988 : vector<1x32xf32>
    %1052 = arith.addf %1050, %1051 : vector<1x32xf32>
    %c6_395 = arith.constant 6 : index
    %c0_396 = arith.constant 0 : index
    %1053 = vector.load %arg24[%c6_395, %c0_396] : memref<8x32xf32, #tpu.memory_space<vmem>>, vector<1x32xf32>
    tpu.vector_store %arg24[%c6_395, %c0_396], %1024 {strides = array<i32>} : memref<8x32xf32, #tpu.memory_space<vmem>>, vector<1x32xf32>,
    %c1_397 = arith.constant 1 : index
    %c0_398 = arith.constant 0 : index
    %1054 = vector.load %arg25[%c1_397, %c0_398] : memref<8x32xf32, #tpu.memory_space<vmem>>, vector<1x32xf32>
    tpu.vector_store %arg25[%c1_397, %c0_398], %1052 {strides = array<i32>} : memref<8x32xf32, #tpu.memory_space<vmem>>, vector<1x32xf32>,
    %cst_399 = arith.constant dense<0.000000e+00> : vector<1x32xf32>
    %1055 = tpu.matmul %1024, %579, %cst_399 {dimension_numbers = #tpu.dot_dimension_numbers<[1], [0], [0], [1], [0, 0, 1, 1], [], []>} : vector<1x32xf32>, vector<32x32xf32>, vector<1x32xf32> -> vector<1x32xf32>
    %cst_400 = arith.constant dense<0.000000e+00> : vector<1x32xf32>
    %1056 = tpu.matmul %1024, %580, %cst_400 {dimension_numbers = #tpu.dot_dimension_numbers<[1], [0], [0], [1], [0, 0, 1, 1], [], []>} : vector<1x32xf32>, vector<32x32xf32>, vector<1x32xf32> -> vector<1x32xf32>
    %cst_401 = arith.constant dense<0.000000e+00> : vector<1x32xf32>
    %1057 = tpu.matmul %1024, %581, %cst_401 {dimension_numbers = #tpu.dot_dimension_numbers<[1], [0], [0], [1], [0, 0, 1, 1], [], []>} : vector<1x32xf32>, vector<32x32xf32>, vector<1x32xf32> -> vector<1x32xf32>
    %cst_402 = arith.constant dense<0.000000e+00> : vector<1x32xf32>
    %1058 = tpu.matmul %1052, %582, %cst_402 {dimension_numbers = #tpu.dot_dimension_numbers<[1], [0], [0], [1], [0, 0, 1, 1], [], []>} : vector<1x32xf32>, vector<32x32xf32>, vector<1x32xf32> -> vector<1x32xf32>
    %cst_403 = arith.constant dense<0.000000e+00> : vector<1x32xf32>
    %1059 = tpu.matmul %1052, %583, %cst_403 {dimension_numbers = #tpu.dot_dimension_numbers<[1], [0], [0], [1], [0, 0, 1, 1], [], []>} : vector<1x32xf32>, vector<32x32xf32>, vector<1x32xf32> -> vector<1x32xf32>
    %cst_404 = arith.constant dense<0.000000e+00> : vector<1x32xf32>
    %1060 = tpu.matmul %1052, %584, %cst_404 {dimension_numbers = #tpu.dot_dimension_numbers<[1], [0], [0], [1], [0, 0, 1, 1], [], []>} : vector<1x32xf32>, vector<32x32xf32>, vector<1x32xf32> -> vector<1x32xf32>
    %1061 = vector.extract_strided_slice %588 {offsets = [7, 0], sizes = [1, 32], strides = [1, 1]} : vector<8x32xf32> to vector<1x32xf32>
    %1062 = arith.addf %1061, %1055 : vector<1x32xf32>
    %cst_405 = arith.constant 5.000000e-01 : f32
    %1063 = vector.broadcast %cst_405 : f32 to vector<1x32xf32>
    %1064 = arith.mulf %1063, %1062 : vector<1x32xf32>
    %1065 = math.tanh %1064 : vector<1x32xf32>
    %cst_406 = arith.constant 1.000000e+00 : f32
    %1066 = vector.broadcast %cst_406 : f32 to vector<1x32xf32>
    %1067 = arith.addf %1065, %1066 : vector<1x32xf32>
    %cst_407 = arith.constant 5.000000e-01 : f32
    %1068 = vector.broadcast %cst_407 : f32 to vector<1x32xf32>
    %1069 = arith.mulf %1068, %1067 : vector<1x32xf32>
    %1070 = vector.extract_strided_slice %592 {offsets = [7, 0], sizes = [1, 32], strides = [1, 1]} : vector<8x32xf32> to vector<1x32xf32>
    %1071 = arith.addf %1070, %1056 : vector<1x32xf32>
    %cst_408 = arith.constant 5.000000e-01 : f32
    %1072 = vector.broadcast %cst_408 : f32 to vector<1x32xf32>
    %1073 = arith.mulf %1072, %1071 : vector<1x32xf32>
    %1074 = math.tanh %1073 : vector<1x32xf32>
    %cst_409 = arith.constant 1.000000e+00 : f32
    %1075 = vector.broadcast %cst_409 : f32 to vector<1x32xf32>
    %1076 = arith.addf %1074, %1075 : vector<1x32xf32>
    %cst_410 = arith.constant 5.000000e-01 : f32
    %1077 = vector.broadcast %cst_410 : f32 to vector<1x32xf32>
    %1078 = arith.mulf %1077, %1076 : vector<1x32xf32>
    %1079 = vector.extract_strided_slice %593 {offsets = [7, 0], sizes = [1, 32], strides = [1, 1]} : vector<8x32xf32> to vector<1x32xf32>
    %1080 = arith.addf %1057, %594 : vector<1x32xf32>
    %1081 = arith.mulf %1069, %1080 : vector<1x32xf32>
    %1082 = arith.addf %1079, %1081 : vector<1x32xf32>
    %1083 = math.tanh %1082 : vector<1x32xf32>
    %cst_411 = arith.constant 1.000000e+00 : f32
    %1084 = vector.broadcast %cst_411 : f32 to vector<1x32xf32>
    %1085 = arith.subf %1084, %1078 : vector<1x32xf32>
    %1086 = arith.mulf %1085, %1083 : vector<1x32xf32>
    %1087 = arith.mulf %1078, %1024 : vector<1x32xf32>
    %1088 = arith.addf %1086, %1087 : vector<1x32xf32>
    %1089 = vector.extract_strided_slice %598 {offsets = [0, 0], sizes = [1, 32], strides = [1, 1]} : vector<8x32xf32> to vector<1x32xf32>
    %1090 = arith.addf %1089, %1058 : vector<1x32xf32>
    %cst_412 = arith.constant 5.000000e-01 : f32
    %1091 = vector.broadcast %cst_412 : f32 to vector<1x32xf32>
    %1092 = arith.mulf %1091, %1090 : vector<1x32xf32>
    %1093 = math.tanh %1092 : vector<1x32xf32>
    %cst_413 = arith.constant 1.000000e+00 : f32
    %1094 = vector.broadcast %cst_413 : f32 to vector<1x32xf32>
    %1095 = arith.addf %1093, %1094 : vector<1x32xf32>
    %cst_414 = arith.constant 5.000000e-01 : f32
    %1096 = vector.broadcast %cst_414 : f32 to vector<1x32xf32>
    %1097 = arith.mulf %1096, %1095 : vector<1x32xf32>
    %1098 = vector.extract_strided_slice %602 {offsets = [0, 0], sizes = [1, 32], strides = [1, 1]} : vector<8x32xf32> to vector<1x32xf32>
    %1099 = arith.addf %1098, %1059 : vector<1x32xf32>
    %cst_415 = arith.constant 5.000000e-01 : f32
    %1100 = vector.broadcast %cst_415 : f32 to vector<1x32xf32>
    %1101 = arith.mulf %1100, %1099 : vector<1x32xf32>
    %1102 = math.tanh %1101 : vector<1x32xf32>
    %cst_416 = arith.constant 1.000000e+00 : f32
    %1103 = vector.broadcast %cst_416 : f32 to vector<1x32xf32>
    %1104 = arith.addf %1102, %1103 : vector<1x32xf32>
    %cst_417 = arith.constant 5.000000e-01 : f32
    %1105 = vector.broadcast %cst_417 : f32 to vector<1x32xf32>
    %1106 = arith.mulf %1105, %1104 : vector<1x32xf32>
    %1107 = vector.extract_strided_slice %603 {offsets = [0, 0], sizes = [1, 32], strides = [1, 1]} : vector<8x32xf32> to vector<1x32xf32>
    %1108 = arith.addf %1060, %604 : vector<1x32xf32>
    %1109 = arith.mulf %1097, %1108 : vector<1x32xf32>
    %1110 = arith.addf %1107, %1109 : vector<1x32xf32>
    %1111 = math.tanh %1110 : vector<1x32xf32>
    %cst_418 = arith.constant 1.000000e+00 : f32
    %1112 = vector.broadcast %cst_418 : f32 to vector<1x32xf32>
    %1113 = arith.subf %1112, %1106 : vector<1x32xf32>
    %1114 = arith.mulf %1113, %1111 : vector<1x32xf32>
    %1115 = arith.mulf %1106, %1052 : vector<1x32xf32>
    %1116 = arith.addf %1114, %1115 : vector<1x32xf32>
    %c7_419 = arith.constant 7 : index
    %c0_420 = arith.constant 0 : index
    %1117 = vector.load %arg24[%c7_419, %c0_420] : memref<8x32xf32, #tpu.memory_space<vmem>>, vector<1x32xf32>
    tpu.vector_store %arg24[%c7_419, %c0_420], %1088 {strides = array<i32>} : memref<8x32xf32, #tpu.memory_space<vmem>>, vector<1x32xf32>,
    %c0_421 = arith.constant 0 : index
    %c0_422 = arith.constant 0 : index
    %1118 = vector.load %arg25[%c0_421, %c0_422] : memref<8x32xf32, #tpu.memory_space<vmem>>, vector<1x32xf32>
    tpu.vector_store %arg25[%c0_421, %c0_422], %1116 {strides = array<i32>} : memref<8x32xf32, #tpu.memory_space<vmem>>, vector<1x32xf32>,
    %c0_423 = arith.constant 0 : index
    %c0_424 = arith.constant 0 : index
    %1119 = vector.load %arg24[%c0_423, %c0_424] : memref<8x32xf32, #tpu.memory_space<vmem>>, vector<8x32xf32>
    %c0_425 = arith.constant 0 : index
    %c0_426 = arith.constant 0 : index
    %1120 = vector.load %arg25[%c0_425, %c0_426] : memref<8x32xf32, #tpu.memory_space<vmem>>, vector<8x32xf32>
    %1121 = arith.addf %1119, %1120 : vector<8x32xf32>
    %c0_427 = arith.constant 0 : index
    %c0_428 = arith.constant 0 : index
    %1122 = vector.load %arg17[%c0_427, %c0_428] : memref<32x1xf32, #tpu.memory_space<vmem>>, vector<32x1xf32>
    %cst_429 = arith.constant dense<0.000000e+00> : vector<8x1xf32>
    %1123 = tpu.matmul %1121, %1122, %cst_429 {dimension_numbers = #tpu.dot_dimension_numbers<[1], [0], [0], [1], [0, 0, 1, 1], [], []>} : vector<8x32xf32>, vector<32x1xf32>, vector<8x1xf32> -> vector<8x1xf32>
    %c0_430 = arith.constant 0 : index
    %c0_431 = arith.constant 0 : index
    %1124 = vector.load %arg18[%c0_430, %c0_431] : memref<1x1xf32, #tpu.memory_space<vmem>>, vector<1x1xf32>
    %1125 = vector.broadcast %1124 : vector<1x1xf32> to vector<8x1xf32>
    %1126 = arith.addf %1123, %1125 : vector<8x1xf32>
    %c0_432 = arith.constant 0 : index
    %c0_433 = arith.constant 0 : index
    %1127 = vector.load %arg19[%c0_432, %c0_433] : memref<1x8xf32, #tpu.memory_space<vmem>>, vector<1x8xf32>
    %cst_434 = arith.constant dense<0.000000e+00> : vector<1x1xf32>
    %1128 = tpu.matmul %1127, %1126, %cst_434 {dimension_numbers = #tpu.dot_dimension_numbers<[1], [0], [0], [1], [0, 0, 1, 1], [], []>} : vector<1x8xf32>, vector<8x1xf32>, vector<1x1xf32> -> vector<1x1xf32>
    %c0_435 = arith.constant 0 : index
    %c0_436 = arith.constant 0 : index
    %1129 = vector.load %arg20[%c0_435, %c0_436] : memref<1x1xf32, #tpu.memory_space<vmem>>, vector<1x1xf32>
    %1130 = arith.addf %1128, %1129 : vector<1x1xf32>
    %cst_437 = arith.constant 5.000000e-01 : f32
    %1131 = vector.broadcast %cst_437 : f32 to vector<1x1xf32>
    %1132 = arith.mulf %1131, %1130 : vector<1x1xf32>
    %1133 = math.tanh %1132 : vector<1x1xf32>
    %cst_438 = arith.constant 1.000000e+00 : f32
    %1134 = vector.broadcast %cst_438 : f32 to vector<1x1xf32>
    %1135 = arith.addf %1133, %1134 : vector<1x1xf32>
    %cst_439 = arith.constant 5.000000e-01 : f32
    %1136 = vector.broadcast %cst_439 : f32 to vector<1x1xf32>
    %1137 = arith.mulf %1136, %1135 : vector<1x1xf32>
    %c0_440 = arith.constant 0 : index
    %c0_441 = arith.constant 0 : index
    %1138 = vector.load %arg21[%c0_440, %c0_441] : memref<1x1xf32, #tpu.memory_space<vmem>>, vector<1x1xf32>
    tpu.vector_store %arg21[%c0_440, %c0_441], %1137 {strides = array<i32>} : memref<1x1xf32, #tpu.memory_space<vmem>>, vector<1x1xf32>,
    return
  }
}

</mosaic_0001>

<llo_original>
// kernel: network_forward.1
$region0: #{network_forward.1}
  #allocation0 [shape = 'u32[]', space=smem, size = 0x4, offset = 0x4, fixed_abs, tag = 'smem constant byte address 0x4 - core index']
  #allocation1 [shape = 'u32[144,128]{1,0:T(1,128)}', space=vmem, size = 0x12000, scoped, tag = 'internal scratch']
  #allocation2 [shape = 'f32[8,32]{1,0:T(8,128)}', space=vmem, size = 0x1000, scoped, tag = 'scratch operand']
  #allocation3 [shape = 'f32[8,32]{1,0:T(8,128)}', space=vmem, size = 0x1000, scoped, tag = 'scratch operand']
  #allocation4 [shape = 'f32[8,32]{1,0:T(8,128)}', space=vmem, size = 0x1000, scoped, tag = 'scratch operand']
  #allocation5 [shape = 'f32[8,32]{1,0:T(8,128)}', space=vmem, size = 0x1000, scoped, tag = 'scratch operand']
  #allocation6 [shape = 'f32[1,1]{1,0:T(1,128)S(1)}', space=vmem, size = 0x200, scoped, tag = 'scoped memory for network_forward.1']
  #allocation7 [shape = 'f32[1,1]{1,0:T(1,128)S(1)}', space=vmem, size = 0x200, scoped, tag = 'scoped memory for network_forward.1']
  %s0 = inlined_call_operand.vmem [shape: f32[8,16], index: 0, kind: input, shape index: {}]
  %s1 = inlined_call_operand.vmem [shape: f32[16,96], index: 1, kind: input, shape index: {}]
  %s2 = inlined_call_operand.hbm [shape: f32[32,96], index: 2, kind: input, shape index: {}]
  %s3 = inlined_call_operand.vmem [shape: f32[1,96], index: 3, kind: input, shape index: {}]
  %s4 = inlined_call_operand.hbm [shape: f32[1,96], index: 4, kind: input, shape index: {}]
  %s5 = inlined_call_operand.hbm [shape: f32[16,96], index: 5, kind: input, shape index: {}]
  %s6 = inlined_call_operand.hbm [shape: f32[32,96], index: 6, kind: input, shape index: {}]
  %s7 = inlined_call_operand.hbm [shape: f32[1,96], index: 7, kind: input, shape index: {}]
  %s8 = inlined_call_operand.hbm [shape: f32[1,96], index: 8, kind: input, shape index: {}]
  %s9 = inlined_call_operand.vmem [shape: f32[64,96], index: 9, kind: input, shape index: {}]
  %s10 = inlined_call_operand.hbm [shape: f32[32,96], index: 10, kind: input, shape index: {}]
  %s11 = inlined_call_operand.vmem [shape: f32[1,96], index: 11, kind: input, shape index: {}]
  %s12 = inlined_call_operand.vmem [shape: f32[1,96], index: 12, kind: input, shape index: {}]
  %s13 = inlined_call_operand.hbm [shape: f32[64,96], index: 13, kind: input, shape index: {}]
  %s14 = inlined_call_operand.hbm [shape: f32[32,96], index: 14, kind: input, shape index: {}]
  %s15 = inlined_call_operand.hbm [shape: f32[1,96], index: 15, kind: input, shape index: {}]
  %s16 = inlined_call_operand.hbm [shape: f32[1,96], index: 16, kind: input, shape index: {}]
  %s17 = inlined_call_operand.vmem [shape: f32[32,1], index: 17, kind: input, shape index: {}]
  %s18 = inlined_call_operand.<no memory space> [shape: f32[1,1], index: 18, kind: input, shape index: {}]
  %s19 = inlined_call_operand.vmem [shape: f32[1,8], index: 19, kind: input, shape index: {}]
  %s20 = inlined_call_operand.<no memory space> [shape: f32[1,1], index: 20, kind: input, shape index: {}]
  %s21 = inlined_call_operand.hbm [shape: f32[1,1], index: 21, kind: output, shape index: {}]
  %s22 = sld [smem:[#allocation0]]
  $region138: #{network_forward.1} parent=0
    _
  %s24 = ssub.s32 1, %s22
  %s25 = scalar_select 0, %s24, %s22
  %v26 = vstv %s18
  %27 = vst [vmem:[#allocation6] sm:$0x1] %v26
  %v28 = vstv %s20
  %29 = vst [vmem:[#allocation7] sm:$0x1] %v28
  $region1: #{network_forward.1} parent=0
    #allocation8 [shape = 'u8[16384]{0}', space=vmem, size = 0x4000, scoped, tag = 'input window, operand 2, single buffered']
    #allocation9 [shape = 's32[1]{0}', space=sflag, size = 0x4, scoped, tag = 'scoped memory for network_forward.1']
    #allocation10 [shape = 's32[1]{0}', space=sflag, size = 0x4, scoped, tag = 'scoped memory for network_forward.1']
    #allocation11 [shape = 'u8[512]{0}', space=vmem, size = 0x400, scoped, tag = 'input window, operand 4, single buffered']
    #allocation12 [shape = 's32[1]{0}', space=sflag, size = 0x4, scoped, tag = 'scoped memory for network_forward.1']
    #allocation13 [shape = 'u8[8192]{0}', space=vmem, size = 0x2000, scoped, tag = 'input window, operand 5, single buffered']
    #allocation14 [shape = 'u8[16384]{0}', space=vmem, size = 0x4000, scoped, tag = 'input window, operand 6, single buffered']
    #allocation15 [shape = 's32[1]{0}', space=sflag, size = 0x4, scoped, tag = 'scoped memory for network_forward.1']
    #allocation16 [shape = 'u8[512]{0}', space=vmem, size = 0x400, scoped, tag = 'input window, operand 7, single buffered']
    #allocation17 [shape = 'u8[512]{0}', space=vmem, size = 0x400, scoped, tag = 'input window, operand 8, single buffered']
    #allocation18 [shape = 's32[1]{0}', space=sflag, size = 0x4, scoped, tag = 'scoped memory for network_forward.1']
    #allocation19 [shape = 'u8[16384]{0}', space=vmem, size = 0x4000, scoped, tag = 'input window, operand 10, single buffered']
    #allocation20 [shape = 'u8[32768]{0}', space=vmem, size = 0x8000, scoped, tag = 'input window, operand 13, single buffered']
    #allocation21 [shape = 's32[1]{0}', space=sflag, size = 0x4, scoped, tag = 'scoped memory for network_forward.1']
    #allocation22 [shape = 'u8[16384]{0}', space=vmem, size = 0x4000, scoped, tag = 'input window, operand 14, single buffered']
    #allocation23 [shape = 'u8[512]{0}', space=vmem, size = 0x400, scoped, tag = 'input window, operand 15, single buffered']
    #allocation24 [shape = 's32[1]{0}', space=sflag, size = 0x4, scoped, tag = 'scoped memory for network_forward.1']
    #allocation25 [shape = 'u8[512]{0}', space=vmem, size = 0x400, scoped, tag = 'input window, operand 16, single buffered']
    #allocation26 [shape = 'u8[512]{0}', space=vmem, size = 0x400, scoped, tag = 'output window, operand 0, single buffered']
    %30 = vsyncpa [#allocation9], 0
    %31 = vsyncpa [#allocation12], 0
    %32 = vsyncpa [#allocation15], 0
    %33 = vsyncpa [#allocation18], 0
    %34 = vsyncpa [#allocation21], 0
    %35 = vsyncpa [#allocation24], 0
    %36 = vsyncpa [#allocation10], 0
    // Predicated region
    $region2: #{network_forward.1} parent=1 // pred_check
      _
    $region3: #{network_forward.1} parent=1 // pred_check_branch
      %38 = sbr.rel (0) target = $region5
    $region4: #{network_forward.1} parent=1 // pred_region
      _
    $region5: #{network_forward.1} parent=1 // pred_fallthru
      _
    // Predicated region
    $region6: #{network_forward.1} parent=1 // pred_check
      _
    $region7: #{network_forward.1} parent=1 // pred_check_branch
      %40 = sbr.rel (0) target = $region9
    $region8: #{network_forward.1} parent=1 // pred_region
      _
    $region9: #{network_forward.1} parent=1 // pred_fallthru
      _
    // Predicated region
    $region10: #{network_forward.1} parent=1 // pred_check
      _
    $region11: #{network_forward.1} parent=1 // pred_check_branch
      %42 = sbr.rel (0) target = $region13
    $region12: #{network_forward.1} parent=1 // pred_region
      %s44 = ssub.s32 512, 512
      %45 = vsyncadd [#allocation9], %s44
      %s46 = sshll.u32 [#allocation8], 4
      %s47 = int_to_ptr.vmem [resolvable:$true] %s46
      %52 = dma.hbm_to_vmem [thread:$0]  %s2, 512, %s47, [#allocation9], 128, 128, 8
    $region13: #{network_forward.1} parent=1 // pred_fallthru
      _
    // Predicated region
    $region14: #{network_forward.1} parent=1 // pred_check
      _
    $region15: #{network_forward.1} parent=1 // pred_check_branch
      %54 = sbr.rel (0) target = $region17
    $region16: #{network_forward.1} parent=1 // pred_region
      _
    $region17: #{network_forward.1} parent=1 // pred_fallthru
      _
    // Predicated region
    $region18: #{network_forward.1} parent=1 // pred_check
      _
    $region19: #{network_forward.1} parent=1 // pred_check_branch
      %56 = sbr.rel (0) target = $region21
    $region20: #{network_forward.1} parent=1 // pred_region
      %s58 = ssub.s32 16, 16
      %59 = vsyncadd [#allocation12], %s58
      %s61 = sshll.u32 [#allocation11], 4
      %s62 = int_to_ptr.vmem [resolvable:$true] %s61
      %64 = dma.hbm_to_vmem [thread:$0]  %s4, 16, %s62, [#allocation12]
    $region21: #{network_forward.1} parent=1 // pred_fallthru
      _
    // Predicated region
    $region22: #{network_forward.1} parent=1 // pred_check
      _
    $region23: #{network_forward.1} parent=1 // pred_check_branch
      %66 = sbr.rel (0) target = $region25
    $region24: #{network_forward.1} parent=1 // pred_region
      %s68 = ssub.s32 256, 256
      %69 = vsyncadd [#allocation12], %s68
      %s70 = sshll.u32 [#allocation13], 4
      %s71 = int_to_ptr.vmem [resolvable:$true] %s70
      %76 = dma.hbm_to_vmem [thread:$0]  %s5, 256, %s71, [#allocation12], 128, 128, 8
    $region25: #{network_forward.1} parent=1 // pred_fallthru
      _
    // Predicated region
    $region26: #{network_forward.1} parent=1 // pred_check
      _
    $region27: #{network_forward.1} parent=1 // pred_check_branch
      %78 = sbr.rel (0) target = $region29
    $region28: #{network_forward.1} parent=1 // pred_region
      %s80 = ssub.s32 512, 512
      %81 = vsyncadd [#allocation15], %s80
      %s82 = sshll.u32 [#allocation14], 4
      %s83 = int_to_ptr.vmem [resolvable:$true] %s82
      %88 = dma.hbm_to_vmem [thread:$0]  %s6, 512, %s83, [#allocation15], 128, 128, 8
    $region29: #{network_forward.1} parent=1 // pred_fallthru
      _
    // Predicated region
    $region30: #{network_forward.1} parent=1 // pred_check
      _
    $region31: #{network_forward.1} parent=1 // pred_check_branch
      %90 = sbr.rel (0) target = $region33
    $region32: #{network_forward.1} parent=1 // pred_region
      %s92 = ssub.s32 16, 16
      %93 = vsyncadd [#allocation15], %s92
      %s95 = sshll.u32 [#allocation16], 4
      %s96 = int_to_ptr.vmem [resolvable:$true] %s95
      %98 = dma.hbm_to_vmem [thread:$0]  %s7, 16, %s96, [#allocation15]
    $region33: #{network_forward.1} parent=1 // pred_fallthru
      _
    // Predicated region
    $region34: #{network_forward.1} parent=1 // pred_check
      _
    $region35: #{network_forward.1} parent=1 // pred_check_branch
      %100 = sbr.rel (0) target = $region37
    $region36: #{network_forward.1} parent=1 // pred_region
      %s102 = ssub.s32 16, 16
      %103 = vsyncadd [#allocation18], %s102
      %s105 = sshll.u32 [#allocation17], 4
      %s106 = int_to_ptr.vmem [resolvable:$true] %s105
      %108 = dma.hbm_to_vmem [thread:$0]  %s8, 16, %s106, [#allocation18]
    $region37: #{network_forward.1} parent=1 // pred_fallthru
      _
    // Predicated region
    $region38: #{network_forward.1} parent=1 // pred_check
      _
    $region39: #{network_forward.1} parent=1 // pred_check_branch
      %110 = sbr.rel (0) target = $region41
    $region40: #{network_forward.1} parent=1 // pred_region
      _
    $region41: #{network_forward.1} parent=1 // pred_fallthru
      _
    // Predicated region
    $region42: #{network_forward.1} parent=1 // pred_check
      _
    $region43: #{network_forward.1} parent=1 // pred_check_branch
      %112 = sbr.rel (0) target = $region45
    $region44: #{network_forward.1} parent=1 // pred_region
      %s114 = ssub.s32 512, 512
      %115 = vsyncadd [#allocation18], %s114
      %s116 = sshll.u32 [#allocation19], 4
      %s117 = int_to_ptr.vmem [resolvable:$true] %s116
      %122 = dma.hbm_to_vmem [thread:$0]  %s10, 512, %s117, [#allocation18], 128, 128, 8
    $region45: #{network_forward.1} parent=1 // pred_fallthru
      _
    // Predicated region
    $region46: #{network_forward.1} parent=1 // pred_check
      _
    $region47: #{network_forward.1} parent=1 // pred_check_branch
      %124 = sbr.rel (0) target = $region49
    $region48: #{network_forward.1} parent=1 // pred_region
      _
    $region49: #{network_forward.1} parent=1 // pred_fallthru
      _
    // Predicated region
    $region50: #{network_forward.1} parent=1 // pred_check
      _
    $region51: #{network_forward.1} parent=1 // pred_check_branch
      %126 = sbr.rel (0) target = $region53
    $region52: #{network_forward.1} parent=1 // pred_region
      _
    $region53: #{network_forward.1} parent=1 // pred_fallthru
      _
    // Predicated region
    $region54: #{network_forward.1} parent=1 // pred_check
      _
    $region55: #{network_forward.1} parent=1 // pred_check_branch
      %128 = sbr.rel (0) target = $region57
    $region56: #{network_forward.1} parent=1 // pred_region
      %s130 = ssub.s32 1024, 1024
      %131 = vsyncadd [#allocation21], %s130
      %s132 = sshll.u32 [#allocation20], 4
      %s133 = int_to_ptr.vmem [resolvable:$true] %s132
      %138 = dma.hbm_to_vmem [thread:$0]  %s13, 1024, %s133, [#allocation21], 128, 128, 8
    $region57: #{network_forward.1} parent=1 // pred_fallthru
      _
    // Predicated region
    $region58: #{network_forward.1} parent=1 // pred_check
      _
    $region59: #{network_forward.1} parent=1 // pred_check_branch
      %140 = sbr.rel (0) target = $region61
    $region60: #{network_forward.1} parent=1 // pred_region
      %s142 = ssub.s32 512, 512
      %143 = vsyncadd [#allocation21], %s142
      %s144 = sshll.u32 [#allocation22], 4
      %s145 = int_to_ptr.vmem [resolvable:$true] %s144
      %150 = dma.hbm_to_vmem [thread:$0]  %s14, 512, %s145, [#allocation21], 128, 128, 8
    $region61: #{network_forward.1} parent=1 // pred_fallthru
      _
    // Predicated region
    $region62: #{network_forward.1} parent=1 // pred_check
      _
    $region63: #{network_forward.1} parent=1 // pred_check_branch
      %152 = sbr.rel (0) target = $region65
    $region64: #{network_forward.1} parent=1 // pred_region
      %s154 = ssub.s32 16, 16
      %155 = vsyncadd [#allocation24], %s154
      %s157 = sshll.u32 [#allocation23], 4
      %s158 = int_to_ptr.vmem [resolvable:$true] %s157
      %160 = dma.hbm_to_vmem [thread:$0]  %s15, 16, %s158, [#allocation24]
    $region65: #{network_forward.1} parent=1 // pred_fallthru
      _
    // Predicated region
    $region66: #{network_forward.1} parent=1 // pred_check
      _
    $region67: #{network_forward.1} parent=1 // pred_check_branch
      %162 = sbr.rel (0) target = $region69
    $region68: #{network_forward.1} parent=1 // pred_region
      %s164 = ssub.s32 16, 16
      %165 = vsyncadd [#allocation24], %s164
      %s167 = sshll.u32 [#allocation25], 4
      %s168 = int_to_ptr.vmem [resolvable:$true] %s167
      %170 = dma.hbm_to_vmem [thread:$0]  %s16, 16, %s168, [#allocation24]
    $region69: #{network_forward.1} parent=1 // pred_fallthru
      _
    // Predicated region
    $region70: #{network_forward.1} parent=1 // pred_check
      _
    $region71: #{network_forward.1} parent=1 // pred_check_branch
      %172 = sbr.rel (0) target = $region73
    $region72: #{network_forward.1} parent=1 // pred_region
      _
    $region73: #{network_forward.1} parent=1 // pred_fallthru
      _
    // Predicated region
    $region74: #{network_forward.1} parent=1 // pred_check
      _
    $region75: #{network_forward.1} parent=1 // pred_check_branch
      %174 = sbr.rel (0) target = $region77
    $region76: #{network_forward.1} parent=1 // pred_region
      _
    $region77: #{network_forward.1} parent=1 // pred_fallthru
      _
    // Predicated region
    $region78: #{network_forward.1} parent=1 // pred_check
      _
    $region79: #{network_forward.1} parent=1 // pred_check_branch
      %176 = sbr.rel (0) target = $region81
    $region80: #{network_forward.1} parent=1 // pred_region
      _
    $region81: #{network_forward.1} parent=1 // pred_fallthru
      _
    // Predicated region
    $region82: #{network_forward.1} parent=1 // pred_check
      _
    $region83: #{network_forward.1} parent=1 // pred_check_branch
      %178 = sbr.rel (0) target = $region85
    $region84: #{network_forward.1} parent=1 // pred_region
      _
    $region85: #{network_forward.1} parent=1 // pred_fallthru
      _
    // Predicated region
    $region86: #{network_forward.1} parent=1 // pred_check
      _
    $region87: #{network_forward.1} parent=1 // pred_check_branch
      %180 = sbr.rel (0) target = $region89
    $region88: #{network_forward.1} parent=1 // pred_region
      %181 = dma.done [#allocation9], 512
    $region89: #{network_forward.1} parent=1 // pred_fallthru
      _
    // Predicated region
    $region90: #{network_forward.1} parent=1 // pred_check
      _
    $region91: #{network_forward.1} parent=1 // pred_check_branch
      %183 = sbr.rel (0) target = $region93
    $region92: #{network_forward.1} parent=1 // pred_region
      %184 = dma.done [#allocation12], 16
    $region93: #{network_forward.1} parent=1 // pred_fallthru
      _
    // Predicated region
    $region94: #{network_forward.1} parent=1 // pred_check
      _
    $region95: #{network_forward.1} parent=1 // pred_check_branch
      %186 = sbr.rel (0) target = $region97
    $region96: #{network_forward.1} parent=1 // pred_region
      %187 = dma.done [#allocation12], 256
    $region97: #{network_forward.1} parent=1 // pred_fallthru
      _
    // Predicated region
    $region98: #{network_forward.1} parent=1 // pred_check
      _
    $region99: #{network_forward.1} parent=1 // pred_check_branch
      %189 = sbr.rel (0) target = $region101
    $region100: #{network_forward.1} parent=1 // pred_region
      %190 = dma.done [#allocation15], 512
    $region101: #{network_forward.1} parent=1 // pred_fallthru
      _
    // Predicated region
    $region102: #{network_forward.1} parent=1 // pred_check
      _
    $region103: #{network_forward.1} parent=1 // pred_check_branch
      %192 = sbr.rel (0) target = $region105
    $region104: #{network_forward.1} parent=1 // pred_region
      %193 = dma.done [#allocation15], 16
    $region105: #{network_forward.1} parent=1 // pred_fallthru
      _
    // Predicated region
    $region106: #{network_forward.1} parent=1 // pred_check
      _
    $region107: #{network_forward.1} parent=1 // pred_check_branch
      %195 = sbr.rel (0) target = $region109
    $region108: #{network_forward.1} parent=1 // pred_region
      %196 = dma.done [#allocation18], 16
    $region109: #{network_forward.1} parent=1 // pred_fallthru
      _
    // Predicated region
    $region110: #{network_forward.1} parent=1 // pred_check
      _
    $region111: #{network_forward.1} parent=1 // pred_check_branch
      %198 = sbr.rel (0) target = $region113
    $region112: #{network_forward.1} parent=1 // pred_region
      %199 = dma.done [#allocation18], 512
    $region113: #{network_forward.1} parent=1 // pred_fallthru
      _
    // Predicated region
    $region114: #{network_forward.1} parent=1 // pred_check
      _
    $region115: #{network_forward.1} parent=1 // pred_check_branch
      %201 = sbr.rel (0) target = $region117
    $region116: #{network_forward.1} parent=1 // pred_region
      %202 = dma.done [#allocation21], 1024
    $region117: #{network_forward.1} parent=1 // pred_fallthru
      _
    // Predicated region
    $region118: #{network_forward.1} parent=1 // pred_check
      _
    $region119: #{network_forward.1} parent=1 // pred_check_branch
      %204 = sbr.rel (0) target = $region121
    $region120: #{network_forward.1} parent=1 // pred_region
      %205 = dma.done [#allocation21], 512
    $region121: #{network_forward.1} parent=1 // pred_fallthru
      _
    // Predicated region
    $region122: #{network_forward.1} parent=1 // pred_check
      _
    $region123: #{network_forward.1} parent=1 // pred_check_branch
      %207 = sbr.rel (0) target = $region125
    $region124: #{network_forward.1} parent=1 // pred_region
      %208 = dma.done [#allocation24], 16
    $region125: #{network_forward.1} parent=1 // pred_fallthru
      _
    // Predicated region
    $region126: #{network_forward.1} parent=1 // pred_check
      _
    $region127: #{network_forward.1} parent=1 // pred_check_branch
      %210 = sbr.rel (0) target = $region129
    $region128: #{network_forward.1} parent=1 // pred_region
      %211 = dma.done [#allocation24], 16
    $region129: #{network_forward.1} parent=1 // pred_fallthru
      _
    %v212 = vld [vmem:[%s0] sm:$0xff]
    %v213 = vld [vmem:[%s1] sm:$0xff]
    %v214 = vld [vmem:[%s1 + $0x8] sm:$0xff]
    %v215 = vld [vmem:[%s3] sm:$0x1]
    %v217 = vlaneseq
    %v218 = vshrl.u32 %v217, 7
    %v219 = vsub.s32 0, %v218
    %v220 = vrot.slane %v215, %v219
    %vm222 = vcmask 130048
    %v224 = vsel %vm222, %v212, 0
    %226 = vmatprep.subr.mxu0 0.0
    %227 = vmatpush1.msra.mxu0 %v213
    %228 = vmatprep.subr.mxu0 0.0
    %229 = vmatpush1.msra.mxu0 %v214
    %230 = vmatprep.subr.mxu0 0.0
    %231 = vmatpush1.msra.mxu0 0.0
    %232 = vmatprep.subr.mxu0 0.0
    %233 = vmatpush1.msra.mxu0 0.0
    %234 = vmatprep.subr.mxu0 0.0
    %235 = vmatpush1.msra.mxu0 0.0
    %236 = vmatprep.subr.mxu0 0.0
    %237 = vmatpush1.msra.mxu0 0.0
    %238 = vmatprep.subr.mxu0 0.0
    %239 = vmatpush1.msra.mxu0 0.0
    %240 = vmatprep.subr.mxu0 0.0
    %241 = vmatpush1.msra.mxu0 0.0
    %242 = vmatprep.subr.mxu0 0.0
    %243 = vmatpush1.msra.mxu0 0.0
    %244 = vmatprep.subr.mxu0 0.0
    %245 = vmatpush1.msra.mxu0 0.0
    %246 = vmatprep.subr.mxu0 0.0
    %247 = vmatpush1.msra.mxu0 0.0
    %248 = vmatprep.subr.mxu0 0.0
    %249 = vmatpush1.msra.mxu0 0.0
    %250 = vmatprep.subr.mxu0 0.0
    %251 = vmatpush1.msra.mxu0 0.0
    %252 = vmatprep.subr.mxu0 0.0
    %253 = vmatpush1.msra.mxu0 0.0
    %254 = vmatprep.subr.mxu0 0.0
    %255 = vmatpush1.msra.mxu0 0.0
    %256 = vmatprep.subr.mxu0 0.0
    %257 = vmatpush1.msra.mxu0 0.0
    %258 = vmatprep.subr.mxu0 0.0
    %259 = vmatpush1.msra.mxu0 0.0
    %260 = vmatprep.subr.mxu0 0.0
    %261 = vmatpush1.msra.mxu0 0.0
    %262 = vmatprep.subr.mxu0 0.0
    %263 = vmatpush1.msra.mxu0 0.0
    %264 = vmatprep.subr.mxu0 0.0
    %265 = vmatpush1.msra.mxu0 0.0
    %266 = vmatprep.subr.mxu0 0.0
    %267 = vmatpush1.msra.mxu0 0.0
    %268 = vmatprep.subr.mxu0 0.0
    %269 = vmatpush1.msra.mxu0 0.0
    %270 = vmatprep.subr.mxu0 0.0
    %271 = vmatpush1.msra.mxu0 0.0
    %272 = vmatprep.subr.mxu0 0.0
    %273 = vmatpush1.msra.mxu0 0.0
    %274 = vmatprep.subr.mxu0 0.0
    %275 = vmatpush1.msra.mxu0 0.0
    %276 = vmatprep.subr.mxu0 0.0
    %277 = vmatpush1.msra.mxu0 0.0
    %278 = vmatprep.subr.mxu0 0.0
    %279 = vmatpush1.msra.mxu0 0.0
    %280 = vmatprep.subr.mxu0 0.0
    %281 = vmatpush1.msra.mxu0 0.0
    %282 = vmatprep.subr.mxu0 0.0
    %283 = vmatpush1.msra.mxu0 0.0
    %284 = vmatprep.subr.mxu0 0.0
    %285 = vmatpush1.msra.mxu0 0.0
    %286 = vmatprep.subr.mxu0 0.0
    %287 = vmatpush1.msra.mxu0 0.0
    %288 = vmatprep.subr.mxu0 0.0
    %289 = vmatpush1.msra.mxu0 0.0
    %290 = vmatprep.mubr.f32.mxu0 0.0
    %291 = vmatmul.mubr.f32.gmra.mrb[0].mxu0 %v224
    %v292 = vpop.f32.mrb[0].mxu0
    %v293 = vadd.f32 %v220, %v292
    %v294 = vpop.f32.mrb[0].mxu0
    %295 = vdwg.mxu0
    %v296 = vld [vmem:[#allocation13] sm:$0xff]
    %v297 = vld [vmem:[#allocation13 + $0x8] sm:$0xff]
    %v298 = vld [vmem:[#allocation16] sm:$0x1]
    %v300 = vlaneseq
    %v301 = vshrl.u32 %v300, 7
    %v302 = vsub.s32 0, %v301
    %v303 = vrot.slane %v298, %v302
    %305 = vmatprep.subr.mxu0 0.0
    %306 = vmatpush1.msra.mxu0 %v296
    %307 = vmatprep.subr.mxu0 0.0
    %308 = vmatpush1.msra.mxu0 %v297
    %309 = vmatprep.subr.mxu0 0.0
    %310 = vmatpush1.msra.mxu0 0.0
    %311 = vmatprep.subr.mxu0 0.0
    %312 = vmatpush1.msra.mxu0 0.0
    %313 = vmatprep.subr.mxu0 0.0
    %314 = vmatpush1.msra.mxu0 0.0
    %315 = vmatprep.subr.mxu0 0.0
    %316 = vmatpush1.msra.mxu0 0.0
    %317 = vmatprep.subr.mxu0 0.0
    %318 = vmatpush1.msra.mxu0 0.0
    %319 = vmatprep.subr.mxu0 0.0
    %320 = vmatpush1.msra.mxu0 0.0
    %321 = vmatprep.subr.mxu0 0.0
    %322 = vmatpush1.msra.mxu0 0.0
    %323 = vmatprep.subr.mxu0 0.0
    %324 = vmatpush1.msra.mxu0 0.0
    %325 = vmatprep.subr.mxu0 0.0
    %326 = vmatpush1.msra.mxu0 0.0
    %327 = vmatprep.subr.mxu0 0.0
    %328 = vmatpush1.msra.mxu0 0.0
    %329 = vmatprep.subr.mxu0 0.0
    %330 = vmatpush1.msra.mxu0 0.0
    %331 = vmatprep.subr.mxu0 0.0
    %332 = vmatpush1.msra.mxu0 0.0
    %333 = vmatprep.subr.mxu0 0.0
    %334 = vmatpush1.msra.mxu0 0.0
    %335 = vmatprep.subr.mxu0 0.0
    %336 = vmatpush1.msra.mxu0 0.0
    %337 = vmatprep.subr.mxu0 0.0
    %338 = vmatpush1.msra.mxu0 0.0
    %339 = vmatprep.subr.mxu0 0.0
    %340 = vmatpush1.msra.mxu0 0.0
    %341 = vmatprep.subr.mxu0 0.0
    %342 = vmatpush1.msra.mxu0 0.0
    %343 = vmatprep.subr.mxu0 0.0
    %344 = vmatpush1.msra.mxu0 0.0
    %345 = vmatprep.subr.mxu0 0.0
    %346 = vmatpush1.msra.mxu0 0.0
    %347 = vmatprep.subr.mxu0 0.0
    %348 = vmatpush1.msra.mxu0 0.0
    %349 = vmatprep.subr.mxu0 0.0
    %350 = vmatpush1.msra.mxu0 0.0
    %351 = vmatprep.subr.mxu0 0.0
    %352 = vmatpush1.msra.mxu0 0.0
    %353 = vmatprep.subr.mxu0 0.0
    %354 = vmatpush1.msra.mxu0 0.0
    %355 = vmatprep.subr.mxu0 0.0
    %356 = vmatpush1.msra.mxu0 0.0
    %357 = vmatprep.subr.mxu0 0.0
    %358 = vmatpush1.msra.mxu0 0.0
    %359 = vmatprep.subr.mxu0 0.0
    %360 = vmatpush1.msra.mxu0 0.0
    %361 = vmatprep.subr.mxu0 0.0
    %362 = vmatpush1.msra.mxu0 0.0
    %363 = vmatprep.subr.mxu0 0.0
    %364 = vmatpush1.msra.mxu0 0.0
    %365 = vmatprep.subr.mxu0 0.0
    %366 = vmatpush1.msra.mxu0 0.0
    %367 = vmatprep.subr.mxu0 0.0
    %368 = vmatpush1.msra.mxu0 0.0
    %369 = vmatprep.mubr.f32.mxu0 0.0
    %370 = vmatmul.mubr.f32.gmra.mrb[0].mxu0 %v224
    %v371 = vpop.f32.mrb[0].mxu0
    %v372 = vadd.f32 %v303, %v371
    %v373 = vpop.f32.mrb[0].mxu0
    %374 = vdwg.mxu0
    %v375 = vld [vmem:[#allocation8] sm:$0xff]
    %v376 = vld [vmem:[#allocation8 + $0x8] sm:$0xff]
    %v377 = vld [vmem:[#allocation8 + $0x10] sm:$0xff]
    %v378 = vld [vmem:[#allocation8 + $0x18] sm:$0xff]
    %v379 = vld [vmem:[#allocation11] sm:$0x1]
    %v380 = vld [vmem:[#allocation14] sm:$0xff]
    %v381 = vld [vmem:[#allocation14 + $0x8] sm:$0xff]
    %v382 = vld [vmem:[#allocation14 + $0x10] sm:$0xff]
    %v383 = vld [vmem:[#allocation14 + $0x18] sm:$0xff]
    %v384 = vld [vmem:[#allocation17] sm:$0x1]
    %v386 = vlaneseq
    %v387 = vshrl.u32 %v386, 7
    %v388 = vsub.s32 0, %v387
    %v389 = vrot.slane %v379, %v388
    %v391 = vadd.f32 %v293, %v389
    %v393 = vlaneseq
    %v394 = vshrl.u32 %v393, 7
    %v395 = vsub.s32 0, %v394
    %v396 = vrot.slane %v384, %v395
    %v398 = vadd.f32 %v372, %v396
    %vm399 = vcmask 261120
    %v401 = vsel %vm399, 0.0, 0
    %403 = vmatprep.subr.mxu0 0.0
    %404 = vmatpush1.msra.mxu0 %v375
    %405 = vmatprep.subr.mxu0 0.0
    %406 = vmatpush1.msra.mxu0 %v376
    %407 = vmatprep.subr.mxu0 0.0
    %408 = vmatpush1.msra.mxu0 %v377
    %409 = vmatprep.subr.mxu0 0.0
    %410 = vmatpush1.msra.mxu0 %v378
    %411 = vmatprep.subr.mxu0 0.0
    %412 = vmatpush1.msra.mxu0 0.0
    %413 = vmatprep.subr.mxu0 0.0
    %414 = vmatpush1.msra.mxu0 0.0
    %415 = vmatprep.subr.mxu0 0.0
    %416 = vmatpush1.msra.mxu0 0.0
    %417 = vmatprep.subr.mxu0 0.0
    %418 = vmatpush1.msra.mxu0 0.0
    %419 = vmatprep.subr.mxu0 0.0
    %420 = vmatpush1.msra.mxu0 0.0
    %421 = vmatprep.subr.mxu0 0.0
    %422 = vmatpush1.msra.mxu0 0.0
    %423 = vmatprep.subr.mxu0 0.0
    %424 = vmatpush1.msra.mxu0 0.0
    %425 = vmatprep.subr.mxu0 0.0
    %426 = vmatpush1.msra.mxu0 0.0
    %427 = vmatprep.subr.mxu0 0.0
    %428 = vmatpush1.msra.mxu0 0.0
    %429 = vmatprep.subr.mxu0 0.0
    %430 = vmatpush1.msra.mxu0 0.0
    %431 = vmatprep.subr.mxu0 0.0
    %432 = vmatpush1.msra.mxu0 0.0
    %433 = vmatprep.subr.mxu0 0.0
    %434 = vmatpush1.msra.mxu0 0.0
    %435 = vmatprep.subr.mxu0 0.0
    %436 = vmatpush1.msra.mxu0 0.0
    %437 = vmatprep.subr.mxu0 0.0
    %438 = vmatpush1.msra.mxu0 0.0
    %439 = vmatprep.subr.mxu0 0.0
    %440 = vmatpush1.msra.mxu0 0.0
    %441 = vmatprep.subr.mxu0 0.0
    %442 = vmatpush1.msra.mxu0 0.0
    %443 = vmatprep.subr.mxu0 0.0
    %444 = vmatpush1.msra.mxu0 0.0
    %445 = vmatprep.subr.mxu0 0.0
    %446 = vmatpush1.msra.mxu0 0.0
    %447 = vmatprep.subr.mxu0 0.0
    %448 = vmatpush1.msra.mxu0 0.0
    %449 = vmatprep.subr.mxu0 0.0
    %450 = vmatpush1.msra.mxu0 0.0
    %451 = vmatprep.subr.mxu0 0.0
    %452 = vmatpush1.msra.mxu0 0.0
    %453 = vmatprep.subr.mxu0 0.0
    %454 = vmatpush1.msra.mxu0 0.0
    %455 = vmatprep.subr.mxu0 0.0
    %456 = vmatpush1.msra.mxu0 0.0
    %457 = vmatprep.subr.mxu0 0.0
    %458 = vmatpush1.msra.mxu0 0.0
    %459 = vmatprep.subr.mxu0 0.0
    %460 = vmatpush1.msra.mxu0 0.0
    %461 = vmatprep.subr.mxu0 0.0
    %462 = vmatpush1.msra.mxu0 0.0
    %463 = vmatprep.subr.mxu0 0.0
    %464 = vmatpush1.msra.mxu0 0.0
    %465 = vmatprep.subr.mxu0 0.0
    %466 = vmatpush1.msra.mxu0 0.0
    %467 = vmatprep.mubr.f32.mxu0 0.0
    %468 = vmatmul.mubr.f32.gmra.mrb[0].mxu0 %v401
    %v469 = vpop.f32.mrb[0].mxu0
    %v470 = vadd.f32 0.0, %v469
    %v471 = vpop.f32.mrb[0].mxu0
    %472 = vdwg.mxu0
    %477 = vrot.lane.b32.xlu0 %v375, 96
    %v478 = vpop.permute.xlu0 %477
    %479 = vrot.lane.b32.xlu0 %v376, 96
    %v480 = vpop.permute.xlu0 %479
    %481 = vrot.lane.b32.xlu0 %v377, 96
    %v482 = vpop.permute.xlu0 %481
    %483 = vrot.lane.b32.xlu0 %v378, 96
    %v484 = vpop.permute.xlu0 %483
    %489 = vmatprep.subr.mxu0 0.0
    %490 = vmatpush1.msra.mxu0 %v478
    %491 = vmatprep.subr.mxu0 0.0
    %492 = vmatpush1.msra.mxu0 %v480
    %493 = vmatprep.subr.mxu0 0.0
    %494 = vmatpush1.msra.mxu0 %v482
    %495 = vmatprep.subr.mxu0 0.0
    %496 = vmatpush1.msra.mxu0 %v484
    %497 = vmatprep.subr.mxu0 0.0
    %498 = vmatpush1.msra.mxu0 0.0
    %499 = vmatprep.subr.mxu0 0.0
    %500 = vmatpush1.msra.mxu0 0.0
    %501 = vmatprep.subr.mxu0 0.0
    %502 = vmatpush1.msra.mxu0 0.0
    %503 = vmatprep.subr.mxu0 0.0
    %504 = vmatpush1.msra.mxu0 0.0
    %505 = vmatprep.subr.mxu0 0.0
    %506 = vmatpush1.msra.mxu0 0.0
    %507 = vmatprep.subr.mxu0 0.0
    %508 = vmatpush1.msra.mxu0 0.0
    %509 = vmatprep.subr.mxu0 0.0
    %510 = vmatpush1.msra.mxu0 0.0
    %511 = vmatprep.subr.mxu0 0.0
    %512 = vmatpush1.msra.mxu0 0.0
    %513 = vmatprep.subr.mxu0 0.0
    %514 = vmatpush1.msra.mxu0 0.0
    %515 = vmatprep.subr.mxu0 0.0
    %516 = vmatpush1.msra.mxu0 0.0
    %517 = vmatprep.subr.mxu0 0.0
    %518 = vmatpush1.msra.mxu0 0.0
    %519 = vmatprep.subr.mxu0 0.0
    %520 = vmatpush1.msra.mxu0 0.0
    %521 = vmatprep.subr.mxu0 0.0
    %522 = vmatpush1.msra.mxu0 0.0
    %523 = vmatprep.subr.mxu0 0.0
    %524 = vmatpush1.msra.mxu0 0.0
    %525 = vmatprep.subr.mxu0 0.0
    %526 = vmatpush1.msra.mxu0 0.0
    %527 = vmatprep.subr.mxu0 0.0
    %528 = vmatpush1.msra.mxu0 0.0
    %529 = vmatprep.subr.mxu0 0.0
    %530 = vmatpush1.msra.mxu0 0.0
    %531 = vmatprep.subr.mxu0 0.0
    %532 = vmatpush1.msra.mxu0 0.0
    %533 = vmatprep.subr.mxu0 0.0
    %534 = vmatpush1.msra.mxu0 0.0
    %535 = vmatprep.subr.mxu0 0.0
    %536 = vmatpush1.msra.mxu0 0.0
    %537 = vmatprep.subr.mxu0 0.0
    %538 = vmatpush1.msra.mxu0 0.0
    %539 = vmatprep.subr.mxu0 0.0
    %540 = vmatpush1.msra.mxu0 0.0
    %541 = vmatprep.subr.mxu0 0.0
    %542 = vmatpush1.msra.mxu0 0.0
    %543 = vmatprep.subr.mxu0 0.0
    %544 = vmatpush1.msra.mxu0 0.0
    %545 = vmatprep.subr.mxu0 0.0
    %546 = vmatpush1.msra.mxu0 0.0
    %547 = vmatprep.subr.mxu0 0.0
    %548 = vmatpush1.msra.mxu0 0.0
    %549 = vmatprep.subr.mxu0 0.0
    %550 = vmatpush1.msra.mxu0 0.0
    %551 = vmatprep.subr.mxu0 0.0
    %552 = vmatpush1.msra.mxu0 0.0
    %553 = vmatprep.mubr.f32.mxu0 0.0
    %554 = vmatmul.mubr.f32.gmra.mrb[0].mxu0 %v401
    %v555 = vpop.f32.mrb[0].mxu0
    %v556 = vadd.f32 0.0, %v555
    %v557 = vpop.f32.mrb[0].mxu0
    %558 = vdwg.mxu0
    %559 = vmatprep.subr.mxu0 0.0
    %560 = vmatpush1.msra.mxu0 %v380
    %561 = vmatprep.subr.mxu0 0.0
    %562 = vmatpush1.msra.mxu0 %v381
    %563 = vmatprep.subr.mxu0 0.0
    %564 = vmatpush1.msra.mxu0 %v382
    %565 = vmatprep.subr.mxu0 0.0
    %566 = vmatpush1.msra.mxu0 %v383
    %567 = vmatprep.subr.mxu0 0.0
    %568 = vmatpush1.msra.mxu0 0.0
    %569 = vmatprep.subr.mxu0 0.0
    %570 = vmatpush1.msra.mxu0 0.0
    %571 = vmatprep.subr.mxu0 0.0
    %572 = vmatpush1.msra.mxu0 0.0
    %573 = vmatprep.subr.mxu0 0.0
    %574 = vmatpush1.msra.mxu0 0.0
    %575 = vmatprep.subr.mxu0 0.0
    %576 = vmatpush1.msra.mxu0 0.0
    %577 = vmatprep.subr.mxu0 0.0
    %578 = vmatpush1.msra.mxu0 0.0
    %579 = vmatprep.subr.mxu0 0.0
    %580 = vmatpush1.msra.mxu0 0.0
    %581 = vmatprep.subr.mxu0 0.0
    %582 = vmatpush1.msra.mxu0 0.0
    %583 = vmatprep.subr.mxu0 0.0
    %584 = vmatpush1.msra.mxu0 0.0
    %585 = vmatprep.subr.mxu0 0.0
    %586 = vmatpush1.msra.mxu0 0.0
    %587 = vmatprep.subr.mxu0 0.0
    %588 = vmatpush1.msra.mxu0 0.0
    %589 = vmatprep.subr.mxu0 0.0
    %590 = vmatpush1.msra.mxu0 0.0
    %591 = vmatprep.subr.mxu0 0.0
    %592 = vmatpush1.msra.mxu0 0.0
    %593 = vmatprep.subr.mxu0 0.0
    %594 = vmatpush1.msra.mxu0 0.0
    %595 = vmatprep.subr.mxu0 0.0
    %596 = vmatpush1.msra.mxu0 0.0
    %597 = vmatprep.subr.mxu0 0.0
    %598 = vmatpush1.msra.mxu0 0.0
    %599 = vmatprep.subr.mxu0 0.0
    %600 = vmatpush1.msra.mxu0 0.0
    %601 = vmatprep.subr.mxu0 0.0
    %602 = vmatpush1.msra.mxu0 0.0
    %603 = vmatprep.subr.mxu0 0.0
    %604 = vmatpush1.msra.mxu0 0.0
    %605 = vmatprep.subr.mxu0 0.0
    %606 = vmatpush1.msra.mxu0 0.0
    %607 = vmatprep.subr.mxu0 0.0
    %608 = vmatpush1.msra.mxu0 0.0
    %609 = vmatprep.subr.mxu0 0.0
    %610 = vmatpush1.msra.mxu0 0.0
    %611 = vmatprep.subr.mxu0 0.0
    %612 = vmatpush1.msra.mxu0 0.0
    %613 = vmatprep.subr.mxu0 0.0
    %614 = vmatpush1.msra.mxu0 0.0
    %615 = vmatprep.subr.mxu0 0.0
    %616 = vmatpush1.msra.mxu0 0.0
    %617 = vmatprep.subr.mxu0 0.0
    %618 = vmatpush1.msra.mxu0 0.0
    %619 = vmatprep.subr.mxu0 0.0
    %620 = vmatpush1.msra.mxu0 0.0
    %621 = vmatprep.subr.mxu0 0.0
    %622 = vmatpush1.msra.mxu0 0.0
    %623 = vmatprep.mubr.f32.mxu0 0.0
    %624 = vmatmul.mubr.f32.gmra.mrb[0].mxu0 %v401
    %v625 = vpop.f32.mrb[0].mxu0
    %v626 = vadd.f32 0.0, %v625
    %v627 = vpop.f32.mrb[0].mxu0
    %628 = vdwg.mxu0
    %633 = vrot.lane.b32.xlu0 %v380, 96
    %v634 = vpop.permute.xlu0 %633
    %635 = vrot.lane.b32.xlu0 %v381, 96
    %v636 = vpop.permute.xlu0 %635
    %637 = vrot.lane.b32.xlu0 %v382, 96
    %v638 = vpop.permute.xlu0 %637
    %639 = vrot.lane.b32.xlu0 %v383, 96
    %v640 = vpop.permute.xlu0 %639
    %645 = vmatprep.subr.mxu0 0.0
    %646 = vmatpush1.msra.mxu0 %v634
    %647 = vmatprep.subr.mxu0 0.0
    %648 = vmatpush1.msra.mxu0 %v636
    %649 = vmatprep.subr.mxu0 0.0
    %650 = vmatpush1.msra.mxu0 %v638
    %651 = vmatprep.subr.mxu0 0.0
    %652 = vmatpush1.msra.mxu0 %v640
    %653 = vmatprep.subr.mxu0 0.0
    %654 = vmatpush1.msra.mxu0 0.0
    %655 = vmatprep.subr.mxu0 0.0
    %656 = vmatpush1.msra.mxu0 0.0
    %657 = vmatprep.subr.mxu0 0.0
    %658 = vmatpush1.msra.mxu0 0.0
    %659 = vmatprep.subr.mxu0 0.0
    %660 = vmatpush1.msra.mxu0 0.0
    %661 = vmatprep.subr.mxu0 0.0
    %662 = vmatpush1.msra.mxu0 0.0
    %663 = vmatprep.subr.mxu0 0.0
    %664 = vmatpush1.msra.mxu0 0.0
    %665 = vmatprep.subr.mxu0 0.0
    %666 = vmatpush1.msra.mxu0 0.0
    %667 = vmatprep.subr.mxu0 0.0
    %668 = vmatpush1.msra.mxu0 0.0
    %669 = vmatprep.subr.mxu0 0.0
    %670 = vmatpush1.msra.mxu0 0.0
    %671 = vmatprep.subr.mxu0 0.0
    %672 = vmatpush1.msra.mxu0 0.0
    %673 = vmatprep.subr.mxu0 0.0
    %674 = vmatpush1.msra.mxu0 0.0
    %675 = vmatprep.subr.mxu0 0.0
    %676 = vmatpush1.msra.mxu0 0.0
    %677 = vmatprep.subr.mxu0 0.0
    %678 = vmatpush1.msra.mxu0 0.0
    %679 = vmatprep.subr.mxu0 0.0
    %680 = vmatpush1.msra.mxu0 0.0
    %681 = vmatprep.subr.mxu0 0.0
    %682 = vmatpush1.msra.mxu0 0.0
    %683 = vmatprep.subr.mxu0 0.0
    %684 = vmatpush1.msra.mxu0 0.0
    %685 = vmatprep.subr.mxu0 0.0
    %686 = vmatpush1.msra.mxu0 0.0
    %687 = vmatprep.subr.mxu0 0.0
    %688 = vmatpush1.msra.mxu0 0.0
    %689 = vmatprep.subr.mxu0 0.0
    %690 = vmatpush1.msra.mxu0 0.0
    %691 = vmatprep.subr.mxu0 0.0
    %692 = vmatpush1.msra.mxu0 0.0
    %693 = vmatprep.subr.mxu0 0.0
    %694 = vmatpush1.msra.mxu0 0.0
    %695 = vmatprep.subr.mxu0 0.0
    %696 = vmatpush1.msra.mxu0 0.0
    %697 = vmatprep.subr.mxu0 0.0
    %698 = vmatpush1.msra.mxu0 0.0
    %699 = vmatprep.subr.mxu0 0.0
    %700 = vmatpush1.msra.mxu0 0.0
    %701 = vmatprep.subr.mxu0 0.0
    %702 = vmatpush1.msra.mxu0 0.0
    %703 = vmatprep.subr.mxu0 0.0
    %704 = vmatpush1.msra.mxu0 0.0
    %705 = vmatprep.subr.mxu0 0.0
    %706 = vmatpush1.msra.mxu0 0.0
    %707 = vmatprep.subr.mxu0 0.0
    %708 = vmatpush1.msra.mxu0 0.0
    %709 = vmatprep.mubr.f32.mxu0 0.0
    %710 = vmatmul.mubr.f32.gmra.mrb[0].mxu0 %v401
    %v711 = vpop.f32.mrb[0].mxu0
    %v712 = vadd.f32 0.0, %v711
    %v713 = vpop.f32.mrb[0].mxu0
    %714 = vdwg.mxu0
    %v715 = vadd.f32 %v391, %v470
    %v716 = vmul.f32 %v715, 0.5
    %v717 = vtanh.pop %v716
    %v718 = vadd.f32 %v717, 1.0
    %v719 = vmul.f32 %v718, 0.5
    %721 = vrot.lane.b32.xlu0 %v556, 32
    %v722 = vpop.permute.xlu0 %721
    %v724 = vadd.f32 %v391, %v722
    %v725 = vmul.f32 %v724, 0.5
    %v726 = vtanh.pop %v725
    %v727 = vadd.f32 %v726, 1.0
    %v728 = vmul.f32 %v727, 0.5
    %729 = vrot.lane.b32.xlu0 %v375, 64
    %v730 = vpop.permute.xlu0 %729
    %731 = vrot.lane.b32.xlu0 %v376, 64
    %v732 = vpop.permute.xlu0 %731
    %733 = vrot.lane.b32.xlu0 %v377, 64
    %v734 = vpop.permute.xlu0 %733
    %735 = vrot.lane.b32.xlu0 %v378, 64
    %v736 = vpop.permute.xlu0 %735
    %741 = vrot.lane.b32.xlu0 %v389, 64
    %v742 = vpop.permute.xlu0 %741
    %744 = vmatprep.subr.mxu0 0.0
    %745 = vmatpush1.msra.mxu0 %v730
    %746 = vmatprep.subr.mxu0 0.0
    %747 = vmatpush1.msra.mxu0 %v732
    %748 = vmatprep.subr.mxu0 0.0
    %749 = vmatpush1.msra.mxu0 %v734
    %750 = vmatprep.subr.mxu0 0.0
    %751 = vmatpush1.msra.mxu0 %v736
    %752 = vmatprep.subr.mxu0 0.0
    %753 = vmatpush1.msra.mxu0 0.0
    %754 = vmatprep.subr.mxu0 0.0
    %755 = vmatpush1.msra.mxu0 0.0
    %756 = vmatprep.subr.mxu0 0.0
    %757 = vmatpush1.msra.mxu0 0.0
    %758 = vmatprep.subr.mxu0 0.0
    %759 = vmatpush1.msra.mxu0 0.0
    %760 = vmatprep.subr.mxu0 0.0
    %761 = vmatpush1.msra.mxu0 0.0
    %762 = vmatprep.subr.mxu0 0.0
    %763 = vmatpush1.msra.mxu0 0.0
    %764 = vmatprep.subr.mxu0 0.0
    %765 = vmatpush1.msra.mxu0 0.0
    %766 = vmatprep.subr.mxu0 0.0
    %767 = vmatpush1.msra.mxu0 0.0
    %768 = vmatprep.subr.mxu0 0.0
    %769 = vmatpush1.msra.mxu0 0.0
    %770 = vmatprep.subr.mxu0 0.0
    %771 = vmatpush1.msra.mxu0 0.0
    %772 = vmatprep.subr.mxu0 0.0
    %773 = vmatpush1.msra.mxu0 0.0
    %774 = vmatprep.subr.mxu0 0.0
    %775 = vmatpush1.msra.mxu0 0.0
    %776 = vmatprep.subr.mxu0 0.0
    %777 = vmatpush1.msra.mxu0 0.0
    %778 = vmatprep.subr.mxu0 0.0
    %779 = vmatpush1.msra.mxu0 0.0
    %780 = vmatprep.subr.mxu0 0.0
    %781 = vmatpush1.msra.mxu0 0.0
    %782 = vmatprep.subr.mxu0 0.0
    %783 = vmatpush1.msra.mxu0 0.0
    %784 = vmatprep.subr.mxu0 0.0
    %785 = vmatpush1.msra.mxu0 0.0
    %786 = vmatprep.subr.mxu0 0.0
    %787 = vmatpush1.msra.mxu0 0.0
    %788 = vmatprep.subr.mxu0 0.0
    %789 = vmatpush1.msra.mxu0 0.0
    %790 = vmatprep.subr.mxu0 0.0
    %791 = vmatpush1.msra.mxu0 0.0
    %792 = vmatprep.subr.mxu0 0.0
    %793 = vmatpush1.msra.mxu0 0.0
    %794 = vmatprep.subr.mxu0 0.0
    %795 = vmatpush1.msra.mxu0 0.0
    %796 = vmatprep.subr.mxu0 0.0
    %797 = vmatpush1.msra.mxu0 0.0
    %798 = vmatprep.subr.mxu0 0.0
    %799 = vmatpush1.msra.mxu0 0.0
    %800 = vmatprep.subr.mxu0 0.0
    %801 = vmatpush1.msra.mxu0 0.0
    %802 = vmatprep.subr.mxu0 0.0
    %803 = vmatpush1.msra.mxu0 0.0
    %804 = vmatprep.subr.mxu0 0.0
    %805 = vmatpush1.msra.mxu0 0.0
    %806 = vmatprep.subr.mxu0 0.0
    %807 = vmatpush1.msra.mxu0 0.0
    %808 = vmatprep.mubr.f32.mxu0 0.0
    %809 = vmatmul.mubr.f32.gmra.mrb[0].mxu0 %v401
    %v810 = vpop.f32.mrb[0].mxu0
    %v811 = vadd.f32 %v742, %v810
    %v812 = vpop.f32.mrb[0].mxu0
    %813 = vdwg.mxu0
    %v814 = vmul.f32 %v719, %v811
    %816 = vrot.lane.b32.xlu0 %v814, 64
    %v817 = vpop.permute.xlu0 %816
    %v819 = vadd.f32 %v293, %v817
    %v820 = vtanh.pop %v819
    %v821 = vsub.f32 1.0, %v728
    %823 = vrot.lane.b32.xlu0 %v820, 96
    %v824 = vpop.permute.xlu0 %823
    %v826 = vmul.f32 %v821, %v824
    %v827 = vmul.f32 %v728, 0.0
    %v828 = vadd.f32 %v826, %v827
    %v830 = vrot.slane %v626, 1
    %v832 = vadd.f32 %v398, %v830
    %v833 = vmul.f32 %v832, 0.5
    %v834 = vtanh.pop %v833
    %v835 = vadd.f32 %v834, 1.0
    %v836 = vmul.f32 %v835, 0.5
    %v838 = vrot.slane %v712, 1
    %839 = vrot.lane.b32.xlu0 %v838, 32
    %v840 = vpop.permute.xlu0 %839
    %v842 = vadd.f32 %v398, %v840
    %v843 = vmul.f32 %v842, 0.5
    %v844 = vtanh.pop %v843
    %v845 = vadd.f32 %v844, 1.0
    %v846 = vmul.f32 %v845, 0.5
    %847 = vrot.lane.b32.xlu0 %v380, 64
    %v848 = vpop.permute.xlu0 %847
    %849 = vrot.lane.b32.xlu0 %v381, 64
    %v850 = vpop.permute.xlu0 %849
    %851 = vrot.lane.b32.xlu0 %v382, 64
    %v852 = vpop.permute.xlu0 %851
    %853 = vrot.lane.b32.xlu0 %v383, 64
    %v854 = vpop.permute.xlu0 %853
    %859 = vrot.lane.b32.xlu0 %v396, 64
    %v860 = vpop.permute.xlu0 %859
    %862 = vmatprep.subr.mxu0 0.0
    %863 = vmatpush1.msra.mxu0 %v848
    %864 = vmatprep.subr.mxu0 0.0
    %865 = vmatpush1.msra.mxu0 %v850
    %866 = vmatprep.subr.mxu0 0.0
    %867 = vmatpush1.msra.mxu0 %v852
    %868 = vmatprep.subr.mxu0 0.0
    %869 = vmatpush1.msra.mxu0 %v854
    %870 = vmatprep.subr.mxu0 0.0
    %871 = vmatpush1.msra.mxu0 0.0
    %872 = vmatprep.subr.mxu0 0.0
    %873 = vmatpush1.msra.mxu0 0.0
    %874 = vmatprep.subr.mxu0 0.0
    %875 = vmatpush1.msra.mxu0 0.0
    %876 = vmatprep.subr.mxu0 0.0
    %877 = vmatpush1.msra.mxu0 0.0
    %878 = vmatprep.subr.mxu0 0.0
    %879 = vmatpush1.msra.mxu0 0.0
    %880 = vmatprep.subr.mxu0 0.0
    %881 = vmatpush1.msra.mxu0 0.0
    %882 = vmatprep.subr.mxu0 0.0
    %883 = vmatpush1.msra.mxu0 0.0
    %884 = vmatprep.subr.mxu0 0.0
    %885 = vmatpush1.msra.mxu0 0.0
    %886 = vmatprep.subr.mxu0 0.0
    %887 = vmatpush1.msra.mxu0 0.0
    %888 = vmatprep.subr.mxu0 0.0
    %889 = vmatpush1.msra.mxu0 0.0
    %890 = vmatprep.subr.mxu0 0.0
    %891 = vmatpush1.msra.mxu0 0.0
    %892 = vmatprep.subr.mxu0 0.0
    %893 = vmatpush1.msra.mxu0 0.0
    %894 = vmatprep.subr.mxu0 0.0
    %895 = vmatpush1.msra.mxu0 0.0
    %896 = vmatprep.subr.mxu0 0.0
    %897 = vmatpush1.msra.mxu0 0.0
    %898 = vmatprep.subr.mxu0 0.0
    %899 = vmatpush1.msra.mxu0 0.0
    %900 = vmatprep.subr.mxu0 0.0
    %901 = vmatpush1.msra.mxu0 0.0
    %902 = vmatprep.subr.mxu0 0.0
    %903 = vmatpush1.msra.mxu0 0.0
    %904 = vmatprep.subr.mxu0 0.0
    %905 = vmatpush1.msra.mxu0 0.0
    %906 = vmatprep.subr.mxu0 0.0
    %907 = vmatpush1.msra.mxu0 0.0
    %908 = vmatprep.subr.mxu0 0.0
    %909 = vmatpush1.msra.mxu0 0.0
    %910 = vmatprep.subr.mxu0 0.0
    %911 = vmatpush1.msra.mxu0 0.0
    %912 = vmatprep.subr.mxu0 0.0
    %913 = vmatpush1.msra.mxu0 0.0
    %914 = vmatprep.subr.mxu0 0.0
    %915 = vmatpush1.msra.mxu0 0.0
    %916 = vmatprep.subr.mxu0 0.0
    %917 = vmatpush1.msra.mxu0 0.0
    %918 = vmatprep.subr.mxu0 0.0
    %919 = vmatpush1.msra.mxu0 0.0
    %920 = vmatprep.subr.mxu0 0.0
    %921 = vmatpush1.msra.mxu0 0.0
    %922 = vmatprep.subr.mxu0 0.0
    %923 = vmatpush1.msra.mxu0 0.0
    %924 = vmatprep.subr.mxu0 0.0
    %925 = vmatpush1.msra.mxu0 0.0
    %926 = vmatprep.mubr.f32.mxu0 0.0
    %927 = vmatmul.mubr.f32.gmra.mrb[0].mxu0 %v401
    %v928 = vpop.f32.mrb[0].mxu0
    %v929 = vadd.f32 %v860, %v928
    %v930 = vpop.f32.mrb[0].mxu0
    %931 = vdwg.mxu0
    %v933 = vrot.slane %v929, 1
    %v935 = vmul.f32 %v836, %v933
    %937 = vrot.lane.b32.xlu0 %v935, 64
    %v938 = vpop.permute.xlu0 %937
    %v940 = vadd.f32 %v372, %v938
    %v941 = vtanh.pop %v940
    %v942 = vsub.f32 1.0, %v846
    %944 = vrot.lane.b32.xlu0 %v941, 96
    %v945 = vpop.permute.xlu0 %944
    %v947 = vmul.f32 %v942, %v945
    %v948 = vmul.f32 %v846, 0.0
    %v949 = vadd.f32 %v947, %v948
    %951 = vrot.lane.b32.xlu0 %v828, 96
    %v952 = vpop.permute.xlu0 %951
    %vm954 = vcmask 253952
    %955 = vst.msk [vmem:[#allocation2] sm:$0x1] %vm954, %v952
    %957 = vrot.lane.b32.xlu0 %v949, 96
    %v958 = vpop.permute.xlu0 %957
    %vm960 = vcmask 261127
    %961 = vst.msk [vmem:[#allocation3] sm:$0x80] %vm960, %v958
    %v962 = vsel %vm399, %v952, 0
    %964 = vmatprep.subr.mxu0 0.0
    %965 = vmatpush1.msra.mxu0 %v375
    %966 = vmatprep.subr.mxu0 0.0
    %967 = vmatpush1.msra.mxu0 %v376
    %968 = vmatprep.subr.mxu0 0.0
    %969 = vmatpush1.msra.mxu0 %v377
    %970 = vmatprep.subr.mxu0 0.0
    %971 = vmatpush1.msra.mxu0 %v378
    %972 = vmatprep.subr.mxu0 0.0
    %973 = vmatpush1.msra.mxu0 0.0
    %974 = vmatprep.subr.mxu0 0.0
    %975 = vmatpush1.msra.mxu0 0.0
    %976 = vmatprep.subr.mxu0 0.0
    %977 = vmatpush1.msra.mxu0 0.0
    %978 = vmatprep.subr.mxu0 0.0
    %979 = vmatpush1.msra.mxu0 0.0
    %980 = vmatprep.subr.mxu0 0.0
    %981 = vmatpush1.msra.mxu0 0.0
    %982 = vmatprep.subr.mxu0 0.0
    %983 = vmatpush1.msra.mxu0 0.0
    %984 = vmatprep.subr.mxu0 0.0
    %985 = vmatpush1.msra.mxu0 0.0
    %986 = vmatprep.subr.mxu0 0.0
    %987 = vmatpush1.msra.mxu0 0.0
    %988 = vmatprep.subr.mxu0 0.0
    %989 = vmatpush1.msra.mxu0 0.0
    %990 = vmatprep.subr.mxu0 0.0
    %991 = vmatpush1.msra.mxu0 0.0
    %992 = vmatprep.subr.mxu0 0.0
    %993 = vmatpush1.msra.mxu0 0.0
    %994 = vmatprep.subr.mxu0 0.0
    %995 = vmatpush1.msra.mxu0 0.0
    %996 = vmatprep.subr.mxu0 0.0
    %997 = vmatpush1.msra.mxu0 0.0
    %998 = vmatprep.subr.mxu0 0.0
    %999 = vmatpush1.msra.mxu0 0.0
    %1000 = vmatprep.subr.mxu0 0.0
    %1001 = vmatpush1.msra.mxu0 0.0
    %1002 = vmatprep.subr.mxu0 0.0
    %1003 = vmatpush1.msra.mxu0 0.0
    %1004 = vmatprep.subr.mxu0 0.0
    %1005 = vmatpush1.msra.mxu0 0.0
    %1006 = vmatprep.subr.mxu0 0.0
    %1007 = vmatpush1.msra.mxu0 0.0
    %1008 = vmatprep.subr.mxu0 0.0
    %1009 = vmatpush1.msra.mxu0 0.0
    %1010 = vmatprep.subr.mxu0 0.0
    %1011 = vmatpush1.msra.mxu0 0.0
    %1012 = vmatprep.subr.mxu0 0.0
    %1013 = vmatpush1.msra.mxu0 0.0
    %1014 = vmatprep.subr.mxu0 0.0
    %1015 = vmatpush1.msra.mxu0 0.0
    %1016 = vmatprep.subr.mxu0 0.0
    %1017 = vmatpush1.msra.mxu0 0.0
    %1018 = vmatprep.subr.mxu0 0.0
    %1019 = vmatpush1.msra.mxu0 0.0
    %1020 = vmatprep.subr.mxu0 0.0
    %1021 = vmatpush1.msra.mxu0 0.0
    %1022 = vmatprep.subr.mxu0 0.0
    %1023 = vmatpush1.msra.mxu0 0.0
    %1024 = vmatprep.subr.mxu0 0.0
    %1025 = vmatpush1.msra.mxu0 0.0
    %1026 = vmatprep.subr.mxu0 0.0
    %1027 = vmatpush1.msra.mxu0 0.0
    %1028 = vmatprep.mubr.f32.mxu0 0.0
    %1029 = vmatmul.mubr.f32.gmra.mrb[0].mxu0 %v962
    %v1030 = vpop.f32.mrb[0].mxu0
    %v1031 = vadd.f32 0.0, %v1030
    %v1032 = vpop.f32.mrb[0].mxu0
    %1033 = vdwg.mxu0
    %1034 = vmatprep.subr.mxu0 0.0
    %1035 = vmatpush1.msra.mxu0 %v478
    %1036 = vmatprep.subr.mxu0 0.0
    %1037 = vmatpush1.msra.mxu0 %v480
    %1038 = vmatprep.subr.mxu0 0.0
    %1039 = vmatpush1.msra.mxu0 %v482
    %1040 = vmatprep.subr.mxu0 0.0
    %1041 = vmatpush1.msra.mxu0 %v484
    %1042 = vmatprep.subr.mxu0 0.0
    %1043 = vmatpush1.msra.mxu0 0.0
    %1044 = vmatprep.subr.mxu0 0.0
    %1045 = vmatpush1.msra.mxu0 0.0
    %1046 = vmatprep.subr.mxu0 0.0
    %1047 = vmatpush1.msra.mxu0 0.0
    %1048 = vmatprep.subr.mxu0 0.0
    %1049 = vmatpush1.msra.mxu0 0.0
    %1050 = vmatprep.subr.mxu0 0.0
    %1051 = vmatpush1.msra.mxu0 0.0
    %1052 = vmatprep.subr.mxu0 0.0
    %1053 = vmatpush1.msra.mxu0 0.0
    %1054 = vmatprep.subr.mxu0 0.0
    %1055 = vmatpush1.msra.mxu0 0.0
    %1056 = vmatprep.subr.mxu0 0.0
    %1057 = vmatpush1.msra.mxu0 0.0
    %1058 = vmatprep.subr.mxu0 0.0
    %1059 = vmatpush1.msra.mxu0 0.0
    %1060 = vmatprep.subr.mxu0 0.0
    %1061 = vmatpush1.msra.mxu0 0.0
    %1062 = vmatprep.subr.mxu0 0.0
    %1063 = vmatpush1.msra.mxu0 0.0
    %1064 = vmatprep.subr.mxu0 0.0
    %1065 = vmatpush1.msra.mxu0 0.0
    %1066 = vmatprep.subr.mxu0 0.0
    %1067 = vmatpush1.msra.mxu0 0.0
    %1068 = vmatprep.subr.mxu0 0.0
    %1069 = vmatpush1.msra.mxu0 0.0
    %1070 = vmatprep.subr.mxu0 0.0
    %1071 = vmatpush1.msra.mxu0 0.0
    %1072 = vmatprep.subr.mxu0 0.0
    %1073 = vmatpush1.msra.mxu0 0.0
    %1074 = vmatprep.subr.mxu0 0.0
    %1075 = vmatpush1.msra.mxu0 0.0
    %1076 = vmatprep.subr.mxu0 0.0
    %1077 = vmatpush1.msra.mxu0 0.0
    %1078 = vmatprep.subr.mxu0 0.0
    %1079 = vmatpush1.msra.mxu0 0.0
    %1080 = vmatprep.subr.mxu0 0.0
    %1081 = vmatpush1.msra.mxu0 0.0
    %1082 = vmatprep.subr.mxu0 0.0
    %1083 = vmatpush1.msra.mxu0 0.0
    %1084 = vmatprep.subr.mxu0 0.0
    %1085 = vmatpush1.msra.mxu0 0.0
    %1086 = vmatprep.subr.mxu0 0.0
    %1087 = vmatpush1.msra.mxu0 0.0
    %1088 = vmatprep.subr.mxu0 0.0
    %1089 = vmatpush1.msra.mxu0 0.0
    %1090 = vmatprep.subr.mxu0 0.0
    %1091 = vmatpush1.msra.mxu0 0.0
    %1092 = vmatprep.subr.mxu0 0.0
    %1093 = vmatpush1.msra.mxu0 0.0
    %1094 = vmatprep.subr.mxu0 0.0
    %1095 = vmatpush1.msra.mxu0 0.0
    %1096 = vmatprep.subr.mxu0 0.0
    %1097 = vmatpush1.msra.mxu0 0.0
    %1098 = vmatprep.mubr.f32.mxu0 0.0
    %1099 = vmatmul.mubr.f32.gmra.mrb[0].mxu0 %v962
    %v1100 = vpop.f32.mrb[0].mxu0
    %v1101 = vadd.f32 0.0, %v1100
    %v1102 = vpop.f32.mrb[0].mxu0
    %1103 = vdwg.mxu0
    %v1104 = vrot.slane %v949, 7
    %1105 = vrot.lane.b32.xlu0 %v1104, 96
    %v1106 = vpop.permute.xlu0 %1105
    %v1107 = vsel %vm399, %v1106, 0
    %1109 = vmatprep.subr.mxu0 0.0
    %1110 = vmatpush1.msra.mxu0 %v380
    %1111 = vmatprep.subr.mxu0 0.0
    %1112 = vmatpush1.msra.mxu0 %v381
    %1113 = vmatprep.subr.mxu0 0.0
    %1114 = vmatpush1.msra.mxu0 %v382
    %1115 = vmatprep.subr.mxu0 0.0
    %1116 = vmatpush1.msra.mxu0 %v383
    %1117 = vmatprep.subr.mxu0 0.0
    %1118 = vmatpush1.msra.mxu0 0.0
    %1119 = vmatprep.subr.mxu0 0.0
    %1120 = vmatpush1.msra.mxu0 0.0
    %1121 = vmatprep.subr.mxu0 0.0
    %1122 = vmatpush1.msra.mxu0 0.0
    %1123 = vmatprep.subr.mxu0 0.0
    %1124 = vmatpush1.msra.mxu0 0.0
    %1125 = vmatprep.subr.mxu0 0.0
    %1126 = vmatpush1.msra.mxu0 0.0
    %1127 = vmatprep.subr.mxu0 0.0
    %1128 = vmatpush1.msra.mxu0 0.0
    %1129 = vmatprep.subr.mxu0 0.0
    %1130 = vmatpush1.msra.mxu0 0.0
    %1131 = vmatprep.subr.mxu0 0.0
    %1132 = vmatpush1.msra.mxu0 0.0
    %1133 = vmatprep.subr.mxu0 0.0
    %1134 = vmatpush1.msra.mxu0 0.0
    %1135 = vmatprep.subr.mxu0 0.0
    %1136 = vmatpush1.msra.mxu0 0.0
    %1137 = vmatprep.subr.mxu0 0.0
    %1138 = vmatpush1.msra.mxu0 0.0
    %1139 = vmatprep.subr.mxu0 0.0
    %1140 = vmatpush1.msra.mxu0 0.0
    %1141 = vmatprep.subr.mxu0 0.0
    %1142 = vmatpush1.msra.mxu0 0.0
    %1143 = vmatprep.subr.mxu0 0.0
    %1144 = vmatpush1.msra.mxu0 0.0
    %1145 = vmatprep.subr.mxu0 0.0
    %1146 = vmatpush1.msra.mxu0 0.0
    %1147 = vmatprep.subr.mxu0 0.0
    %1148 = vmatpush1.msra.mxu0 0.0
    %1149 = vmatprep.subr.mxu0 0.0
    %1150 = vmatpush1.msra.mxu0 0.0
    %1151 = vmatprep.subr.mxu0 0.0
    %1152 = vmatpush1.msra.mxu0 0.0
    %1153 = vmatprep.subr.mxu0 0.0
    %1154 = vmatpush1.msra.mxu0 0.0
    %1155 = vmatprep.subr.mxu0 0.0
    %1156 = vmatpush1.msra.mxu0 0.0
    %1157 = vmatprep.subr.mxu0 0.0
    %1158 = vmatpush1.msra.mxu0 0.0
    %1159 = vmatprep.subr.mxu0 0.0
    %1160 = vmatpush1.msra.mxu0 0.0
    %1161 = vmatprep.subr.mxu0 0.0
    %1162 = vmatpush1.msra.mxu0 0.0
    %1163 = vmatprep.subr.mxu0 0.0
    %1164 = vmatpush1.msra.mxu0 0.0
    %1165 = vmatprep.subr.mxu0 0.0
    %1166 = vmatpush1.msra.mxu0 0.0
    %1167 = vmatprep.subr.mxu0 0.0
    %1168 = vmatpush1.msra.mxu0 0.0
    %1169 = vmatprep.subr.mxu0 0.0
    %1170 = vmatpush1.msra.mxu0 0.0
    %1171 = vmatprep.subr.mxu0 0.0
    %1172 = vmatpush1.msra.mxu0 0.0
    %1173 = vmatprep.mubr.f32.mxu0 0.0
    %1174 = vmatmul.mubr.f32.gmra.mrb[0].mxu0 %v1107
    %v1175 = vpop.f32.mrb[0].mxu0
    %v1176 = vadd.f32 0.0, %v1175
    %v1177 = vpop.f32.mrb[0].mxu0
    %1178 = vdwg.mxu0
    %1179 = vmatprep.subr.mxu0 0.0
    %1180 = vmatpush1.msra.mxu0 %v634
    %1181 = vmatprep.subr.mxu0 0.0
    %1182 = vmatpush1.msra.mxu0 %v636
    %1183 = vmatprep.subr.mxu0 0.0
    %1184 = vmatpush1.msra.mxu0 %v638
    %1185 = vmatprep.subr.mxu0 0.0
    %1186 = vmatpush1.msra.mxu0 %v640
    %1187 = vmatprep.subr.mxu0 0.0
    %1188 = vmatpush1.msra.mxu0 0.0
    %1189 = vmatprep.subr.mxu0 0.0
    %1190 = vmatpush1.msra.mxu0 0.0
    %1191 = vmatprep.subr.mxu0 0.0
    %1192 = vmatpush1.msra.mxu0 0.0
    %1193 = vmatprep.subr.mxu0 0.0
    %1194 = vmatpush1.msra.mxu0 0.0
    %1195 = vmatprep.subr.mxu0 0.0
    %1196 = vmatpush1.msra.mxu0 0.0
    %1197 = vmatprep.subr.mxu0 0.0
    %1198 = vmatpush1.msra.mxu0 0.0
    %1199 = vmatprep.subr.mxu0 0.0
    %1200 = vmatpush1.msra.mxu0 0.0
    %1201 = vmatprep.subr.mxu0 0.0
    %1202 = vmatpush1.msra.mxu0 0.0
    %1203 = vmatprep.subr.mxu0 0.0
    %1204 = vmatpush1.msra.mxu0 0.0
    %1205 = vmatprep.subr.mxu0 0.0
    %1206 = vmatpush1.msra.mxu0 0.0
    %1207 = vmatprep.subr.mxu0 0.0
    %1208 = vmatpush1.msra.mxu0 0.0
    %1209 = vmatprep.subr.mxu0 0.0
    %1210 = vmatpush1.msra.mxu0 0.0
    %1211 = vmatprep.subr.mxu0 0.0
    %1212 = vmatpush1.msra.mxu0 0.0
    %1213 = vmatprep.subr.mxu0 0.0
    %1214 = vmatpush1.msra.mxu0 0.0
    %1215 = vmatprep.subr.mxu0 0.0
    %1216 = vmatpush1.msra.mxu0 0.0
    %1217 = vmatprep.subr.mxu0 0.0
    %1218 = vmatpush1.msra.mxu0 0.0
    %1219 = vmatprep.subr.mxu0 0.0
    %1220 = vmatpush1.msra.mxu0 0.0
    %1221 = vmatprep.subr.mxu0 0.0
    %1222 = vmatpush1.msra.mxu0 0.0
    %1223 = vmatprep.subr.mxu0 0.0
    %1224 = vmatpush1.msra.mxu0 0.0
    %1225 = vmatprep.subr.mxu0 0.0
    %1226 = vmatpush1.msra.mxu0 0.0
    %1227 = vmatprep.subr.mxu0 0.0
    %1228 = vmatpush1.msra.mxu0 0.0
    %1229 = vmatprep.subr.mxu0 0.0
    %1230 = vmatpush1.msra.mxu0 0.0
    %1231 = vmatprep.subr.mxu0 0.0
    %1232 = vmatpush1.msra.mxu0 0.0
    %1233 = vmatprep.subr.mxu0 0.0
    %1234 = vmatpush1.msra.mxu0 0.0
    %1235 = vmatprep.subr.mxu0 0.0
    %1236 = vmatpush1.msra.mxu0 0.0
    %1237 = vmatprep.subr.mxu0 0.0
    %1238 = vmatpush1.msra.mxu0 0.0
    %1239 = vmatprep.subr.mxu0 0.0
    %1240 = vmatpush1.msra.mxu0 0.0
    %1241 = vmatprep.subr.mxu0 0.0
    %1242 = vmatpush1.msra.mxu0 0.0
    %1243 = vmatprep.mubr.f32.mxu0 0.0
    %1244 = vmatmul.mubr.f32.gmra.mrb[0].mxu0 %v1107
    %v1245 = vpop.f32.mrb[0].mxu0
    %v1246 = vadd.f32 0.0, %v1245
    %v1247 = vpop.f32.mrb[0].mxu0
    %1248 = vdwg.mxu0
    %v1250 = vrot.slane %v1031, 7
    %v1252 = vadd.f32 %v391, %v1250
    %v1253 = vmul.f32 %v1252, 0.5
    %v1254 = vtanh.pop %v1253
    %v1255 = vadd.f32 %v1254, 1.0
    %v1256 = vmul.f32 %v1255, 0.5
    %v1258 = vrot.slane %v1101, 7
    %1259 = vrot.lane.b32.xlu0 %v1258, 32
    %v1260 = vpop.permute.xlu0 %1259
    %v1262 = vadd.f32 %v391, %v1260
    %v1263 = vmul.f32 %v1262, 0.5
    %v1264 = vtanh.pop %v1263
    %v1265 = vadd.f32 %v1264, 1.0
    %v1266 = vmul.f32 %v1265, 0.5
    %1267 = vmatprep.subr.mxu0 0.0
    %1268 = vmatpush1.msra.mxu0 %v730
    %1269 = vmatprep.subr.mxu0 0.0
    %1270 = vmatpush1.msra.mxu0 %v732
    %1271 = vmatprep.subr.mxu0 0.0
    %1272 = vmatpush1.msra.mxu0 %v734
    %1273 = vmatprep.subr.mxu0 0.0
    %1274 = vmatpush1.msra.mxu0 %v736
    %1275 = vmatprep.subr.mxu0 0.0
    %1276 = vmatpush1.msra.mxu0 0.0
    %1277 = vmatprep.subr.mxu0 0.0
    %1278 = vmatpush1.msra.mxu0 0.0
    %1279 = vmatprep.subr.mxu0 0.0
    %1280 = vmatpush1.msra.mxu0 0.0
    %1281 = vmatprep.subr.mxu0 0.0
    %1282 = vmatpush1.msra.mxu0 0.0
    %1283 = vmatprep.subr.mxu0 0.0
    %1284 = vmatpush1.msra.mxu0 0.0
    %1285 = vmatprep.subr.mxu0 0.0
    %1286 = vmatpush1.msra.mxu0 0.0
    %1287 = vmatprep.subr.mxu0 0.0
    %1288 = vmatpush1.msra.mxu0 0.0
    %1289 = vmatprep.subr.mxu0 0.0
    %1290 = vmatpush1.msra.mxu0 0.0
    %1291 = vmatprep.subr.mxu0 0.0
    %1292 = vmatpush1.msra.mxu0 0.0
    %1293 = vmatprep.subr.mxu0 0.0
    %1294 = vmatpush1.msra.mxu0 0.0
    %1295 = vmatprep.subr.mxu0 0.0
    %1296 = vmatpush1.msra.mxu0 0.0
    %1297 = vmatprep.subr.mxu0 0.0
    %1298 = vmatpush1.msra.mxu0 0.0
    %1299 = vmatprep.subr.mxu0 0.0
    %1300 = vmatpush1.msra.mxu0 0.0
    %1301 = vmatprep.subr.mxu0 0.0
    %1302 = vmatpush1.msra.mxu0 0.0
    %1303 = vmatprep.subr.mxu0 0.0
    %1304 = vmatpush1.msra.mxu0 0.0
    %1305 = vmatprep.subr.mxu0 0.0
    %1306 = vmatpush1.msra.mxu0 0.0
    %1307 = vmatprep.subr.mxu0 0.0
    %1308 = vmatpush1.msra.mxu0 0.0
    %1309 = vmatprep.subr.mxu0 0.0
    %1310 = vmatpush1.msra.mxu0 0.0
    %1311 = vmatprep.subr.mxu0 0.0
    %1312 = vmatpush1.msra.mxu0 0.0
    %1313 = vmatprep.subr.mxu0 0.0
    %1314 = vmatpush1.msra.mxu0 0.0
    %1315 = vmatprep.subr.mxu0 0.0
    %1316 = vmatpush1.msra.mxu0 0.0
    %1317 = vmatprep.subr.mxu0 0.0
    %1318 = vmatpush1.msra.mxu0 0.0
    %1319 = vmatprep.subr.mxu0 0.0
    %1320 = vmatpush1.msra.mxu0 0.0
    %1321 = vmatprep.subr.mxu0 0.0
    %1322 = vmatpush1.msra.mxu0 0.0
    %1323 = vmatprep.subr.mxu0 0.0
    %1324 = vmatpush1.msra.mxu0 0.0
    %1325 = vmatprep.subr.mxu0 0.0
    %1326 = vmatpush1.msra.mxu0 0.0
    %1327 = vmatprep.subr.mxu0 0.0
    %1328 = vmatpush1.msra.mxu0 0.0
    %1329 = vmatprep.subr.mxu0 0.0
    %1330 = vmatpush1.msra.mxu0 0.0
    %1331 = vmatprep.mubr.f32.mxu0 0.0
    %1332 = vmatmul.mubr.f32.gmra.mrb[0].mxu0 %v962
    %v1333 = vpop.f32.mrb[0].mxu0
    %v1334 = vadd.f32 %v742, %v1333
    %v1335 = vpop.f32.mrb[0].mxu0
    %1336 = vdwg.mxu0
    %v1338 = vrot.slane %v1334, 7
    %v1340 = vmul.f32 %v1256, %v1338
    %1342 = vrot.lane.b32.xlu0 %v1340, 64
    %v1343 = vpop.permute.xlu0 %1342
    %v1345 = vadd.f32 %v293, %v1343
    %v1346 = vtanh.pop %v1345
    %v1347 = vsub.f32 1.0, %v1266
    %1349 = vrot.lane.b32.xlu0 %v1346, 96
    %v1350 = vpop.permute.xlu0 %1349
    %v1352 = vmul.f32 %v1347, %v1350
    %v1353 = vrot.slane %v828, 7
    %v1355 = vmul.f32 %v1266, %v1353
    %v1356 = vadd.f32 %v1352, %v1355
    %v1358 = vrot.slane %v1176, 2
    %v1360 = vadd.f32 %v398, %v1358
    %v1361 = vmul.f32 %v1360, 0.5
    %v1362 = vtanh.pop %v1361
    %v1363 = vadd.f32 %v1362, 1.0
    %v1364 = vmul.f32 %v1363, 0.5
    %v1366 = vrot.slane %v1246, 2
    %1367 = vrot.lane.b32.xlu0 %v1366, 32
    %v1368 = vpop.permute.xlu0 %1367
    %v1370 = vadd.f32 %v398, %v1368
    %v1371 = vmul.f32 %v1370, 0.5
    %v1372 = vtanh.pop %v1371
    %v1373 = vadd.f32 %v1372, 1.0
    %v1374 = vmul.f32 %v1373, 0.5
    %1375 = vmatprep.subr.mxu0 0.0
    %1376 = vmatpush1.msra.mxu0 %v848
    %1377 = vmatprep.subr.mxu0 0.0
    %1378 = vmatpush1.msra.mxu0 %v850
    %1379 = vmatprep.subr.mxu0 0.0
    %1380 = vmatpush1.msra.mxu0 %v852
    %1381 = vmatprep.subr.mxu0 0.0
    %1382 = vmatpush1.msra.mxu0 %v854
    %1383 = vmatprep.subr.mxu0 0.0
    %1384 = vmatpush1.msra.mxu0 0.0
    %1385 = vmatprep.subr.mxu0 0.0
    %1386 = vmatpush1.msra.mxu0 0.0
    %1387 = vmatprep.subr.mxu0 0.0
    %1388 = vmatpush1.msra.mxu0 0.0
    %1389 = vmatprep.subr.mxu0 0.0
    %1390 = vmatpush1.msra.mxu0 0.0
    %1391 = vmatprep.subr.mxu0 0.0
    %1392 = vmatpush1.msra.mxu0 0.0
    %1393 = vmatprep.subr.mxu0 0.0
    %1394 = vmatpush1.msra.mxu0 0.0
    %1395 = vmatprep.subr.mxu0 0.0
    %1396 = vmatpush1.msra.mxu0 0.0
    %1397 = vmatprep.subr.mxu0 0.0
    %1398 = vmatpush1.msra.mxu0 0.0
    %1399 = vmatprep.subr.mxu0 0.0
    %1400 = vmatpush1.msra.mxu0 0.0
    %1401 = vmatprep.subr.mxu0 0.0
    %1402 = vmatpush1.msra.mxu0 0.0
    %1403 = vmatprep.subr.mxu0 0.0
    %1404 = vmatpush1.msra.mxu0 0.0
    %1405 = vmatprep.subr.mxu0 0.0
    %1406 = vmatpush1.msra.mxu0 0.0
    %1407 = vmatprep.subr.mxu0 0.0
    %1408 = vmatpush1.msra.mxu0 0.0
    %1409 = vmatprep.subr.mxu0 0.0
    %1410 = vmatpush1.msra.mxu0 0.0
    %1411 = vmatprep.subr.mxu0 0.0
    %1412 = vmatpush1.msra.mxu0 0.0
    %1413 = vmatprep.subr.mxu0 0.0
    %1414 = vmatpush1.msra.mxu0 0.0
    %1415 = vmatprep.subr.mxu0 0.0
    %1416 = vmatpush1.msra.mxu0 0.0
    %1417 = vmatprep.subr.mxu0 0.0
    %1418 = vmatpush1.msra.mxu0 0.0
    %1419 = vmatprep.subr.mxu0 0.0
    %1420 = vmatpush1.msra.mxu0 0.0
    %1421 = vmatprep.subr.mxu0 0.0
    %1422 = vmatpush1.msra.mxu0 0.0
    %1423 = vmatprep.subr.mxu0 0.0
    %1424 = vmatpush1.msra.mxu0 0.0
    %1425 = vmatprep.subr.mxu0 0.0
    %1426 = vmatpush1.msra.mxu0 0.0
    %1427 = vmatprep.subr.mxu0 0.0
    %1428 = vmatpush1.msra.mxu0 0.0
    %1429 = vmatprep.subr.mxu0 0.0
    %1430 = vmatpush1.msra.mxu0 0.0
    %1431 = vmatprep.subr.mxu0 0.0
    %1432 = vmatpush1.msra.mxu0 0.0
    %1433 = vmatprep.subr.mxu0 0.0
    %1434 = vmatpush1.msra.mxu0 0.0
    %1435 = vmatprep.subr.mxu0 0.0
    %1436 = vmatpush1.msra.mxu0 0.0
    %1437 = vmatprep.subr.mxu0 0.0
    %1438 = vmatpush1.msra.mxu0 0.0
    %1439 = vmatprep.mubr.f32.mxu0 0.0
    %1440 = vmatmul.mubr.f32.gmra.mrb[0].mxu0 %v1107
    %v1441 = vpop.f32.mrb[0].mxu0
    %v1442 = vadd.f32 %v860, %v1441
    %v1443 = vpop.f32.mrb[0].mxu0
    %1444 = vdwg.mxu0
    %v1446 = vrot.slane %v1442, 2
    %v1448 = vmul.f32 %v1364, %v1446
    %1450 = vrot.lane.b32.xlu0 %v1448, 64
    %v1451 = vpop.permute.xlu0 %1450
    %v1453 = vadd.f32 %v372, %v1451
    %v1454 = vtanh.pop %v1453
    %v1455 = vsub.f32 1.0, %v1374
    %1457 = vrot.lane.b32.xlu0 %v1454, 96
    %v1458 = vpop.permute.xlu0 %1457
    %v1460 = vmul.f32 %v1455, %v1458
    %v1461 = vrot.slane %v949, 1
    %v1463 = vmul.f32 %v1374, %v1461
    %v1464 = vadd.f32 %v1460, %v1463
    %1466 = vrot.lane.b32.xlu0 %v1356, 96
    %v1467 = vpop.permute.xlu0 %1466
    %vm1469 = vcmask 254977
    %1470 = vst.msk [vmem:[#allocation2] sm:$0x2] %vm1469, %v1467
    %1472 = vrot.lane.b32.xlu0 %v1464, 96
    %v1473 = vpop.permute.xlu0 %1472
    %vm1475 = vcmask 260102
    %1476 = vst.msk [vmem:[#allocation3] sm:$0x40] %vm1475, %v1473
    %v1477 = vrot.slane %v1356, 1
    %1478 = vrot.lane.b32.xlu0 %v1477, 96
    %v1479 = vpop.permute.xlu0 %1478
    %v1480 = vsel %vm399, %v1479, 0
    %1482 = vmatprep.subr.mxu0 0.0
    %1483 = vmatpush1.msra.mxu0 %v375
    %1484 = vmatprep.subr.mxu0 0.0
    %1485 = vmatpush1.msra.mxu0 %v376
    %1486 = vmatprep.subr.mxu0 0.0
    %1487 = vmatpush1.msra.mxu0 %v377
    %1488 = vmatprep.subr.mxu0 0.0
    %1489 = vmatpush1.msra.mxu0 %v378
    %1490 = vmatprep.subr.mxu0 0.0
    %1491 = vmatpush1.msra.mxu0 0.0
    %1492 = vmatprep.subr.mxu0 0.0
    %1493 = vmatpush1.msra.mxu0 0.0
    %1494 = vmatprep.subr.mxu0 0.0
    %1495 = vmatpush1.msra.mxu0 0.0
    %1496 = vmatprep.subr.mxu0 0.0
    %1497 = vmatpush1.msra.mxu0 0.0
    %1498 = vmatprep.subr.mxu0 0.0
    %1499 = vmatpush1.msra.mxu0 0.0
    %1500 = vmatprep.subr.mxu0 0.0
    %1501 = vmatpush1.msra.mxu0 0.0
    %1502 = vmatprep.subr.mxu0 0.0
    %1503 = vmatpush1.msra.mxu0 0.0
    %1504 = vmatprep.subr.mxu0 0.0
    %1505 = vmatpush1.msra.mxu0 0.0
    %1506 = vmatprep.subr.mxu0 0.0
    %1507 = vmatpush1.msra.mxu0 0.0
    %1508 = vmatprep.subr.mxu0 0.0
    %1509 = vmatpush1.msra.mxu0 0.0
    %1510 = vmatprep.subr.mxu0 0.0
    %1511 = vmatpush1.msra.mxu0 0.0
    %1512 = vmatprep.subr.mxu0 0.0
    %1513 = vmatpush1.msra.mxu0 0.0
    %1514 = vmatprep.subr.mxu0 0.0
    %1515 = vmatpush1.msra.mxu0 0.0
    %1516 = vmatprep.subr.mxu0 0.0
    %1517 = vmatpush1.msra.mxu0 0.0
    %1518 = vmatprep.subr.mxu0 0.0
    %1519 = vmatpush1.msra.mxu0 0.0
    %1520 = vmatprep.subr.mxu0 0.0
    %1521 = vmatpush1.msra.mxu0 0.0
    %1522 = vmatprep.subr.mxu0 0.0
    %1523 = vmatpush1.msra.mxu0 0.0
    %1524 = vmatprep.subr.mxu0 0.0
    %1525 = vmatpush1.msra.mxu0 0.0
    %1526 = vmatprep.subr.mxu0 0.0
    %1527 = vmatpush1.msra.mxu0 0.0
    %1528 = vmatprep.subr.mxu0 0.0
    %1529 = vmatpush1.msra.mxu0 0.0
    %1530 = vmatprep.subr.mxu0 0.0
    %1531 = vmatpush1.msra.mxu0 0.0
    %1532 = vmatprep.subr.mxu0 0.0
    %1533 = vmatpush1.msra.mxu0 0.0
    %1534 = vmatprep.subr.mxu0 0.0
    %1535 = vmatpush1.msra.mxu0 0.0
    %1536 = vmatprep.subr.mxu0 0.0
    %1537 = vmatpush1.msra.mxu0 0.0
    %1538 = vmatprep.subr.mxu0 0.0
    %1539 = vmatpush1.msra.mxu0 0.0
    %1540 = vmatprep.subr.mxu0 0.0
    %1541 = vmatpush1.msra.mxu0 0.0
    %1542 = vmatprep.subr.mxu0 0.0
    %1543 = vmatpush1.msra.mxu0 0.0
    %1544 = vmatprep.subr.mxu0 0.0
    %1545 = vmatpush1.msra.mxu0 0.0
    %1546 = vmatprep.mubr.f32.mxu0 0.0
    %1547 = vmatmul.mubr.f32.gmra.mrb[0].mxu0 %v1480
    %v1548 = vpop.f32.mrb[0].mxu0
    %v1549 = vadd.f32 0.0, %v1548
    %v1550 = vpop.f32.mrb[0].mxu0
    %1551 = vdwg.mxu0
    %1552 = vmatprep.subr.mxu0 0.0
    %1553 = vmatpush1.msra.mxu0 %v478
    %1554 = vmatprep.subr.mxu0 0.0
    %1555 = vmatpush1.msra.mxu0 %v480
    %1556 = vmatprep.subr.mxu0 0.0
    %1557 = vmatpush1.msra.mxu0 %v482
    %1558 = vmatprep.subr.mxu0 0.0
    %1559 = vmatpush1.msra.mxu0 %v484
    %1560 = vmatprep.subr.mxu0 0.0
    %1561 = vmatpush1.msra.mxu0 0.0
    %1562 = vmatprep.subr.mxu0 0.0
    %1563 = vmatpush1.msra.mxu0 0.0
    %1564 = vmatprep.subr.mxu0 0.0
    %1565 = vmatpush1.msra.mxu0 0.0
    %1566 = vmatprep.subr.mxu0 0.0
    %1567 = vmatpush1.msra.mxu0 0.0
    %1568 = vmatprep.subr.mxu0 0.0
    %1569 = vmatpush1.msra.mxu0 0.0
    %1570 = vmatprep.subr.mxu0 0.0
    %1571 = vmatpush1.msra.mxu0 0.0
    %1572 = vmatprep.subr.mxu0 0.0
    %1573 = vmatpush1.msra.mxu0 0.0
    %1574 = vmatprep.subr.mxu0 0.0
    %1575 = vmatpush1.msra.mxu0 0.0
    %1576 = vmatprep.subr.mxu0 0.0
    %1577 = vmatpush1.msra.mxu0 0.0
    %1578 = vmatprep.subr.mxu0 0.0
    %1579 = vmatpush1.msra.mxu0 0.0
    %1580 = vmatprep.subr.mxu0 0.0
    %1581 = vmatpush1.msra.mxu0 0.0
    %1582 = vmatprep.subr.mxu0 0.0
    %1583 = vmatpush1.msra.mxu0 0.0
    %1584 = vmatprep.subr.mxu0 0.0
    %1585 = vmatpush1.msra.mxu0 0.0
    %1586 = vmatprep.subr.mxu0 0.0
    %1587 = vmatpush1.msra.mxu0 0.0
    %1588 = vmatprep.subr.mxu0 0.0
    %1589 = vmatpush1.msra.mxu0 0.0
    %1590 = vmatprep.subr.mxu0 0.0
    %1591 = vmatpush1.msra.mxu0 0.0
    %1592 = vmatprep.subr.mxu0 0.0
    %1593 = vmatpush1.msra.mxu0 0.0
    %1594 = vmatprep.subr.mxu0 0.0
    %1595 = vmatpush1.msra.mxu0 0.0
    %1596 = vmatprep.subr.mxu0 0.0
    %1597 = vmatpush1.msra.mxu0 0.0
    %1598 = vmatprep.subr.mxu0 0.0
    %1599 = vmatpush1.msra.mxu0 0.0
    %1600 = vmatprep.subr.mxu0 0.0
    %1601 = vmatpush1.msra.mxu0 0.0
    %1602 = vmatprep.subr.mxu0 0.0
    %1603 = vmatpush1.msra.mxu0 0.0
    %1604 = vmatprep.subr.mxu0 0.0
    %1605 = vmatpush1.msra.mxu0 0.0
    %1606 = vmatprep.subr.mxu0 0.0
    %1607 = vmatpush1.msra.mxu0 0.0
    %1608 = vmatprep.subr.mxu0 0.0
    %1609 = vmatpush1.msra.mxu0 0.0
    %1610 = vmatprep.subr.mxu0 0.0
    %1611 = vmatpush1.msra.mxu0 0.0
    %1612 = vmatprep.subr.mxu0 0.0
    %1613 = vmatpush1.msra.mxu0 0.0
    %1614 = vmatprep.subr.mxu0 0.0
    %1615 = vmatpush1.msra.mxu0 0.0
    %1616 = vmatprep.mubr.f32.mxu0 0.0
    %1617 = vmatmul.mubr.f32.gmra.mrb[0].mxu0 %v1480
    %v1618 = vpop.f32.mrb[0].mxu0
    %v1619 = vadd.f32 0.0, %v1618
    %v1620 = vpop.f32.mrb[0].mxu0
    %1621 = vdwg.mxu0
    %v1622 = vrot.slane %v1464, 6
    %1623 = vrot.lane.b32.xlu0 %v1622, 96
    %v1624 = vpop.permute.xlu0 %1623
    %v1625 = vsel %vm399, %v1624, 0
    %1627 = vmatprep.subr.mxu0 0.0
    %1628 = vmatpush1.msra.mxu0 %v380
    %1629 = vmatprep.subr.mxu0 0.0
    %1630 = vmatpush1.msra.mxu0 %v381
    %1631 = vmatprep.subr.mxu0 0.0
    %1632 = vmatpush1.msra.mxu0 %v382
    %1633 = vmatprep.subr.mxu0 0.0
    %1634 = vmatpush1.msra.mxu0 %v383
    %1635 = vmatprep.subr.mxu0 0.0
    %1636 = vmatpush1.msra.mxu0 0.0
    %1637 = vmatprep.subr.mxu0 0.0
    %1638 = vmatpush1.msra.mxu0 0.0
    %1639 = vmatprep.subr.mxu0 0.0
    %1640 = vmatpush1.msra.mxu0 0.0
    %1641 = vmatprep.subr.mxu0 0.0
    %1642 = vmatpush1.msra.mxu0 0.0
    %1643 = vmatprep.subr.mxu0 0.0
    %1644 = vmatpush1.msra.mxu0 0.0
    %1645 = vmatprep.subr.mxu0 0.0
    %1646 = vmatpush1.msra.mxu0 0.0
    %1647 = vmatprep.subr.mxu0 0.0
    %1648 = vmatpush1.msra.mxu0 0.0
    %1649 = vmatprep.subr.mxu0 0.0
    %1650 = vmatpush1.msra.mxu0 0.0
    %1651 = vmatprep.subr.mxu0 0.0
    %1652 = vmatpush1.msra.mxu0 0.0
    %1653 = vmatprep.subr.mxu0 0.0
    %1654 = vmatpush1.msra.mxu0 0.0
    %1655 = vmatprep.subr.mxu0 0.0
    %1656 = vmatpush1.msra.mxu0 0.0
    %1657 = vmatprep.subr.mxu0 0.0
    %1658 = vmatpush1.msra.mxu0 0.0
    %1659 = vmatprep.subr.mxu0 0.0
    %1660 = vmatpush1.msra.mxu0 0.0
    %1661 = vmatprep.subr.mxu0 0.0
    %1662 = vmatpush1.msra.mxu0 0.0
    %1663 = vmatprep.subr.mxu0 0.0
    %1664 = vmatpush1.msra.mxu0 0.0
    %1665 = vmatprep.subr.mxu0 0.0
    %1666 = vmatpush1.msra.mxu0 0.0
    %1667 = vmatprep.subr.mxu0 0.0
    %1668 = vmatpush1.msra.mxu0 0.0
    %1669 = vmatprep.subr.mxu0 0.0
    %1670 = vmatpush1.msra.mxu0 0.0
    %1671 = vmatprep.subr.mxu0 0.0
    %1672 = vmatpush1.msra.mxu0 0.0
    %1673 = vmatprep.subr.mxu0 0.0
    %1674 = vmatpush1.msra.mxu0 0.0
    %1675 = vmatprep.subr.mxu0 0.0
    %1676 = vmatpush1.msra.mxu0 0.0
    %1677 = vmatprep.subr.mxu0 0.0
    %1678 = vmatpush1.msra.mxu0 0.0
    %1679 = vmatprep.subr.mxu0 0.0
    %1680 = vmatpush1.msra.mxu0 0.0
    %1681 = vmatprep.subr.mxu0 0.0
    %1682 = vmatpush1.msra.mxu0 0.0
    %1683 = vmatprep.subr.mxu0 0.0
    %1684 = vmatpush1.msra.mxu0 0.0
    %1685 = vmatprep.subr.mxu0 0.0
    %1686 = vmatpush1.msra.mxu0 0.0
    %1687 = vmatprep.subr.mxu0 0.0
    %1688 = vmatpush1.msra.mxu0 0.0
    %1689 = vmatprep.subr.mxu0 0.0
    %1690 = vmatpush1.msra.mxu0 0.0
    %1691 = vmatprep.mubr.f32.mxu0 0.0
    %1692 = vmatmul.mubr.f32.gmra.mrb[0].mxu0 %v1625
    %v1693 = vpop.f32.mrb[0].mxu0
    %v1694 = vadd.f32 0.0, %v1693
    %v1695 = vpop.f32.mrb[0].mxu0
    %1696 = vdwg.mxu0
    %1697 = vmatprep.subr.mxu0 0.0
    %1698 = vmatpush1.msra.mxu0 %v634
    %1699 = vmatprep.subr.mxu0 0.0
    %1700 = vmatpush1.msra.mxu0 %v636
    %1701 = vmatprep.subr.mxu0 0.0
    %1702 = vmatpush1.msra.mxu0 %v638
    %1703 = vmatprep.subr.mxu0 0.0
    %1704 = vmatpush1.msra.mxu0 %v640
    %1705 = vmatprep.subr.mxu0 0.0
    %1706 = vmatpush1.msra.mxu0 0.0
    %1707 = vmatprep.subr.mxu0 0.0
    %1708 = vmatpush1.msra.mxu0 0.0
    %1709 = vmatprep.subr.mxu0 0.0
    %1710 = vmatpush1.msra.mxu0 0.0
    %1711 = vmatprep.subr.mxu0 0.0
    %1712 = vmatpush1.msra.mxu0 0.0
    %1713 = vmatprep.subr.mxu0 0.0
    %1714 = vmatpush1.msra.mxu0 0.0
    %1715 = vmatprep.subr.mxu0 0.0
    %1716 = vmatpush1.msra.mxu0 0.0
    %1717 = vmatprep.subr.mxu0 0.0
    %1718 = vmatpush1.msra.mxu0 0.0
    %1719 = vmatprep.subr.mxu0 0.0
    %1720 = vmatpush1.msra.mxu0 0.0
    %1721 = vmatprep.subr.mxu0 0.0
    %1722 = vmatpush1.msra.mxu0 0.0
    %1723 = vmatprep.subr.mxu0 0.0
    %1724 = vmatpush1.msra.mxu0 0.0
    %1725 = vmatprep.subr.mxu0 0.0
    %1726 = vmatpush1.msra.mxu0 0.0
    %1727 = vmatprep.subr.mxu0 0.0
    %1728 = vmatpush1.msra.mxu0 0.0
    %1729 = vmatprep.subr.mxu0 0.0
    %1730 = vmatpush1.msra.mxu0 0.0
    %1731 = vmatprep.subr.mxu0 0.0
    %1732 = vmatpush1.msra.mxu0 0.0
    %1733 = vmatprep.subr.mxu0 0.0
    %1734 = vmatpush1.msra.mxu0 0.0
    %1735 = vmatprep.subr.mxu0 0.0
    %1736 = vmatpush1.msra.mxu0 0.0
    %1737 = vmatprep.subr.mxu0 0.0
    %1738 = vmatpush1.msra.mxu0 0.0
    %1739 = vmatprep.subr.mxu0 0.0
    %1740 = vmatpush1.msra.mxu0 0.0
    %1741 = vmatprep.subr.mxu0 0.0
    %1742 = vmatpush1.msra.mxu0 0.0
    %1743 = vmatprep.subr.mxu0 0.0
    %1744 = vmatpush1.msra.mxu0 0.0
    %1745 = vmatprep.subr.mxu0 0.0
    %1746 = vmatpush1.msra.mxu0 0.0
    %1747 = vmatprep.subr.mxu0 0.0
    %1748 = vmatpush1.msra.mxu0 0.0
    %1749 = vmatprep.subr.mxu0 0.0
    %1750 = vmatpush1.msra.mxu0 0.0
    %1751 = vmatprep.subr.mxu0 0.0
    %1752 = vmatpush1.msra.mxu0 0.0
    %1753 = vmatprep.subr.mxu0 0.0
    %1754 = vmatpush1.msra.mxu0 0.0
    %1755 = vmatprep.subr.mxu0 0.0
    %1756 = vmatpush1.msra.mxu0 0.0
    %1757 = vmatprep.subr.mxu0 0.0
    %1758 = vmatpush1.msra.mxu0 0.0
    %1759 = vmatprep.subr.mxu0 0.0
    %1760 = vmatpush1.msra.mxu0 0.0
    %1761 = vmatprep.mubr.f32.mxu0 0.0
    %1762 = vmatmul.mubr.f32.gmra.mrb[0].mxu0 %v1625
    %v1763 = vpop.f32.mrb[0].mxu0
    %v1764 = vadd.f32 0.0, %v1763
    %v1765 = vpop.f32.mrb[0].mxu0
    %1766 = vdwg.mxu0
    %v1768 = vrot.slane %v1549, 6
    %v1770 = vadd.f32 %v391, %v1768
    %v1771 = vmul.f32 %v1770, 0.5
    %v1772 = vtanh.pop %v1771
    %v1773 = vadd.f32 %v1772, 1.0
    %v1774 = vmul.f32 %v1773, 0.5
    %v1776 = vrot.slane %v1619, 6
    %1777 = vrot.lane.b32.xlu0 %v1776, 32
    %v1778 = vpop.permute.xlu0 %1777
    %v1780 = vadd.f32 %v391, %v1778
    %v1781 = vmul.f32 %v1780, 0.5
    %v1782 = vtanh.pop %v1781
    %v1783 = vadd.f32 %v1782, 1.0
    %v1784 = vmul.f32 %v1783, 0.5
    %1785 = vmatprep.subr.mxu0 0.0
    %1786 = vmatpush1.msra.mxu0 %v730
    %1787 = vmatprep.subr.mxu0 0.0
    %1788 = vmatpush1.msra.mxu0 %v732
    %1789 = vmatprep.subr.mxu0 0.0
    %1790 = vmatpush1.msra.mxu0 %v734
    %1791 = vmatprep.subr.mxu0 0.0
    %1792 = vmatpush1.msra.mxu0 %v736
    %1793 = vmatprep.subr.mxu0 0.0
    %1794 = vmatpush1.msra.mxu0 0.0
    %1795 = vmatprep.subr.mxu0 0.0
    %1796 = vmatpush1.msra.mxu0 0.0
    %1797 = vmatprep.subr.mxu0 0.0
    %1798 = vmatpush1.msra.mxu0 0.0
    %1799 = vmatprep.subr.mxu0 0.0
    %1800 = vmatpush1.msra.mxu0 0.0
    %1801 = vmatprep.subr.mxu0 0.0
    %1802 = vmatpush1.msra.mxu0 0.0
    %1803 = vmatprep.subr.mxu0 0.0
    %1804 = vmatpush1.msra.mxu0 0.0
    %1805 = vmatprep.subr.mxu0 0.0
    %1806 = vmatpush1.msra.mxu0 0.0
    %1807 = vmatprep.subr.mxu0 0.0
    %1808 = vmatpush1.msra.mxu0 0.0
    %1809 = vmatprep.subr.mxu0 0.0
    %1810 = vmatpush1.msra.mxu0 0.0
    %1811 = vmatprep.subr.mxu0 0.0
    %1812 = vmatpush1.msra.mxu0 0.0
    %1813 = vmatprep.subr.mxu0 0.0
    %1814 = vmatpush1.msra.mxu0 0.0
    %1815 = vmatprep.subr.mxu0 0.0
    %1816 = vmatpush1.msra.mxu0 0.0
    %1817 = vmatprep.subr.mxu0 0.0
    %1818 = vmatpush1.msra.mxu0 0.0
    %1819 = vmatprep.subr.mxu0 0.0
    %1820 = vmatpush1.msra.mxu0 0.0
    %1821 = vmatprep.subr.mxu0 0.0
    %1822 = vmatpush1.msra.mxu0 0.0
    %1823 = vmatprep.subr.mxu0 0.0
    %1824 = vmatpush1.msra.mxu0 0.0
    %1825 = vmatprep.subr.mxu0 0.0
    %1826 = vmatpush1.msra.mxu0 0.0
    %1827 = vmatprep.subr.mxu0 0.0
    %1828 = vmatpush1.msra.mxu0 0.0
    %1829 = vmatprep.subr.mxu0 0.0
    %1830 = vmatpush1.msra.mxu0 0.0
    %1831 = vmatprep.subr.mxu0 0.0
    %1832 = vmatpush1.msra.mxu0 0.0
    %1833 = vmatprep.subr.mxu0 0.0
    %1834 = vmatpush1.msra.mxu0 0.0
    %1835 = vmatprep.subr.mxu0 0.0
    %1836 = vmatpush1.msra.mxu0 0.0
    %1837 = vmatprep.subr.mxu0 0.0
    %1838 = vmatpush1.msra.mxu0 0.0
    %1839 = vmatprep.subr.mxu0 0.0
    %1840 = vmatpush1.msra.mxu0 0.0
    %1841 = vmatprep.subr.mxu0 0.0
    %1842 = vmatpush1.msra.mxu0 0.0
    %1843 = vmatprep.subr.mxu0 0.0
    %1844 = vmatpush1.msra.mxu0 0.0
    %1845 = vmatprep.subr.mxu0 0.0
    %1846 = vmatpush1.msra.mxu0 0.0
    %1847 = vmatprep.subr.mxu0 0.0
    %1848 = vmatpush1.msra.mxu0 0.0
    %1849 = vmatprep.mubr.f32.mxu0 0.0
    %1850 = vmatmul.mubr.f32.gmra.mrb[0].mxu0 %v1480
    %v1851 = vpop.f32.mrb[0].mxu0
    %v1852 = vadd.f32 %v742, %v1851
    %v1853 = vpop.f32.mrb[0].mxu0
    %1854 = vdwg.mxu0
    %v1856 = vrot.slane %v1852, 6
    %v1858 = vmul.f32 %v1774, %v1856
    %1860 = vrot.lane.b32.xlu0 %v1858, 64
    %v1861 = vpop.permute.xlu0 %1860
    %v1863 = vadd.f32 %v293, %v1861
    %v1864 = vtanh.pop %v1863
    %v1865 = vsub.f32 1.0, %v1784
    %1867 = vrot.lane.b32.xlu0 %v1864, 96
    %v1868 = vpop.permute.xlu0 %1867
    %v1870 = vmul.f32 %v1865, %v1868
    %v1871 = vrot.slane %v1356, 7
    %v1873 = vmul.f32 %v1784, %v1871
    %v1874 = vadd.f32 %v1870, %v1873
    %v1876 = vrot.slane %v1694, 3
    %v1878 = vadd.f32 %v398, %v1876
    %v1879 = vmul.f32 %v1878, 0.5
    %v1880 = vtanh.pop %v1879
    %v1881 = vadd.f32 %v1880, 1.0
    %v1882 = vmul.f32 %v1881, 0.5
    %v1884 = vrot.slane %v1764, 3
    %1885 = vrot.lane.b32.xlu0 %v1884, 32
    %v1886 = vpop.permute.xlu0 %1885
    %v1888 = vadd.f32 %v398, %v1886
    %v1889 = vmul.f32 %v1888, 0.5
    %v1890 = vtanh.pop %v1889
    %v1891 = vadd.f32 %v1890, 1.0
    %v1892 = vmul.f32 %v1891, 0.5
    %1893 = vmatprep.subr.mxu0 0.0
    %1894 = vmatpush1.msra.mxu0 %v848
    %1895 = vmatprep.subr.mxu0 0.0
    %1896 = vmatpush1.msra.mxu0 %v850
    %1897 = vmatprep.subr.mxu0 0.0
    %1898 = vmatpush1.msra.mxu0 %v852
    %1899 = vmatprep.subr.mxu0 0.0
    %1900 = vmatpush1.msra.mxu0 %v854
    %1901 = vmatprep.subr.mxu0 0.0
    %1902 = vmatpush1.msra.mxu0 0.0
    %1903 = vmatprep.subr.mxu0 0.0
    %1904 = vmatpush1.msra.mxu0 0.0
    %1905 = vmatprep.subr.mxu0 0.0
    %1906 = vmatpush1.msra.mxu0 0.0
    %1907 = vmatprep.subr.mxu0 0.0
    %1908 = vmatpush1.msra.mxu0 0.0
    %1909 = vmatprep.subr.mxu0 0.0
    %1910 = vmatpush1.msra.mxu0 0.0
    %1911 = vmatprep.subr.mxu0 0.0
    %1912 = vmatpush1.msra.mxu0 0.0
    %1913 = vmatprep.subr.mxu0 0.0
    %1914 = vmatpush1.msra.mxu0 0.0
    %1915 = vmatprep.subr.mxu0 0.0
    %1916 = vmatpush1.msra.mxu0 0.0
    %1917 = vmatprep.subr.mxu0 0.0
    %1918 = vmatpush1.msra.mxu0 0.0
    %1919 = vmatprep.subr.mxu0 0.0
    %1920 = vmatpush1.msra.mxu0 0.0
    %1921 = vmatprep.subr.mxu0 0.0
    %1922 = vmatpush1.msra.mxu0 0.0
    %1923 = vmatprep.subr.mxu0 0.0
    %1924 = vmatpush1.msra.mxu0 0.0
    %1925 = vmatprep.subr.mxu0 0.0
    %1926 = vmatpush1.msra.mxu0 0.0
    %1927 = vmatprep.subr.mxu0 0.0
    %1928 = vmatpush1.msra.mxu0 0.0
    %1929 = vmatprep.subr.mxu0 0.0
    %1930 = vmatpush1.msra.mxu0 0.0
    %1931 = vmatprep.subr.mxu0 0.0
    %1932 = vmatpush1.msra.mxu0 0.0
    %1933 = vmatprep.subr.mxu0 0.0
    %1934 = vmatpush1.msra.mxu0 0.0
    %1935 = vmatprep.subr.mxu0 0.0
    %1936 = vmatpush1.msra.mxu0 0.0
    %1937 = vmatprep.subr.mxu0 0.0
    %1938 = vmatpush1.msra.mxu0 0.0
    %1939 = vmatprep.subr.mxu0 0.0
    %1940 = vmatpush1.msra.mxu0 0.0
    %1941 = vmatprep.subr.mxu0 0.0
    %1942 = vmatpush1.msra.mxu0 0.0
    %1943 = vmatprep.subr.mxu0 0.0
    %1944 = vmatpush1.msra.mxu0 0.0
    %1945 = vmatprep.subr.mxu0 0.0
    %1946 = vmatpush1.msra.mxu0 0.0
    %1947 = vmatprep.subr.mxu0 0.0
    %1948 = vmatpush1.msra.mxu0 0.0
    %1949 = vmatprep.subr.mxu0 0.0
    %1950 = vmatpush1.msra.mxu0 0.0
    %1951 = vmatprep.subr.mxu0 0.0
    %1952 = vmatpush1.msra.mxu0 0.0
    %1953 = vmatprep.subr.mxu0 0.0
    %1954 = vmatpush1.msra.mxu0 0.0
    %1955 = vmatprep.subr.mxu0 0.0
    %1956 = vmatpush1.msra.mxu0 0.0
    %1957 = vmatprep.mubr.f32.mxu0 0.0
    %1958 = vmatmul.mubr.f32.gmra.mrb[0].mxu0 %v1625
    %v1959 = vpop.f32.mrb[0].mxu0
    %v1960 = vadd.f32 %v860, %v1959
    %v1961 = vpop.f32.mrb[0].mxu0
    %1962 = vdwg.mxu0
    %v1964 = vrot.slane %v1960, 3
    %v1966 = vmul.f32 %v1882, %v1964
    %1968 = vrot.lane.b32.xlu0 %v1966, 64
    %v1969 = vpop.permute.xlu0 %1968
    %v1971 = vadd.f32 %v372, %v1969
    %v1972 = vtanh.pop %v1971
    %v1973 = vsub.f32 1.0, %v1892
    %1975 = vrot.lane.b32.xlu0 %v1972, 96
    %v1976 = vpop.permute.xlu0 %1975
    %v1978 = vmul.f32 %v1973, %v1976
    %v1979 = vrot.slane %v1464, 1
    %v1981 = vmul.f32 %v1892, %v1979
    %v1982 = vadd.f32 %v1978, %v1981
    %1984 = vrot.lane.b32.xlu0 %v1874, 96
    %v1985 = vpop.permute.xlu0 %1984
    %vm1987 = vcmask 256002
    %1988 = vst.msk [vmem:[#allocation2] sm:$0x4] %vm1987, %v1985
    %1990 = vrot.lane.b32.xlu0 %v1982, 96
    %v1991 = vpop.permute.xlu0 %1990
    %vm1993 = vcmask 259077
    %1994 = vst.msk [vmem:[#allocation3] sm:$0x20] %vm1993, %v1991
    %v1995 = vrot.slane %v1874, 2
    %1996 = vrot.lane.b32.xlu0 %v1995, 96
    %v1997 = vpop.permute.xlu0 %1996
    %v1998 = vsel %vm399, %v1997, 0
    %2000 = vmatprep.subr.mxu0 0.0
    %2001 = vmatpush1.msra.mxu0 %v375
    %2002 = vmatprep.subr.mxu0 0.0
    %2003 = vmatpush1.msra.mxu0 %v376
    %2004 = vmatprep.subr.mxu0 0.0
    %2005 = vmatpush1.msra.mxu0 %v377
    %2006 = vmatprep.subr.mxu0 0.0
    %2007 = vmatpush1.msra.mxu0 %v378
    %2008 = vmatprep.subr.mxu0 0.0
    %2009 = vmatpush1.msra.mxu0 0.0
    %2010 = vmatprep.subr.mxu0 0.0
    %2011 = vmatpush1.msra.mxu0 0.0
    %2012 = vmatprep.subr.mxu0 0.0
    %2013 = vmatpush1.msra.mxu0 0.0
    %2014 = vmatprep.subr.mxu0 0.0
    %2015 = vmatpush1.msra.mxu0 0.0
    %2016 = vmatprep.subr.mxu0 0.0
    %2017 = vmatpush1.msra.mxu0 0.0
    %2018 = vmatprep.subr.mxu0 0.0
    %2019 = vmatpush1.msra.mxu0 0.0
    %2020 = vmatprep.subr.mxu0 0.0
    %2021 = vmatpush1.msra.mxu0 0.0
    %2022 = vmatprep.subr.mxu0 0.0
    %2023 = vmatpush1.msra.mxu0 0.0
    %2024 = vmatprep.subr.mxu0 0.0
    %2025 = vmatpush1.msra.mxu0 0.0
    %2026 = vmatprep.subr.mxu0 0.0
    %2027 = vmatpush1.msra.mxu0 0.0
    %2028 = vmatprep.subr.mxu0 0.0
    %2029 = vmatpush1.msra.mxu0 0.0
    %2030 = vmatprep.subr.mxu0 0.0
    %2031 = vmatpush1.msra.mxu0 0.0
    %2032 = vmatprep.subr.mxu0 0.0
    %2033 = vmatpush1.msra.mxu0 0.0
    %2034 = vmatprep.subr.mxu0 0.0
    %2035 = vmatpush1.msra.mxu0 0.0
    %2036 = vmatprep.subr.mxu0 0.0
    %2037 = vmatpush1.msra.mxu0 0.0
    %2038 = vmatprep.subr.mxu0 0.0
    %2039 = vmatpush1.msra.mxu0 0.0
    %2040 = vmatprep.subr.mxu0 0.0
    %2041 = vmatpush1.msra.mxu0 0.0
    %2042 = vmatprep.subr.mxu0 0.0
    %2043 = vmatpush1.msra.mxu0 0.0
    %2044 = vmatprep.subr.mxu0 0.0
    %2045 = vmatpush1.msra.mxu0 0.0
    %2046 = vmatprep.subr.mxu0 0.0
    %2047 = vmatpush1.msra.mxu0 0.0
    %2048 = vmatprep.subr.mxu0 0.0
    %2049 = vmatpush1.msra.mxu0 0.0
    %2050 = vmatprep.subr.mxu0 0.0
    %2051 = vmatpush1.msra.mxu0 0.0
    %2052 = vmatprep.subr.mxu0 0.0
    %2053 = vmatpush1.msra.mxu0 0.0
    %2054 = vmatprep.subr.mxu0 0.0
    %2055 = vmatpush1.msra.mxu0 0.0
    %2056 = vmatprep.subr.mxu0 0.0
    %2057 = vmatpush1.msra.mxu0 0.0
    %2058 = vmatprep.subr.mxu0 0.0
    %2059 = vmatpush1.msra.mxu0 0.0
    %2060 = vmatprep.subr.mxu0 0.0
    %2061 = vmatpush1.msra.mxu0 0.0
    %2062 = vmatprep.subr.mxu0 0.0
    %2063 = vmatpush1.msra.mxu0 0.0
    %2064 = vmatprep.mubr.f32.mxu0 0.0
    %2065 = vmatmul.mubr.f32.gmra.mrb[0].mxu0 %v1998
    %v2066 = vpop.f32.mrb[0].mxu0
    %v2067 = vadd.f32 0.0, %v2066
    %v2068 = vpop.f32.mrb[0].mxu0
    %2069 = vdwg.mxu0
    %2070 = vmatprep.subr.mxu0 0.0
    %2071 = vmatpush1.msra.mxu0 %v478
    %2072 = vmatprep.subr.mxu0 0.0
    %2073 = vmatpush1.msra.mxu0 %v480
    %2074 = vmatprep.subr.mxu0 0.0
    %2075 = vmatpush1.msra.mxu0 %v482
    %2076 = vmatprep.subr.mxu0 0.0
    %2077 = vmatpush1.msra.mxu0 %v484
    %2078 = vmatprep.subr.mxu0 0.0
    %2079 = vmatpush1.msra.mxu0 0.0
    %2080 = vmatprep.subr.mxu0 0.0
    %2081 = vmatpush1.msra.mxu0 0.0
    %2082 = vmatprep.subr.mxu0 0.0
    %2083 = vmatpush1.msra.mxu0 0.0
    %2084 = vmatprep.subr.mxu0 0.0
    %2085 = vmatpush1.msra.mxu0 0.0
    %2086 = vmatprep.subr.mxu0 0.0
    %2087 = vmatpush1.msra.mxu0 0.0
    %2088 = vmatprep.subr.mxu0 0.0
    %2089 = vmatpush1.msra.mxu0 0.0
    %2090 = vmatprep.subr.mxu0 0.0
    %2091 = vmatpush1.msra.mxu0 0.0
    %2092 = vmatprep.subr.mxu0 0.0
    %2093 = vmatpush1.msra.mxu0 0.0
    %2094 = vmatprep.subr.mxu0 0.0
    %2095 = vmatpush1.msra.mxu0 0.0
    %2096 = vmatprep.subr.mxu0 0.0
    %2097 = vmatpush1.msra.mxu0 0.0
    %2098 = vmatprep.subr.mxu0 0.0
    %2099 = vmatpush1.msra.mxu0 0.0
    %2100 = vmatprep.subr.mxu0 0.0
    %2101 = vmatpush1.msra.mxu0 0.0
    %2102 = vmatprep.subr.mxu0 0.0
    %2103 = vmatpush1.msra.mxu0 0.0
    %2104 = vmatprep.subr.mxu0 0.0
    %2105 = vmatpush1.msra.mxu0 0.0
    %2106 = vmatprep.subr.mxu0 0.0
    %2107 = vmatpush1.msra.mxu0 0.0
    %2108 = vmatprep.subr.mxu0 0.0
    %2109 = vmatpush1.msra.mxu0 0.0
    %2110 = vmatprep.subr.mxu0 0.0
    %2111 = vmatpush1.msra.mxu0 0.0
    %2112 = vmatprep.subr.mxu0 0.0
    %2113 = vmatpush1.msra.mxu0 0.0
    %2114 = vmatprep.subr.mxu0 0.0
    %2115 = vmatpush1.msra.mxu0 0.0
    %2116 = vmatprep.subr.mxu0 0.0
    %2117 = vmatpush1.msra.mxu0 0.0
    %2118 = vmatprep.subr.mxu0 0.0
    %2119 = vmatpush1.msra.mxu0 0.0
    %2120 = vmatprep.subr.mxu0 0.0
    %2121 = vmatpush1.msra.mxu0 0.0
    %2122 = vmatprep.subr.mxu0 0.0
    %2123 = vmatpush1.msra.mxu0 0.0
    %2124 = vmatprep.subr.mxu0 0.0
    %2125 = vmatpush1.msra.mxu0 0.0
    %2126 = vmatprep.subr.mxu0 0.0
    %2127 = vmatpush1.msra.mxu0 0.0
    %2128 = vmatprep.subr.mxu0 0.0
    %2129 = vmatpush1.msra.mxu0 0.0
    %2130 = vmatprep.subr.mxu0 0.0
    %2131 = vmatpush1.msra.mxu0 0.0
    %2132 = vmatprep.subr.mxu0 0.0
    %2133 = vmatpush1.msra.mxu0 0.0
    %2134 = vmatprep.mubr.f32.mxu0 0.0
    %2135 = vmatmul.mubr.f32.gmra.mrb[0].mxu0 %v1998
    %v2136 = vpop.f32.mrb[0].mxu0
    %v2137 = vadd.f32 0.0, %v2136
    %v2138 = vpop.f32.mrb[0].mxu0
    %2139 = vdwg.mxu0
    %v2140 = vrot.slane %v1982, 5
    %2141 = vrot.lane.b32.xlu0 %v2140, 96
    %v2142 = vpop.permute.xlu0 %2141
    %v2143 = vsel %vm399, %v2142, 0
    %2145 = vmatprep.subr.mxu0 0.0
    %2146 = vmatpush1.msra.mxu0 %v380
    %2147 = vmatprep.subr.mxu0 0.0
    %2148 = vmatpush1.msra.mxu0 %v381
    %2149 = vmatprep.subr.mxu0 0.0
    %2150 = vmatpush1.msra.mxu0 %v382
    %2151 = vmatprep.subr.mxu0 0.0
    %2152 = vmatpush1.msra.mxu0 %v383
    %2153 = vmatprep.subr.mxu0 0.0
    %2154 = vmatpush1.msra.mxu0 0.0
    %2155 = vmatprep.subr.mxu0 0.0
    %2156 = vmatpush1.msra.mxu0 0.0
    %2157 = vmatprep.subr.mxu0 0.0
    %2158 = vmatpush1.msra.mxu0 0.0
    %2159 = vmatprep.subr.mxu0 0.0
    %2160 = vmatpush1.msra.mxu0 0.0
    %2161 = vmatprep.subr.mxu0 0.0
    %2162 = vmatpush1.msra.mxu0 0.0
    %2163 = vmatprep.subr.mxu0 0.0
    %2164 = vmatpush1.msra.mxu0 0.0
    %2165 = vmatprep.subr.mxu0 0.0
    %2166 = vmatpush1.msra.mxu0 0.0
    %2167 = vmatprep.subr.mxu0 0.0
    %2168 = vmatpush1.msra.mxu0 0.0
    %2169 = vmatprep.subr.mxu0 0.0
    %2170 = vmatpush1.msra.mxu0 0.0
    %2171 = vmatprep.subr.mxu0 0.0
    %2172 = vmatpush1.msra.mxu0 0.0
    %2173 = vmatprep.subr.mxu0 0.0
    %2174 = vmatpush1.msra.mxu0 0.0
    %2175 = vmatprep.subr.mxu0 0.0
    %2176 = vmatpush1.msra.mxu0 0.0
    %2177 = vmatprep.subr.mxu0 0.0
    %2178 = vmatpush1.msra.mxu0 0.0
    %2179 = vmatprep.subr.mxu0 0.0
    %2180 = vmatpush1.msra.mxu0 0.0
    %2181 = vmatprep.subr.mxu0 0.0
    %2182 = vmatpush1.msra.mxu0 0.0
    %2183 = vmatprep.subr.mxu0 0.0
    %2184 = vmatpush1.msra.mxu0 0.0
    %2185 = vmatprep.subr.mxu0 0.0
    %2186 = vmatpush1.msra.mxu0 0.0
    %2187 = vmatprep.subr.mxu0 0.0
    %2188 = vmatpush1.msra.mxu0 0.0
    %2189 = vmatprep.subr.mxu0 0.0
    %2190 = vmatpush1.msra.mxu0 0.0
    %2191 = vmatprep.subr.mxu0 0.0
    %2192 = vmatpush1.msra.mxu0 0.0
    %2193 = vmatprep.subr.mxu0 0.0
    %2194 = vmatpush1.msra.mxu0 0.0
    %2195 = vmatprep.subr.mxu0 0.0
    %2196 = vmatpush1.msra.mxu0 0.0
    %2197 = vmatprep.subr.mxu0 0.0
    %2198 = vmatpush1.msra.mxu0 0.0
    %2199 = vmatprep.subr.mxu0 0.0
    %2200 = vmatpush1.msra.mxu0 0.0
    %2201 = vmatprep.subr.mxu0 0.0
    %2202 = vmatpush1.msra.mxu0 0.0
    %2203 = vmatprep.subr.mxu0 0.0
    %2204 = vmatpush1.msra.mxu0 0.0
    %2205 = vmatprep.subr.mxu0 0.0
    %2206 = vmatpush1.msra.mxu0 0.0
    %2207 = vmatprep.subr.mxu0 0.0
    %2208 = vmatpush1.msra.mxu0 0.0
    %2209 = vmatprep.mubr.f32.mxu0 0.0
    %2210 = vmatmul.mubr.f32.gmra.mrb[0].mxu0 %v2143
    %v2211 = vpop.f32.mrb[0].mxu0
    %v2212 = vadd.f32 0.0, %v2211
    %v2213 = vpop.f32.mrb[0].mxu0
    %2214 = vdwg.mxu0
    %2215 = vmatprep.subr.mxu0 0.0
    %2216 = vmatpush1.msra.mxu0 %v634
    %2217 = vmatprep.subr.mxu0 0.0
    %2218 = vmatpush1.msra.mxu0 %v636
    %2219 = vmatprep.subr.mxu0 0.0
    %2220 = vmatpush1.msra.mxu0 %v638
    %2221 = vmatprep.subr.mxu0 0.0
    %2222 = vmatpush1.msra.mxu0 %v640
    %2223 = vmatprep.subr.mxu0 0.0
    %2224 = vmatpush1.msra.mxu0 0.0
    %2225 = vmatprep.subr.mxu0 0.0
    %2226 = vmatpush1.msra.mxu0 0.0
    %2227 = vmatprep.subr.mxu0 0.0
    %2228 = vmatpush1.msra.mxu0 0.0
    %2229 = vmatprep.subr.mxu0 0.0
    %2230 = vmatpush1.msra.mxu0 0.0
    %2231 = vmatprep.subr.mxu0 0.0
    %2232 = vmatpush1.msra.mxu0 0.0
    %2233 = vmatprep.subr.mxu0 0.0
    %2234 = vmatpush1.msra.mxu0 0.0
    %2235 = vmatprep.subr.mxu0 0.0
    %2236 = vmatpush1.msra.mxu0 0.0
    %2237 = vmatprep.subr.mxu0 0.0
    %2238 = vmatpush1.msra.mxu0 0.0
    %2239 = vmatprep.subr.mxu0 0.0
    %2240 = vmatpush1.msra.mxu0 0.0
    %2241 = vmatprep.subr.mxu0 0.0
    %2242 = vmatpush1.msra.mxu0 0.0
    %2243 = vmatprep.subr.mxu0 0.0
    %2244 = vmatpush1.msra.mxu0 0.0
    %2245 = vmatprep.subr.mxu0 0.0
    %2246 = vmatpush1.msra.mxu0 0.0
    %2247 = vmatprep.subr.mxu0 0.0
    %2248 = vmatpush1.msra.mxu0 0.0
    %2249 = vmatprep.subr.mxu0 0.0
    %2250 = vmatpush1.msra.mxu0 0.0
    %2251 = vmatprep.subr.mxu0 0.0
    %2252 = vmatpush1.msra.mxu0 0.0
    %2253 = vmatprep.subr.mxu0 0.0
    %2254 = vmatpush1.msra.mxu0 0.0
    %2255 = vmatprep.subr.mxu0 0.0
    %2256 = vmatpush1.msra.mxu0 0.0
    %2257 = vmatprep.subr.mxu0 0.0
    %2258 = vmatpush1.msra.mxu0 0.0
    %2259 = vmatprep.subr.mxu0 0.0
    %2260 = vmatpush1.msra.mxu0 0.0
    %2261 = vmatprep.subr.mxu0 0.0
    %2262 = vmatpush1.msra.mxu0 0.0
    %2263 = vmatprep.subr.mxu0 0.0
    %2264 = vmatpush1.msra.mxu0 0.0
    %2265 = vmatprep.subr.mxu0 0.0
    %2266 = vmatpush1.msra.mxu0 0.0
    %2267 = vmatprep.subr.mxu0 0.0
    %2268 = vmatpush1.msra.mxu0 0.0
    %2269 = vmatprep.subr.mxu0 0.0
    %2270 = vmatpush1.msra.mxu0 0.0
    %2271 = vmatprep.subr.mxu0 0.0
    %2272 = vmatpush1.msra.mxu0 0.0
    %2273 = vmatprep.subr.mxu0 0.0
    %2274 = vmatpush1.msra.mxu0 0.0
    %2275 = vmatprep.subr.mxu0 0.0
    %2276 = vmatpush1.msra.mxu0 0.0
    %2277 = vmatprep.subr.mxu0 0.0
    %2278 = vmatpush1.msra.mxu0 0.0
    %2279 = vmatprep.mubr.f32.mxu0 0.0
    %2280 = vmatmul.mubr.f32.gmra.mrb[0].mxu0 %v2143
    %v2281 = vpop.f32.mrb[0].mxu0
    %v2282 = vadd.f32 0.0, %v2281
    %v2283 = vpop.f32.mrb[0].mxu0
    %2284 = vdwg.mxu0
    %v2286 = vrot.slane %v2067, 5
    %v2288 = vadd.f32 %v391, %v2286
    %v2289 = vmul.f32 %v2288, 0.5
    %v2290 = vtanh.pop %v2289
    %v2291 = vadd.f32 %v2290, 1.0
    %v2292 = vmul.f32 %v2291, 0.5
    %v2294 = vrot.slane %v2137, 5
    %2295 = vrot.lane.b32.xlu0 %v2294, 32
    %v2296 = vpop.permute.xlu0 %2295
    %v2298 = vadd.f32 %v391, %v2296
    %v2299 = vmul.f32 %v2298, 0.5
    %v2300 = vtanh.pop %v2299
    %v2301 = vadd.f32 %v2300, 1.0
    %v2302 = vmul.f32 %v2301, 0.5
    %2303 = vmatprep.subr.mxu0 0.0
    %2304 = vmatpush1.msra.mxu0 %v730
    %2305 = vmatprep.subr.mxu0 0.0
    %2306 = vmatpush1.msra.mxu0 %v732
    %2307 = vmatprep.subr.mxu0 0.0
    %2308 = vmatpush1.msra.mxu0 %v734
    %2309 = vmatprep.subr.mxu0 0.0
    %2310 = vmatpush1.msra.mxu0 %v736
    %2311 = vmatprep.subr.mxu0 0.0
    %2312 = vmatpush1.msra.mxu0 0.0
    %2313 = vmatprep.subr.mxu0 0.0
    %2314 = vmatpush1.msra.mxu0 0.0
    %2315 = vmatprep.subr.mxu0 0.0
    %2316 = vmatpush1.msra.mxu0 0.0
    %2317 = vmatprep.subr.mxu0 0.0
    %2318 = vmatpush1.msra.mxu0 0.0
    %2319 = vmatprep.subr.mxu0 0.0
    %2320 = vmatpush1.msra.mxu0 0.0
    %2321 = vmatprep.subr.mxu0 0.0
    %2322 = vmatpush1.msra.mxu0 0.0
    %2323 = vmatprep.subr.mxu0 0.0
    %2324 = vmatpush1.msra.mxu0 0.0
    %2325 = vmatprep.subr.mxu0 0.0
    %2326 = vmatpush1.msra.mxu0 0.0
    %2327 = vmatprep.subr.mxu0 0.0
    %2328 = vmatpush1.msra.mxu0 0.0
    %2329 = vmatprep.subr.mxu0 0.0
    %2330 = vmatpush1.msra.mxu0 0.0
    %2331 = vmatprep.subr.mxu0 0.0
    %2332 = vmatpush1.msra.mxu0 0.0
    %2333 = vmatprep.subr.mxu0 0.0
    %2334 = vmatpush1.msra.mxu0 0.0
    %2335 = vmatprep.subr.mxu0 0.0
    %2336 = vmatpush1.msra.mxu0 0.0
    %2337 = vmatprep.subr.mxu0 0.0
    %2338 = vmatpush1.msra.mxu0 0.0
    %2339 = vmatprep.subr.mxu0 0.0
    %2340 = vmatpush1.msra.mxu0 0.0
    %2341 = vmatprep.subr.mxu0 0.0
    %2342 = vmatpush1.msra.mxu0 0.0
    %2343 = vmatprep.subr.mxu0 0.0
    %2344 = vmatpush1.msra.mxu0 0.0
    %2345 = vmatprep.subr.mxu0 0.0
    %2346 = vmatpush1.msra.mxu0 0.0
    %2347 = vmatprep.subr.mxu0 0.0
    %2348 = vmatpush1.msra.mxu0 0.0
    %2349 = vmatprep.subr.mxu0 0.0
    %2350 = vmatpush1.msra.mxu0 0.0
    %2351 = vmatprep.subr.mxu0 0.0
    %2352 = vmatpush1.msra.mxu0 0.0
    %2353 = vmatprep.subr.mxu0 0.0
    %2354 = vmatpush1.msra.mxu0 0.0
    %2355 = vmatprep.subr.mxu0 0.0
    %2356 = vmatpush1.msra.mxu0 0.0
    %2357 = vmatprep.subr.mxu0 0.0
    %2358 = vmatpush1.msra.mxu0 0.0
    %2359 = vmatprep.subr.mxu0 0.0
    %2360 = vmatpush1.msra.mxu0 0.0
    %2361 = vmatprep.subr.mxu0 0.0
    %2362 = vmatpush1.msra.mxu0 0.0
    %2363 = vmatprep.subr.mxu0 0.0
    %2364 = vmatpush1.msra.mxu0 0.0
    %2365 = vmatprep.subr.mxu0 0.0
    %2366 = vmatpush1.msra.mxu0 0.0
    %2367 = vmatprep.mubr.f32.mxu0 0.0
    %2368 = vmatmul.mubr.f32.gmra.mrb[0].mxu0 %v1998
    %v2369 = vpop.f32.mrb[0].mxu0
    %v2370 = vadd.f32 %v742, %v2369
    %v2371 = vpop.f32.mrb[0].mxu0
    %2372 = vdwg.mxu0
    %v2374 = vrot.slane %v2370, 5
    %v2376 = vmul.f32 %v2292, %v2374
    %2378 = vrot.lane.b32.xlu0 %v2376, 64
    %v2379 = vpop.permute.xlu0 %2378
    %v2381 = vadd.f32 %v293, %v2379
    %v2382 = vtanh.pop %v2381
    %v2383 = vsub.f32 1.0, %v2302
    %2385 = vrot.lane.b32.xlu0 %v2382, 96
    %v2386 = vpop.permute.xlu0 %2385
    %v2388 = vmul.f32 %v2383, %v2386
    %v2389 = vrot.slane %v1874, 7
    %v2391 = vmul.f32 %v2302, %v2389
    %v2392 = vadd.f32 %v2388, %v2391
    %v2394 = vrot.slane %v2212, 4
    %v2396 = vadd.f32 %v398, %v2394
    %v2397 = vmul.f32 %v2396, 0.5
    %v2398 = vtanh.pop %v2397
    %v2399 = vadd.f32 %v2398, 1.0
    %v2400 = vmul.f32 %v2399, 0.5
    %v2402 = vrot.slane %v2282, 4
    %2403 = vrot.lane.b32.xlu0 %v2402, 32
    %v2404 = vpop.permute.xlu0 %2403
    %v2406 = vadd.f32 %v398, %v2404
    %v2407 = vmul.f32 %v2406, 0.5
    %v2408 = vtanh.pop %v2407
    %v2409 = vadd.f32 %v2408, 1.0
    %v2410 = vmul.f32 %v2409, 0.5
    %2411 = vmatprep.subr.mxu0 0.0
    %2412 = vmatpush1.msra.mxu0 %v848
    %2413 = vmatprep.subr.mxu0 0.0
    %2414 = vmatpush1.msra.mxu0 %v850
    %2415 = vmatprep.subr.mxu0 0.0
    %2416 = vmatpush1.msra.mxu0 %v852
    %2417 = vmatprep.subr.mxu0 0.0
    %2418 = vmatpush1.msra.mxu0 %v854
    %2419 = vmatprep.subr.mxu0 0.0
    %2420 = vmatpush1.msra.mxu0 0.0
    %2421 = vmatprep.subr.mxu0 0.0
    %2422 = vmatpush1.msra.mxu0 0.0
    %2423 = vmatprep.subr.mxu0 0.0
    %2424 = vmatpush1.msra.mxu0 0.0
    %2425 = vmatprep.subr.mxu0 0.0
    %2426 = vmatpush1.msra.mxu0 0.0
    %2427 = vmatprep.subr.mxu0 0.0
    %2428 = vmatpush1.msra.mxu0 0.0
    %2429 = vmatprep.subr.mxu0 0.0
    %2430 = vmatpush1.msra.mxu0 0.0
    %2431 = vmatprep.subr.mxu0 0.0
    %2432 = vmatpush1.msra.mxu0 0.0
    %2433 = vmatprep.subr.mxu0 0.0
    %2434 = vmatpush1.msra.mxu0 0.0
    %2435 = vmatprep.subr.mxu0 0.0
    %2436 = vmatpush1.msra.mxu0 0.0
    %2437 = vmatprep.subr.mxu0 0.0
    %2438 = vmatpush1.msra.mxu0 0.0
    %2439 = vmatprep.subr.mxu0 0.0
    %2440 = vmatpush1.msra.mxu0 0.0
    %2441 = vmatprep.subr.mxu0 0.0
    %2442 = vmatpush1.msra.mxu0 0.0
    %2443 = vmatprep.subr.mxu0 0.0
    %2444 = vmatpush1.msra.mxu0 0.0
    %2445 = vmatprep.subr.mxu0 0.0
    %2446 = vmatpush1.msra.mxu0 0.0
    %2447 = vmatprep.subr.mxu0 0.0
    %2448 = vmatpush1.msra.mxu0 0.0
    %2449 = vmatprep.subr.mxu0 0.0
    %2450 = vmatpush1.msra.mxu0 0.0
    %2451 = vmatprep.subr.mxu0 0.0
    %2452 = vmatpush1.msra.mxu0 0.0
    %2453 = vmatprep.subr.mxu0 0.0
    %2454 = vmatpush1.msra.mxu0 0.0
    %2455 = vmatprep.subr.mxu0 0.0
    %2456 = vmatpush1.msra.mxu0 0.0
    %2457 = vmatprep.subr.mxu0 0.0
    %2458 = vmatpush1.msra.mxu0 0.0
    %2459 = vmatprep.subr.mxu0 0.0
    %2460 = vmatpush1.msra.mxu0 0.0
    %2461 = vmatprep.subr.mxu0 0.0
    %2462 = vmatpush1.msra.mxu0 0.0
    %2463 = vmatprep.subr.mxu0 0.0
    %2464 = vmatpush1.msra.mxu0 0.0
    %2465 = vmatprep.subr.mxu0 0.0
    %2466 = vmatpush1.msra.mxu0 0.0
    %2467 = vmatprep.subr.mxu0 0.0
    %2468 = vmatpush1.msra.mxu0 0.0
    %2469 = vmatprep.subr.mxu0 0.0
    %2470 = vmatpush1.msra.mxu0 0.0
    %2471 = vmatprep.subr.mxu0 0.0
    %2472 = vmatpush1.msra.mxu0 0.0
    %2473 = vmatprep.subr.mxu0 0.0
    %2474 = vmatpush1.msra.mxu0 0.0
    %2475 = vmatprep.mubr.f32.mxu0 0.0
    %2476 = vmatmul.mubr.f32.gmra.mrb[0].mxu0 %v2143
    %v2477 = vpop.f32.mrb[0].mxu0
    %v2478 = vadd.f32 %v860, %v2477
    %v2479 = vpop.f32.mrb[0].mxu0
    %2480 = vdwg.mxu0
    %v2482 = vrot.slane %v2478, 4
    %v2484 = vmul.f32 %v2400, %v2482
    %2486 = vrot.lane.b32.xlu0 %v2484, 64
    %v2487 = vpop.permute.xlu0 %2486
    %v2489 = vadd.f32 %v372, %v2487
    %v2490 = vtanh.pop %v2489
    %v2491 = vsub.f32 1.0, %v2410
    %2493 = vrot.lane.b32.xlu0 %v2490, 96
    %v2494 = vpop.permute.xlu0 %2493
    %v2496 = vmul.f32 %v2491, %v2494
    %v2497 = vrot.slane %v1982, 1
    %v2499 = vmul.f32 %v2410, %v2497
    %v2500 = vadd.f32 %v2496, %v2499
    %2502 = vrot.lane.b32.xlu0 %v2392, 96
    %v2503 = vpop.permute.xlu0 %2502
    %vm2505 = vcmask 257027
    %2506 = vst.msk [vmem:[#allocation2] sm:$0x8] %vm2505, %v2503
    %2508 = vrot.lane.b32.xlu0 %v2500, 96
    %v2509 = vpop.permute.xlu0 %2508
    %vm2511 = vcmask 258052
    %2512 = vst.msk [vmem:[#allocation3] sm:$0x10] %vm2511, %v2509
    %v2513 = vrot.slane %v2392, 3
    %2514 = vrot.lane.b32.xlu0 %v2513, 96
    %v2515 = vpop.permute.xlu0 %2514
    %v2516 = vsel %vm399, %v2515, 0
    %2518 = vmatprep.subr.mxu0 0.0
    %2519 = vmatpush1.msra.mxu0 %v375
    %2520 = vmatprep.subr.mxu0 0.0
    %2521 = vmatpush1.msra.mxu0 %v376
    %2522 = vmatprep.subr.mxu0 0.0
    %2523 = vmatpush1.msra.mxu0 %v377
    %2524 = vmatprep.subr.mxu0 0.0
    %2525 = vmatpush1.msra.mxu0 %v378
    %2526 = vmatprep.subr.mxu0 0.0
    %2527 = vmatpush1.msra.mxu0 0.0
    %2528 = vmatprep.subr.mxu0 0.0
    %2529 = vmatpush1.msra.mxu0 0.0
    %2530 = vmatprep.subr.mxu0 0.0
    %2531 = vmatpush1.msra.mxu0 0.0
    %2532 = vmatprep.subr.mxu0 0.0
    %2533 = vmatpush1.msra.mxu0 0.0
    %2534 = vmatprep.subr.mxu0 0.0
    %2535 = vmatpush1.msra.mxu0 0.0
    %2536 = vmatprep.subr.mxu0 0.0
    %2537 = vmatpush1.msra.mxu0 0.0
    %2538 = vmatprep.subr.mxu0 0.0
    %2539 = vmatpush1.msra.mxu0 0.0
    %2540 = vmatprep.subr.mxu0 0.0
    %2541 = vmatpush1.msra.mxu0 0.0
    %2542 = vmatprep.subr.mxu0 0.0
    %2543 = vmatpush1.msra.mxu0 0.0
    %2544 = vmatprep.subr.mxu0 0.0
    %2545 = vmatpush1.msra.mxu0 0.0
    %2546 = vmatprep.subr.mxu0 0.0
    %2547 = vmatpush1.msra.mxu0 0.0
    %2548 = vmatprep.subr.mxu0 0.0
    %2549 = vmatpush1.msra.mxu0 0.0
    %2550 = vmatprep.subr.mxu0 0.0
    %2551 = vmatpush1.msra.mxu0 0.0
    %2552 = vmatprep.subr.mxu0 0.0
    %2553 = vmatpush1.msra.mxu0 0.0
    %2554 = vmatprep.subr.mxu0 0.0
    %2555 = vmatpush1.msra.mxu0 0.0
    %2556 = vmatprep.subr.mxu0 0.0
    %2557 = vmatpush1.msra.mxu0 0.0
    %2558 = vmatprep.subr.mxu0 0.0
    %2559 = vmatpush1.msra.mxu0 0.0
    %2560 = vmatprep.subr.mxu0 0.0
    %2561 = vmatpush1.msra.mxu0 0.0
    %2562 = vmatprep.subr.mxu0 0.0
    %2563 = vmatpush1.msra.mxu0 0.0
    %2564 = vmatprep.subr.mxu0 0.0
    %2565 = vmatpush1.msra.mxu0 0.0
    %2566 = vmatprep.subr.mxu0 0.0
    %2567 = vmatpush1.msra.mxu0 0.0
    %2568 = vmatprep.subr.mxu0 0.0
    %2569 = vmatpush1.msra.mxu0 0.0
    %2570 = vmatprep.subr.mxu0 0.0
    %2571 = vmatpush1.msra.mxu0 0.0
    %2572 = vmatprep.subr.mxu0 0.0
    %2573 = vmatpush1.msra.mxu0 0.0
    %2574 = vmatprep.subr.mxu0 0.0
    %2575 = vmatpush1.msra.mxu0 0.0
    %2576 = vmatprep.subr.mxu0 0.0
    %2577 = vmatpush1.msra.mxu0 0.0
    %2578 = vmatprep.subr.mxu0 0.0
    %2579 = vmatpush1.msra.mxu0 0.0
    %2580 = vmatprep.subr.mxu0 0.0
    %2581 = vmatpush1.msra.mxu0 0.0
    %2582 = vmatprep.mubr.f32.mxu0 0.0
    %2583 = vmatmul.mubr.f32.gmra.mrb[0].mxu0 %v2516
    %v2584 = vpop.f32.mrb[0].mxu0
    %v2585 = vadd.f32 0.0, %v2584
    %v2586 = vpop.f32.mrb[0].mxu0
    %2587 = vdwg.mxu0
    %2588 = vmatprep.subr.mxu0 0.0
    %2589 = vmatpush1.msra.mxu0 %v478
    %2590 = vmatprep.subr.mxu0 0.0
    %2591 = vmatpush1.msra.mxu0 %v480
    %2592 = vmatprep.subr.mxu0 0.0
    %2593 = vmatpush1.msra.mxu0 %v482
    %2594 = vmatprep.subr.mxu0 0.0
    %2595 = vmatpush1.msra.mxu0 %v484
    %2596 = vmatprep.subr.mxu0 0.0
    %2597 = vmatpush1.msra.mxu0 0.0
    %2598 = vmatprep.subr.mxu0 0.0
    %2599 = vmatpush1.msra.mxu0 0.0
    %2600 = vmatprep.subr.mxu0 0.0
    %2601 = vmatpush1.msra.mxu0 0.0
    %2602 = vmatprep.subr.mxu0 0.0
    %2603 = vmatpush1.msra.mxu0 0.0
    %2604 = vmatprep.subr.mxu0 0.0
    %2605 = vmatpush1.msra.mxu0 0.0
    %2606 = vmatprep.subr.mxu0 0.0
    %2607 = vmatpush1.msra.mxu0 0.0
    %2608 = vmatprep.subr.mxu0 0.0
    %2609 = vmatpush1.msra.mxu0 0.0
    %2610 = vmatprep.subr.mxu0 0.0
    %2611 = vmatpush1.msra.mxu0 0.0
    %2612 = vmatprep.subr.mxu0 0.0
    %2613 = vmatpush1.msra.mxu0 0.0
    %2614 = vmatprep.subr.mxu0 0.0
    %2615 = vmatpush1.msra.mxu0 0.0
    %2616 = vmatprep.subr.mxu0 0.0
    %2617 = vmatpush1.msra.mxu0 0.0
    %2618 = vmatprep.subr.mxu0 0.0
    %2619 = vmatpush1.msra.mxu0 0.0
    %2620 = vmatprep.subr.mxu0 0.0
    %2621 = vmatpush1.msra.mxu0 0.0
    %2622 = vmatprep.subr.mxu0 0.0
    %2623 = vmatpush1.msra.mxu0 0.0
    %2624 = vmatprep.subr.mxu0 0.0
    %2625 = vmatpush1.msra.mxu0 0.0
    %2626 = vmatprep.subr.mxu0 0.0
    %2627 = vmatpush1.msra.mxu0 0.0
    %2628 = vmatprep.subr.mxu0 0.0
    %2629 = vmatpush1.msra.mxu0 0.0
    %2630 = vmatprep.subr.mxu0 0.0
    %2631 = vmatpush1.msra.mxu0 0.0
    %2632 = vmatprep.subr.mxu0 0.0
    %2633 = vmatpush1.msra.mxu0 0.0
    %2634 = vmatprep.subr.mxu0 0.0
    %2635 = vmatpush1.msra.mxu0 0.0
    %2636 = vmatprep.subr.mxu0 0.0
    %2637 = vmatpush1.msra.mxu0 0.0
    %2638 = vmatprep.subr.mxu0 0.0
    %2639 = vmatpush1.msra.mxu0 0.0
    %2640 = vmatprep.subr.mxu0 0.0
    %2641 = vmatpush1.msra.mxu0 0.0
    %2642 = vmatprep.subr.mxu0 0.0
    %2643 = vmatpush1.msra.mxu0 0.0
    %2644 = vmatprep.subr.mxu0 0.0
    %2645 = vmatpush1.msra.mxu0 0.0
    %2646 = vmatprep.subr.mxu0 0.0
    %2647 = vmatpush1.msra.mxu0 0.0
    %2648 = vmatprep.subr.mxu0 0.0
    %2649 = vmatpush1.msra.mxu0 0.0
    %2650 = vmatprep.subr.mxu0 0.0
    %2651 = vmatpush1.msra.mxu0 0.0
    %2652 = vmatprep.mubr.f32.mxu0 0.0
    %2653 = vmatmul.mubr.f32.gmra.mrb[0].mxu0 %v2516
    %v2654 = vpop.f32.mrb[0].mxu0
    %v2655 = vadd.f32 0.0, %v2654
    %v2656 = vpop.f32.mrb[0].mxu0
    %2657 = vdwg.mxu0
    %v2658 = vrot.slane %v2500, 4
    %2659 = vrot.lane.b32.xlu0 %v2658, 96
    %v2660 = vpop.permute.xlu0 %2659
    %v2661 = vsel %vm399, %v2660, 0
    %2663 = vmatprep.subr.mxu0 0.0
    %2664 = vmatpush1.msra.mxu0 %v380
    %2665 = vmatprep.subr.mxu0 0.0
    %2666 = vmatpush1.msra.mxu0 %v381
    %2667 = vmatprep.subr.mxu0 0.0
    %2668 = vmatpush1.msra.mxu0 %v382
    %2669 = vmatprep.subr.mxu0 0.0
    %2670 = vmatpush1.msra.mxu0 %v383
    %2671 = vmatprep.subr.mxu0 0.0
    %2672 = vmatpush1.msra.mxu0 0.0
    %2673 = vmatprep.subr.mxu0 0.0
    %2674 = vmatpush1.msra.mxu0 0.0
    %2675 = vmatprep.subr.mxu0 0.0
    %2676 = vmatpush1.msra.mxu0 0.0
    %2677 = vmatprep.subr.mxu0 0.0
    %2678 = vmatpush1.msra.mxu0 0.0
    %2679 = vmatprep.subr.mxu0 0.0
    %2680 = vmatpush1.msra.mxu0 0.0
    %2681 = vmatprep.subr.mxu0 0.0
    %2682 = vmatpush1.msra.mxu0 0.0
    %2683 = vmatprep.subr.mxu0 0.0
    %2684 = vmatpush1.msra.mxu0 0.0
    %2685 = vmatprep.subr.mxu0 0.0
    %2686 = vmatpush1.msra.mxu0 0.0
    %2687 = vmatprep.subr.mxu0 0.0
    %2688 = vmatpush1.msra.mxu0 0.0
    %2689 = vmatprep.subr.mxu0 0.0
    %2690 = vmatpush1.msra.mxu0 0.0
    %2691 = vmatprep.subr.mxu0 0.0
    %2692 = vmatpush1.msra.mxu0 0.0
    %2693 = vmatprep.subr.mxu0 0.0
    %2694 = vmatpush1.msra.mxu0 0.0
    %2695 = vmatprep.subr.mxu0 0.0
    %2696 = vmatpush1.msra.mxu0 0.0
    %2697 = vmatprep.subr.mxu0 0.0
    %2698 = vmatpush1.msra.mxu0 0.0
    %2699 = vmatprep.subr.mxu0 0.0
    %2700 = vmatpush1.msra.mxu0 0.0
    %2701 = vmatprep.subr.mxu0 0.0
    %2702 = vmatpush1.msra.mxu0 0.0
    %2703 = vmatprep.subr.mxu0 0.0
    %2704 = vmatpush1.msra.mxu0 0.0
    %2705 = vmatprep.subr.mxu0 0.0
    %2706 = vmatpush1.msra.mxu0 0.0
    %2707 = vmatprep.subr.mxu0 0.0
    %2708 = vmatpush1.msra.mxu0 0.0
    %2709 = vmatprep.subr.mxu0 0.0
    %2710 = vmatpush1.msra.mxu0 0.0
    %2711 = vmatprep.subr.mxu0 0.0
    %2712 = vmatpush1.msra.mxu0 0.0
    %2713 = vmatprep.subr.mxu0 0.0
    %2714 = vmatpush1.msra.mxu0 0.0
    %2715 = vmatprep.subr.mxu0 0.0
    %2716 = vmatpush1.msra.mxu0 0.0
    %2717 = vmatprep.subr.mxu0 0.0
    %2718 = vmatpush1.msra.mxu0 0.0
    %2719 = vmatprep.subr.mxu0 0.0
    %2720 = vmatpush1.msra.mxu0 0.0
    %2721 = vmatprep.subr.mxu0 0.0
    %2722 = vmatpush1.msra.mxu0 0.0
    %2723 = vmatprep.subr.mxu0 0.0
    %2724 = vmatpush1.msra.mxu0 0.0
    %2725 = vmatprep.subr.mxu0 0.0
    %2726 = vmatpush1.msra.mxu0 0.0
    %2727 = vmatprep.mubr.f32.mxu0 0.0
    %2728 = vmatmul.mubr.f32.gmra.mrb[0].mxu0 %v2661
    %v2729 = vpop.f32.mrb[0].mxu0
    %v2730 = vadd.f32 0.0, %v2729
    %v2731 = vpop.f32.mrb[0].mxu0
    %2732 = vdwg.mxu0
    %2733 = vmatprep.subr.mxu0 0.0
    %2734 = vmatpush1.msra.mxu0 %v634
    %2735 = vmatprep.subr.mxu0 0.0
    %2736 = vmatpush1.msra.mxu0 %v636
    %2737 = vmatprep.subr.mxu0 0.0
    %2738 = vmatpush1.msra.mxu0 %v638
    %2739 = vmatprep.subr.mxu0 0.0
    %2740 = vmatpush1.msra.mxu0 %v640
    %2741 = vmatprep.subr.mxu0 0.0
    %2742 = vmatpush1.msra.mxu0 0.0
    %2743 = vmatprep.subr.mxu0 0.0
    %2744 = vmatpush1.msra.mxu0 0.0
    %2745 = vmatprep.subr.mxu0 0.0
    %2746 = vmatpush1.msra.mxu0 0.0
    %2747 = vmatprep.subr.mxu0 0.0
    %2748 = vmatpush1.msra.mxu0 0.0
    %2749 = vmatprep.subr.mxu0 0.0
    %2750 = vmatpush1.msra.mxu0 0.0
    %2751 = vmatprep.subr.mxu0 0.0
    %2752 = vmatpush1.msra.mxu0 0.0
    %2753 = vmatprep.subr.mxu0 0.0
    %2754 = vmatpush1.msra.mxu0 0.0
    %2755 = vmatprep.subr.mxu0 0.0
    %2756 = vmatpush1.msra.mxu0 0.0
    %2757 = vmatprep.subr.mxu0 0.0
    %2758 = vmatpush1.msra.mxu0 0.0
    %2759 = vmatprep.subr.mxu0 0.0
    %2760 = vmatpush1.msra.mxu0 0.0
    %2761 = vmatprep.subr.mxu0 0.0
    %2762 = vmatpush1.msra.mxu0 0.0
    %2763 = vmatprep.subr.mxu0 0.0
    %2764 = vmatpush1.msra.mxu0 0.0
    %2765 = vmatprep.subr.mxu0 0.0
    %2766 = vmatpush1.msra.mxu0 0.0
    %2767 = vmatprep.subr.mxu0 0.0
    %2768 = vmatpush1.msra.mxu0 0.0
    %2769 = vmatprep.subr.mxu0 0.0
    %2770 = vmatpush1.msra.mxu0 0.0
    %2771 = vmatprep.subr.mxu0 0.0
    %2772 = vmatpush1.msra.mxu0 0.0
    %2773 = vmatprep.subr.mxu0 0.0
    %2774 = vmatpush1.msra.mxu0 0.0
    %2775 = vmatprep.subr.mxu0 0.0
    %2776 = vmatpush1.msra.mxu0 0.0
    %2777 = vmatprep.subr.mxu0 0.0
    %2778 = vmatpush1.msra.mxu0 0.0
    %2779 = vmatprep.subr.mxu0 0.0
    %2780 = vmatpush1.msra.mxu0 0.0
    %2781 = vmatprep.subr.mxu0 0.0
    %2782 = vmatpush1.msra.mxu0 0.0
    %2783 = vmatprep.subr.mxu0 0.0
    %2784 = vmatpush1.msra.mxu0 0.0
    %2785 = vmatprep.subr.mxu0 0.0
    %2786 = vmatpush1.msra.mxu0 0.0
    %2787 = vmatprep.subr.mxu0 0.0
    %2788 = vmatpush1.msra.mxu0 0.0
    %2789 = vmatprep.subr.mxu0 0.0
    %2790 = vmatpush1.msra.mxu0 0.0
    %2791 = vmatprep.subr.mxu0 0.0
    %2792 = vmatpush1.msra.mxu0 0.0
    %2793 = vmatprep.subr.mxu0 0.0
    %2794 = vmatpush1.msra.mxu0 0.0
    %2795 = vmatprep.subr.mxu0 0.0
    %2796 = vmatpush1.msra.mxu0 0.0
    %2797 = vmatprep.mubr.f32.mxu0 0.0
    %2798 = vmatmul.mubr.f32.gmra.mrb[0].mxu0 %v2661
    %v2799 = vpop.f32.mrb[0].mxu0
    %v2800 = vadd.f32 0.0, %v2799
    %v2801 = vpop.f32.mrb[0].mxu0
    %2802 = vdwg.mxu0
    %v2804 = vrot.slane %v2585, 4
    %v2806 = vadd.f32 %v391, %v2804
    %v2807 = vmul.f32 %v2806, 0.5
    %v2808 = vtanh.pop %v2807
    %v2809 = vadd.f32 %v2808, 1.0
    %v2810 = vmul.f32 %v2809, 0.5
    %v2812 = vrot.slane %v2655, 4
    %2813 = vrot.lane.b32.xlu0 %v2812, 32
    %v2814 = vpop.permute.xlu0 %2813
    %v2816 = vadd.f32 %v391, %v2814
    %v2817 = vmul.f32 %v2816, 0.5
    %v2818 = vtanh.pop %v2817
    %v2819 = vadd.f32 %v2818, 1.0
    %v2820 = vmul.f32 %v2819, 0.5
    %2821 = vmatprep.subr.mxu0 0.0
    %2822 = vmatpush1.msra.mxu0 %v730
    %2823 = vmatprep.subr.mxu0 0.0
    %2824 = vmatpush1.msra.mxu0 %v732
    %2825 = vmatprep.subr.mxu0 0.0
    %2826 = vmatpush1.msra.mxu0 %v734
    %2827 = vmatprep.subr.mxu0 0.0
    %2828 = vmatpush1.msra.mxu0 %v736
    %2829 = vmatprep.subr.mxu0 0.0
    %2830 = vmatpush1.msra.mxu0 0.0
    %2831 = vmatprep.subr.mxu0 0.0
    %2832 = vmatpush1.msra.mxu0 0.0
    %2833 = vmatprep.subr.mxu0 0.0
    %2834 = vmatpush1.msra.mxu0 0.0
    %2835 = vmatprep.subr.mxu0 0.0
    %2836 = vmatpush1.msra.mxu0 0.0
    %2837 = vmatprep.subr.mxu0 0.0
    %2838 = vmatpush1.msra.mxu0 0.0
    %2839 = vmatprep.subr.mxu0 0.0
    %2840 = vmatpush1.msra.mxu0 0.0
    %2841 = vmatprep.subr.mxu0 0.0
    %2842 = vmatpush1.msra.mxu0 0.0
    %2843 = vmatprep.subr.mxu0 0.0
    %2844 = vmatpush1.msra.mxu0 0.0
    %2845 = vmatprep.subr.mxu0 0.0
    %2846 = vmatpush1.msra.mxu0 0.0
    %2847 = vmatprep.subr.mxu0 0.0
    %2848 = vmatpush1.msra.mxu0 0.0
    %2849 = vmatprep.subr.mxu0 0.0
    %2850 = vmatpush1.msra.mxu0 0.0
    %2851 = vmatprep.subr.mxu0 0.0
    %2852 = vmatpush1.msra.mxu0 0.0
    %2853 = vmatprep.subr.mxu0 0.0
    %2854 = vmatpush1.msra.mxu0 0.0
    %2855 = vmatprep.subr.mxu0 0.0
    %2856 = vmatpush1.msra.mxu0 0.0
    %2857 = vmatprep.subr.mxu0 0.0
    %2858 = vmatpush1.msra.mxu0 0.0
    %2859 = vmatprep.subr.mxu0 0.0
    %2860 = vmatpush1.msra.mxu0 0.0
    %2861 = vmatprep.subr.mxu0 0.0
    %2862 = vmatpush1.msra.mxu0 0.0
    %2863 = vmatprep.subr.mxu0 0.0
    %2864 = vmatpush1.msra.mxu0 0.0
    %2865 = vmatprep.subr.mxu0 0.0
    %2866 = vmatpush1.msra.mxu0 0.0
    %2867 = vmatprep.subr.mxu0 0.0
    %2868 = vmatpush1.msra.mxu0 0.0
    %2869 = vmatprep.subr.mxu0 0.0
    %2870 = vmatpush1.msra.mxu0 0.0
    %2871 = vmatprep.subr.mxu0 0.0
    %2872 = vmatpush1.msra.mxu0 0.0
    %2873 = vmatprep.subr.mxu0 0.0
    %2874 = vmatpush1.msra.mxu0 0.0
    %2875 = vmatprep.subr.mxu0 0.0
    %2876 = vmatpush1.msra.mxu0 0.0
    %2877 = vmatprep.subr.mxu0 0.0
    %2878 = vmatpush1.msra.mxu0 0.0
    %2879 = vmatprep.subr.mxu0 0.0
    %2880 = vmatpush1.msra.mxu0 0.0
    %2881 = vmatprep.subr.mxu0 0.0
    %2882 = vmatpush1.msra.mxu0 0.0
    %2883 = vmatprep.subr.mxu0 0.0
    %2884 = vmatpush1.msra.mxu0 0.0
    %2885 = vmatprep.mubr.f32.mxu0 0.0
    %2886 = vmatmul.mubr.f32.gmra.mrb[0].mxu0 %v2516
    %v2887 = vpop.f32.mrb[0].mxu0
    %v2888 = vadd.f32 %v742, %v2887
    %v2889 = vpop.f32.mrb[0].mxu0
    %2890 = vdwg.mxu0
    %v2892 = vrot.slane %v2888, 4
    %v2894 = vmul.f32 %v2810, %v2892
    %2896 = vrot.lane.b32.xlu0 %v2894, 64
    %v2897 = vpop.permute.xlu0 %2896
    %v2899 = vadd.f32 %v293, %v2897
    %v2900 = vtanh.pop %v2899
    %v2901 = vsub.f32 1.0, %v2820
    %2903 = vrot.lane.b32.xlu0 %v2900, 96
    %v2904 = vpop.permute.xlu0 %2903
    %v2906 = vmul.f32 %v2901, %v2904
    %v2907 = vrot.slane %v2392, 7
    %v2909 = vmul.f32 %v2820, %v2907
    %v2910 = vadd.f32 %v2906, %v2909
    %v2912 = vrot.slane %v2730, 5
    %v2914 = vadd.f32 %v398, %v2912
    %v2915 = vmul.f32 %v2914, 0.5
    %v2916 = vtanh.pop %v2915
    %v2917 = vadd.f32 %v2916, 1.0
    %v2918 = vmul.f32 %v2917, 0.5
    %v2920 = vrot.slane %v2800, 5
    %2921 = vrot.lane.b32.xlu0 %v2920, 32
    %v2922 = vpop.permute.xlu0 %2921
    %v2924 = vadd.f32 %v398, %v2922
    %v2925 = vmul.f32 %v2924, 0.5
    %v2926 = vtanh.pop %v2925
    %v2927 = vadd.f32 %v2926, 1.0
    %v2928 = vmul.f32 %v2927, 0.5
    %2929 = vmatprep.subr.mxu0 0.0
    %2930 = vmatpush1.msra.mxu0 %v848
    %2931 = vmatprep.subr.mxu0 0.0
    %2932 = vmatpush1.msra.mxu0 %v850
    %2933 = vmatprep.subr.mxu0 0.0
    %2934 = vmatpush1.msra.mxu0 %v852
    %2935 = vmatprep.subr.mxu0 0.0
    %2936 = vmatpush1.msra.mxu0 %v854
    %2937 = vmatprep.subr.mxu0 0.0
    %2938 = vmatpush1.msra.mxu0 0.0
    %2939 = vmatprep.subr.mxu0 0.0
    %2940 = vmatpush1.msra.mxu0 0.0
    %2941 = vmatprep.subr.mxu0 0.0
    %2942 = vmatpush1.msra.mxu0 0.0
    %2943 = vmatprep.subr.mxu0 0.0
    %2944 = vmatpush1.msra.mxu0 0.0
    %2945 = vmatprep.subr.mxu0 0.0
    %2946 = vmatpush1.msra.mxu0 0.0
    %2947 = vmatprep.subr.mxu0 0.0
    %2948 = vmatpush1.msra.mxu0 0.0
    %2949 = vmatprep.subr.mxu0 0.0
    %2950 = vmatpush1.msra.mxu0 0.0
    %2951 = vmatprep.subr.mxu0 0.0
    %2952 = vmatpush1.msra.mxu0 0.0
    %2953 = vmatprep.subr.mxu0 0.0
    %2954 = vmatpush1.msra.mxu0 0.0
    %2955 = vmatprep.subr.mxu0 0.0
    %2956 = vmatpush1.msra.mxu0 0.0
    %2957 = vmatprep.subr.mxu0 0.0
    %2958 = vmatpush1.msra.mxu0 0.0
    %2959 = vmatprep.subr.mxu0 0.0
    %2960 = vmatpush1.msra.mxu0 0.0
    %2961 = vmatprep.subr.mxu0 0.0
    %2962 = vmatpush1.msra.mxu0 0.0
    %2963 = vmatprep.subr.mxu0 0.0
    %2964 = vmatpush1.msra.mxu0 0.0
    %2965 = vmatprep.subr.mxu0 0.0
    %2966 = vmatpush1.msra.mxu0 0.0
    %2967 = vmatprep.subr.mxu0 0.0
    %2968 = vmatpush1.msra.mxu0 0.0
    %2969 = vmatprep.subr.mxu0 0.0
    %2970 = vmatpush1.msra.mxu0 0.0
    %2971 = vmatprep.subr.mxu0 0.0
    %2972 = vmatpush1.msra.mxu0 0.0
    %2973 = vmatprep.subr.mxu0 0.0
    %2974 = vmatpush1.msra.mxu0 0.0
    %2975 = vmatprep.subr.mxu0 0.0
    %2976 = vmatpush1.msra.mxu0 0.0
    %2977 = vmatprep.subr.mxu0 0.0
    %2978 = vmatpush1.msra.mxu0 0.0
    %2979 = vmatprep.subr.mxu0 0.0
    %2980 = vmatpush1.msra.mxu0 0.0
    %2981 = vmatprep.subr.mxu0 0.0
    %2982 = vmatpush1.msra.mxu0 0.0
    %2983 = vmatprep.subr.mxu0 0.0
    %2984 = vmatpush1.msra.mxu0 0.0
    %2985 = vmatprep.subr.mxu0 0.0
    %2986 = vmatpush1.msra.mxu0 0.0
    %2987 = vmatprep.subr.mxu0 0.0
    %2988 = vmatpush1.msra.mxu0 0.0
    %2989 = vmatprep.subr.mxu0 0.0
    %2990 = vmatpush1.msra.mxu0 0.0
    %2991 = vmatprep.subr.mxu0 0.0
    %2992 = vmatpush1.msra.mxu0 0.0
    %2993 = vmatprep.mubr.f32.mxu0 0.0
    %2994 = vmatmul.mubr.f32.gmra.mrb[0].mxu0 %v2661
    %v2995 = vpop.f32.mrb[0].mxu0
    %v2996 = vadd.f32 %v860, %v2995
    %v2997 = vpop.f32.mrb[0].mxu0
    %2998 = vdwg.mxu0
    %v3000 = vrot.slane %v2996, 5
    %v3002 = vmul.f32 %v2918, %v3000
    %3004 = vrot.lane.b32.xlu0 %v3002, 64
    %v3005 = vpop.permute.xlu0 %3004
    %v3007 = vadd.f32 %v372, %v3005
    %v3008 = vtanh.pop %v3007
    %v3009 = vsub.f32 1.0, %v2928
    %3011 = vrot.lane.b32.xlu0 %v3008, 96
    %v3012 = vpop.permute.xlu0 %3011
    %v3014 = vmul.f32 %v3009, %v3012
    %v3015 = vrot.slane %v2500, 1
    %v3017 = vmul.f32 %v2928, %v3015
    %v3018 = vadd.f32 %v3014, %v3017
    %3020 = vrot.lane.b32.xlu0 %v2910, 96
    %v3021 = vpop.permute.xlu0 %3020
    %3023 = vst.msk [vmem:[#allocation2] sm:$0x10] %vm2511, %v3021
    %3025 = vrot.lane.b32.xlu0 %v3018, 96
    %v3026 = vpop.permute.xlu0 %3025
    %3028 = vst.msk [vmem:[#allocation3] sm:$0x8] %vm2505, %v3026
    %v3029 = vrot.slane %v2910, 4
    %3030 = vrot.lane.b32.xlu0 %v3029, 96
    %v3031 = vpop.permute.xlu0 %3030
    %v3032 = vsel %vm399, %v3031, 0
    %3034 = vmatprep.subr.mxu0 0.0
    %3035 = vmatpush1.msra.mxu0 %v375
    %3036 = vmatprep.subr.mxu0 0.0
    %3037 = vmatpush1.msra.mxu0 %v376
    %3038 = vmatprep.subr.mxu0 0.0
    %3039 = vmatpush1.msra.mxu0 %v377
    %3040 = vmatprep.subr.mxu0 0.0
    %3041 = vmatpush1.msra.mxu0 %v378
    %3042 = vmatprep.subr.mxu0 0.0
    %3043 = vmatpush1.msra.mxu0 0.0
    %3044 = vmatprep.subr.mxu0 0.0
    %3045 = vmatpush1.msra.mxu0 0.0
    %3046 = vmatprep.subr.mxu0 0.0
    %3047 = vmatpush1.msra.mxu0 0.0
    %3048 = vmatprep.subr.mxu0 0.0
    %3049 = vmatpush1.msra.mxu0 0.0
    %3050 = vmatprep.subr.mxu0 0.0
    %3051 = vmatpush1.msra.mxu0 0.0
    %3052 = vmatprep.subr.mxu0 0.0
    %3053 = vmatpush1.msra.mxu0 0.0
    %3054 = vmatprep.subr.mxu0 0.0
    %3055 = vmatpush1.msra.mxu0 0.0
    %3056 = vmatprep.subr.mxu0 0.0
    %3057 = vmatpush1.msra.mxu0 0.0
    %3058 = vmatprep.subr.mxu0 0.0
    %3059 = vmatpush1.msra.mxu0 0.0
    %3060 = vmatprep.subr.mxu0 0.0
    %3061 = vmatpush1.msra.mxu0 0.0
    %3062 = vmatprep.subr.mxu0 0.0
    %3063 = vmatpush1.msra.mxu0 0.0
    %3064 = vmatprep.subr.mxu0 0.0
    %3065 = vmatpush1.msra.mxu0 0.0
    %3066 = vmatprep.subr.mxu0 0.0
    %3067 = vmatpush1.msra.mxu0 0.0
    %3068 = vmatprep.subr.mxu0 0.0
    %3069 = vmatpush1.msra.mxu0 0.0
    %3070 = vmatprep.subr.mxu0 0.0
    %3071 = vmatpush1.msra.mxu0 0.0
    %3072 = vmatprep.subr.mxu0 0.0
    %3073 = vmatpush1.msra.mxu0 0.0
    %3074 = vmatprep.subr.mxu0 0.0
    %3075 = vmatpush1.msra.mxu0 0.0
    %3076 = vmatprep.subr.mxu0 0.0
    %3077 = vmatpush1.msra.mxu0 0.0
    %3078 = vmatprep.subr.mxu0 0.0
    %3079 = vmatpush1.msra.mxu0 0.0
    %3080 = vmatprep.subr.mxu0 0.0
    %3081 = vmatpush1.msra.mxu0 0.0
    %3082 = vmatprep.subr.mxu0 0.0
    %3083 = vmatpush1.msra.mxu0 0.0
    %3084 = vmatprep.subr.mxu0 0.0
    %3085 = vmatpush1.msra.mxu0 0.0
    %3086 = vmatprep.subr.mxu0 0.0
    %3087 = vmatpush1.msra.mxu0 0.0
    %3088 = vmatprep.subr.mxu0 0.0
    %3089 = vmatpush1.msra.mxu0 0.0
    %3090 = vmatprep.subr.mxu0 0.0
    %3091 = vmatpush1.msra.mxu0 0.0
    %3092 = vmatprep.subr.mxu0 0.0
    %3093 = vmatpush1.msra.mxu0 0.0
    %3094 = vmatprep.subr.mxu0 0.0
    %3095 = vmatpush1.msra.mxu0 0.0
    %3096 = vmatprep.subr.mxu0 0.0
    %3097 = vmatpush1.msra.mxu0 0.0
    %3098 = vmatprep.mubr.f32.mxu0 0.0
    %3099 = vmatmul.mubr.f32.gmra.mrb[0].mxu0 %v3032
    %v3100 = vpop.f32.mrb[0].mxu0
    %v3101 = vadd.f32 0.0, %v3100
    %v3102 = vpop.f32.mrb[0].mxu0
    %3103 = vdwg.mxu0
    %3104 = vmatprep.subr.mxu0 0.0
    %3105 = vmatpush1.msra.mxu0 %v478
    %3106 = vmatprep.subr.mxu0 0.0
    %3107 = vmatpush1.msra.mxu0 %v480
    %3108 = vmatprep.subr.mxu0 0.0
    %3109 = vmatpush1.msra.mxu0 %v482
    %3110 = vmatprep.subr.mxu0 0.0
    %3111 = vmatpush1.msra.mxu0 %v484
    %3112 = vmatprep.subr.mxu0 0.0
    %3113 = vmatpush1.msra.mxu0 0.0
    %3114 = vmatprep.subr.mxu0 0.0
    %3115 = vmatpush1.msra.mxu0 0.0
    %3116 = vmatprep.subr.mxu0 0.0
    %3117 = vmatpush1.msra.mxu0 0.0
    %3118 = vmatprep.subr.mxu0 0.0
    %3119 = vmatpush1.msra.mxu0 0.0
    %3120 = vmatprep.subr.mxu0 0.0
    %3121 = vmatpush1.msra.mxu0 0.0
    %3122 = vmatprep.subr.mxu0 0.0
    %3123 = vmatpush1.msra.mxu0 0.0
    %3124 = vmatprep.subr.mxu0 0.0
    %3125 = vmatpush1.msra.mxu0 0.0
    %3126 = vmatprep.subr.mxu0 0.0
    %3127 = vmatpush1.msra.mxu0 0.0
    %3128 = vmatprep.subr.mxu0 0.0
    %3129 = vmatpush1.msra.mxu0 0.0
    %3130 = vmatprep.subr.mxu0 0.0
    %3131 = vmatpush1.msra.mxu0 0.0
    %3132 = vmatprep.subr.mxu0 0.0
    %3133 = vmatpush1.msra.mxu0 0.0
    %3134 = vmatprep.subr.mxu0 0.0
    %3135 = vmatpush1.msra.mxu0 0.0
    %3136 = vmatprep.subr.mxu0 0.0
    %3137 = vmatpush1.msra.mxu0 0.0
    %3138 = vmatprep.subr.mxu0 0.0
    %3139 = vmatpush1.msra.mxu0 0.0
    %3140 = vmatprep.subr.mxu0 0.0
    %3141 = vmatpush1.msra.mxu0 0.0
    %3142 = vmatprep.subr.mxu0 0.0
    %3143 = vmatpush1.msra.mxu0 0.0
    %3144 = vmatprep.subr.mxu0 0.0
    %3145 = vmatpush1.msra.mxu0 0.0
    %3146 = vmatprep.subr.mxu0 0.0
    %3147 = vmatpush1.msra.mxu0 0.0
    %3148 = vmatprep.subr.mxu0 0.0
    %3149 = vmatpush1.msra.mxu0 0.0
    %3150 = vmatprep.subr.mxu0 0.0
    %3151 = vmatpush1.msra.mxu0 0.0
    %3152 = vmatprep.subr.mxu0 0.0
    %3153 = vmatpush1.msra.mxu0 0.0
    %3154 = vmatprep.subr.mxu0 0.0
    %3155 = vmatpush1.msra.mxu0 0.0
    %3156 = vmatprep.subr.mxu0 0.0
    %3157 = vmatpush1.msra.mxu0 0.0
    %3158 = vmatprep.subr.mxu0 0.0
    %3159 = vmatpush1.msra.mxu0 0.0
    %3160 = vmatprep.subr.mxu0 0.0
    %3161 = vmatpush1.msra.mxu0 0.0
    %3162 = vmatprep.subr.mxu0 0.0
    %3163 = vmatpush1.msra.mxu0 0.0
    %3164 = vmatprep.subr.mxu0 0.0
    %3165 = vmatpush1.msra.mxu0 0.0
    %3166 = vmatprep.subr.mxu0 0.0
    %3167 = vmatpush1.msra.mxu0 0.0
    %3168 = vmatprep.mubr.f32.mxu0 0.0
    %3169 = vmatmul.mubr.f32.gmra.mrb[0].mxu0 %v3032
    %v3170 = vpop.f32.mrb[0].mxu0
    %v3171 = vadd.f32 0.0, %v3170
    %v3172 = vpop.f32.mrb[0].mxu0
    %3173 = vdwg.mxu0
    %v3174 = vrot.slane %v3018, 3
    %3175 = vrot.lane.b32.xlu0 %v3174, 96
    %v3176 = vpop.permute.xlu0 %3175
    %v3177 = vsel %vm399, %v3176, 0
    %3179 = vmatprep.subr.mxu0 0.0
    %3180 = vmatpush1.msra.mxu0 %v380
    %3181 = vmatprep.subr.mxu0 0.0
    %3182 = vmatpush1.msra.mxu0 %v381
    %3183 = vmatprep.subr.mxu0 0.0
    %3184 = vmatpush1.msra.mxu0 %v382
    %3185 = vmatprep.subr.mxu0 0.0
    %3186 = vmatpush1.msra.mxu0 %v383
    %3187 = vmatprep.subr.mxu0 0.0
    %3188 = vmatpush1.msra.mxu0 0.0
    %3189 = vmatprep.subr.mxu0 0.0
    %3190 = vmatpush1.msra.mxu0 0.0
    %3191 = vmatprep.subr.mxu0 0.0
    %3192 = vmatpush1.msra.mxu0 0.0
    %3193 = vmatprep.subr.mxu0 0.0
    %3194 = vmatpush1.msra.mxu0 0.0
    %3195 = vmatprep.subr.mxu0 0.0
    %3196 = vmatpush1.msra.mxu0 0.0
    %3197 = vmatprep.subr.mxu0 0.0
    %3198 = vmatpush1.msra.mxu0 0.0
    %3199 = vmatprep.subr.mxu0 0.0
    %3200 = vmatpush1.msra.mxu0 0.0
    %3201 = vmatprep.subr.mxu0 0.0
    %3202 = vmatpush1.msra.mxu0 0.0
    %3203 = vmatprep.subr.mxu0 0.0
    %3204 = vmatpush1.msra.mxu0 0.0
    %3205 = vmatprep.subr.mxu0 0.0
    %3206 = vmatpush1.msra.mxu0 0.0
    %3207 = vmatprep.subr.mxu0 0.0
    %3208 = vmatpush1.msra.mxu0 0.0
    %3209 = vmatprep.subr.mxu0 0.0
    %3210 = vmatpush1.msra.mxu0 0.0
    %3211 = vmatprep.subr.mxu0 0.0
    %3212 = vmatpush1.msra.mxu0 0.0
    %3213 = vmatprep.subr.mxu0 0.0
    %3214 = vmatpush1.msra.mxu0 0.0
    %3215 = vmatprep.subr.mxu0 0.0
    %3216 = vmatpush1.msra.mxu0 0.0
    %3217 = vmatprep.subr.mxu0 0.0
    %3218 = vmatpush1.msra.mxu0 0.0
    %3219 = vmatprep.subr.mxu0 0.0
    %3220 = vmatpush1.msra.mxu0 0.0
    %3221 = vmatprep.subr.mxu0 0.0
    %3222 = vmatpush1.msra.mxu0 0.0
    %3223 = vmatprep.subr.mxu0 0.0
    %3224 = vmatpush1.msra.mxu0 0.0
    %3225 = vmatprep.subr.mxu0 0.0
    %3226 = vmatpush1.msra.mxu0 0.0
    %3227 = vmatprep.subr.mxu0 0.0
    %3228 = vmatpush1.msra.mxu0 0.0
    %3229 = vmatprep.subr.mxu0 0.0
    %3230 = vmatpush1.msra.mxu0 0.0
    %3231 = vmatprep.subr.mxu0 0.0
    %3232 = vmatpush1.msra.mxu0 0.0
    %3233 = vmatprep.subr.mxu0 0.0
    %3234 = vmatpush1.msra.mxu0 0.0
    %3235 = vmatprep.subr.mxu0 0.0
    %3236 = vmatpush1.msra.mxu0 0.0
    %3237 = vmatprep.subr.mxu0 0.0
    %3238 = vmatpush1.msra.mxu0 0.0
    %3239 = vmatprep.subr.mxu0 0.0
    %3240 = vmatpush1.msra.mxu0 0.0
    %3241 = vmatprep.subr.mxu0 0.0
    %3242 = vmatpush1.msra.mxu0 0.0
    %3243 = vmatprep.mubr.f32.mxu0 0.0
    %3244 = vmatmul.mubr.f32.gmra.mrb[0].mxu0 %v3177
    %v3245 = vpop.f32.mrb[0].mxu0
    %v3246 = vadd.f32 0.0, %v3245
    %v3247 = vpop.f32.mrb[0].mxu0
    %3248 = vdwg.mxu0
    %3249 = vmatprep.subr.mxu0 0.0
    %3250 = vmatpush1.msra.mxu0 %v634
    %3251 = vmatprep.subr.mxu0 0.0
    %3252 = vmatpush1.msra.mxu0 %v636
    %3253 = vmatprep.subr.mxu0 0.0
    %3254 = vmatpush1.msra.mxu0 %v638
    %3255 = vmatprep.subr.mxu0 0.0
    %3256 = vmatpush1.msra.mxu0 %v640
    %3257 = vmatprep.subr.mxu0 0.0
    %3258 = vmatpush1.msra.mxu0 0.0
    %3259 = vmatprep.subr.mxu0 0.0
    %3260 = vmatpush1.msra.mxu0 0.0
    %3261 = vmatprep.subr.mxu0 0.0
    %3262 = vmatpush1.msra.mxu0 0.0
    %3263 = vmatprep.subr.mxu0 0.0
    %3264 = vmatpush1.msra.mxu0 0.0
    %3265 = vmatprep.subr.mxu0 0.0
    %3266 = vmatpush1.msra.mxu0 0.0
    %3267 = vmatprep.subr.mxu0 0.0
    %3268 = vmatpush1.msra.mxu0 0.0
    %3269 = vmatprep.subr.mxu0 0.0
    %3270 = vmatpush1.msra.mxu0 0.0
    %3271 = vmatprep.subr.mxu0 0.0
    %3272 = vmatpush1.msra.mxu0 0.0
    %3273 = vmatprep.subr.mxu0 0.0
    %3274 = vmatpush1.msra.mxu0 0.0
    %3275 = vmatprep.subr.mxu0 0.0
    %3276 = vmatpush1.msra.mxu0 0.0
    %3277 = vmatprep.subr.mxu0 0.0
    %3278 = vmatpush1.msra.mxu0 0.0
    %3279 = vmatprep.subr.mxu0 0.0
    %3280 = vmatpush1.msra.mxu0 0.0
    %3281 = vmatprep.subr.mxu0 0.0
    %3282 = vmatpush1.msra.mxu0 0.0
    %3283 = vmatprep.subr.mxu0 0.0
    %3284 = vmatpush1.msra.mxu0 0.0
    %3285 = vmatprep.subr.mxu0 0.0
    %3286 = vmatpush1.msra.mxu0 0.0
    %3287 = vmatprep.subr.mxu0 0.0
    %3288 = vmatpush1.msra.mxu0 0.0
    %3289 = vmatprep.subr.mxu0 0.0
    %3290 = vmatpush1.msra.mxu0 0.0
    %3291 = vmatprep.subr.mxu0 0.0
    %3292 = vmatpush1.msra.mxu0 0.0
    %3293 = vmatprep.subr.mxu0 0.0
    %3294 = vmatpush1.msra.mxu0 0.0
    %3295 = vmatprep.subr.mxu0 0.0
    %3296 = vmatpush1.msra.mxu0 0.0
    %3297 = vmatprep.subr.mxu0 0.0
    %3298 = vmatpush1.msra.mxu0 0.0
    %3299 = vmatprep.subr.mxu0 0.0
    %3300 = vmatpush1.msra.mxu0 0.0
    %3301 = vmatprep.subr.mxu0 0.0
    %3302 = vmatpush1.msra.mxu0 0.0
    %3303 = vmatprep.subr.mxu0 0.0
    %3304 = vmatpush1.msra.mxu0 0.0
    %3305 = vmatprep.subr.mxu0 0.0
    %3306 = vmatpush1.msra.mxu0 0.0
    %3307 = vmatprep.subr.mxu0 0.0
    %3308 = vmatpush1.msra.mxu0 0.0
    %3309 = vmatprep.subr.mxu0 0.0
    %3310 = vmatpush1.msra.mxu0 0.0
    %3311 = vmatprep.subr.mxu0 0.0
    %3312 = vmatpush1.msra.mxu0 0.0
    %3313 = vmatprep.mubr.f32.mxu0 0.0
    %3314 = vmatmul.mubr.f32.gmra.mrb[0].mxu0 %v3177
    %v3315 = vpop.f32.mrb[0].mxu0
    %v3316 = vadd.f32 0.0, %v3315
    %v3317 = vpop.f32.mrb[0].mxu0
    %3318 = vdwg.mxu0
    %v3320 = vrot.slane %v3101, 3
    %v3322 = vadd.f32 %v391, %v3320
    %v3323 = vmul.f32 %v3322, 0.5
    %v3324 = vtanh.pop %v3323
    %v3325 = vadd.f32 %v3324, 1.0
    %v3326 = vmul.f32 %v3325, 0.5
    %v3328 = vrot.slane %v3171, 3
    %3329 = vrot.lane.b32.xlu0 %v3328, 32
    %v3330 = vpop.permute.xlu0 %3329
    %v3332 = vadd.f32 %v391, %v3330
    %v3333 = vmul.f32 %v3332, 0.5
    %v3334 = vtanh.pop %v3333
    %v3335 = vadd.f32 %v3334, 1.0
    %v3336 = vmul.f32 %v3335, 0.5
    %3337 = vmatprep.subr.mxu0 0.0
    %3338 = vmatpush1.msra.mxu0 %v730
    %3339 = vmatprep.subr.mxu0 0.0
    %3340 = vmatpush1.msra.mxu0 %v732
    %3341 = vmatprep.subr.mxu0 0.0
    %3342 = vmatpush1.msra.mxu0 %v734
    %3343 = vmatprep.subr.mxu0 0.0
    %3344 = vmatpush1.msra.mxu0 %v736
    %3345 = vmatprep.subr.mxu0 0.0
    %3346 = vmatpush1.msra.mxu0 0.0
    %3347 = vmatprep.subr.mxu0 0.0
    %3348 = vmatpush1.msra.mxu0 0.0
    %3349 = vmatprep.subr.mxu0 0.0
    %3350 = vmatpush1.msra.mxu0 0.0
    %3351 = vmatprep.subr.mxu0 0.0
    %3352 = vmatpush1.msra.mxu0 0.0
    %3353 = vmatprep.subr.mxu0 0.0
    %3354 = vmatpush1.msra.mxu0 0.0
    %3355 = vmatprep.subr.mxu0 0.0
    %3356 = vmatpush1.msra.mxu0 0.0
    %3357 = vmatprep.subr.mxu0 0.0
    %3358 = vmatpush1.msra.mxu0 0.0
    %3359 = vmatprep.subr.mxu0 0.0
    %3360 = vmatpush1.msra.mxu0 0.0
    %3361 = vmatprep.subr.mxu0 0.0
    %3362 = vmatpush1.msra.mxu0 0.0
    %3363 = vmatprep.subr.mxu0 0.0
    %3364 = vmatpush1.msra.mxu0 0.0
    %3365 = vmatprep.subr.mxu0 0.0
    %3366 = vmatpush1.msra.mxu0 0.0
    %3367 = vmatprep.subr.mxu0 0.0
    %3368 = vmatpush1.msra.mxu0 0.0
    %3369 = vmatprep.subr.mxu0 0.0
    %3370 = vmatpush1.msra.mxu0 0.0
    %3371 = vmatprep.subr.mxu0 0.0
    %3372 = vmatpush1.msra.mxu0 0.0
    %3373 = vmatprep.subr.mxu0 0.0
    %3374 = vmatpush1.msra.mxu0 0.0
    %3375 = vmatprep.subr.mxu0 0.0
    %3376 = vmatpush1.msra.mxu0 0.0
    %3377 = vmatprep.subr.mxu0 0.0
    %3378 = vmatpush1.msra.mxu0 0.0
    %3379 = vmatprep.subr.mxu0 0.0
    %3380 = vmatpush1.msra.mxu0 0.0
    %3381 = vmatprep.subr.mxu0 0.0
    %3382 = vmatpush1.msra.mxu0 0.0
    %3383 = vmatprep.subr.mxu0 0.0
    %3384 = vmatpush1.msra.mxu0 0.0
    %3385 = vmatprep.subr.mxu0 0.0
    %3386 = vmatpush1.msra.mxu0 0.0
    %3387 = vmatprep.subr.mxu0 0.0
    %3388 = vmatpush1.msra.mxu0 0.0
    %3389 = vmatprep.subr.mxu0 0.0
    %3390 = vmatpush1.msra.mxu0 0.0
    %3391 = vmatprep.subr.mxu0 0.0
    %3392 = vmatpush1.msra.mxu0 0.0
    %3393 = vmatprep.subr.mxu0 0.0
    %3394 = vmatpush1.msra.mxu0 0.0
    %3395 = vmatprep.subr.mxu0 0.0
    %3396 = vmatpush1.msra.mxu0 0.0
    %3397 = vmatprep.subr.mxu0 0.0
    %3398 = vmatpush1.msra.mxu0 0.0
    %3399 = vmatprep.subr.mxu0 0.0
    %3400 = vmatpush1.msra.mxu0 0.0
    %3401 = vmatprep.mubr.f32.mxu0 0.0
    %3402 = vmatmul.mubr.f32.gmra.mrb[0].mxu0 %v3032
    %v3403 = vpop.f32.mrb[0].mxu0
    %v3404 = vadd.f32 %v742, %v3403
    %v3405 = vpop.f32.mrb[0].mxu0
    %3406 = vdwg.mxu0
    %v3408 = vrot.slane %v3404, 3
    %v3410 = vmul.f32 %v3326, %v3408
    %3412 = vrot.lane.b32.xlu0 %v3410, 64
    %v3413 = vpop.permute.xlu0 %3412
    %v3415 = vadd.f32 %v293, %v3413
    %v3416 = vtanh.pop %v3415
    %v3417 = vsub.f32 1.0, %v3336
    %3419 = vrot.lane.b32.xlu0 %v3416, 96
    %v3420 = vpop.permute.xlu0 %3419
    %v3422 = vmul.f32 %v3417, %v3420
    %v3423 = vrot.slane %v2910, 7
    %v3425 = vmul.f32 %v3336, %v3423
    %v3426 = vadd.f32 %v3422, %v3425
    %v3428 = vrot.slane %v3246, 6
    %v3430 = vadd.f32 %v398, %v3428
    %v3431 = vmul.f32 %v3430, 0.5
    %v3432 = vtanh.pop %v3431
    %v3433 = vadd.f32 %v3432, 1.0
    %v3434 = vmul.f32 %v3433, 0.5
    %v3436 = vrot.slane %v3316, 6
    %3437 = vrot.lane.b32.xlu0 %v3436, 32
    %v3438 = vpop.permute.xlu0 %3437
    %v3440 = vadd.f32 %v398, %v3438
    %v3441 = vmul.f32 %v3440, 0.5
    %v3442 = vtanh.pop %v3441
    %v3443 = vadd.f32 %v3442, 1.0
    %v3444 = vmul.f32 %v3443, 0.5
    %3445 = vmatprep.subr.mxu0 0.0
    %3446 = vmatpush1.msra.mxu0 %v848
    %3447 = vmatprep.subr.mxu0 0.0
    %3448 = vmatpush1.msra.mxu0 %v850
    %3449 = vmatprep.subr.mxu0 0.0
    %3450 = vmatpush1.msra.mxu0 %v852
    %3451 = vmatprep.subr.mxu0 0.0
    %3452 = vmatpush1.msra.mxu0 %v854
    %3453 = vmatprep.subr.mxu0 0.0
    %3454 = vmatpush1.msra.mxu0 0.0
    %3455 = vmatprep.subr.mxu0 0.0
    %3456 = vmatpush1.msra.mxu0 0.0
    %3457 = vmatprep.subr.mxu0 0.0
    %3458 = vmatpush1.msra.mxu0 0.0
    %3459 = vmatprep.subr.mxu0 0.0
    %3460 = vmatpush1.msra.mxu0 0.0
    %3461 = vmatprep.subr.mxu0 0.0
    %3462 = vmatpush1.msra.mxu0 0.0
    %3463 = vmatprep.subr.mxu0 0.0
    %3464 = vmatpush1.msra.mxu0 0.0
    %3465 = vmatprep.subr.mxu0 0.0
    %3466 = vmatpush1.msra.mxu0 0.0
    %3467 = vmatprep.subr.mxu0 0.0
    %3468 = vmatpush1.msra.mxu0 0.0
    %3469 = vmatprep.subr.mxu0 0.0
    %3470 = vmatpush1.msra.mxu0 0.0
    %3471 = vmatprep.subr.mxu0 0.0
    %3472 = vmatpush1.msra.mxu0 0.0
    %3473 = vmatprep.subr.mxu0 0.0
    %3474 = vmatpush1.msra.mxu0 0.0
    %3475 = vmatprep.subr.mxu0 0.0
    %3476 = vmatpush1.msra.mxu0 0.0
    %3477 = vmatprep.subr.mxu0 0.0
    %3478 = vmatpush1.msra.mxu0 0.0
    %3479 = vmatprep.subr.mxu0 0.0
    %3480 = vmatpush1.msra.mxu0 0.0
    %3481 = vmatprep.subr.mxu0 0.0
    %3482 = vmatpush1.msra.mxu0 0.0
    %3483 = vmatprep.subr.mxu0 0.0
    %3484 = vmatpush1.msra.mxu0 0.0
    %3485 = vmatprep.subr.mxu0 0.0
    %3486 = vmatpush1.msra.mxu0 0.0
    %3487 = vmatprep.subr.mxu0 0.0
    %3488 = vmatpush1.msra.mxu0 0.0
    %3489 = vmatprep.subr.mxu0 0.0
    %3490 = vmatpush1.msra.mxu0 0.0
    %3491 = vmatprep.subr.mxu0 0.0
    %3492 = vmatpush1.msra.mxu0 0.0
    %3493 = vmatprep.subr.mxu0 0.0
    %3494 = vmatpush1.msra.mxu0 0.0
    %3495 = vmatprep.subr.mxu0 0.0
    %3496 = vmatpush1.msra.mxu0 0.0
    %3497 = vmatprep.subr.mxu0 0.0
    %3498 = vmatpush1.msra.mxu0 0.0
    %3499 = vmatprep.subr.mxu0 0.0
    %3500 = vmatpush1.msra.mxu0 0.0
    %3501 = vmatprep.subr.mxu0 0.0
    %3502 = vmatpush1.msra.mxu0 0.0
    %3503 = vmatprep.subr.mxu0 0.0
    %3504 = vmatpush1.msra.mxu0 0.0
    %3505 = vmatprep.subr.mxu0 0.0
    %3506 = vmatpush1.msra.mxu0 0.0
    %3507 = vmatprep.subr.mxu0 0.0
    %3508 = vmatpush1.msra.mxu0 0.0
    %3509 = vmatprep.mubr.f32.mxu0 0.0
    %3510 = vmatmul.mubr.f32.gmra.mrb[0].mxu0 %v3177
    %v3511 = vpop.f32.mrb[0].mxu0
    %v3512 = vadd.f32 %v860, %v3511
    %v3513 = vpop.f32.mrb[0].mxu0
    %3514 = vdwg.mxu0
    %v3516 = vrot.slane %v3512, 6
    %v3518 = vmul.f32 %v3434, %v3516
    %3520 = vrot.lane.b32.xlu0 %v3518, 64
    %v3521 = vpop.permute.xlu0 %3520
    %v3523 = vadd.f32 %v372, %v3521
    %v3524 = vtanh.pop %v3523
    %v3525 = vsub.f32 1.0, %v3444
    %3527 = vrot.lane.b32.xlu0 %v3524, 96
    %v3528 = vpop.permute.xlu0 %3527
    %v3530 = vmul.f32 %v3525, %v3528
    %v3531 = vrot.slane %v3018, 1
    %v3533 = vmul.f32 %v3444, %v3531
    %v3534 = vadd.f32 %v3530, %v3533
    %3536 = vrot.lane.b32.xlu0 %v3426, 96
    %v3537 = vpop.permute.xlu0 %3536
    %3539 = vst.msk [vmem:[#allocation2] sm:$0x20] %vm1993, %v3537
    %3541 = vrot.lane.b32.xlu0 %v3534, 96
    %v3542 = vpop.permute.xlu0 %3541
    %3544 = vst.msk [vmem:[#allocation3] sm:$0x4] %vm1987, %v3542
    %v3545 = vrot.slane %v3426, 5
    %3546 = vrot.lane.b32.xlu0 %v3545, 96
    %v3547 = vpop.permute.xlu0 %3546
    %v3548 = vsel %vm399, %v3547, 0
    %3550 = vmatprep.subr.mxu0 0.0
    %3551 = vmatpush1.msra.mxu0 %v375
    %3552 = vmatprep.subr.mxu0 0.0
    %3553 = vmatpush1.msra.mxu0 %v376
    %3554 = vmatprep.subr.mxu0 0.0
    %3555 = vmatpush1.msra.mxu0 %v377
    %3556 = vmatprep.subr.mxu0 0.0
    %3557 = vmatpush1.msra.mxu0 %v378
    %3558 = vmatprep.subr.mxu0 0.0
    %3559 = vmatpush1.msra.mxu0 0.0
    %3560 = vmatprep.subr.mxu0 0.0
    %3561 = vmatpush1.msra.mxu0 0.0
    %3562 = vmatprep.subr.mxu0 0.0
    %3563 = vmatpush1.msra.mxu0 0.0
    %3564 = vmatprep.subr.mxu0 0.0
    %3565 = vmatpush1.msra.mxu0 0.0
    %3566 = vmatprep.subr.mxu0 0.0
    %3567 = vmatpush1.msra.mxu0 0.0
    %3568 = vmatprep.subr.mxu0 0.0
    %3569 = vmatpush1.msra.mxu0 0.0
    %3570 = vmatprep.subr.mxu0 0.0
    %3571 = vmatpush1.msra.mxu0 0.0
    %3572 = vmatprep.subr.mxu0 0.0
    %3573 = vmatpush1.msra.mxu0 0.0
    %3574 = vmatprep.subr.mxu0 0.0
    %3575 = vmatpush1.msra.mxu0 0.0
    %3576 = vmatprep.subr.mxu0 0.0
    %3577 = vmatpush1.msra.mxu0 0.0
    %3578 = vmatprep.subr.mxu0 0.0
    %3579 = vmatpush1.msra.mxu0 0.0
    %3580 = vmatprep.subr.mxu0 0.0
    %3581 = vmatpush1.msra.mxu0 0.0
    %3582 = vmatprep.subr.mxu0 0.0
    %3583 = vmatpush1.msra.mxu0 0.0
    %3584 = vmatprep.subr.mxu0 0.0
    %3585 = vmatpush1.msra.mxu0 0.0
    %3586 = vmatprep.subr.mxu0 0.0
    %3587 = vmatpush1.msra.mxu0 0.0
    %3588 = vmatprep.subr.mxu0 0.0
    %3589 = vmatpush1.msra.mxu0 0.0
    %3590 = vmatprep.subr.mxu0 0.0
    %3591 = vmatpush1.msra.mxu0 0.0
    %3592 = vmatprep.subr.mxu0 0.0
    %3593 = vmatpush1.msra.mxu0 0.0
    %3594 = vmatprep.subr.mxu0 0.0
    %3595 = vmatpush1.msra.mxu0 0.0
    %3596 = vmatprep.subr.mxu0 0.0
    %3597 = vmatpush1.msra.mxu0 0.0
    %3598 = vmatprep.subr.mxu0 0.0
    %3599 = vmatpush1.msra.mxu0 0.0
    %3600 = vmatprep.subr.mxu0 0.0
    %3601 = vmatpush1.msra.mxu0 0.0
    %3602 = vmatprep.subr.mxu0 0.0
    %3603 = vmatpush1.msra.mxu0 0.0
    %3604 = vmatprep.subr.mxu0 0.0
    %3605 = vmatpush1.msra.mxu0 0.0
    %3606 = vmatprep.subr.mxu0 0.0
    %3607 = vmatpush1.msra.mxu0 0.0
    %3608 = vmatprep.subr.mxu0 0.0
    %3609 = vmatpush1.msra.mxu0 0.0
    %3610 = vmatprep.subr.mxu0 0.0
    %3611 = vmatpush1.msra.mxu0 0.0
    %3612 = vmatprep.subr.mxu0 0.0
    %3613 = vmatpush1.msra.mxu0 0.0
    %3614 = vmatprep.mubr.f32.mxu0 0.0
    %3615 = vmatmul.mubr.f32.gmra.mrb[0].mxu0 %v3548
    %v3616 = vpop.f32.mrb[0].mxu0
    %v3617 = vadd.f32 0.0, %v3616
    %v3618 = vpop.f32.mrb[0].mxu0
    %3619 = vdwg.mxu0
    %3620 = vmatprep.subr.mxu0 0.0
    %3621 = vmatpush1.msra.mxu0 %v478
    %3622 = vmatprep.subr.mxu0 0.0
    %3623 = vmatpush1.msra.mxu0 %v480
    %3624 = vmatprep.subr.mxu0 0.0
    %3625 = vmatpush1.msra.mxu0 %v482
    %3626 = vmatprep.subr.mxu0 0.0
    %3627 = vmatpush1.msra.mxu0 %v484
    %3628 = vmatprep.subr.mxu0 0.0
    %3629 = vmatpush1.msra.mxu0 0.0
    %3630 = vmatprep.subr.mxu0 0.0
    %3631 = vmatpush1.msra.mxu0 0.0
    %3632 = vmatprep.subr.mxu0 0.0
    %3633 = vmatpush1.msra.mxu0 0.0
    %3634 = vmatprep.subr.mxu0 0.0
    %3635 = vmatpush1.msra.mxu0 0.0
    %3636 = vmatprep.subr.mxu0 0.0
    %3637 = vmatpush1.msra.mxu0 0.0
    %3638 = vmatprep.subr.mxu0 0.0
    %3639 = vmatpush1.msra.mxu0 0.0
    %3640 = vmatprep.subr.mxu0 0.0
    %3641 = vmatpush1.msra.mxu0 0.0
    %3642 = vmatprep.subr.mxu0 0.0
    %3643 = vmatpush1.msra.mxu0 0.0
    %3644 = vmatprep.subr.mxu0 0.0
    %3645 = vmatpush1.msra.mxu0 0.0
    %3646 = vmatprep.subr.mxu0 0.0
    %3647 = vmatpush1.msra.mxu0 0.0
    %3648 = vmatprep.subr.mxu0 0.0
    %3649 = vmatpush1.msra.mxu0 0.0
    %3650 = vmatprep.subr.mxu0 0.0
    %3651 = vmatpush1.msra.mxu0 0.0
    %3652 = vmatprep.subr.mxu0 0.0
    %3653 = vmatpush1.msra.mxu0 0.0
    %3654 = vmatprep.subr.mxu0 0.0
    %3655 = vmatpush1.msra.mxu0 0.0
    %3656 = vmatprep.subr.mxu0 0.0
    %3657 = vmatpush1.msra.mxu0 0.0
    %3658 = vmatprep.subr.mxu0 0.0
    %3659 = vmatpush1.msra.mxu0 0.0
    %3660 = vmatprep.subr.mxu0 0.0
    %3661 = vmatpush1.msra.mxu0 0.0
    %3662 = vmatprep.subr.mxu0 0.0
    %3663 = vmatpush1.msra.mxu0 0.0
    %3664 = vmatprep.subr.mxu0 0.0
    %3665 = vmatpush1.msra.mxu0 0.0
    %3666 = vmatprep.subr.mxu0 0.0
    %3667 = vmatpush1.msra.mxu0 0.0
    %3668 = vmatprep.subr.mxu0 0.0
    %3669 = vmatpush1.msra.mxu0 0.0
    %3670 = vmatprep.subr.mxu0 0.0
    %3671 = vmatpush1.msra.mxu0 0.0
    %3672 = vmatprep.subr.mxu0 0.0
    %3673 = vmatpush1.msra.mxu0 0.0
    %3674 = vmatprep.subr.mxu0 0.0
    %3675 = vmatpush1.msra.mxu0 0.0
    %3676 = vmatprep.subr.mxu0 0.0
    %3677 = vmatpush1.msra.mxu0 0.0
    %3678 = vmatprep.subr.mxu0 0.0
    %3679 = vmatpush1.msra.mxu0 0.0
    %3680 = vmatprep.subr.mxu0 0.0
    %3681 = vmatpush1.msra.mxu0 0.0
    %3682 = vmatprep.subr.mxu0 0.0
    %3683 = vmatpush1.msra.mxu0 0.0
    %3684 = vmatprep.mubr.f32.mxu0 0.0
    %3685 = vmatmul.mubr.f32.gmra.mrb[0].mxu0 %v3548
    %v3686 = vpop.f32.mrb[0].mxu0
    %v3687 = vadd.f32 0.0, %v3686
    %v3688 = vpop.f32.mrb[0].mxu0
    %3689 = vdwg.mxu0
    %v3690 = vrot.slane %v3534, 2
    %3691 = vrot.lane.b32.xlu0 %v3690, 96
    %v3692 = vpop.permute.xlu0 %3691
    %v3693 = vsel %vm399, %v3692, 0
    %3695 = vmatprep.subr.mxu0 0.0
    %3696 = vmatpush1.msra.mxu0 %v380
    %3697 = vmatprep.subr.mxu0 0.0
    %3698 = vmatpush1.msra.mxu0 %v381
    %3699 = vmatprep.subr.mxu0 0.0
    %3700 = vmatpush1.msra.mxu0 %v382
    %3701 = vmatprep.subr.mxu0 0.0
    %3702 = vmatpush1.msra.mxu0 %v383
    %3703 = vmatprep.subr.mxu0 0.0
    %3704 = vmatpush1.msra.mxu0 0.0
    %3705 = vmatprep.subr.mxu0 0.0
    %3706 = vmatpush1.msra.mxu0 0.0
    %3707 = vmatprep.subr.mxu0 0.0
    %3708 = vmatpush1.msra.mxu0 0.0
    %3709 = vmatprep.subr.mxu0 0.0
    %3710 = vmatpush1.msra.mxu0 0.0
    %3711 = vmatprep.subr.mxu0 0.0
    %3712 = vmatpush1.msra.mxu0 0.0
    %3713 = vmatprep.subr.mxu0 0.0
    %3714 = vmatpush1.msra.mxu0 0.0
    %3715 = vmatprep.subr.mxu0 0.0
    %3716 = vmatpush1.msra.mxu0 0.0
    %3717 = vmatprep.subr.mxu0 0.0
    %3718 = vmatpush1.msra.mxu0 0.0
    %3719 = vmatprep.subr.mxu0 0.0
    %3720 = vmatpush1.msra.mxu0 0.0
    %3721 = vmatprep.subr.mxu0 0.0
    %3722 = vmatpush1.msra.mxu0 0.0
    %3723 = vmatprep.subr.mxu0 0.0
    %3724 = vmatpush1.msra.mxu0 0.0
    %3725 = vmatprep.subr.mxu0 0.0
    %3726 = vmatpush1.msra.mxu0 0.0
    %3727 = vmatprep.subr.mxu0 0.0
    %3728 = vmatpush1.msra.mxu0 0.0
    %3729 = vmatprep.subr.mxu0 0.0
    %3730 = vmatpush1.msra.mxu0 0.0
    %3731 = vmatprep.subr.mxu0 0.0
    %3732 = vmatpush1.msra.mxu0 0.0
    %3733 = vmatprep.subr.mxu0 0.0
    %3734 = vmatpush1.msra.mxu0 0.0
    %3735 = vmatprep.subr.mxu0 0.0
    %3736 = vmatpush1.msra.mxu0 0.0
    %3737 = vmatprep.subr.mxu0 0.0
    %3738 = vmatpush1.msra.mxu0 0.0
    %3739 = vmatprep.subr.mxu0 0.0
    %3740 = vmatpush1.msra.mxu0 0.0
    %3741 = vmatprep.subr.mxu0 0.0
    %3742 = vmatpush1.msra.mxu0 0.0
    %3743 = vmatprep.subr.mxu0 0.0
    %3744 = vmatpush1.msra.mxu0 0.0
    %3745 = vmatprep.subr.mxu0 0.0
    %3746 = vmatpush1.msra.mxu0 0.0
    %3747 = vmatprep.subr.mxu0 0.0
    %3748 = vmatpush1.msra.mxu0 0.0
    %3749 = vmatprep.subr.mxu0 0.0
    %3750 = vmatpush1.msra.mxu0 0.0
    %3751 = vmatprep.subr.mxu0 0.0
    %3752 = vmatpush1.msra.mxu0 0.0
    %3753 = vmatprep.subr.mxu0 0.0
    %3754 = vmatpush1.msra.mxu0 0.0
    %3755 = vmatprep.subr.mxu0 0.0
    %3756 = vmatpush1.msra.mxu0 0.0
    %3757 = vmatprep.subr.mxu0 0.0
    %3758 = vmatpush1.msra.mxu0 0.0
    %3759 = vmatprep.mubr.f32.mxu0 0.0
    %3760 = vmatmul.mubr.f32.gmra.mrb[0].mxu0 %v3693
    %v3761 = vpop.f32.mrb[0].mxu0
    %v3762 = vadd.f32 0.0, %v3761
    %v3763 = vpop.f32.mrb[0].mxu0
    %3764 = vdwg.mxu0
    %3765 = vmatprep.subr.mxu0 0.0
    %3766 = vmatpush1.msra.mxu0 %v634
    %3767 = vmatprep.subr.mxu0 0.0
    %3768 = vmatpush1.msra.mxu0 %v636
    %3769 = vmatprep.subr.mxu0 0.0
    %3770 = vmatpush1.msra.mxu0 %v638
    %3771 = vmatprep.subr.mxu0 0.0
    %3772 = vmatpush1.msra.mxu0 %v640
    %3773 = vmatprep.subr.mxu0 0.0
    %3774 = vmatpush1.msra.mxu0 0.0
    %3775 = vmatprep.subr.mxu0 0.0
    %3776 = vmatpush1.msra.mxu0 0.0
    %3777 = vmatprep.subr.mxu0 0.0
    %3778 = vmatpush1.msra.mxu0 0.0
    %3779 = vmatprep.subr.mxu0 0.0
    %3780 = vmatpush1.msra.mxu0 0.0
    %3781 = vmatprep.subr.mxu0 0.0
    %3782 = vmatpush1.msra.mxu0 0.0
    %3783 = vmatprep.subr.mxu0 0.0
    %3784 = vmatpush1.msra.mxu0 0.0
    %3785 = vmatprep.subr.mxu0 0.0
    %3786 = vmatpush1.msra.mxu0 0.0
    %3787 = vmatprep.subr.mxu0 0.0
    %3788 = vmatpush1.msra.mxu0 0.0
    %3789 = vmatprep.subr.mxu0 0.0
    %3790 = vmatpush1.msra.mxu0 0.0
    %3791 = vmatprep.subr.mxu0 0.0
    %3792 = vmatpush1.msra.mxu0 0.0
    %3793 = vmatprep.subr.mxu0 0.0
    %3794 = vmatpush1.msra.mxu0 0.0
    %3795 = vmatprep.subr.mxu0 0.0
    %3796 = vmatpush1.msra.mxu0 0.0
    %3797 = vmatprep.subr.mxu0 0.0
    %3798 = vmatpush1.msra.mxu0 0.0
    %3799 = vmatprep.subr.mxu0 0.0
    %3800 = vmatpush1.msra.mxu0 0.0
    %3801 = vmatprep.subr.mxu0 0.0
    %3802 = vmatpush1.msra.mxu0 0.0
    %3803 = vmatprep.subr.mxu0 0.0
    %3804 = vmatpush1.msra.mxu0 0.0
    %3805 = vmatprep.subr.mxu0 0.0
    %3806 = vmatpush1.msra.mxu0 0.0
    %3807 = vmatprep.subr.mxu0 0.0
    %3808 = vmatpush1.msra.mxu0 0.0
    %3809 = vmatprep.subr.mxu0 0.0
    %3810 = vmatpush1.msra.mxu0 0.0
    %3811 = vmatprep.subr.mxu0 0.0
    %3812 = vmatpush1.msra.mxu0 0.0
    %3813 = vmatprep.subr.mxu0 0.0
    %3814 = vmatpush1.msra.mxu0 0.0
    %3815 = vmatprep.subr.mxu0 0.0
    %3816 = vmatpush1.msra.mxu0 0.0
    %3817 = vmatprep.subr.mxu0 0.0
    %3818 = vmatpush1.msra.mxu0 0.0
    %3819 = vmatprep.subr.mxu0 0.0
    %3820 = vmatpush1.msra.mxu0 0.0
    %3821 = vmatprep.subr.mxu0 0.0
    %3822 = vmatpush1.msra.mxu0 0.0
    %3823 = vmatprep.subr.mxu0 0.0
    %3824 = vmatpush1.msra.mxu0 0.0
    %3825 = vmatprep.subr.mxu0 0.0
    %3826 = vmatpush1.msra.mxu0 0.0
    %3827 = vmatprep.subr.mxu0 0.0
    %3828 = vmatpush1.msra.mxu0 0.0
    %3829 = vmatprep.mubr.f32.mxu0 0.0
    %3830 = vmatmul.mubr.f32.gmra.mrb[0].mxu0 %v3693
    %v3831 = vpop.f32.mrb[0].mxu0
    %v3832 = vadd.f32 0.0, %v3831
    %v3833 = vpop.f32.mrb[0].mxu0
    %3834 = vdwg.mxu0
    %v3836 = vrot.slane %v3617, 2
    %v3838 = vadd.f32 %v391, %v3836
    %v3839 = vmul.f32 %v3838, 0.5
    %v3840 = vtanh.pop %v3839
    %v3841 = vadd.f32 %v3840, 1.0
    %v3842 = vmul.f32 %v3841, 0.5
    %v3844 = vrot.slane %v3687, 2
    %3845 = vrot.lane.b32.xlu0 %v3844, 32
    %v3846 = vpop.permute.xlu0 %3845
    %v3848 = vadd.f32 %v391, %v3846
    %v3849 = vmul.f32 %v3848, 0.5
    %v3850 = vtanh.pop %v3849
    %v3851 = vadd.f32 %v3850, 1.0
    %v3852 = vmul.f32 %v3851, 0.5
    %3853 = vmatprep.subr.mxu0 0.0
    %3854 = vmatpush1.msra.mxu0 %v730
    %3855 = vmatprep.subr.mxu0 0.0
    %3856 = vmatpush1.msra.mxu0 %v732
    %3857 = vmatprep.subr.mxu0 0.0
    %3858 = vmatpush1.msra.mxu0 %v734
    %3859 = vmatprep.subr.mxu0 0.0
    %3860 = vmatpush1.msra.mxu0 %v736
    %3861 = vmatprep.subr.mxu0 0.0
    %3862 = vmatpush1.msra.mxu0 0.0
    %3863 = vmatprep.subr.mxu0 0.0
    %3864 = vmatpush1.msra.mxu0 0.0
    %3865 = vmatprep.subr.mxu0 0.0
    %3866 = vmatpush1.msra.mxu0 0.0
    %3867 = vmatprep.subr.mxu0 0.0
    %3868 = vmatpush1.msra.mxu0 0.0
    %3869 = vmatprep.subr.mxu0 0.0
    %3870 = vmatpush1.msra.mxu0 0.0
    %3871 = vmatprep.subr.mxu0 0.0
    %3872 = vmatpush1.msra.mxu0 0.0
    %3873 = vmatprep.subr.mxu0 0.0
    %3874 = vmatpush1.msra.mxu0 0.0
    %3875 = vmatprep.subr.mxu0 0.0
    %3876 = vmatpush1.msra.mxu0 0.0
    %3877 = vmatprep.subr.mxu0 0.0
    %3878 = vmatpush1.msra.mxu0 0.0
    %3879 = vmatprep.subr.mxu0 0.0
    %3880 = vmatpush1.msra.mxu0 0.0
    %3881 = vmatprep.subr.mxu0 0.0
    %3882 = vmatpush1.msra.mxu0 0.0
    %3883 = vmatprep.subr.mxu0 0.0
    %3884 = vmatpush1.msra.mxu0 0.0
    %3885 = vmatprep.subr.mxu0 0.0
    %3886 = vmatpush1.msra.mxu0 0.0
    %3887 = vmatprep.subr.mxu0 0.0
    %3888 = vmatpush1.msra.mxu0 0.0
    %3889 = vmatprep.subr.mxu0 0.0
    %3890 = vmatpush1.msra.mxu0 0.0
    %3891 = vmatprep.subr.mxu0 0.0
    %3892 = vmatpush1.msra.mxu0 0.0
    %3893 = vmatprep.subr.mxu0 0.0
    %3894 = vmatpush1.msra.mxu0 0.0
    %3895 = vmatprep.subr.mxu0 0.0
    %3896 = vmatpush1.msra.mxu0 0.0
    %3897 = vmatprep.subr.mxu0 0.0
    %3898 = vmatpush1.msra.mxu0 0.0
    %3899 = vmatprep.subr.mxu0 0.0
    %3900 = vmatpush1.msra.mxu0 0.0
    %3901 = vmatprep.subr.mxu0 0.0
    %3902 = vmatpush1.msra.mxu0 0.0
    %3903 = vmatprep.subr.mxu0 0.0
    %3904 = vmatpush1.msra.mxu0 0.0
    %3905 = vmatprep.subr.mxu0 0.0
    %3906 = vmatpush1.msra.mxu0 0.0
    %3907 = vmatprep.subr.mxu0 0.0
    %3908 = vmatpush1.msra.mxu0 0.0
    %3909 = vmatprep.subr.mxu0 0.0
    %3910 = vmatpush1.msra.mxu0 0.0
    %3911 = vmatprep.subr.mxu0 0.0
    %3912 = vmatpush1.msra.mxu0 0.0
    %3913 = vmatprep.subr.mxu0 0.0
    %3914 = vmatpush1.msra.mxu0 0.0
    %3915 = vmatprep.subr.mxu0 0.0
    %3916 = vmatpush1.msra.mxu0 0.0
    %3917 = vmatprep.mubr.f32.mxu0 0.0
    %3918 = vmatmul.mubr.f32.gmra.mrb[0].mxu0 %v3548
    %v3919 = vpop.f32.mrb[0].mxu0
    %v3920 = vadd.f32 %v742, %v3919
    %v3921 = vpop.f32.mrb[0].mxu0
    %3922 = vdwg.mxu0
    %v3924 = vrot.slane %v3920, 2
    %v3926 = vmul.f32 %v3842, %v3924
    %3928 = vrot.lane.b32.xlu0 %v3926, 64
    %v3929 = vpop.permute.xlu0 %3928
    %v3931 = vadd.f32 %v293, %v3929
    %v3932 = vtanh.pop %v3931
    %v3933 = vsub.f32 1.0, %v3852
    %3935 = vrot.lane.b32.xlu0 %v3932, 96
    %v3936 = vpop.permute.xlu0 %3935
    %v3938 = vmul.f32 %v3933, %v3936
    %v3939 = vrot.slane %v3426, 7
    %v3941 = vmul.f32 %v3852, %v3939
    %v3942 = vadd.f32 %v3938, %v3941
    %v3944 = vrot.slane %v3762, 7
    %v3946 = vadd.f32 %v398, %v3944
    %v3947 = vmul.f32 %v3946, 0.5
    %v3948 = vtanh.pop %v3947
    %v3949 = vadd.f32 %v3948, 1.0
    %v3950 = vmul.f32 %v3949, 0.5
    %v3952 = vrot.slane %v3832, 7
    %3953 = vrot.lane.b32.xlu0 %v3952, 32
    %v3954 = vpop.permute.xlu0 %3953
    %v3956 = vadd.f32 %v398, %v3954
    %v3957 = vmul.f32 %v3956, 0.5
    %v3958 = vtanh.pop %v3957
    %v3959 = vadd.f32 %v3958, 1.0
    %v3960 = vmul.f32 %v3959, 0.5
    %3961 = vmatprep.subr.mxu0 0.0
    %3962 = vmatpush1.msra.mxu0 %v848
    %3963 = vmatprep.subr.mxu0 0.0
    %3964 = vmatpush1.msra.mxu0 %v850
    %3965 = vmatprep.subr.mxu0 0.0
    %3966 = vmatpush1.msra.mxu0 %v852
    %3967 = vmatprep.subr.mxu0 0.0
    %3968 = vmatpush1.msra.mxu0 %v854
    %3969 = vmatprep.subr.mxu0 0.0
    %3970 = vmatpush1.msra.mxu0 0.0
    %3971 = vmatprep.subr.mxu0 0.0
    %3972 = vmatpush1.msra.mxu0 0.0
    %3973 = vmatprep.subr.mxu0 0.0
    %3974 = vmatpush1.msra.mxu0 0.0
    %3975 = vmatprep.subr.mxu0 0.0
    %3976 = vmatpush1.msra.mxu0 0.0
    %3977 = vmatprep.subr.mxu0 0.0
    %3978 = vmatpush1.msra.mxu0 0.0
    %3979 = vmatprep.subr.mxu0 0.0
    %3980 = vmatpush1.msra.mxu0 0.0
    %3981 = vmatprep.subr.mxu0 0.0
    %3982 = vmatpush1.msra.mxu0 0.0
    %3983 = vmatprep.subr.mxu0 0.0
    %3984 = vmatpush1.msra.mxu0 0.0
    %3985 = vmatprep.subr.mxu0 0.0
    %3986 = vmatpush1.msra.mxu0 0.0
    %3987 = vmatprep.subr.mxu0 0.0
    %3988 = vmatpush1.msra.mxu0 0.0
    %3989 = vmatprep.subr.mxu0 0.0
    %3990 = vmatpush1.msra.mxu0 0.0
    %3991 = vmatprep.subr.mxu0 0.0
    %3992 = vmatpush1.msra.mxu0 0.0
    %3993 = vmatprep.subr.mxu0 0.0
    %3994 = vmatpush1.msra.mxu0 0.0
    %3995 = vmatprep.subr.mxu0 0.0
    %3996 = vmatpush1.msra.mxu0 0.0
    %3997 = vmatprep.subr.mxu0 0.0
    %3998 = vmatpush1.msra.mxu0 0.0
    %3999 = vmatprep.subr.mxu0 0.0
    %4000 = vmatpush1.msra.mxu0 0.0
    %4001 = vmatprep.subr.mxu0 0.0
    %4002 = vmatpush1.msra.mxu0 0.0
    %4003 = vmatprep.subr.mxu0 0.0
    %4004 = vmatpush1.msra.mxu0 0.0
    %4005 = vmatprep.subr.mxu0 0.0
    %4006 = vmatpush1.msra.mxu0 0.0
    %4007 = vmatprep.subr.mxu0 0.0
    %4008 = vmatpush1.msra.mxu0 0.0
    %4009 = vmatprep.subr.mxu0 0.0
    %4010 = vmatpush1.msra.mxu0 0.0
    %4011 = vmatprep.subr.mxu0 0.0
    %4012 = vmatpush1.msra.mxu0 0.0
    %4013 = vmatprep.subr.mxu0 0.0
    %4014 = vmatpush1.msra.mxu0 0.0
    %4015 = vmatprep.subr.mxu0 0.0
    %4016 = vmatpush1.msra.mxu0 0.0
    %4017 = vmatprep.subr.mxu0 0.0
    %4018 = vmatpush1.msra.mxu0 0.0
    %4019 = vmatprep.subr.mxu0 0.0
    %4020 = vmatpush1.msra.mxu0 0.0
    %4021 = vmatprep.subr.mxu0 0.0
    %4022 = vmatpush1.msra.mxu0 0.0
    %4023 = vmatprep.subr.mxu0 0.0
    %4024 = vmatpush1.msra.mxu0 0.0
    %4025 = vmatprep.mubr.f32.mxu0 0.0
    %4026 = vmatmul.mubr.f32.gmra.mrb[0].mxu0 %v3693
    %v4027 = vpop.f32.mrb[0].mxu0
    %v4028 = vadd.f32 %v860, %v4027
    %v4029 = vpop.f32.mrb[0].mxu0
    %4030 = vdwg.mxu0
    %v4032 = vrot.slane %v4028, 7
    %v4034 = vmul.f32 %v3950, %v4032
    %4036 = vrot.lane.b32.xlu0 %v4034, 64
    %v4037 = vpop.permute.xlu0 %4036
    %v4039 = vadd.f32 %v372, %v4037
    %v4040 = vtanh.pop %v4039
    %v4041 = vsub.f32 1.0, %v3960
    %4043 = vrot.lane.b32.xlu0 %v4040, 96
    %v4044 = vpop.permute.xlu0 %4043
    %v4046 = vmul.f32 %v4041, %v4044
    %v4047 = vrot.slane %v3534, 1
    %v4049 = vmul.f32 %v3960, %v4047
    %v4050 = vadd.f32 %v4046, %v4049
    %4052 = vrot.lane.b32.xlu0 %v3942, 96
    %v4053 = vpop.permute.xlu0 %4052
    %4055 = vst.msk [vmem:[#allocation2] sm:$0x40] %vm1475, %v4053
    %4057 = vrot.lane.b32.xlu0 %v4050, 96
    %v4058 = vpop.permute.xlu0 %4057
    %4060 = vst.msk [vmem:[#allocation3] sm:$0x2] %vm1469, %v4058
    %v4061 = vrot.slane %v3942, 6
    %4062 = vrot.lane.b32.xlu0 %v4061, 96
    %v4063 = vpop.permute.xlu0 %4062
    %v4064 = vsel %vm399, %v4063, 0
    %4066 = vmatprep.subr.mxu0 0.0
    %4067 = vmatpush1.msra.mxu0 %v375
    %4068 = vmatprep.subr.mxu0 0.0
    %4069 = vmatpush1.msra.mxu0 %v376
    %4070 = vmatprep.subr.mxu0 0.0
    %4071 = vmatpush1.msra.mxu0 %v377
    %4072 = vmatprep.subr.mxu0 0.0
    %4073 = vmatpush1.msra.mxu0 %v378
    %4074 = vmatprep.subr.mxu0 0.0
    %4075 = vmatpush1.msra.mxu0 0.0
    %4076 = vmatprep.subr.mxu0 0.0
    %4077 = vmatpush1.msra.mxu0 0.0
    %4078 = vmatprep.subr.mxu0 0.0
    %4079 = vmatpush1.msra.mxu0 0.0
    %4080 = vmatprep.subr.mxu0 0.0
    %4081 = vmatpush1.msra.mxu0 0.0
    %4082 = vmatprep.subr.mxu0 0.0
    %4083 = vmatpush1.msra.mxu0 0.0
    %4084 = vmatprep.subr.mxu0 0.0
    %4085 = vmatpush1.msra.mxu0 0.0
    %4086 = vmatprep.subr.mxu0 0.0
    %4087 = vmatpush1.msra.mxu0 0.0
    %4088 = vmatprep.subr.mxu0 0.0
    %4089 = vmatpush1.msra.mxu0 0.0
    %4090 = vmatprep.subr.mxu0 0.0
    %4091 = vmatpush1.msra.mxu0 0.0
    %4092 = vmatprep.subr.mxu0 0.0
    %4093 = vmatpush1.msra.mxu0 0.0
    %4094 = vmatprep.subr.mxu0 0.0
    %4095 = vmatpush1.msra.mxu0 0.0
    %4096 = vmatprep.subr.mxu0 0.0
    %4097 = vmatpush1.msra.mxu0 0.0
    %4098 = vmatprep.subr.mxu0 0.0
    %4099 = vmatpush1.msra.mxu0 0.0
    %4100 = vmatprep.subr.mxu0 0.0
    %4101 = vmatpush1.msra.mxu0 0.0
    %4102 = vmatprep.subr.mxu0 0.0
    %4103 = vmatpush1.msra.mxu0 0.0
    %4104 = vmatprep.subr.mxu0 0.0
    %4105 = vmatpush1.msra.mxu0 0.0
    %4106 = vmatprep.subr.mxu0 0.0
    %4107 = vmatpush1.msra.mxu0 0.0
    %4108 = vmatprep.subr.mxu0 0.0
    %4109 = vmatpush1.msra.mxu0 0.0
    %4110 = vmatprep.subr.mxu0 0.0
    %4111 = vmatpush1.msra.mxu0 0.0
    %4112 = vmatprep.subr.mxu0 0.0
    %4113 = vmatpush1.msra.mxu0 0.0
    %4114 = vmatprep.subr.mxu0 0.0
    %4115 = vmatpush1.msra.mxu0 0.0
    %4116 = vmatprep.subr.mxu0 0.0
    %4117 = vmatpush1.msra.mxu0 0.0
    %4118 = vmatprep.subr.mxu0 0.0
    %4119 = vmatpush1.msra.mxu0 0.0
    %4120 = vmatprep.subr.mxu0 0.0
    %4121 = vmatpush1.msra.mxu0 0.0
    %4122 = vmatprep.subr.mxu0 0.0
    %4123 = vmatpush1.msra.mxu0 0.0
    %4124 = vmatprep.subr.mxu0 0.0
    %4125 = vmatpush1.msra.mxu0 0.0
    %4126 = vmatprep.subr.mxu0 0.0
    %4127 = vmatpush1.msra.mxu0 0.0
    %4128 = vmatprep.subr.mxu0 0.0
    %4129 = vmatpush1.msra.mxu0 0.0
    %4130 = vmatprep.mubr.f32.mxu0 0.0
    %4131 = vmatmul.mubr.f32.gmra.mrb[0].mxu0 %v4064
    %v4132 = vpop.f32.mrb[0].mxu0
    %v4133 = vadd.f32 0.0, %v4132
    %v4134 = vpop.f32.mrb[0].mxu0
    %4135 = vdwg.mxu0
    %4136 = vmatprep.subr.mxu0 0.0
    %4137 = vmatpush1.msra.mxu0 %v478
    %4138 = vmatprep.subr.mxu0 0.0
    %4139 = vmatpush1.msra.mxu0 %v480
    %4140 = vmatprep.subr.mxu0 0.0
    %4141 = vmatpush1.msra.mxu0 %v482
    %4142 = vmatprep.subr.mxu0 0.0
    %4143 = vmatpush1.msra.mxu0 %v484
    %4144 = vmatprep.subr.mxu0 0.0
    %4145 = vmatpush1.msra.mxu0 0.0
    %4146 = vmatprep.subr.mxu0 0.0
    %4147 = vmatpush1.msra.mxu0 0.0
    %4148 = vmatprep.subr.mxu0 0.0
    %4149 = vmatpush1.msra.mxu0 0.0
    %4150 = vmatprep.subr.mxu0 0.0
    %4151 = vmatpush1.msra.mxu0 0.0
    %4152 = vmatprep.subr.mxu0 0.0
    %4153 = vmatpush1.msra.mxu0 0.0
    %4154 = vmatprep.subr.mxu0 0.0
    %4155 = vmatpush1.msra.mxu0 0.0
    %4156 = vmatprep.subr.mxu0 0.0
    %4157 = vmatpush1.msra.mxu0 0.0
    %4158 = vmatprep.subr.mxu0 0.0
    %4159 = vmatpush1.msra.mxu0 0.0
    %4160 = vmatprep.subr.mxu0 0.0
    %4161 = vmatpush1.msra.mxu0 0.0
    %4162 = vmatprep.subr.mxu0 0.0
    %4163 = vmatpush1.msra.mxu0 0.0
    %4164 = vmatprep.subr.mxu0 0.0
    %4165 = vmatpush1.msra.mxu0 0.0
    %4166 = vmatprep.subr.mxu0 0.0
    %4167 = vmatpush1.msra.mxu0 0.0
    %4168 = vmatprep.subr.mxu0 0.0
    %4169 = vmatpush1.msra.mxu0 0.0
    %4170 = vmatprep.subr.mxu0 0.0
    %4171 = vmatpush1.msra.mxu0 0.0
    %4172 = vmatprep.subr.mxu0 0.0
    %4173 = vmatpush1.msra.mxu0 0.0
    %4174 = vmatprep.subr.mxu0 0.0
    %4175 = vmatpush1.msra.mxu0 0.0
    %4176 = vmatprep.subr.mxu0 0.0
    %4177 = vmatpush1.msra.mxu0 0.0
    %4178 = vmatprep.subr.mxu0 0.0
    %4179 = vmatpush1.msra.mxu0 0.0
    %4180 = vmatprep.subr.mxu0 0.0
    %4181 = vmatpush1.msra.mxu0 0.0
    %4182 = vmatprep.subr.mxu0 0.0
    %4183 = vmatpush1.msra.mxu0 0.0
    %4184 = vmatprep.subr.mxu0 0.0
    %4185 = vmatpush1.msra.mxu0 0.0
    %4186 = vmatprep.subr.mxu0 0.0
    %4187 = vmatpush1.msra.mxu0 0.0
    %4188 = vmatprep.subr.mxu0 0.0
    %4189 = vmatpush1.msra.mxu0 0.0
    %4190 = vmatprep.subr.mxu0 0.0
    %4191 = vmatpush1.msra.mxu0 0.0
    %4192 = vmatprep.subr.mxu0 0.0
    %4193 = vmatpush1.msra.mxu0 0.0
    %4194 = vmatprep.subr.mxu0 0.0
    %4195 = vmatpush1.msra.mxu0 0.0
    %4196 = vmatprep.subr.mxu0 0.0
    %4197 = vmatpush1.msra.mxu0 0.0
    %4198 = vmatprep.subr.mxu0 0.0
    %4199 = vmatpush1.msra.mxu0 0.0
    %4200 = vmatprep.mubr.f32.mxu0 0.0
    %4201 = vmatmul.mubr.f32.gmra.mrb[0].mxu0 %v4064
    %v4202 = vpop.f32.mrb[0].mxu0
    %v4203 = vadd.f32 0.0, %v4202
    %v4204 = vpop.f32.mrb[0].mxu0
    %4205 = vdwg.mxu0
    %v4206 = vrot.slane %v4050, 1
    %4207 = vrot.lane.b32.xlu0 %v4206, 96
    %v4208 = vpop.permute.xlu0 %4207
    %v4209 = vsel %vm399, %v4208, 0
    %4211 = vmatprep.subr.mxu0 0.0
    %4212 = vmatpush1.msra.mxu0 %v380
    %4213 = vmatprep.subr.mxu0 0.0
    %4214 = vmatpush1.msra.mxu0 %v381
    %4215 = vmatprep.subr.mxu0 0.0
    %4216 = vmatpush1.msra.mxu0 %v382
    %4217 = vmatprep.subr.mxu0 0.0
    %4218 = vmatpush1.msra.mxu0 %v383
    %4219 = vmatprep.subr.mxu0 0.0
    %4220 = vmatpush1.msra.mxu0 0.0
    %4221 = vmatprep.subr.mxu0 0.0
    %4222 = vmatpush1.msra.mxu0 0.0
    %4223 = vmatprep.subr.mxu0 0.0
    %4224 = vmatpush1.msra.mxu0 0.0
    %4225 = vmatprep.subr.mxu0 0.0
    %4226 = vmatpush1.msra.mxu0 0.0
    %4227 = vmatprep.subr.mxu0 0.0
    %4228 = vmatpush1.msra.mxu0 0.0
    %4229 = vmatprep.subr.mxu0 0.0
    %4230 = vmatpush1.msra.mxu0 0.0
    %4231 = vmatprep.subr.mxu0 0.0
    %4232 = vmatpush1.msra.mxu0 0.0
    %4233 = vmatprep.subr.mxu0 0.0
    %4234 = vmatpush1.msra.mxu0 0.0
    %4235 = vmatprep.subr.mxu0 0.0
    %4236 = vmatpush1.msra.mxu0 0.0
    %4237 = vmatprep.subr.mxu0 0.0
    %4238 = vmatpush1.msra.mxu0 0.0
    %4239 = vmatprep.subr.mxu0 0.0
    %4240 = vmatpush1.msra.mxu0 0.0
    %4241 = vmatprep.subr.mxu0 0.0
    %4242 = vmatpush1.msra.mxu0 0.0
    %4243 = vmatprep.subr.mxu0 0.0
    %4244 = vmatpush1.msra.mxu0 0.0
    %4245 = vmatprep.subr.mxu0 0.0
    %4246 = vmatpush1.msra.mxu0 0.0
    %4247 = vmatprep.subr.mxu0 0.0
    %4248 = vmatpush1.msra.mxu0 0.0
    %4249 = vmatprep.subr.mxu0 0.0
    %4250 = vmatpush1.msra.mxu0 0.0
    %4251 = vmatprep.subr.mxu0 0.0
    %4252 = vmatpush1.msra.mxu0 0.0
    %4253 = vmatprep.subr.mxu0 0.0
    %4254 = vmatpush1.msra.mxu0 0.0
    %4255 = vmatprep.subr.mxu0 0.0
    %4256 = vmatpush1.msra.mxu0 0.0
    %4257 = vmatprep.subr.mxu0 0.0
    %4258 = vmatpush1.msra.mxu0 0.0
    %4259 = vmatprep.subr.mxu0 0.0
    %4260 = vmatpush1.msra.mxu0 0.0
    %4261 = vmatprep.subr.mxu0 0.0
    %4262 = vmatpush1.msra.mxu0 0.0
    %4263 = vmatprep.subr.mxu0 0.0
    %4264 = vmatpush1.msra.mxu0 0.0
    %4265 = vmatprep.subr.mxu0 0.0
    %4266 = vmatpush1.msra.mxu0 0.0
    %4267 = vmatprep.subr.mxu0 0.0
    %4268 = vmatpush1.msra.mxu0 0.0
    %4269 = vmatprep.subr.mxu0 0.0
    %4270 = vmatpush1.msra.mxu0 0.0
    %4271 = vmatprep.subr.mxu0 0.0
    %4272 = vmatpush1.msra.mxu0 0.0
    %4273 = vmatprep.subr.mxu0 0.0
    %4274 = vmatpush1.msra.mxu0 0.0
    %4275 = vmatprep.mubr.f32.mxu0 0.0
    %4276 = vmatmul.mubr.f32.gmra.mrb[0].mxu0 %v4209
    %v4277 = vpop.f32.mrb[0].mxu0
    %v4278 = vadd.f32 0.0, %v4277
    %v4279 = vpop.f32.mrb[0].mxu0
    %4280 = vdwg.mxu0
    %4281 = vmatprep.subr.mxu0 0.0
    %4282 = vmatpush1.msra.mxu0 %v634
    %4283 = vmatprep.subr.mxu0 0.0
    %4284 = vmatpush1.msra.mxu0 %v636
    %4285 = vmatprep.subr.mxu0 0.0
    %4286 = vmatpush1.msra.mxu0 %v638
    %4287 = vmatprep.subr.mxu0 0.0
    %4288 = vmatpush1.msra.mxu0 %v640
    %4289 = vmatprep.subr.mxu0 0.0
    %4290 = vmatpush1.msra.mxu0 0.0
    %4291 = vmatprep.subr.mxu0 0.0
    %4292 = vmatpush1.msra.mxu0 0.0
    %4293 = vmatprep.subr.mxu0 0.0
    %4294 = vmatpush1.msra.mxu0 0.0
    %4295 = vmatprep.subr.mxu0 0.0
    %4296 = vmatpush1.msra.mxu0 0.0
    %4297 = vmatprep.subr.mxu0 0.0
    %4298 = vmatpush1.msra.mxu0 0.0
    %4299 = vmatprep.subr.mxu0 0.0
    %4300 = vmatpush1.msra.mxu0 0.0
    %4301 = vmatprep.subr.mxu0 0.0
    %4302 = vmatpush1.msra.mxu0 0.0
    %4303 = vmatprep.subr.mxu0 0.0
    %4304 = vmatpush1.msra.mxu0 0.0
    %4305 = vmatprep.subr.mxu0 0.0
    %4306 = vmatpush1.msra.mxu0 0.0
    %4307 = vmatprep.subr.mxu0 0.0
    %4308 = vmatpush1.msra.mxu0 0.0
    %4309 = vmatprep.subr.mxu0 0.0
    %4310 = vmatpush1.msra.mxu0 0.0
    %4311 = vmatprep.subr.mxu0 0.0
    %4312 = vmatpush1.msra.mxu0 0.0
    %4313 = vmatprep.subr.mxu0 0.0
    %4314 = vmatpush1.msra.mxu0 0.0
    %4315 = vmatprep.subr.mxu0 0.0
    %4316 = vmatpush1.msra.mxu0 0.0
    %4317 = vmatprep.subr.mxu0 0.0
    %4318 = vmatpush1.msra.mxu0 0.0
    %4319 = vmatprep.subr.mxu0 0.0
    %4320 = vmatpush1.msra.mxu0 0.0
    %4321 = vmatprep.subr.mxu0 0.0
    %4322 = vmatpush1.msra.mxu0 0.0
    %4323 = vmatprep.subr.mxu0 0.0
    %4324 = vmatpush1.msra.mxu0 0.0
    %4325 = vmatprep.subr.mxu0 0.0
    %4326 = vmatpush1.msra.mxu0 0.0
    %4327 = vmatprep.subr.mxu0 0.0
    %4328 = vmatpush1.msra.mxu0 0.0
    %4329 = vmatprep.subr.mxu0 0.0
    %4330 = vmatpush1.msra.mxu0 0.0
    %4331 = vmatprep.subr.mxu0 0.0
    %4332 = vmatpush1.msra.mxu0 0.0
    %4333 = vmatprep.subr.mxu0 0.0
    %4334 = vmatpush1.msra.mxu0 0.0
    %4335 = vmatprep.subr.mxu0 0.0
    %4336 = vmatpush1.msra.mxu0 0.0
    %4337 = vmatprep.subr.mxu0 0.0
    %4338 = vmatpush1.msra.mxu0 0.0
    %4339 = vmatprep.subr.mxu0 0.0
    %4340 = vmatpush1.msra.mxu0 0.0
    %4341 = vmatprep.subr.mxu0 0.0
    %4342 = vmatpush1.msra.mxu0 0.0
    %4343 = vmatprep.subr.mxu0 0.0
    %4344 = vmatpush1.msra.mxu0 0.0
    %4345 = vmatprep.mubr.f32.mxu0 0.0
    %4346 = vmatmul.mubr.f32.gmra.mrb[0].mxu0 %v4209
    %v4347 = vpop.f32.mrb[0].mxu0
    %v4348 = vadd.f32 0.0, %v4347
    %v4349 = vpop.f32.mrb[0].mxu0
    %4350 = vdwg.mxu0
    %v4352 = vrot.slane %v4133, 1
    %v4354 = vadd.f32 %v391, %v4352
    %v4355 = vmul.f32 %v4354, 0.5
    %v4356 = vtanh.pop %v4355
    %v4357 = vadd.f32 %v4356, 1.0
    %v4358 = vmul.f32 %v4357, 0.5
    %v4360 = vrot.slane %v4203, 1
    %4361 = vrot.lane.b32.xlu0 %v4360, 32
    %v4362 = vpop.permute.xlu0 %4361
    %v4364 = vadd.f32 %v391, %v4362
    %v4365 = vmul.f32 %v4364, 0.5
    %v4366 = vtanh.pop %v4365
    %v4367 = vadd.f32 %v4366, 1.0
    %v4368 = vmul.f32 %v4367, 0.5
    %4369 = vmatprep.subr.mxu0 0.0
    %4370 = vmatpush1.msra.mxu0 %v730
    %4371 = vmatprep.subr.mxu0 0.0
    %4372 = vmatpush1.msra.mxu0 %v732
    %4373 = vmatprep.subr.mxu0 0.0
    %4374 = vmatpush1.msra.mxu0 %v734
    %4375 = vmatprep.subr.mxu0 0.0
    %4376 = vmatpush1.msra.mxu0 %v736
    %4377 = vmatprep.subr.mxu0 0.0
    %4378 = vmatpush1.msra.mxu0 0.0
    %4379 = vmatprep.subr.mxu0 0.0
    %4380 = vmatpush1.msra.mxu0 0.0
    %4381 = vmatprep.subr.mxu0 0.0
    %4382 = vmatpush1.msra.mxu0 0.0
    %4383 = vmatprep.subr.mxu0 0.0
    %4384 = vmatpush1.msra.mxu0 0.0
    %4385 = vmatprep.subr.mxu0 0.0
    %4386 = vmatpush1.msra.mxu0 0.0
    %4387 = vmatprep.subr.mxu0 0.0
    %4388 = vmatpush1.msra.mxu0 0.0
    %4389 = vmatprep.subr.mxu0 0.0
    %4390 = vmatpush1.msra.mxu0 0.0
    %4391 = vmatprep.subr.mxu0 0.0
    %4392 = vmatpush1.msra.mxu0 0.0
    %4393 = vmatprep.subr.mxu0 0.0
    %4394 = vmatpush1.msra.mxu0 0.0
    %4395 = vmatprep.subr.mxu0 0.0
    %4396 = vmatpush1.msra.mxu0 0.0
    %4397 = vmatprep.subr.mxu0 0.0
    %4398 = vmatpush1.msra.mxu0 0.0
    %4399 = vmatprep.subr.mxu0 0.0
    %4400 = vmatpush1.msra.mxu0 0.0
    %4401 = vmatprep.subr.mxu0 0.0
    %4402 = vmatpush1.msra.mxu0 0.0
    %4403 = vmatprep.subr.mxu0 0.0
    %4404 = vmatpush1.msra.mxu0 0.0
    %4405 = vmatprep.subr.mxu0 0.0
    %4406 = vmatpush1.msra.mxu0 0.0
    %4407 = vmatprep.subr.mxu0 0.0
    %4408 = vmatpush1.msra.mxu0 0.0
    %4409 = vmatprep.subr.mxu0 0.0
    %4410 = vmatpush1.msra.mxu0 0.0
    %4411 = vmatprep.subr.mxu0 0.0
    %4412 = vmatpush1.msra.mxu0 0.0
    %4413 = vmatprep.subr.mxu0 0.0
    %4414 = vmatpush1.msra.mxu0 0.0
    %4415 = vmatprep.subr.mxu0 0.0
    %4416 = vmatpush1.msra.mxu0 0.0
    %4417 = vmatprep.subr.mxu0 0.0
    %4418 = vmatpush1.msra.mxu0 0.0
    %4419 = vmatprep.subr.mxu0 0.0
    %4420 = vmatpush1.msra.mxu0 0.0
    %4421 = vmatprep.subr.mxu0 0.0
    %4422 = vmatpush1.msra.mxu0 0.0
    %4423 = vmatprep.subr.mxu0 0.0
    %4424 = vmatpush1.msra.mxu0 0.0
    %4425 = vmatprep.subr.mxu0 0.0
    %4426 = vmatpush1.msra.mxu0 0.0
    %4427 = vmatprep.subr.mxu0 0.0
    %4428 = vmatpush1.msra.mxu0 0.0
    %4429 = vmatprep.subr.mxu0 0.0
    %4430 = vmatpush1.msra.mxu0 0.0
    %4431 = vmatprep.subr.mxu0 0.0
    %4432 = vmatpush1.msra.mxu0 0.0
    %4433 = vmatprep.mubr.f32.mxu0 0.0
    %4434 = vmatmul.mubr.f32.gmra.mrb[0].mxu0 %v4064
    %v4435 = vpop.f32.mrb[0].mxu0
    %v4436 = vadd.f32 %v742, %v4435
    %v4437 = vpop.f32.mrb[0].mxu0
    %4438 = vdwg.mxu0
    %v4440 = vrot.slane %v4436, 1
    %v4442 = vmul.f32 %v4358, %v4440
    %4444 = vrot.lane.b32.xlu0 %v4442, 64
    %v4445 = vpop.permute.xlu0 %4444
    %v4447 = vadd.f32 %v293, %v4445
    %v4448 = vtanh.pop %v4447
    %v4449 = vsub.f32 1.0, %v4368
    %4451 = vrot.lane.b32.xlu0 %v4448, 96
    %v4452 = vpop.permute.xlu0 %4451
    %v4454 = vmul.f32 %v4449, %v4452
    %v4455 = vrot.slane %v3942, 7
    %v4457 = vmul.f32 %v4368, %v4455
    %v4458 = vadd.f32 %v4454, %v4457
    %v4459 = vadd.f32 %v398, %v4278
    %v4460 = vmul.f32 %v4459, 0.5
    %v4461 = vtanh.pop %v4460
    %v4462 = vadd.f32 %v4461, 1.0
    %v4463 = vmul.f32 %v4462, 0.5
    %4465 = vrot.lane.b32.xlu0 %v4348, 32
    %v4466 = vpop.permute.xlu0 %4465
    %v4468 = vadd.f32 %v398, %v4466
    %v4469 = vmul.f32 %v4468, 0.5
    %v4470 = vtanh.pop %v4469
    %v4471 = vadd.f32 %v4470, 1.0
    %v4472 = vmul.f32 %v4471, 0.5
    %4473 = vmatprep.subr.mxu0 0.0
    %4474 = vmatpush1.msra.mxu0 %v848
    %4475 = vmatprep.subr.mxu0 0.0
    %4476 = vmatpush1.msra.mxu0 %v850
    %4477 = vmatprep.subr.mxu0 0.0
    %4478 = vmatpush1.msra.mxu0 %v852
    %4479 = vmatprep.subr.mxu0 0.0
    %4480 = vmatpush1.msra.mxu0 %v854
    %4481 = vmatprep.subr.mxu0 0.0
    %4482 = vmatpush1.msra.mxu0 0.0
    %4483 = vmatprep.subr.mxu0 0.0
    %4484 = vmatpush1.msra.mxu0 0.0
    %4485 = vmatprep.subr.mxu0 0.0
    %4486 = vmatpush1.msra.mxu0 0.0
    %4487 = vmatprep.subr.mxu0 0.0
    %4488 = vmatpush1.msra.mxu0 0.0
    %4489 = vmatprep.subr.mxu0 0.0
    %4490 = vmatpush1.msra.mxu0 0.0
    %4491 = vmatprep.subr.mxu0 0.0
    %4492 = vmatpush1.msra.mxu0 0.0
    %4493 = vmatprep.subr.mxu0 0.0
    %4494 = vmatpush1.msra.mxu0 0.0
    %4495 = vmatprep.subr.mxu0 0.0
    %4496 = vmatpush1.msra.mxu0 0.0
    %4497 = vmatprep.subr.mxu0 0.0
    %4498 = vmatpush1.msra.mxu0 0.0
    %4499 = vmatprep.subr.mxu0 0.0
    %4500 = vmatpush1.msra.mxu0 0.0
    %4501 = vmatprep.subr.mxu0 0.0
    %4502 = vmatpush1.msra.mxu0 0.0
    %4503 = vmatprep.subr.mxu0 0.0
    %4504 = vmatpush1.msra.mxu0 0.0
    %4505 = vmatprep.subr.mxu0 0.0
    %4506 = vmatpush1.msra.mxu0 0.0
    %4507 = vmatprep.subr.mxu0 0.0
    %4508 = vmatpush1.msra.mxu0 0.0
    %4509 = vmatprep.subr.mxu0 0.0
    %4510 = vmatpush1.msra.mxu0 0.0
    %4511 = vmatprep.subr.mxu0 0.0
    %4512 = vmatpush1.msra.mxu0 0.0
    %4513 = vmatprep.subr.mxu0 0.0
    %4514 = vmatpush1.msra.mxu0 0.0
    %4515 = vmatprep.subr.mxu0 0.0
    %4516 = vmatpush1.msra.mxu0 0.0
    %4517 = vmatprep.subr.mxu0 0.0
    %4518 = vmatpush1.msra.mxu0 0.0
    %4519 = vmatprep.subr.mxu0 0.0
    %4520 = vmatpush1.msra.mxu0 0.0
    %4521 = vmatprep.subr.mxu0 0.0
    %4522 = vmatpush1.msra.mxu0 0.0
    %4523 = vmatprep.subr.mxu0 0.0
    %4524 = vmatpush1.msra.mxu0 0.0
    %4525 = vmatprep.subr.mxu0 0.0
    %4526 = vmatpush1.msra.mxu0 0.0
    %4527 = vmatprep.subr.mxu0 0.0
    %4528 = vmatpush1.msra.mxu0 0.0
    %4529 = vmatprep.subr.mxu0 0.0
    %4530 = vmatpush1.msra.mxu0 0.0
    %4531 = vmatprep.subr.mxu0 0.0
    %4532 = vmatpush1.msra.mxu0 0.0
    %4533 = vmatprep.subr.mxu0 0.0
    %4534 = vmatpush1.msra.mxu0 0.0
    %4535 = vmatprep.subr.mxu0 0.0
    %4536 = vmatpush1.msra.mxu0 0.0
    %4537 = vmatprep.mubr.f32.mxu0 0.0
    %4538 = vmatmul.mubr.f32.gmra.mrb[0].mxu0 %v4209
    %v4539 = vpop.f32.mrb[0].mxu0
    %v4540 = vadd.f32 %v860, %v4539
    %v4541 = vpop.f32.mrb[0].mxu0
    %4542 = vdwg.mxu0
    %v4543 = vmul.f32 %v4463, %v4540
    %4545 = vrot.lane.b32.xlu0 %v4543, 64
    %v4546 = vpop.permute.xlu0 %4545
    %v4548 = vadd.f32 %v372, %v4546
    %v4549 = vtanh.pop %v4548
    %v4550 = vsub.f32 1.0, %v4472
    %4552 = vrot.lane.b32.xlu0 %v4549, 96
    %v4553 = vpop.permute.xlu0 %4552
    %v4555 = vmul.f32 %v4550, %v4553
    %v4557 = vmul.f32 %v4472, %v4206
    %v4558 = vadd.f32 %v4555, %v4557
    %4560 = vrot.lane.b32.xlu0 %v4458, 96
    %v4561 = vpop.permute.xlu0 %4560
    %4563 = vst.msk [vmem:[#allocation2] sm:$0x80] %vm960, %v4561
    %4565 = vrot.lane.b32.xlu0 %v4558, 96
    %v4566 = vpop.permute.xlu0 %4565
    %4568 = vst.msk [vmem:[#allocation3] sm:$0x1] %vm954, %v4566
    %v4569 = vld [vmem:[#allocation2] sm:$0xff]
    %v4570 = vld [vmem:[#allocation3] sm:$0xff]
    %v4571 = vld [vmem:[%s9] sm:$0xff]
    %v4572 = vld [vmem:[%s9 + $0x8] sm:$0xff]
    %v4573 = vld [vmem:[%s9 + $0x10] sm:$0xff]
    %v4574 = vld [vmem:[%s9 + $0x18] sm:$0xff]
    %v4575 = vld [vmem:[%s9 + $0x20] sm:$0xff]
    %v4576 = vld [vmem:[%s9 + $0x28] sm:$0xff]
    %v4577 = vld [vmem:[%s9 + $0x30] sm:$0xff]
    %v4578 = vld [vmem:[%s9 + $0x38] sm:$0xff]
    %v4579 = vld [vmem:[#allocation20] sm:$0xff]
    %v4580 = vld [vmem:[#allocation20 + $0x8] sm:$0xff]
    %v4581 = vld [vmem:[#allocation20 + $0x10] sm:$0xff]
    %v4582 = vld [vmem:[#allocation20 + $0x18] sm:$0xff]
    %v4583 = vld [vmem:[#allocation20 + $0x20] sm:$0xff]
    %v4584 = vld [vmem:[#allocation20 + $0x28] sm:$0xff]
    %v4585 = vld [vmem:[#allocation20 + $0x30] sm:$0xff]
    %v4586 = vld [vmem:[#allocation20 + $0x38] sm:$0xff]
    %v4588 = vsel %vm399, %v4570, 0
    %4590 = vmatprep.subr.mxu0 0.0
    %4591 = vmatpush1.msra.mxu0 %v4575
    %4592 = vmatprep.subr.mxu0 0.0
    %4593 = vmatpush1.msra.mxu0 %v4576
    %4594 = vmatprep.subr.mxu0 0.0
    %4595 = vmatpush1.msra.mxu0 %v4577
    %4596 = vmatprep.subr.mxu0 0.0
    %4597 = vmatpush1.msra.mxu0 %v4578
    %4598 = vmatprep.subr.mxu0 0.0
    %4599 = vmatpush1.msra.mxu0 0.0
    %4600 = vmatprep.subr.mxu0 0.0
    %4601 = vmatpush1.msra.mxu0 0.0
    %4602 = vmatprep.subr.mxu0 0.0
    %4603 = vmatpush1.msra.mxu0 0.0
    %4604 = vmatprep.subr.mxu0 0.0
    %4605 = vmatpush1.msra.mxu0 0.0
    %4606 = vmatprep.subr.mxu0 0.0
    %4607 = vmatpush1.msra.mxu0 0.0
    %4608 = vmatprep.subr.mxu0 0.0
    %4609 = vmatpush1.msra.mxu0 0.0
    %4610 = vmatprep.subr.mxu0 0.0
    %4611 = vmatpush1.msra.mxu0 0.0
    %4612 = vmatprep.subr.mxu0 0.0
    %4613 = vmatpush1.msra.mxu0 0.0
    %4614 = vmatprep.subr.mxu0 0.0
    %4615 = vmatpush1.msra.mxu0 0.0
    %4616 = vmatprep.subr.mxu0 0.0
    %4617 = vmatpush1.msra.mxu0 0.0
    %4618 = vmatprep.subr.mxu0 0.0
    %4619 = vmatpush1.msra.mxu0 0.0
    %4620 = vmatprep.subr.mxu0 0.0
    %4621 = vmatpush1.msra.mxu0 0.0
    %4622 = vmatprep.subr.mxu0 0.0
    %4623 = vmatpush1.msra.mxu0 0.0
    %4624 = vmatprep.subr.mxu0 0.0
    %4625 = vmatpush1.msra.mxu0 0.0
    %4626 = vmatprep.subr.mxu0 0.0
    %4627 = vmatpush1.msra.mxu0 0.0
    %4628 = vmatprep.subr.mxu0 0.0
    %4629 = vmatpush1.msra.mxu0 0.0
    %4630 = vmatprep.subr.mxu0 0.0
    %4631 = vmatpush1.msra.mxu0 0.0
    %4632 = vmatprep.subr.mxu0 0.0
    %4633 = vmatpush1.msra.mxu0 0.0
    %4634 = vmatprep.subr.mxu0 0.0
    %4635 = vmatpush1.msra.mxu0 0.0
    %4636 = vmatprep.subr.mxu0 0.0
    %4637 = vmatpush1.msra.mxu0 0.0
    %4638 = vmatprep.subr.mxu0 0.0
    %4639 = vmatpush1.msra.mxu0 0.0
    %4640 = vmatprep.subr.mxu0 0.0
    %4641 = vmatpush1.msra.mxu0 0.0
    %4642 = vmatprep.subr.mxu0 0.0
    %4643 = vmatpush1.msra.mxu0 0.0
    %4644 = vmatprep.subr.mxu0 0.0
    %4645 = vmatpush1.msra.mxu0 0.0
    %4646 = vmatprep.subr.mxu0 0.0
    %4647 = vmatpush1.msra.mxu0 0.0
    %4648 = vmatprep.subr.mxu0 0.0
    %4649 = vmatpush1.msra.mxu0 0.0
    %4650 = vmatprep.subr.mxu0 0.0
    %4651 = vmatpush1.msra.mxu0 0.0
    %4652 = vmatprep.subr.mxu0 0.0
    %4653 = vmatpush1.msra.mxu0 0.0
    %4654 = vmatprep.mubr.f32.mxu0 0.0
    %4655 = vmatmul.mubr.f32.gmra.mrb[0].mxu0 %v4588
    %v4656 = vpop.f32.mrb[0].mxu0
    %v4657 = vadd.f32 0.0, %v4656
    %v4658 = vpop.f32.mrb[0].mxu0
    %4659 = vdwg.mxu0
    %v4661 = vsel %vm399, %v4569, 0
    %4663 = vmatprep.subr.mxu0 0.0
    %4664 = vmatpush1.msra.mxu0 %v4571
    %4665 = vmatprep.subr.mxu0 0.0
    %4666 = vmatpush1.msra.mxu0 %v4572
    %4667 = vmatprep.subr.mxu0 0.0
    %4668 = vmatpush1.msra.mxu0 %v4573
    %4669 = vmatprep.subr.mxu0 0.0
    %4670 = vmatpush1.msra.mxu0 %v4574
    %4671 = vmatprep.subr.mxu0 0.0
    %4672 = vmatpush1.msra.mxu0 0.0
    %4673 = vmatprep.subr.mxu0 0.0
    %4674 = vmatpush1.msra.mxu0 0.0
    %4675 = vmatprep.subr.mxu0 0.0
    %4676 = vmatpush1.msra.mxu0 0.0
    %4677 = vmatprep.subr.mxu0 0.0
    %4678 = vmatpush1.msra.mxu0 0.0
    %4679 = vmatprep.subr.mxu0 0.0
    %4680 = vmatpush1.msra.mxu0 0.0
    %4681 = vmatprep.subr.mxu0 0.0
    %4682 = vmatpush1.msra.mxu0 0.0
    %4683 = vmatprep.subr.mxu0 0.0
    %4684 = vmatpush1.msra.mxu0 0.0
    %4685 = vmatprep.subr.mxu0 0.0
    %4686 = vmatpush1.msra.mxu0 0.0
    %4687 = vmatprep.subr.mxu0 0.0
    %4688 = vmatpush1.msra.mxu0 0.0
    %4689 = vmatprep.subr.mxu0 0.0
    %4690 = vmatpush1.msra.mxu0 0.0
    %4691 = vmatprep.subr.mxu0 0.0
    %4692 = vmatpush1.msra.mxu0 0.0
    %4693 = vmatprep.subr.mxu0 0.0
    %4694 = vmatpush1.msra.mxu0 0.0
    %4695 = vmatprep.subr.mxu0 0.0
    %4696 = vmatpush1.msra.mxu0 0.0
    %4697 = vmatprep.subr.mxu0 0.0
    %4698 = vmatpush1.msra.mxu0 0.0
    %4699 = vmatprep.subr.mxu0 0.0
    %4700 = vmatpush1.msra.mxu0 0.0
    %4701 = vmatprep.subr.mxu0 0.0
    %4702 = vmatpush1.msra.mxu0 0.0
    %4703 = vmatprep.subr.mxu0 0.0
    %4704 = vmatpush1.msra.mxu0 0.0
    %4705 = vmatprep.subr.mxu0 0.0
    %4706 = vmatpush1.msra.mxu0 0.0
    %4707 = vmatprep.subr.mxu0 0.0
    %4708 = vmatpush1.msra.mxu0 0.0
    %4709 = vmatprep.subr.mxu0 0.0
    %4710 = vmatpush1.msra.mxu0 0.0
    %4711 = vmatprep.subr.mxu0 0.0
    %4712 = vmatpush1.msra.mxu0 0.0
    %4713 = vmatprep.subr.mxu0 0.0
    %4714 = vmatpush1.msra.mxu0 0.0
    %4715 = vmatprep.subr.mxu0 0.0
    %4716 = vmatpush1.msra.mxu0 0.0
    %4717 = vmatprep.subr.mxu0 0.0
    %4718 = vmatpush1.msra.mxu0 0.0
    %4719 = vmatprep.subr.mxu0 0.0
    %4720 = vmatpush1.msra.mxu0 0.0
    %4721 = vmatprep.subr.mxu0 0.0
    %4722 = vmatpush1.msra.mxu0 0.0
    %4723 = vmatprep.subr.mxu0 0.0
    %4724 = vmatpush1.msra.mxu0 0.0
    %4725 = vmatprep.subr.mxu0 0.0
    %4726 = vmatpush1.msra.mxu0 0.0
    %4727 = vmatprep.mubr.f32.mxu0 0.0
    %4728 = vmatmul.mubr.f32.gmra.mrb[0].mxu0 %v4661
    %v4729 = vpop.f32.mrb[0].mxu0
    %v4730 = vadd.f32 %v4657, %v4729
    %v4731 = vpop.f32.mrb[0].mxu0
    %4732 = vdwg.mxu0
    %v4733 = vld [vmem:[%s11] sm:$0x1]
    %v4735 = vlaneseq
    %v4736 = vshrl.u32 %v4735, 7
    %v4737 = vsub.s32 0, %v4736
    %v4738 = vrot.slane %v4733, %v4737
    %v4740 = vadd.f32 %v4730, %v4738
    %4741 = vmatprep.subr.mxu0 0.0
    %4742 = vmatpush1.msra.mxu0 %v4583
    %4743 = vmatprep.subr.mxu0 0.0
    %4744 = vmatpush1.msra.mxu0 %v4584
    %4745 = vmatprep.subr.mxu0 0.0
    %4746 = vmatpush1.msra.mxu0 %v4585
    %4747 = vmatprep.subr.mxu0 0.0
    %4748 = vmatpush1.msra.mxu0 %v4586
    %4749 = vmatprep.subr.mxu0 0.0
    %4750 = vmatpush1.msra.mxu0 0.0
    %4751 = vmatprep.subr.mxu0 0.0
    %4752 = vmatpush1.msra.mxu0 0.0
    %4753 = vmatprep.subr.mxu0 0.0
    %4754 = vmatpush1.msra.mxu0 0.0
    %4755 = vmatprep.subr.mxu0 0.0
    %4756 = vmatpush1.msra.mxu0 0.0
    %4757 = vmatprep.subr.mxu0 0.0
    %4758 = vmatpush1.msra.mxu0 0.0
    %4759 = vmatprep.subr.mxu0 0.0
    %4760 = vmatpush1.msra.mxu0 0.0
    %4761 = vmatprep.subr.mxu0 0.0
    %4762 = vmatpush1.msra.mxu0 0.0
    %4763 = vmatprep.subr.mxu0 0.0
    %4764 = vmatpush1.msra.mxu0 0.0
    %4765 = vmatprep.subr.mxu0 0.0
    %4766 = vmatpush1.msra.mxu0 0.0
    %4767 = vmatprep.subr.mxu0 0.0
    %4768 = vmatpush1.msra.mxu0 0.0
    %4769 = vmatprep.subr.mxu0 0.0
    %4770 = vmatpush1.msra.mxu0 0.0
    %4771 = vmatprep.subr.mxu0 0.0
    %4772 = vmatpush1.msra.mxu0 0.0
    %4773 = vmatprep.subr.mxu0 0.0
    %4774 = vmatpush1.msra.mxu0 0.0
    %4775 = vmatprep.subr.mxu0 0.0
    %4776 = vmatpush1.msra.mxu0 0.0
    %4777 = vmatprep.subr.mxu0 0.0
    %4778 = vmatpush1.msra.mxu0 0.0
    %4779 = vmatprep.subr.mxu0 0.0
    %4780 = vmatpush1.msra.mxu0 0.0
    %4781 = vmatprep.subr.mxu0 0.0
    %4782 = vmatpush1.msra.mxu0 0.0
    %4783 = vmatprep.subr.mxu0 0.0
    %4784 = vmatpush1.msra.mxu0 0.0
    %4785 = vmatprep.subr.mxu0 0.0
    %4786 = vmatpush1.msra.mxu0 0.0
    %4787 = vmatprep.subr.mxu0 0.0
    %4788 = vmatpush1.msra.mxu0 0.0
    %4789 = vmatprep.subr.mxu0 0.0
    %4790 = vmatpush1.msra.mxu0 0.0
    %4791 = vmatprep.subr.mxu0 0.0
    %4792 = vmatpush1.msra.mxu0 0.0
    %4793 = vmatprep.subr.mxu0 0.0
    %4794 = vmatpush1.msra.mxu0 0.0
    %4795 = vmatprep.subr.mxu0 0.0
    %4796 = vmatpush1.msra.mxu0 0.0
    %4797 = vmatprep.subr.mxu0 0.0
    %4798 = vmatpush1.msra.mxu0 0.0
    %4799 = vmatprep.subr.mxu0 0.0
    %4800 = vmatpush1.msra.mxu0 0.0
    %4801 = vmatprep.subr.mxu0 0.0
    %4802 = vmatpush1.msra.mxu0 0.0
    %4803 = vmatprep.subr.mxu0 0.0
    %4804 = vmatpush1.msra.mxu0 0.0
    %4805 = vmatprep.mubr.f32.mxu0 0.0
    %4806 = vmatmul.mubr.f32.gmra.mrb[0].mxu0 %v4588
    %v4807 = vpop.f32.mrb[0].mxu0
    %v4808 = vadd.f32 0.0, %v4807
    %v4809 = vpop.f32.mrb[0].mxu0
    %4810 = vdwg.mxu0
    %4811 = vmatprep.subr.mxu0 0.0
    %4812 = vmatpush1.msra.mxu0 %v4579
    %4813 = vmatprep.subr.mxu0 0.0
    %4814 = vmatpush1.msra.mxu0 %v4580
    %4815 = vmatprep.subr.mxu0 0.0
    %4816 = vmatpush1.msra.mxu0 %v4581
    %4817 = vmatprep.subr.mxu0 0.0
    %4818 = vmatpush1.msra.mxu0 %v4582
    %4819 = vmatprep.subr.mxu0 0.0
    %4820 = vmatpush1.msra.mxu0 0.0
    %4821 = vmatprep.subr.mxu0 0.0
    %4822 = vmatpush1.msra.mxu0 0.0
    %4823 = vmatprep.subr.mxu0 0.0
    %4824 = vmatpush1.msra.mxu0 0.0
    %4825 = vmatprep.subr.mxu0 0.0
    %4826 = vmatpush1.msra.mxu0 0.0
    %4827 = vmatprep.subr.mxu0 0.0
    %4828 = vmatpush1.msra.mxu0 0.0
    %4829 = vmatprep.subr.mxu0 0.0
    %4830 = vmatpush1.msra.mxu0 0.0
    %4831 = vmatprep.subr.mxu0 0.0
    %4832 = vmatpush1.msra.mxu0 0.0
    %4833 = vmatprep.subr.mxu0 0.0
    %4834 = vmatpush1.msra.mxu0 0.0
    %4835 = vmatprep.subr.mxu0 0.0
    %4836 = vmatpush1.msra.mxu0 0.0
    %4837 = vmatprep.subr.mxu0 0.0
    %4838 = vmatpush1.msra.mxu0 0.0
    %4839 = vmatprep.subr.mxu0 0.0
    %4840 = vmatpush1.msra.mxu0 0.0
    %4841 = vmatprep.subr.mxu0 0.0
    %4842 = vmatpush1.msra.mxu0 0.0
    %4843 = vmatprep.subr.mxu0 0.0
    %4844 = vmatpush1.msra.mxu0 0.0
    %4845 = vmatprep.subr.mxu0 0.0
    %4846 = vmatpush1.msra.mxu0 0.0
    %4847 = vmatprep.subr.mxu0 0.0
    %4848 = vmatpush1.msra.mxu0 0.0
    %4849 = vmatprep.subr.mxu0 0.0
    %4850 = vmatpush1.msra.mxu0 0.0
    %4851 = vmatprep.subr.mxu0 0.0
    %4852 = vmatpush1.msra.mxu0 0.0
    %4853 = vmatprep.subr.mxu0 0.0
    %4854 = vmatpush1.msra.mxu0 0.0
    %4855 = vmatprep.subr.mxu0 0.0
    %4856 = vmatpush1.msra.mxu0 0.0
    %4857 = vmatprep.subr.mxu0 0.0
    %4858 = vmatpush1.msra.mxu0 0.0
    %4859 = vmatprep.subr.mxu0 0.0
    %4860 = vmatpush1.msra.mxu0 0.0
    %4861 = vmatprep.subr.mxu0 0.0
    %4862 = vmatpush1.msra.mxu0 0.0
    %4863 = vmatprep.subr.mxu0 0.0
    %4864 = vmatpush1.msra.mxu0 0.0
    %4865 = vmatprep.subr.mxu0 0.0
    %4866 = vmatpush1.msra.mxu0 0.0
    %4867 = vmatprep.subr.mxu0 0.0
    %4868 = vmatpush1.msra.mxu0 0.0
    %4869 = vmatprep.subr.mxu0 0.0
    %4870 = vmatpush1.msra.mxu0 0.0
    %4871 = vmatprep.subr.mxu0 0.0
    %4872 = vmatpush1.msra.mxu0 0.0
    %4873 = vmatprep.subr.mxu0 0.0
    %4874 = vmatpush1.msra.mxu0 0.0
    %4875 = vmatprep.mubr.f32.mxu0 0.0
    %4876 = vmatmul.mubr.f32.gmra.mrb[0].mxu0 %v4661
    %v4877 = vpop.f32.mrb[0].mxu0
    %v4878 = vadd.f32 %v4808, %v4877
    %v4879 = vpop.f32.mrb[0].mxu0
    %4880 = vdwg.mxu0
    %v4881 = vld [vmem:[#allocation23] sm:$0x1]
    %v4883 = vlaneseq
    %v4884 = vshrl.u32 %v4883, 7
    %v4885 = vsub.s32 0, %v4884
    %v4886 = vrot.slane %v4881, %v4885
    %v4888 = vadd.f32 %v4878, %v4886
    %v4889 = vld [vmem:[#allocation19] sm:$0xff]
    %v4890 = vld [vmem:[#allocation19 + $0x8] sm:$0xff]
    %v4891 = vld [vmem:[#allocation19 + $0x10] sm:$0xff]
    %v4892 = vld [vmem:[#allocation19 + $0x18] sm:$0xff]
    %v4893 = vld [vmem:[%s12] sm:$0x1]
    %v4894 = vld [vmem:[#allocation22] sm:$0xff]
    %v4895 = vld [vmem:[#allocation22 + $0x8] sm:$0xff]
    %v4896 = vld [vmem:[#allocation22 + $0x10] sm:$0xff]
    %v4897 = vld [vmem:[#allocation22 + $0x18] sm:$0xff]
    %v4898 = vld [vmem:[#allocation25] sm:$0x1]
    %v4900 = vlaneseq
    %v4901 = vshrl.u32 %v4900, 7
    %v4902 = vsub.s32 0, %v4901
    %v4903 = vrot.slane %v4893, %v4902
    %v4905 = vadd.f32 %v4740, %v4903
    %v4907 = vlaneseq
    %v4908 = vshrl.u32 %v4907, 7
    %v4909 = vsub.s32 0, %v4908
    %v4910 = vrot.slane %v4898, %v4909
    %v4912 = vadd.f32 %v4888, %v4910
    %4913 = vmatprep.subr.mxu0 0.0
    %4914 = vmatpush1.msra.mxu0 %v4889
    %4915 = vmatprep.subr.mxu0 0.0
    %4916 = vmatpush1.msra.mxu0 %v4890
    %4917 = vmatprep.subr.mxu0 0.0
    %4918 = vmatpush1.msra.mxu0 %v4891
    %4919 = vmatprep.subr.mxu0 0.0
    %4920 = vmatpush1.msra.mxu0 %v4892
    %4921 = vmatprep.subr.mxu0 0.0
    %4922 = vmatpush1.msra.mxu0 0.0
    %4923 = vmatprep.subr.mxu0 0.0
    %4924 = vmatpush1.msra.mxu0 0.0
    %4925 = vmatprep.subr.mxu0 0.0
    %4926 = vmatpush1.msra.mxu0 0.0
    %4927 = vmatprep.subr.mxu0 0.0
    %4928 = vmatpush1.msra.mxu0 0.0
    %4929 = vmatprep.subr.mxu0 0.0
    %4930 = vmatpush1.msra.mxu0 0.0
    %4931 = vmatprep.subr.mxu0 0.0
    %4932 = vmatpush1.msra.mxu0 0.0
    %4933 = vmatprep.subr.mxu0 0.0
    %4934 = vmatpush1.msra.mxu0 0.0
    %4935 = vmatprep.subr.mxu0 0.0
    %4936 = vmatpush1.msra.mxu0 0.0
    %4937 = vmatprep.subr.mxu0 0.0
    %4938 = vmatpush1.msra.mxu0 0.0
    %4939 = vmatprep.subr.mxu0 0.0
    %4940 = vmatpush1.msra.mxu0 0.0
    %4941 = vmatprep.subr.mxu0 0.0
    %4942 = vmatpush1.msra.mxu0 0.0
    %4943 = vmatprep.subr.mxu0 0.0
    %4944 = vmatpush1.msra.mxu0 0.0
    %4945 = vmatprep.subr.mxu0 0.0
    %4946 = vmatpush1.msra.mxu0 0.0
    %4947 = vmatprep.subr.mxu0 0.0
    %4948 = vmatpush1.msra.mxu0 0.0
    %4949 = vmatprep.subr.mxu0 0.0
    %4950 = vmatpush1.msra.mxu0 0.0
    %4951 = vmatprep.subr.mxu0 0.0
    %4952 = vmatpush1.msra.mxu0 0.0
    %4953 = vmatprep.subr.mxu0 0.0
    %4954 = vmatpush1.msra.mxu0 0.0
    %4955 = vmatprep.subr.mxu0 0.0
    %4956 = vmatpush1.msra.mxu0 0.0
    %4957 = vmatprep.subr.mxu0 0.0
    %4958 = vmatpush1.msra.mxu0 0.0
    %4959 = vmatprep.subr.mxu0 0.0
    %4960 = vmatpush1.msra.mxu0 0.0
    %4961 = vmatprep.subr.mxu0 0.0
    %4962 = vmatpush1.msra.mxu0 0.0
    %4963 = vmatprep.subr.mxu0 0.0
    %4964 = vmatpush1.msra.mxu0 0.0
    %4965 = vmatprep.subr.mxu0 0.0
    %4966 = vmatpush1.msra.mxu0 0.0
    %4967 = vmatprep.subr.mxu0 0.0
    %4968 = vmatpush1.msra.mxu0 0.0
    %4969 = vmatprep.subr.mxu0 0.0
    %4970 = vmatpush1.msra.mxu0 0.0
    %4971 = vmatprep.subr.mxu0 0.0
    %4972 = vmatpush1.msra.mxu0 0.0
    %4973 = vmatprep.subr.mxu0 0.0
    %4974 = vmatpush1.msra.mxu0 0.0
    %4975 = vmatprep.subr.mxu0 0.0
    %4976 = vmatpush1.msra.mxu0 0.0
    %4977 = vmatprep.mubr.f32.mxu0 0.0
    %4978 = vmatmul.mubr.f32.gmra.mrb[0].mxu0 %v401
    %v4979 = vpop.f32.mrb[0].mxu0
    %v4980 = vadd.f32 0.0, %v4979
    %v4981 = vpop.f32.mrb[0].mxu0
    %4982 = vdwg.mxu0
    %4987 = vrot.lane.b32.xlu0 %v4889, 96
    %v4988 = vpop.permute.xlu0 %4987
    %4989 = vrot.lane.b32.xlu0 %v4890, 96
    %v4990 = vpop.permute.xlu0 %4989
    %4991 = vrot.lane.b32.xlu0 %v4891, 96
    %v4992 = vpop.permute.xlu0 %4991
    %4993 = vrot.lane.b32.xlu0 %v4892, 96
    %v4994 = vpop.permute.xlu0 %4993
    %4999 = vmatprep.subr.mxu0 0.0
    %5000 = vmatpush1.msra.mxu0 %v4988
    %5001 = vmatprep.subr.mxu0 0.0
    %5002 = vmatpush1.msra.mxu0 %v4990
    %5003 = vmatprep.subr.mxu0 0.0
    %5004 = vmatpush1.msra.mxu0 %v4992
    %5005 = vmatprep.subr.mxu0 0.0
    %5006 = vmatpush1.msra.mxu0 %v4994
    %5007 = vmatprep.subr.mxu0 0.0
    %5008 = vmatpush1.msra.mxu0 0.0
    %5009 = vmatprep.subr.mxu0 0.0
    %5010 = vmatpush1.msra.mxu0 0.0
    %5011 = vmatprep.subr.mxu0 0.0
    %5012 = vmatpush1.msra.mxu0 0.0
    %5013 = vmatprep.subr.mxu0 0.0
    %5014 = vmatpush1.msra.mxu0 0.0
    %5015 = vmatprep.subr.mxu0 0.0
    %5016 = vmatpush1.msra.mxu0 0.0
    %5017 = vmatprep.subr.mxu0 0.0
    %5018 = vmatpush1.msra.mxu0 0.0
    %5019 = vmatprep.subr.mxu0 0.0
    %5020 = vmatpush1.msra.mxu0 0.0
    %5021 = vmatprep.subr.mxu0 0.0
    %5022 = vmatpush1.msra.mxu0 0.0
    %5023 = vmatprep.subr.mxu0 0.0
    %5024 = vmatpush1.msra.mxu0 0.0
    %5025 = vmatprep.subr.mxu0 0.0
    %5026 = vmatpush1.msra.mxu0 0.0
    %5027 = vmatprep.subr.mxu0 0.0
    %5028 = vmatpush1.msra.mxu0 0.0
    %5029 = vmatprep.subr.mxu0 0.0
    %5030 = vmatpush1.msra.mxu0 0.0
    %5031 = vmatprep.subr.mxu0 0.0
    %5032 = vmatpush1.msra.mxu0 0.0
    %5033 = vmatprep.subr.mxu0 0.0
    %5034 = vmatpush1.msra.mxu0 0.0
    %5035 = vmatprep.subr.mxu0 0.0
    %5036 = vmatpush1.msra.mxu0 0.0
    %5037 = vmatprep.subr.mxu0 0.0
    %5038 = vmatpush1.msra.mxu0 0.0
    %5039 = vmatprep.subr.mxu0 0.0
    %5040 = vmatpush1.msra.mxu0 0.0
    %5041 = vmatprep.subr.mxu0 0.0
    %5042 = vmatpush1.msra.mxu0 0.0
    %5043 = vmatprep.subr.mxu0 0.0
    %5044 = vmatpush1.msra.mxu0 0.0
    %5045 = vmatprep.subr.mxu0 0.0
    %5046 = vmatpush1.msra.mxu0 0.0
    %5047 = vmatprep.subr.mxu0 0.0
    %5048 = vmatpush1.msra.mxu0 0.0
    %5049 = vmatprep.subr.mxu0 0.0
    %5050 = vmatpush1.msra.mxu0 0.0
    %5051 = vmatprep.subr.mxu0 0.0
    %5052 = vmatpush1.msra.mxu0 0.0
    %5053 = vmatprep.subr.mxu0 0.0
    %5054 = vmatpush1.msra.mxu0 0.0
    %5055 = vmatprep.subr.mxu0 0.0
    %5056 = vmatpush1.msra.mxu0 0.0
    %5057 = vmatprep.subr.mxu0 0.0
    %5058 = vmatpush1.msra.mxu0 0.0
    %5059 = vmatprep.subr.mxu0 0.0
    %5060 = vmatpush1.msra.mxu0 0.0
    %5061 = vmatprep.subr.mxu0 0.0
    %5062 = vmatpush1.msra.mxu0 0.0
    %5063 = vmatprep.mubr.f32.mxu0 0.0
    %5064 = vmatmul.mubr.f32.gmra.mrb[0].mxu0 %v401
    %v5065 = vpop.f32.mrb[0].mxu0
    %v5066 = vadd.f32 0.0, %v5065
    %v5067 = vpop.f32.mrb[0].mxu0
    %5068 = vdwg.mxu0
    %5069 = vmatprep.subr.mxu0 0.0
    %5070 = vmatpush1.msra.mxu0 %v4894
    %5071 = vmatprep.subr.mxu0 0.0
    %5072 = vmatpush1.msra.mxu0 %v4895
    %5073 = vmatprep.subr.mxu0 0.0
    %5074 = vmatpush1.msra.mxu0 %v4896
    %5075 = vmatprep.subr.mxu0 0.0
    %5076 = vmatpush1.msra.mxu0 %v4897
    %5077 = vmatprep.subr.mxu0 0.0
    %5078 = vmatpush1.msra.mxu0 0.0
    %5079 = vmatprep.subr.mxu0 0.0
    %5080 = vmatpush1.msra.mxu0 0.0
    %5081 = vmatprep.subr.mxu0 0.0
    %5082 = vmatpush1.msra.mxu0 0.0
    %5083 = vmatprep.subr.mxu0 0.0
    %5084 = vmatpush1.msra.mxu0 0.0
    %5085 = vmatprep.subr.mxu0 0.0
    %5086 = vmatpush1.msra.mxu0 0.0
    %5087 = vmatprep.subr.mxu0 0.0
    %5088 = vmatpush1.msra.mxu0 0.0
    %5089 = vmatprep.subr.mxu0 0.0
    %5090 = vmatpush1.msra.mxu0 0.0
    %5091 = vmatprep.subr.mxu0 0.0
    %5092 = vmatpush1.msra.mxu0 0.0
    %5093 = vmatprep.subr.mxu0 0.0
    %5094 = vmatpush1.msra.mxu0 0.0
    %5095 = vmatprep.subr.mxu0 0.0
    %5096 = vmatpush1.msra.mxu0 0.0
    %5097 = vmatprep.subr.mxu0 0.0
    %5098 = vmatpush1.msra.mxu0 0.0
    %5099 = vmatprep.subr.mxu0 0.0
    %5100 = vmatpush1.msra.mxu0 0.0
    %5101 = vmatprep.subr.mxu0 0.0
    %5102 = vmatpush1.msra.mxu0 0.0
    %5103 = vmatprep.subr.mxu0 0.0
    %5104 = vmatpush1.msra.mxu0 0.0
    %5105 = vmatprep.subr.mxu0 0.0
    %5106 = vmatpush1.msra.mxu0 0.0
    %5107 = vmatprep.subr.mxu0 0.0
    %5108 = vmatpush1.msra.mxu0 0.0
    %5109 = vmatprep.subr.mxu0 0.0
    %5110 = vmatpush1.msra.mxu0 0.0
    %5111 = vmatprep.subr.mxu0 0.0
    %5112 = vmatpush1.msra.mxu0 0.0
    %5113 = vmatprep.subr.mxu0 0.0
    %5114 = vmatpush1.msra.mxu0 0.0
    %5115 = vmatprep.subr.mxu0 0.0
    %5116 = vmatpush1.msra.mxu0 0.0
    %5117 = vmatprep.subr.mxu0 0.0
    %5118 = vmatpush1.msra.mxu0 0.0
    %5119 = vmatprep.subr.mxu0 0.0
    %5120 = vmatpush1.msra.mxu0 0.0
    %5121 = vmatprep.subr.mxu0 0.0
    %5122 = vmatpush1.msra.mxu0 0.0
    %5123 = vmatprep.subr.mxu0 0.0
    %5124 = vmatpush1.msra.mxu0 0.0
    %5125 = vmatprep.subr.mxu0 0.0
    %5126 = vmatpush1.msra.mxu0 0.0
    %5127 = vmatprep.subr.mxu0 0.0
    %5128 = vmatpush1.msra.mxu0 0.0
    %5129 = vmatprep.subr.mxu0 0.0
    %5130 = vmatpush1.msra.mxu0 0.0
    %5131 = vmatprep.subr.mxu0 0.0
    %5132 = vmatpush1.msra.mxu0 0.0
    %5133 = vmatprep.mubr.f32.mxu0 0.0
    %5134 = vmatmul.mubr.f32.gmra.mrb[0].mxu0 %v401
    %v5135 = vpop.f32.mrb[0].mxu0
    %v5136 = vadd.f32 0.0, %v5135
    %v5137 = vpop.f32.mrb[0].mxu0
    %5138 = vdwg.mxu0
    %5143 = vrot.lane.b32.xlu0 %v4894, 96
    %v5144 = vpop.permute.xlu0 %5143
    %5145 = vrot.lane.b32.xlu0 %v4895, 96
    %v5146 = vpop.permute.xlu0 %5145
    %5147 = vrot.lane.b32.xlu0 %v4896, 96
    %v5148 = vpop.permute.xlu0 %5147
    %5149 = vrot.lane.b32.xlu0 %v4897, 96
    %v5150 = vpop.permute.xlu0 %5149
    %5155 = vmatprep.subr.mxu0 0.0
    %5156 = vmatpush1.msra.mxu0 %v5144
    %5157 = vmatprep.subr.mxu0 0.0
    %5158 = vmatpush1.msra.mxu0 %v5146
    %5159 = vmatprep.subr.mxu0 0.0
    %5160 = vmatpush1.msra.mxu0 %v5148
    %5161 = vmatprep.subr.mxu0 0.0
    %5162 = vmatpush1.msra.mxu0 %v5150
    %5163 = vmatprep.subr.mxu0 0.0
    %5164 = vmatpush1.msra.mxu0 0.0
    %5165 = vmatprep.subr.mxu0 0.0
    %5166 = vmatpush1.msra.mxu0 0.0
    %5167 = vmatprep.subr.mxu0 0.0
    %5168 = vmatpush1.msra.mxu0 0.0
    %5169 = vmatprep.subr.mxu0 0.0
    %5170 = vmatpush1.msra.mxu0 0.0
    %5171 = vmatprep.subr.mxu0 0.0
    %5172 = vmatpush1.msra.mxu0 0.0
    %5173 = vmatprep.subr.mxu0 0.0
    %5174 = vmatpush1.msra.mxu0 0.0
    %5175 = vmatprep.subr.mxu0 0.0
    %5176 = vmatpush1.msra.mxu0 0.0
    %5177 = vmatprep.subr.mxu0 0.0
    %5178 = vmatpush1.msra.mxu0 0.0
    %5179 = vmatprep.subr.mxu0 0.0
    %5180 = vmatpush1.msra.mxu0 0.0
    %5181 = vmatprep.subr.mxu0 0.0
    %5182 = vmatpush1.msra.mxu0 0.0
    %5183 = vmatprep.subr.mxu0 0.0
    %5184 = vmatpush1.msra.mxu0 0.0
    %5185 = vmatprep.subr.mxu0 0.0
    %5186 = vmatpush1.msra.mxu0 0.0
    %5187 = vmatprep.subr.mxu0 0.0
    %5188 = vmatpush1.msra.mxu0 0.0
    %5189 = vmatprep.subr.mxu0 0.0
    %5190 = vmatpush1.msra.mxu0 0.0
    %5191 = vmatprep.subr.mxu0 0.0
    %5192 = vmatpush1.msra.mxu0 0.0
    %5193 = vmatprep.subr.mxu0 0.0
    %5194 = vmatpush1.msra.mxu0 0.0
    %5195 = vmatprep.subr.mxu0 0.0
    %5196 = vmatpush1.msra.mxu0 0.0
    %5197 = vmatprep.subr.mxu0 0.0
    %5198 = vmatpush1.msra.mxu0 0.0
    %5199 = vmatprep.subr.mxu0 0.0
    %5200 = vmatpush1.msra.mxu0 0.0
    %5201 = vmatprep.subr.mxu0 0.0
    %5202 = vmatpush1.msra.mxu0 0.0
    %5203 = vmatprep.subr.mxu0 0.0
    %5204 = vmatpush1.msra.mxu0 0.0
    %5205 = vmatprep.subr.mxu0 0.0
    %5206 = vmatpush1.msra.mxu0 0.0
    %5207 = vmatprep.subr.mxu0 0.0
    %5208 = vmatpush1.msra.mxu0 0.0
    %5209 = vmatprep.subr.mxu0 0.0
    %5210 = vmatpush1.msra.mxu0 0.0
    %5211 = vmatprep.subr.mxu0 0.0
    %5212 = vmatpush1.msra.mxu0 0.0
    %5213 = vmatprep.subr.mxu0 0.0
    %5214 = vmatpush1.msra.mxu0 0.0
    %5215 = vmatprep.subr.mxu0 0.0
    %5216 = vmatpush1.msra.mxu0 0.0
    %5217 = vmatprep.subr.mxu0 0.0
    %5218 = vmatpush1.msra.mxu0 0.0
    %5219 = vmatprep.mubr.f32.mxu0 0.0
    %5220 = vmatmul.mubr.f32.gmra.mrb[0].mxu0 %v401
    %v5221 = vpop.f32.mrb[0].mxu0
    %v5222 = vadd.f32 0.0, %v5221
    %v5223 = vpop.f32.mrb[0].mxu0
    %5224 = vdwg.mxu0
    %v5225 = vadd.f32 %v4905, %v4980
    %v5226 = vmul.f32 %v5225, 0.5
    %v5227 = vtanh.pop %v5226
    %v5228 = vadd.f32 %v5227, 1.0
    %v5229 = vmul.f32 %v5228, 0.5
    %5231 = vrot.lane.b32.xlu0 %v5066, 32
    %v5232 = vpop.permute.xlu0 %5231
    %v5234 = vadd.f32 %v4905, %v5232
    %v5235 = vmul.f32 %v5234, 0.5
    %v5236 = vtanh.pop %v5235
    %v5237 = vadd.f32 %v5236, 1.0
    %v5238 = vmul.f32 %v5237, 0.5
    %5239 = vrot.lane.b32.xlu0 %v4889, 64
    %v5240 = vpop.permute.xlu0 %5239
    %5241 = vrot.lane.b32.xlu0 %v4890, 64
    %v5242 = vpop.permute.xlu0 %5241
    %5243 = vrot.lane.b32.xlu0 %v4891, 64
    %v5244 = vpop.permute.xlu0 %5243
    %5245 = vrot.lane.b32.xlu0 %v4892, 64
    %v5246 = vpop.permute.xlu0 %5245
    %5251 = vrot.lane.b32.xlu0 %v4903, 64
    %v5252 = vpop.permute.xlu0 %5251
    %5254 = vmatprep.subr.mxu0 0.0
    %5255 = vmatpush1.msra.mxu0 %v5240
    %5256 = vmatprep.subr.mxu0 0.0
    %5257 = vmatpush1.msra.mxu0 %v5242
    %5258 = vmatprep.subr.mxu0 0.0
    %5259 = vmatpush1.msra.mxu0 %v5244
    %5260 = vmatprep.subr.mxu0 0.0
    %5261 = vmatpush1.msra.mxu0 %v5246
    %5262 = vmatprep.subr.mxu0 0.0
    %5263 = vmatpush1.msra.mxu0 0.0
    %5264 = vmatprep.subr.mxu0 0.0
    %5265 = vmatpush1.msra.mxu0 0.0
    %5266 = vmatprep.subr.mxu0 0.0
    %5267 = vmatpush1.msra.mxu0 0.0
    %5268 = vmatprep.subr.mxu0 0.0
    %5269 = vmatpush1.msra.mxu0 0.0
    %5270 = vmatprep.subr.mxu0 0.0
    %5271 = vmatpush1.msra.mxu0 0.0
    %5272 = vmatprep.subr.mxu0 0.0
    %5273 = vmatpush1.msra.mxu0 0.0
    %5274 = vmatprep.subr.mxu0 0.0
    %5275 = vmatpush1.msra.mxu0 0.0
    %5276 = vmatprep.subr.mxu0 0.0
    %5277 = vmatpush1.msra.mxu0 0.0
    %5278 = vmatprep.subr.mxu0 0.0
    %5279 = vmatpush1.msra.mxu0 0.0
    %5280 = vmatprep.subr.mxu0 0.0
    %5281 = vmatpush1.msra.mxu0 0.0
    %5282 = vmatprep.subr.mxu0 0.0
    %5283 = vmatpush1.msra.mxu0 0.0
    %5284 = vmatprep.subr.mxu0 0.0
    %5285 = vmatpush1.msra.mxu0 0.0
    %5286 = vmatprep.subr.mxu0 0.0
    %5287 = vmatpush1.msra.mxu0 0.0
    %5288 = vmatprep.subr.mxu0 0.0
    %5289 = vmatpush1.msra.mxu0 0.0
    %5290 = vmatprep.subr.mxu0 0.0
    %5291 = vmatpush1.msra.mxu0 0.0
    %5292 = vmatprep.subr.mxu0 0.0
    %5293 = vmatpush1.msra.mxu0 0.0
    %5294 = vmatprep.subr.mxu0 0.0
    %5295 = vmatpush1.msra.mxu0 0.0
    %5296 = vmatprep.subr.mxu0 0.0
    %5297 = vmatpush1.msra.mxu0 0.0
    %5298 = vmatprep.subr.mxu0 0.0
    %5299 = vmatpush1.msra.mxu0 0.0
    %5300 = vmatprep.subr.mxu0 0.0
    %5301 = vmatpush1.msra.mxu0 0.0
    %5302 = vmatprep.subr.mxu0 0.0
    %5303 = vmatpush1.msra.mxu0 0.0
    %5304 = vmatprep.subr.mxu0 0.0
    %5305 = vmatpush1.msra.mxu0 0.0
    %5306 = vmatprep.subr.mxu0 0.0
    %5307 = vmatpush1.msra.mxu0 0.0
    %5308 = vmatprep.subr.mxu0 0.0
    %5309 = vmatpush1.msra.mxu0 0.0
    %5310 = vmatprep.subr.mxu0 0.0
    %5311 = vmatpush1.msra.mxu0 0.0
    %5312 = vmatprep.subr.mxu0 0.0
    %5313 = vmatpush1.msra.mxu0 0.0
    %5314 = vmatprep.subr.mxu0 0.0
    %5315 = vmatpush1.msra.mxu0 0.0
    %5316 = vmatprep.subr.mxu0 0.0
    %5317 = vmatpush1.msra.mxu0 0.0
    %5318 = vmatprep.mubr.f32.mxu0 0.0
    %5319 = vmatmul.mubr.f32.gmra.mrb[0].mxu0 %v401
    %v5320 = vpop.f32.mrb[0].mxu0
    %v5321 = vadd.f32 %v5252, %v5320
    %v5322 = vpop.f32.mrb[0].mxu0
    %5323 = vdwg.mxu0
    %v5324 = vmul.f32 %v5229, %v5321
    %5326 = vrot.lane.b32.xlu0 %v5324, 64
    %v5327 = vpop.permute.xlu0 %5326
    %v5329 = vadd.f32 %v4740, %v5327
    %v5330 = vtanh.pop %v5329
    %v5331 = vsub.f32 1.0, %v5238
    %5333 = vrot.lane.b32.xlu0 %v5330, 96
    %v5334 = vpop.permute.xlu0 %5333
    %v5336 = vmul.f32 %v5331, %v5334
    %v5337 = vmul.f32 %v5238, 0.0
    %v5338 = vadd.f32 %v5336, %v5337
    %v5340 = vrot.slane %v5136, 1
    %v5342 = vadd.f32 %v4912, %v5340
    %v5343 = vmul.f32 %v5342, 0.5
    %v5344 = vtanh.pop %v5343
    %v5345 = vadd.f32 %v5344, 1.0
    %v5346 = vmul.f32 %v5345, 0.5
    %v5348 = vrot.slane %v5222, 1
    %5349 = vrot.lane.b32.xlu0 %v5348, 32
    %v5350 = vpop.permute.xlu0 %5349
    %v5352 = vadd.f32 %v4912, %v5350
    %v5353 = vmul.f32 %v5352, 0.5
    %v5354 = vtanh.pop %v5353
    %v5355 = vadd.f32 %v5354, 1.0
    %v5356 = vmul.f32 %v5355, 0.5
    %5357 = vrot.lane.b32.xlu0 %v4894, 64
    %v5358 = vpop.permute.xlu0 %5357
    %5359 = vrot.lane.b32.xlu0 %v4895, 64
    %v5360 = vpop.permute.xlu0 %5359
    %5361 = vrot.lane.b32.xlu0 %v4896, 64
    %v5362 = vpop.permute.xlu0 %5361
    %5363 = vrot.lane.b32.xlu0 %v4897, 64
    %v5364 = vpop.permute.xlu0 %5363
    %5369 = vrot.lane.b32.xlu0 %v4910, 64
    %v5370 = vpop.permute.xlu0 %5369
    %5372 = vmatprep.subr.mxu0 0.0
    %5373 = vmatpush1.msra.mxu0 %v5358
    %5374 = vmatprep.subr.mxu0 0.0
    %5375 = vmatpush1.msra.mxu0 %v5360
    %5376 = vmatprep.subr.mxu0 0.0
    %5377 = vmatpush1.msra.mxu0 %v5362
    %5378 = vmatprep.subr.mxu0 0.0
    %5379 = vmatpush1.msra.mxu0 %v5364
    %5380 = vmatprep.subr.mxu0 0.0
    %5381 = vmatpush1.msra.mxu0 0.0
    %5382 = vmatprep.subr.mxu0 0.0
    %5383 = vmatpush1.msra.mxu0 0.0
    %5384 = vmatprep.subr.mxu0 0.0
    %5385 = vmatpush1.msra.mxu0 0.0
    %5386 = vmatprep.subr.mxu0 0.0
    %5387 = vmatpush1.msra.mxu0 0.0
    %5388 = vmatprep.subr.mxu0 0.0
    %5389 = vmatpush1.msra.mxu0 0.0
    %5390 = vmatprep.subr.mxu0 0.0
    %5391 = vmatpush1.msra.mxu0 0.0
    %5392 = vmatprep.subr.mxu0 0.0
    %5393 = vmatpush1.msra.mxu0 0.0
    %5394 = vmatprep.subr.mxu0 0.0
    %5395 = vmatpush1.msra.mxu0 0.0
    %5396 = vmatprep.subr.mxu0 0.0
    %5397 = vmatpush1.msra.mxu0 0.0
    %5398 = vmatprep.subr.mxu0 0.0
    %5399 = vmatpush1.msra.mxu0 0.0
    %5400 = vmatprep.subr.mxu0 0.0
    %5401 = vmatpush1.msra.mxu0 0.0
    %5402 = vmatprep.subr.mxu0 0.0
    %5403 = vmatpush1.msra.mxu0 0.0
    %5404 = vmatprep.subr.mxu0 0.0
    %5405 = vmatpush1.msra.mxu0 0.0
    %5406 = vmatprep.subr.mxu0 0.0
    %5407 = vmatpush1.msra.mxu0 0.0
    %5408 = vmatprep.subr.mxu0 0.0
    %5409 = vmatpush1.msra.mxu0 0.0
    %5410 = vmatprep.subr.mxu0 0.0
    %5411 = vmatpush1.msra.mxu0 0.0
    %5412 = vmatprep.subr.mxu0 0.0
    %5413 = vmatpush1.msra.mxu0 0.0
    %5414 = vmatprep.subr.mxu0 0.0
    %5415 = vmatpush1.msra.mxu0 0.0
    %5416 = vmatprep.subr.mxu0 0.0
    %5417 = vmatpush1.msra.mxu0 0.0
    %5418 = vmatprep.subr.mxu0 0.0
    %5419 = vmatpush1.msra.mxu0 0.0
    %5420 = vmatprep.subr.mxu0 0.0
    %5421 = vmatpush1.msra.mxu0 0.0
    %5422 = vmatprep.subr.mxu0 0.0
    %5423 = vmatpush1.msra.mxu0 0.0
    %5424 = vmatprep.subr.mxu0 0.0
    %5425 = vmatpush1.msra.mxu0 0.0
    %5426 = vmatprep.subr.mxu0 0.0
    %5427 = vmatpush1.msra.mxu0 0.0
    %5428 = vmatprep.subr.mxu0 0.0
    %5429 = vmatpush1.msra.mxu0 0.0
    %5430 = vmatprep.subr.mxu0 0.0
    %5431 = vmatpush1.msra.mxu0 0.0
    %5432 = vmatprep.subr.mxu0 0.0
    %5433 = vmatpush1.msra.mxu0 0.0
    %5434 = vmatprep.subr.mxu0 0.0
    %5435 = vmatpush1.msra.mxu0 0.0
    %5436 = vmatprep.mubr.f32.mxu0 0.0
    %5437 = vmatmul.mubr.f32.gmra.mrb[0].mxu0 %v401
    %v5438 = vpop.f32.mrb[0].mxu0
    %v5439 = vadd.f32 %v5370, %v5438
    %v5440 = vpop.f32.mrb[0].mxu0
    %5441 = vdwg.mxu0
    %v5443 = vrot.slane %v5439, 1
    %v5445 = vmul.f32 %v5346, %v5443
    %5447 = vrot.lane.b32.xlu0 %v5445, 64
    %v5448 = vpop.permute.xlu0 %5447
    %v5450 = vadd.f32 %v4888, %v5448
    %v5451 = vtanh.pop %v5450
    %v5452 = vsub.f32 1.0, %v5356
    %5454 = vrot.lane.b32.xlu0 %v5451, 96
    %v5455 = vpop.permute.xlu0 %5454
    %v5457 = vmul.f32 %v5452, %v5455
    %v5458 = vmul.f32 %v5356, 0.0
    %v5459 = vadd.f32 %v5457, %v5458
    %5461 = vrot.lane.b32.xlu0 %v5338, 96
    %v5462 = vpop.permute.xlu0 %5461
    %5464 = vst.msk [vmem:[#allocation4] sm:$0x1] %vm954, %v5462
    %5466 = vrot.lane.b32.xlu0 %v5459, 96
    %v5467 = vpop.permute.xlu0 %5466
    %5469 = vst.msk [vmem:[#allocation5] sm:$0x80] %vm960, %v5467
    %v5470 = vsel %vm399, %v5462, 0
    %5472 = vmatprep.subr.mxu0 0.0
    %5473 = vmatpush1.msra.mxu0 %v4889
    %5474 = vmatprep.subr.mxu0 0.0
    %5475 = vmatpush1.msra.mxu0 %v4890
    %5476 = vmatprep.subr.mxu0 0.0
    %5477 = vmatpush1.msra.mxu0 %v4891
    %5478 = vmatprep.subr.mxu0 0.0
    %5479 = vmatpush1.msra.mxu0 %v4892
    %5480 = vmatprep.subr.mxu0 0.0
    %5481 = vmatpush1.msra.mxu0 0.0
    %5482 = vmatprep.subr.mxu0 0.0
    %5483 = vmatpush1.msra.mxu0 0.0
    %5484 = vmatprep.subr.mxu0 0.0
    %5485 = vmatpush1.msra.mxu0 0.0
    %5486 = vmatprep.subr.mxu0 0.0
    %5487 = vmatpush1.msra.mxu0 0.0
    %5488 = vmatprep.subr.mxu0 0.0
    %5489 = vmatpush1.msra.mxu0 0.0
    %5490 = vmatprep.subr.mxu0 0.0
    %5491 = vmatpush1.msra.mxu0 0.0
    %5492 = vmatprep.subr.mxu0 0.0
    %5493 = vmatpush1.msra.mxu0 0.0
    %5494 = vmatprep.subr.mxu0 0.0
    %5495 = vmatpush1.msra.mxu0 0.0
    %5496 = vmatprep.subr.mxu0 0.0
    %5497 = vmatpush1.msra.mxu0 0.0
    %5498 = vmatprep.subr.mxu0 0.0
    %5499 = vmatpush1.msra.mxu0 0.0
    %5500 = vmatprep.subr.mxu0 0.0
    %5501 = vmatpush1.msra.mxu0 0.0
    %5502 = vmatprep.subr.mxu0 0.0
    %5503 = vmatpush1.msra.mxu0 0.0
    %5504 = vmatprep.subr.mxu0 0.0
    %5505 = vmatpush1.msra.mxu0 0.0
    %5506 = vmatprep.subr.mxu0 0.0
    %5507 = vmatpush1.msra.mxu0 0.0
    %5508 = vmatprep.subr.mxu0 0.0
    %5509 = vmatpush1.msra.mxu0 0.0
    %5510 = vmatprep.subr.mxu0 0.0
    %5511 = vmatpush1.msra.mxu0 0.0
    %5512 = vmatprep.subr.mxu0 0.0
    %5513 = vmatpush1.msra.mxu0 0.0
    %5514 = vmatprep.subr.mxu0 0.0
    %5515 = vmatpush1.msra.mxu0 0.0
    %5516 = vmatprep.subr.mxu0 0.0
    %5517 = vmatpush1.msra.mxu0 0.0
    %5518 = vmatprep.subr.mxu0 0.0
    %5519 = vmatpush1.msra.mxu0 0.0
    %5520 = vmatprep.subr.mxu0 0.0
    %5521 = vmatpush1.msra.mxu0 0.0
    %5522 = vmatprep.subr.mxu0 0.0
    %5523 = vmatpush1.msra.mxu0 0.0
    %5524 = vmatprep.subr.mxu0 0.0
    %5525 = vmatpush1.msra.mxu0 0.0
    %5526 = vmatprep.subr.mxu0 0.0
    %5527 = vmatpush1.msra.mxu0 0.0
    %5528 = vmatprep.subr.mxu0 0.0
    %5529 = vmatpush1.msra.mxu0 0.0
    %5530 = vmatprep.subr.mxu0 0.0
    %5531 = vmatpush1.msra.mxu0 0.0
    %5532 = vmatprep.subr.mxu0 0.0
    %5533 = vmatpush1.msra.mxu0 0.0
    %5534 = vmatprep.subr.mxu0 0.0
    %5535 = vmatpush1.msra.mxu0 0.0
    %5536 = vmatprep.mubr.f32.mxu0 0.0
    %5537 = vmatmul.mubr.f32.gmra.mrb[0].mxu0 %v5470
    %v5538 = vpop.f32.mrb[0].mxu0
    %v5539 = vadd.f32 0.0, %v5538
    %v5540 = vpop.f32.mrb[0].mxu0
    %5541 = vdwg.mxu0
    %5542 = vmatprep.subr.mxu0 0.0
    %5543 = vmatpush1.msra.mxu0 %v4988
    %5544 = vmatprep.subr.mxu0 0.0
    %5545 = vmatpush1.msra.mxu0 %v4990
    %5546 = vmatprep.subr.mxu0 0.0
    %5547 = vmatpush1.msra.mxu0 %v4992
    %5548 = vmatprep.subr.mxu0 0.0
    %5549 = vmatpush1.msra.mxu0 %v4994
    %5550 = vmatprep.subr.mxu0 0.0
    %5551 = vmatpush1.msra.mxu0 0.0
    %5552 = vmatprep.subr.mxu0 0.0
    %5553 = vmatpush1.msra.mxu0 0.0
    %5554 = vmatprep.subr.mxu0 0.0
    %5555 = vmatpush1.msra.mxu0 0.0
    %5556 = vmatprep.subr.mxu0 0.0
    %5557 = vmatpush1.msra.mxu0 0.0
    %5558 = vmatprep.subr.mxu0 0.0
    %5559 = vmatpush1.msra.mxu0 0.0
    %5560 = vmatprep.subr.mxu0 0.0
    %5561 = vmatpush1.msra.mxu0 0.0
    %5562 = vmatprep.subr.mxu0 0.0
    %5563 = vmatpush1.msra.mxu0 0.0
    %5564 = vmatprep.subr.mxu0 0.0
    %5565 = vmatpush1.msra.mxu0 0.0
    %5566 = vmatprep.subr.mxu0 0.0
    %5567 = vmatpush1.msra.mxu0 0.0
    %5568 = vmatprep.subr.mxu0 0.0
    %5569 = vmatpush1.msra.mxu0 0.0
    %5570 = vmatprep.subr.mxu0 0.0
    %5571 = vmatpush1.msra.mxu0 0.0
    %5572 = vmatprep.subr.mxu0 0.0
    %5573 = vmatpush1.msra.mxu0 0.0
    %5574 = vmatprep.subr.mxu0 0.0
    %5575 = vmatpush1.msra.mxu0 0.0
    %5576 = vmatprep.subr.mxu0 0.0
    %5577 = vmatpush1.msra.mxu0 0.0
    %5578 = vmatprep.subr.mxu0 0.0
    %5579 = vmatpush1.msra.mxu0 0.0
    %5580 = vmatprep.subr.mxu0 0.0
    %5581 = vmatpush1.msra.mxu0 0.0
    %5582 = vmatprep.subr.mxu0 0.0
    %5583 = vmatpush1.msra.mxu0 0.0
    %5584 = vmatprep.subr.mxu0 0.0
    %5585 = vmatpush1.msra.mxu0 0.0
    %5586 = vmatprep.subr.mxu0 0.0
    %5587 = vmatpush1.msra.mxu0 0.0
    %5588 = vmatprep.subr.mxu0 0.0
    %5589 = vmatpush1.msra.mxu0 0.0
    %5590 = vmatprep.subr.mxu0 0.0
    %5591 = vmatpush1.msra.mxu0 0.0
    %5592 = vmatprep.subr.mxu0 0.0
    %5593 = vmatpush1.msra.mxu0 0.0
    %5594 = vmatprep.subr.mxu0 0.0
    %5595 = vmatpush1.msra.mxu0 0.0
    %5596 = vmatprep.subr.mxu0 0.0
    %5597 = vmatpush1.msra.mxu0 0.0
    %5598 = vmatprep.subr.mxu0 0.0
    %5599 = vmatpush1.msra.mxu0 0.0
    %5600 = vmatprep.subr.mxu0 0.0
    %5601 = vmatpush1.msra.mxu0 0.0
    %5602 = vmatprep.subr.mxu0 0.0
    %5603 = vmatpush1.msra.mxu0 0.0
    %5604 = vmatprep.subr.mxu0 0.0
    %5605 = vmatpush1.msra.mxu0 0.0
    %5606 = vmatprep.mubr.f32.mxu0 0.0
    %5607 = vmatmul.mubr.f32.gmra.mrb[0].mxu0 %v5470
    %v5608 = vpop.f32.mrb[0].mxu0
    %v5609 = vadd.f32 0.0, %v5608
    %v5610 = vpop.f32.mrb[0].mxu0
    %5611 = vdwg.mxu0
    %v5612 = vrot.slane %v5459, 7
    %5613 = vrot.lane.b32.xlu0 %v5612, 96
    %v5614 = vpop.permute.xlu0 %5613
    %v5615 = vsel %vm399, %v5614, 0
    %5617 = vmatprep.subr.mxu0 0.0
    %5618 = vmatpush1.msra.mxu0 %v4894
    %5619 = vmatprep.subr.mxu0 0.0
    %5620 = vmatpush1.msra.mxu0 %v4895
    %5621 = vmatprep.subr.mxu0 0.0
    %5622 = vmatpush1.msra.mxu0 %v4896
    %5623 = vmatprep.subr.mxu0 0.0
    %5624 = vmatpush1.msra.mxu0 %v4897
    %5625 = vmatprep.subr.mxu0 0.0
    %5626 = vmatpush1.msra.mxu0 0.0
    %5627 = vmatprep.subr.mxu0 0.0
    %5628 = vmatpush1.msra.mxu0 0.0
    %5629 = vmatprep.subr.mxu0 0.0
    %5630 = vmatpush1.msra.mxu0 0.0
    %5631 = vmatprep.subr.mxu0 0.0
    %5632 = vmatpush1.msra.mxu0 0.0
    %5633 = vmatprep.subr.mxu0 0.0
    %5634 = vmatpush1.msra.mxu0 0.0
    %5635 = vmatprep.subr.mxu0 0.0
    %5636 = vmatpush1.msra.mxu0 0.0
    %5637 = vmatprep.subr.mxu0 0.0
    %5638 = vmatpush1.msra.mxu0 0.0
    %5639 = vmatprep.subr.mxu0 0.0
    %5640 = vmatpush1.msra.mxu0 0.0
    %5641 = vmatprep.subr.mxu0 0.0
    %5642 = vmatpush1.msra.mxu0 0.0
    %5643 = vmatprep.subr.mxu0 0.0
    %5644 = vmatpush1.msra.mxu0 0.0
    %5645 = vmatprep.subr.mxu0 0.0
    %5646 = vmatpush1.msra.mxu0 0.0
    %5647 = vmatprep.subr.mxu0 0.0
    %5648 = vmatpush1.msra.mxu0 0.0
    %5649 = vmatprep.subr.mxu0 0.0
    %5650 = vmatpush1.msra.mxu0 0.0
    %5651 = vmatprep.subr.mxu0 0.0
    %5652 = vmatpush1.msra.mxu0 0.0
    %5653 = vmatprep.subr.mxu0 0.0
    %5654 = vmatpush1.msra.mxu0 0.0
    %5655 = vmatprep.subr.mxu0 0.0
    %5656 = vmatpush1.msra.mxu0 0.0
    %5657 = vmatprep.subr.mxu0 0.0
    %5658 = vmatpush1.msra.mxu0 0.0
    %5659 = vmatprep.subr.mxu0 0.0
    %5660 = vmatpush1.msra.mxu0 0.0
    %5661 = vmatprep.subr.mxu0 0.0
    %5662 = vmatpush1.msra.mxu0 0.0
    %5663 = vmatprep.subr.mxu0 0.0
    %5664 = vmatpush1.msra.mxu0 0.0
    %5665 = vmatprep.subr.mxu0 0.0
    %5666 = vmatpush1.msra.mxu0 0.0
    %5667 = vmatprep.subr.mxu0 0.0
    %5668 = vmatpush1.msra.mxu0 0.0
    %5669 = vmatprep.subr.mxu0 0.0
    %5670 = vmatpush1.msra.mxu0 0.0
    %5671 = vmatprep.subr.mxu0 0.0
    %5672 = vmatpush1.msra.mxu0 0.0
    %5673 = vmatprep.subr.mxu0 0.0
    %5674 = vmatpush1.msra.mxu0 0.0
    %5675 = vmatprep.subr.mxu0 0.0
    %5676 = vmatpush1.msra.mxu0 0.0
    %5677 = vmatprep.subr.mxu0 0.0
    %5678 = vmatpush1.msra.mxu0 0.0
    %5679 = vmatprep.subr.mxu0 0.0
    %5680 = vmatpush1.msra.mxu0 0.0
    %5681 = vmatprep.mubr.f32.mxu0 0.0
    %5682 = vmatmul.mubr.f32.gmra.mrb[0].mxu0 %v5615
    %v5683 = vpop.f32.mrb[0].mxu0
    %v5684 = vadd.f32 0.0, %v5683
    %v5685 = vpop.f32.mrb[0].mxu0
    %5686 = vdwg.mxu0
    %5687 = vmatprep.subr.mxu0 0.0
    %5688 = vmatpush1.msra.mxu0 %v5144
    %5689 = vmatprep.subr.mxu0 0.0
    %5690 = vmatpush1.msra.mxu0 %v5146
    %5691 = vmatprep.subr.mxu0 0.0
    %5692 = vmatpush1.msra.mxu0 %v5148
    %5693 = vmatprep.subr.mxu0 0.0
    %5694 = vmatpush1.msra.mxu0 %v5150
    %5695 = vmatprep.subr.mxu0 0.0
    %5696 = vmatpush1.msra.mxu0 0.0
    %5697 = vmatprep.subr.mxu0 0.0
    %5698 = vmatpush1.msra.mxu0 0.0
    %5699 = vmatprep.subr.mxu0 0.0
    %5700 = vmatpush1.msra.mxu0 0.0
    %5701 = vmatprep.subr.mxu0 0.0
    %5702 = vmatpush1.msra.mxu0 0.0
    %5703 = vmatprep.subr.mxu0 0.0
    %5704 = vmatpush1.msra.mxu0 0.0
    %5705 = vmatprep.subr.mxu0 0.0
    %5706 = vmatpush1.msra.mxu0 0.0
    %5707 = vmatprep.subr.mxu0 0.0
    %5708 = vmatpush1.msra.mxu0 0.0
    %5709 = vmatprep.subr.mxu0 0.0
    %5710 = vmatpush1.msra.mxu0 0.0
    %5711 = vmatprep.subr.mxu0 0.0
    %5712 = vmatpush1.msra.mxu0 0.0
    %5713 = vmatprep.subr.mxu0 0.0
    %5714 = vmatpush1.msra.mxu0 0.0
    %5715 = vmatprep.subr.mxu0 0.0
    %5716 = vmatpush1.msra.mxu0 0.0
    %5717 = vmatprep.subr.mxu0 0.0
    %5718 = vmatpush1.msra.mxu0 0.0
    %5719 = vmatprep.subr.mxu0 0.0
    %5720 = vmatpush1.msra.mxu0 0.0
    %5721 = vmatprep.subr.mxu0 0.0
    %5722 = vmatpush1.msra.mxu0 0.0
    %5723 = vmatprep.subr.mxu0 0.0
    %5724 = vmatpush1.msra.mxu0 0.0
    %5725 = vmatprep.subr.mxu0 0.0
    %5726 = vmatpush1.msra.mxu0 0.0
    %5727 = vmatprep.subr.mxu0 0.0
    %5728 = vmatpush1.msra.mxu0 0.0
    %5729 = vmatprep.subr.mxu0 0.0
    %5730 = vmatpush1.msra.mxu0 0.0
    %5731 = vmatprep.subr.mxu0 0.0
    %5732 = vmatpush1.msra.mxu0 0.0
    %5733 = vmatprep.subr.mxu0 0.0
    %5734 = vmatpush1.msra.mxu0 0.0
    %5735 = vmatprep.subr.mxu0 0.0
    %5736 = vmatpush1.msra.mxu0 0.0
    %5737 = vmatprep.subr.mxu0 0.0
    %5738 = vmatpush1.msra.mxu0 0.0
    %5739 = vmatprep.subr.mxu0 0.0
    %5740 = vmatpush1.msra.mxu0 0.0
    %5741 = vmatprep.subr.mxu0 0.0
    %5742 = vmatpush1.msra.mxu0 0.0
    %5743 = vmatprep.subr.mxu0 0.0
    %5744 = vmatpush1.msra.mxu0 0.0
    %5745 = vmatprep.subr.mxu0 0.0
    %5746 = vmatpush1.msra.mxu0 0.0
    %5747 = vmatprep.subr.mxu0 0.0
    %5748 = vmatpush1.msra.mxu0 0.0
    %5749 = vmatprep.subr.mxu0 0.0
    %5750 = vmatpush1.msra.mxu0 0.0
    %5751 = vmatprep.mubr.f32.mxu0 0.0
    %5752 = vmatmul.mubr.f32.gmra.mrb[0].mxu0 %v5615
    %v5753 = vpop.f32.mrb[0].mxu0
    %v5754 = vadd.f32 0.0, %v5753
    %v5755 = vpop.f32.mrb[0].mxu0
    %5756 = vdwg.mxu0
    %v5758 = vrot.slane %v5539, 7
    %v5760 = vadd.f32 %v4905, %v5758
    %v5761 = vmul.f32 %v5760, 0.5
    %v5762 = vtanh.pop %v5761
    %v5763 = vadd.f32 %v5762, 1.0
    %v5764 = vmul.f32 %v5763, 0.5
    %v5766 = vrot.slane %v5609, 7
    %5767 = vrot.lane.b32.xlu0 %v5766, 32
    %v5768 = vpop.permute.xlu0 %5767
    %v5770 = vadd.f32 %v4905, %v5768
    %v5771 = vmul.f32 %v5770, 0.5
    %v5772 = vtanh.pop %v5771
    %v5773 = vadd.f32 %v5772, 1.0
    %v5774 = vmul.f32 %v5773, 0.5
    %5775 = vmatprep.subr.mxu0 0.0
    %5776 = vmatpush1.msra.mxu0 %v5240
    %5777 = vmatprep.subr.mxu0 0.0
    %5778 = vmatpush1.msra.mxu0 %v5242
    %5779 = vmatprep.subr.mxu0 0.0
    %5780 = vmatpush1.msra.mxu0 %v5244
    %5781 = vmatprep.subr.mxu0 0.0
    %5782 = vmatpush1.msra.mxu0 %v5246
    %5783 = vmatprep.subr.mxu0 0.0
    %5784 = vmatpush1.msra.mxu0 0.0
    %5785 = vmatprep.subr.mxu0 0.0
    %5786 = vmatpush1.msra.mxu0 0.0
    %5787 = vmatprep.subr.mxu0 0.0
    %5788 = vmatpush1.msra.mxu0 0.0
    %5789 = vmatprep.subr.mxu0 0.0
    %5790 = vmatpush1.msra.mxu0 0.0
    %5791 = vmatprep.subr.mxu0 0.0
    %5792 = vmatpush1.msra.mxu0 0.0
    %5793 = vmatprep.subr.mxu0 0.0
    %5794 = vmatpush1.msra.mxu0 0.0
    %5795 = vmatprep.subr.mxu0 0.0
    %5796 = vmatpush1.msra.mxu0 0.0
    %5797 = vmatprep.subr.mxu0 0.0
    %5798 = vmatpush1.msra.mxu0 0.0
    %5799 = vmatprep.subr.mxu0 0.0
    %5800 = vmatpush1.msra.mxu0 0.0
    %5801 = vmatprep.subr.mxu0 0.0
    %5802 = vmatpush1.msra.mxu0 0.0
    %5803 = vmatprep.subr.mxu0 0.0
    %5804 = vmatpush1.msra.mxu0 0.0
    %5805 = vmatprep.subr.mxu0 0.0
    %5806 = vmatpush1.msra.mxu0 0.0
    %5807 = vmatprep.subr.mxu0 0.0
    %5808 = vmatpush1.msra.mxu0 0.0
    %5809 = vmatprep.subr.mxu0 0.0
    %5810 = vmatpush1.msra.mxu0 0.0
    %5811 = vmatprep.subr.mxu0 0.0
    %5812 = vmatpush1.msra.mxu0 0.0
    %5813 = vmatprep.subr.mxu0 0.0
    %5814 = vmatpush1.msra.mxu0 0.0
    %5815 = vmatprep.subr.mxu0 0.0
    %5816 = vmatpush1.msra.mxu0 0.0
    %5817 = vmatprep.subr.mxu0 0.0
    %5818 = vmatpush1.msra.mxu0 0.0
    %5819 = vmatprep.subr.mxu0 0.0
    %5820 = vmatpush1.msra.mxu0 0.0
    %5821 = vmatprep.subr.mxu0 0.0
    %5822 = vmatpush1.msra.mxu0 0.0
    %5823 = vmatprep.subr.mxu0 0.0
    %5824 = vmatpush1.msra.mxu0 0.0
    %5825 = vmatprep.subr.mxu0 0.0
    %5826 = vmatpush1.msra.mxu0 0.0
    %5827 = vmatprep.subr.mxu0 0.0
    %5828 = vmatpush1.msra.mxu0 0.0
    %5829 = vmatprep.subr.mxu0 0.0
    %5830 = vmatpush1.msra.mxu0 0.0
    %5831 = vmatprep.subr.mxu0 0.0
    %5832 = vmatpush1.msra.mxu0 0.0
    %5833 = vmatprep.subr.mxu0 0.0
    %5834 = vmatpush1.msra.mxu0 0.0
    %5835 = vmatprep.subr.mxu0 0.0
    %5836 = vmatpush1.msra.mxu0 0.0
    %5837 = vmatprep.subr.mxu0 0.0
    %5838 = vmatpush1.msra.mxu0 0.0
    %5839 = vmatprep.mubr.f32.mxu0 0.0
    %5840 = vmatmul.mubr.f32.gmra.mrb[0].mxu0 %v5470
    %v5841 = vpop.f32.mrb[0].mxu0
    %v5842 = vadd.f32 %v5252, %v5841
    %v5843 = vpop.f32.mrb[0].mxu0
    %5844 = vdwg.mxu0
    %v5846 = vrot.slane %v5842, 7
    %v5848 = vmul.f32 %v5764, %v5846
    %5850 = vrot.lane.b32.xlu0 %v5848, 64
    %v5851 = vpop.permute.xlu0 %5850
    %v5853 = vadd.f32 %v4740, %v5851
    %v5854 = vtanh.pop %v5853
    %v5855 = vsub.f32 1.0, %v5774
    %5857 = vrot.lane.b32.xlu0 %v5854, 96
    %v5858 = vpop.permute.xlu0 %5857
    %v5860 = vmul.f32 %v5855, %v5858
    %v5861 = vrot.slane %v5338, 7
    %v5863 = vmul.f32 %v5774, %v5861
    %v5864 = vadd.f32 %v5860, %v5863
    %v5866 = vrot.slane %v5684, 2
    %v5868 = vadd.f32 %v4912, %v5866
    %v5869 = vmul.f32 %v5868, 0.5
    %v5870 = vtanh.pop %v5869
    %v5871 = vadd.f32 %v5870, 1.0
    %v5872 = vmul.f32 %v5871, 0.5
    %v5874 = vrot.slane %v5754, 2
    %5875 = vrot.lane.b32.xlu0 %v5874, 32
    %v5876 = vpop.permute.xlu0 %5875
    %v5878 = vadd.f32 %v4912, %v5876
    %v5879 = vmul.f32 %v5878, 0.5
    %v5880 = vtanh.pop %v5879
    %v5881 = vadd.f32 %v5880, 1.0
    %v5882 = vmul.f32 %v5881, 0.5
    %5883 = vmatprep.subr.mxu0 0.0
    %5884 = vmatpush1.msra.mxu0 %v5358
    %5885 = vmatprep.subr.mxu0 0.0
    %5886 = vmatpush1.msra.mxu0 %v5360
    %5887 = vmatprep.subr.mxu0 0.0
    %5888 = vmatpush1.msra.mxu0 %v5362
    %5889 = vmatprep.subr.mxu0 0.0
    %5890 = vmatpush1.msra.mxu0 %v5364
    %5891 = vmatprep.subr.mxu0 0.0
    %5892 = vmatpush1.msra.mxu0 0.0
    %5893 = vmatprep.subr.mxu0 0.0
    %5894 = vmatpush1.msra.mxu0 0.0
    %5895 = vmatprep.subr.mxu0 0.0
    %5896 = vmatpush1.msra.mxu0 0.0
    %5897 = vmatprep.subr.mxu0 0.0
    %5898 = vmatpush1.msra.mxu0 0.0
    %5899 = vmatprep.subr.mxu0 0.0
    %5900 = vmatpush1.msra.mxu0 0.0
    %5901 = vmatprep.subr.mxu0 0.0
    %5902 = vmatpush1.msra.mxu0 0.0
    %5903 = vmatprep.subr.mxu0 0.0
    %5904 = vmatpush1.msra.mxu0 0.0
    %5905 = vmatprep.subr.mxu0 0.0
    %5906 = vmatpush1.msra.mxu0 0.0
    %5907 = vmatprep.subr.mxu0 0.0
    %5908 = vmatpush1.msra.mxu0 0.0
    %5909 = vmatprep.subr.mxu0 0.0
    %5910 = vmatpush1.msra.mxu0 0.0
    %5911 = vmatprep.subr.mxu0 0.0
    %5912 = vmatpush1.msra.mxu0 0.0
    %5913 = vmatprep.subr.mxu0 0.0
    %5914 = vmatpush1.msra.mxu0 0.0
    %5915 = vmatprep.subr.mxu0 0.0
    %5916 = vmatpush1.msra.mxu0 0.0
    %5917 = vmatprep.subr.mxu0 0.0
    %5918 = vmatpush1.msra.mxu0 0.0
    %5919 = vmatprep.subr.mxu0 0.0
    %5920 = vmatpush1.msra.mxu0 0.0
    %5921 = vmatprep.subr.mxu0 0.0
    %5922 = vmatpush1.msra.mxu0 0.0
    %5923 = vmatprep.subr.mxu0 0.0
    %5924 = vmatpush1.msra.mxu0 0.0
    %5925 = vmatprep.subr.mxu0 0.0
    %5926 = vmatpush1.msra.mxu0 0.0
    %5927 = vmatprep.subr.mxu0 0.0
    %5928 = vmatpush1.msra.mxu0 0.0
    %5929 = vmatprep.subr.mxu0 0.0
    %5930 = vmatpush1.msra.mxu0 0.0
    %5931 = vmatprep.subr.mxu0 0.0
    %5932 = vmatpush1.msra.mxu0 0.0
    %5933 = vmatprep.subr.mxu0 0.0
    %5934 = vmatpush1.msra.mxu0 0.0
    %5935 = vmatprep.subr.mxu0 0.0
    %5936 = vmatpush1.msra.mxu0 0.0
    %5937 = vmatprep.subr.mxu0 0.0
    %5938 = vmatpush1.msra.mxu0 0.0
    %5939 = vmatprep.subr.mxu0 0.0
    %5940 = vmatpush1.msra.mxu0 0.0
    %5941 = vmatprep.subr.mxu0 0.0
    %5942 = vmatpush1.msra.mxu0 0.0
    %5943 = vmatprep.subr.mxu0 0.0
    %5944 = vmatpush1.msra.mxu0 0.0
    %5945 = vmatprep.subr.mxu0 0.0
    %5946 = vmatpush1.msra.mxu0 0.0
    %5947 = vmatprep.mubr.f32.mxu0 0.0
    %5948 = vmatmul.mubr.f32.gmra.mrb[0].mxu0 %v5615
    %v5949 = vpop.f32.mrb[0].mxu0
    %v5950 = vadd.f32 %v5370, %v5949
    %v5951 = vpop.f32.mrb[0].mxu0
    %5952 = vdwg.mxu0
    %v5954 = vrot.slane %v5950, 2
    %v5956 = vmul.f32 %v5872, %v5954
    %5958 = vrot.lane.b32.xlu0 %v5956, 64
    %v5959 = vpop.permute.xlu0 %5958
    %v5961 = vadd.f32 %v4888, %v5959
    %v5962 = vtanh.pop %v5961
    %v5963 = vsub.f32 1.0, %v5882
    %5965 = vrot.lane.b32.xlu0 %v5962, 96
    %v5966 = vpop.permute.xlu0 %5965
    %v5968 = vmul.f32 %v5963, %v5966
    %v5969 = vrot.slane %v5459, 1
    %v5971 = vmul.f32 %v5882, %v5969
    %v5972 = vadd.f32 %v5968, %v5971
    %5974 = vrot.lane.b32.xlu0 %v5864, 96
    %v5975 = vpop.permute.xlu0 %5974
    %5977 = vst.msk [vmem:[#allocation4] sm:$0x2] %vm1469, %v5975
    %5979 = vrot.lane.b32.xlu0 %v5972, 96
    %v5980 = vpop.permute.xlu0 %5979
    %5982 = vst.msk [vmem:[#allocation5] sm:$0x40] %vm1475, %v5980
    %v5983 = vrot.slane %v5864, 1
    %5984 = vrot.lane.b32.xlu0 %v5983, 96
    %v5985 = vpop.permute.xlu0 %5984
    %v5986 = vsel %vm399, %v5985, 0
    %5988 = vmatprep.subr.mxu0 0.0
    %5989 = vmatpush1.msra.mxu0 %v4889
    %5990 = vmatprep.subr.mxu0 0.0
    %5991 = vmatpush1.msra.mxu0 %v4890
    %5992 = vmatprep.subr.mxu0 0.0
    %5993 = vmatpush1.msra.mxu0 %v4891
    %5994 = vmatprep.subr.mxu0 0.0
    %5995 = vmatpush1.msra.mxu0 %v4892
    %5996 = vmatprep.subr.mxu0 0.0
    %5997 = vmatpush1.msra.mxu0 0.0
    %5998 = vmatprep.subr.mxu0 0.0
    %5999 = vmatpush1.msra.mxu0 0.0
    %6000 = vmatprep.subr.mxu0 0.0
    %6001 = vmatpush1.msra.mxu0 0.0
    %6002 = vmatprep.subr.mxu0 0.0
    %6003 = vmatpush1.msra.mxu0 0.0
    %6004 = vmatprep.subr.mxu0 0.0
    %6005 = vmatpush1.msra.mxu0 0.0
    %6006 = vmatprep.subr.mxu0 0.0
    %6007 = vmatpush1.msra.mxu0 0.0
    %6008 = vmatprep.subr.mxu0 0.0
    %6009 = vmatpush1.msra.mxu0 0.0
    %6010 = vmatprep.subr.mxu0 0.0
    %6011 = vmatpush1.msra.mxu0 0.0
    %6012 = vmatprep.subr.mxu0 0.0
    %6013 = vmatpush1.msra.mxu0 0.0
    %6014 = vmatprep.subr.mxu0 0.0
    %6015 = vmatpush1.msra.mxu0 0.0
    %6016 = vmatprep.subr.mxu0 0.0
    %6017 = vmatpush1.msra.mxu0 0.0
    %6018 = vmatprep.subr.mxu0 0.0
    %6019 = vmatpush1.msra.mxu0 0.0
    %6020 = vmatprep.subr.mxu0 0.0
    %6021 = vmatpush1.msra.mxu0 0.0
    %6022 = vmatprep.subr.mxu0 0.0
    %6023 = vmatpush1.msra.mxu0 0.0
    %6024 = vmatprep.subr.mxu0 0.0
    %6025 = vmatpush1.msra.mxu0 0.0
    %6026 = vmatprep.subr.mxu0 0.0
    %6027 = vmatpush1.msra.mxu0 0.0
    %6028 = vmatprep.subr.mxu0 0.0
    %6029 = vmatpush1.msra.mxu0 0.0
    %6030 = vmatprep.subr.mxu0 0.0
    %6031 = vmatpush1.msra.mxu0 0.0
    %6032 = vmatprep.subr.mxu0 0.0
    %6033 = vmatpush1.msra.mxu0 0.0
    %6034 = vmatprep.subr.mxu0 0.0
    %6035 = vmatpush1.msra.mxu0 0.0
    %6036 = vmatprep.subr.mxu0 0.0
    %6037 = vmatpush1.msra.mxu0 0.0
    %6038 = vmatprep.subr.mxu0 0.0
    %6039 = vmatpush1.msra.mxu0 0.0
    %6040 = vmatprep.subr.mxu0 0.0
    %6041 = vmatpush1.msra.mxu0 0.0
    %6042 = vmatprep.subr.mxu0 0.0
    %6043 = vmatpush1.msra.mxu0 0.0
    %6044 = vmatprep.subr.mxu0 0.0
    %6045 = vmatpush1.msra.mxu0 0.0
    %6046 = vmatprep.subr.mxu0 0.0
    %6047 = vmatpush1.msra.mxu0 0.0
    %6048 = vmatprep.subr.mxu0 0.0
    %6049 = vmatpush1.msra.mxu0 0.0
    %6050 = vmatprep.subr.mxu0 0.0
    %6051 = vmatpush1.msra.mxu0 0.0
    %6052 = vmatprep.mubr.f32.mxu0 0.0
    %6053 = vmatmul.mubr.f32.gmra.mrb[0].mxu0 %v5986
    %v6054 = vpop.f32.mrb[0].mxu0
    %v6055 = vadd.f32 0.0, %v6054
    %v6056 = vpop.f32.mrb[0].mxu0
    %6057 = vdwg.mxu0
    %6058 = vmatprep.subr.mxu0 0.0
    %6059 = vmatpush1.msra.mxu0 %v4988
    %6060 = vmatprep.subr.mxu0 0.0
    %6061 = vmatpush1.msra.mxu0 %v4990
    %6062 = vmatprep.subr.mxu0 0.0
    %6063 = vmatpush1.msra.mxu0 %v4992
    %6064 = vmatprep.subr.mxu0 0.0
    %6065 = vmatpush1.msra.mxu0 %v4994
    %6066 = vmatprep.subr.mxu0 0.0
    %6067 = vmatpush1.msra.mxu0 0.0
    %6068 = vmatprep.subr.mxu0 0.0
    %6069 = vmatpush1.msra.mxu0 0.0
    %6070 = vmatprep.subr.mxu0 0.0
    %6071 = vmatpush1.msra.mxu0 0.0
    %6072 = vmatprep.subr.mxu0 0.0
    %6073 = vmatpush1.msra.mxu0 0.0
    %6074 = vmatprep.subr.mxu0 0.0
    %6075 = vmatpush1.msra.mxu0 0.0
    %6076 = vmatprep.subr.mxu0 0.0
    %6077 = vmatpush1.msra.mxu0 0.0
    %6078 = vmatprep.subr.mxu0 0.0
    %6079 = vmatpush1.msra.mxu0 0.0
    %6080 = vmatprep.subr.mxu0 0.0
    %6081 = vmatpush1.msra.mxu0 0.0
    %6082 = vmatprep.subr.mxu0 0.0
    %6083 = vmatpush1.msra.mxu0 0.0
    %6084 = vmatprep.subr.mxu0 0.0
    %6085 = vmatpush1.msra.mxu0 0.0
    %6086 = vmatprep.subr.mxu0 0.0
    %6087 = vmatpush1.msra.mxu0 0.0
    %6088 = vmatprep.subr.mxu0 0.0
    %6089 = vmatpush1.msra.mxu0 0.0
    %6090 = vmatprep.subr.mxu0 0.0
    %6091 = vmatpush1.msra.mxu0 0.0
    %6092 = vmatprep.subr.mxu0 0.0
    %6093 = vmatpush1.msra.mxu0 0.0
    %6094 = vmatprep.subr.mxu0 0.0
    %6095 = vmatpush1.msra.mxu0 0.0
    %6096 = vmatprep.subr.mxu0 0.0
    %6097 = vmatpush1.msra.mxu0 0.0
    %6098 = vmatprep.subr.mxu0 0.0
    %6099 = vmatpush1.msra.mxu0 0.0
    %6100 = vmatprep.subr.mxu0 0.0
    %6101 = vmatpush1.msra.mxu0 0.0
    %6102 = vmatprep.subr.mxu0 0.0
    %6103 = vmatpush1.msra.mxu0 0.0
    %6104 = vmatprep.subr.mxu0 0.0
    %6105 = vmatpush1.msra.mxu0 0.0
    %6106 = vmatprep.subr.mxu0 0.0
    %6107 = vmatpush1.msra.mxu0 0.0
    %6108 = vmatprep.subr.mxu0 0.0
    %6109 = vmatpush1.msra.mxu0 0.0
    %6110 = vmatprep.subr.mxu0 0.0
    %6111 = vmatpush1.msra.mxu0 0.0
    %6112 = vmatprep.subr.mxu0 0.0
    %6113 = vmatpush1.msra.mxu0 0.0
    %6114 = vmatprep.subr.mxu0 0.0
    %6115 = vmatpush1.msra.mxu0 0.0
    %6116 = vmatprep.subr.mxu0 0.0
    %6117 = vmatpush1.msra.mxu0 0.0
    %6118 = vmatprep.subr.mxu0 0.0
    %6119 = vmatpush1.msra.mxu0 0.0
    %6120 = vmatprep.subr.mxu0 0.0
    %6121 = vmatpush1.msra.mxu0 0.0
    %6122 = vmatprep.mubr.f32.mxu0 0.0
    %6123 = vmatmul.mubr.f32.gmra.mrb[0].mxu0 %v5986
    %v6124 = vpop.f32.mrb[0].mxu0
    %v6125 = vadd.f32 0.0, %v6124
    %v6126 = vpop.f32.mrb[0].mxu0
    %6127 = vdwg.mxu0
    %v6128 = vrot.slane %v5972, 6
    %6129 = vrot.lane.b32.xlu0 %v6128, 96
    %v6130 = vpop.permute.xlu0 %6129
    %v6131 = vsel %vm399, %v6130, 0
    %6133 = vmatprep.subr.mxu0 0.0
    %6134 = vmatpush1.msra.mxu0 %v4894
    %6135 = vmatprep.subr.mxu0 0.0
    %6136 = vmatpush1.msra.mxu0 %v4895
    %6137 = vmatprep.subr.mxu0 0.0
    %6138 = vmatpush1.msra.mxu0 %v4896
    %6139 = vmatprep.subr.mxu0 0.0
    %6140 = vmatpush1.msra.mxu0 %v4897
    %6141 = vmatprep.subr.mxu0 0.0
    %6142 = vmatpush1.msra.mxu0 0.0
    %6143 = vmatprep.subr.mxu0 0.0
    %6144 = vmatpush1.msra.mxu0 0.0
    %6145 = vmatprep.subr.mxu0 0.0
    %6146 = vmatpush1.msra.mxu0 0.0
    %6147 = vmatprep.subr.mxu0 0.0
    %6148 = vmatpush1.msra.mxu0 0.0
    %6149 = vmatprep.subr.mxu0 0.0
    %6150 = vmatpush1.msra.mxu0 0.0
    %6151 = vmatprep.subr.mxu0 0.0
    %6152 = vmatpush1.msra.mxu0 0.0
    %6153 = vmatprep.subr.mxu0 0.0
    %6154 = vmatpush1.msra.mxu0 0.0
    %6155 = vmatprep.subr.mxu0 0.0
    %6156 = vmatpush1.msra.mxu0 0.0
    %6157 = vmatprep.subr.mxu0 0.0
    %6158 = vmatpush1.msra.mxu0 0.0
    %6159 = vmatprep.subr.mxu0 0.0
    %6160 = vmatpush1.msra.mxu0 0.0
    %6161 = vmatprep.subr.mxu0 0.0
    %6162 = vmatpush1.msra.mxu0 0.0
    %6163 = vmatprep.subr.mxu0 0.0
    %6164 = vmatpush1.msra.mxu0 0.0
    %6165 = vmatprep.subr.mxu0 0.0
    %6166 = vmatpush1.msra.mxu0 0.0
    %6167 = vmatprep.subr.mxu0 0.0
    %6168 = vmatpush1.msra.mxu0 0.0
    %6169 = vmatprep.subr.mxu0 0.0
    %6170 = vmatpush1.msra.mxu0 0.0
    %6171 = vmatprep.subr.mxu0 0.0
    %6172 = vmatpush1.msra.mxu0 0.0
    %6173 = vmatprep.subr.mxu0 0.0
    %6174 = vmatpush1.msra.mxu0 0.0
    %6175 = vmatprep.subr.mxu0 0.0
    %6176 = vmatpush1.msra.mxu0 0.0
    %6177 = vmatprep.subr.mxu0 0.0
    %6178 = vmatpush1.msra.mxu0 0.0
    %6179 = vmatprep.subr.mxu0 0.0
    %6180 = vmatpush1.msra.mxu0 0.0
    %6181 = vmatprep.subr.mxu0 0.0
    %6182 = vmatpush1.msra.mxu0 0.0
    %6183 = vmatprep.subr.mxu0 0.0
    %6184 = vmatpush1.msra.mxu0 0.0
    %6185 = vmatprep.subr.mxu0 0.0
    %6186 = vmatpush1.msra.mxu0 0.0
    %6187 = vmatprep.subr.mxu0 0.0
    %6188 = vmatpush1.msra.mxu0 0.0
    %6189 = vmatprep.subr.mxu0 0.0
    %6190 = vmatpush1.msra.mxu0 0.0
    %6191 = vmatprep.subr.mxu0 0.0
    %6192 = vmatpush1.msra.mxu0 0.0
    %6193 = vmatprep.subr.mxu0 0.0
    %6194 = vmatpush1.msra.mxu0 0.0
    %6195 = vmatprep.subr.mxu0 0.0
    %6196 = vmatpush1.msra.mxu0 0.0
    %6197 = vmatprep.mubr.f32.mxu0 0.0
    %6198 = vmatmul.mubr.f32.gmra.mrb[0].mxu0 %v6131
    %v6199 = vpop.f32.mrb[0].mxu0
    %v6200 = vadd.f32 0.0, %v6199
    %v6201 = vpop.f32.mrb[0].mxu0
    %6202 = vdwg.mxu0
    %6203 = vmatprep.subr.mxu0 0.0
    %6204 = vmatpush1.msra.mxu0 %v5144
    %6205 = vmatprep.subr.mxu0 0.0
    %6206 = vmatpush1.msra.mxu0 %v5146
    %6207 = vmatprep.subr.mxu0 0.0
    %6208 = vmatpush1.msra.mxu0 %v5148
    %6209 = vmatprep.subr.mxu0 0.0
    %6210 = vmatpush1.msra.mxu0 %v5150
    %6211 = vmatprep.subr.mxu0 0.0
    %6212 = vmatpush1.msra.mxu0 0.0
    %6213 = vmatprep.subr.mxu0 0.0
    %6214 = vmatpush1.msra.mxu0 0.0
    %6215 = vmatprep.subr.mxu0 0.0
    %6216 = vmatpush1.msra.mxu0 0.0
    %6217 = vmatprep.subr.mxu0 0.0
    %6218 = vmatpush1.msra.mxu0 0.0
    %6219 = vmatprep.subr.mxu0 0.0
    %6220 = vmatpush1.msra.mxu0 0.0
    %6221 = vmatprep.subr.mxu0 0.0
    %6222 = vmatpush1.msra.mxu0 0.0
    %6223 = vmatprep.subr.mxu0 0.0
    %6224 = vmatpush1.msra.mxu0 0.0
    %6225 = vmatprep.subr.mxu0 0.0
    %6226 = vmatpush1.msra.mxu0 0.0
    %6227 = vmatprep.subr.mxu0 0.0
    %6228 = vmatpush1.msra.mxu0 0.0
    %6229 = vmatprep.subr.mxu0 0.0
    %6230 = vmatpush1.msra.mxu0 0.0
    %6231 = vmatprep.subr.mxu0 0.0
    %6232 = vmatpush1.msra.mxu0 0.0
    %6233 = vmatprep.subr.mxu0 0.0
    %6234 = vmatpush1.msra.mxu0 0.0
    %6235 = vmatprep.subr.mxu0 0.0
    %6236 = vmatpush1.msra.mxu0 0.0
    %6237 = vmatprep.subr.mxu0 0.0
    %6238 = vmatpush1.msra.mxu0 0.0
    %6239 = vmatprep.subr.mxu0 0.0
    %6240 = vmatpush1.msra.mxu0 0.0
    %6241 = vmatprep.subr.mxu0 0.0
    %6242 = vmatpush1.msra.mxu0 0.0
    %6243 = vmatprep.subr.mxu0 0.0
    %6244 = vmatpush1.msra.mxu0 0.0
    %6245 = vmatprep.subr.mxu0 0.0
    %6246 = vmatpush1.msra.mxu0 0.0
    %6247 = vmatprep.subr.mxu0 0.0
    %6248 = vmatpush1.msra.mxu0 0.0
    %6249 = vmatprep.subr.mxu0 0.0
    %6250 = vmatpush1.msra.mxu0 0.0
    %6251 = vmatprep.subr.mxu0 0.0
    %6252 = vmatpush1.msra.mxu0 0.0
    %6253 = vmatprep.subr.mxu0 0.0
    %6254 = vmatpush1.msra.mxu0 0.0
    %6255 = vmatprep.subr.mxu0 0.0
    %6256 = vmatpush1.msra.mxu0 0.0
    %6257 = vmatprep.subr.mxu0 0.0
    %6258 = vmatpush1.msra.mxu0 0.0
    %6259 = vmatprep.subr.mxu0 0.0
    %6260 = vmatpush1.msra.mxu0 0.0
    %6261 = vmatprep.subr.mxu0 0.0
    %6262 = vmatpush1.msra.mxu0 0.0
    %6263 = vmatprep.subr.mxu0 0.0
    %6264 = vmatpush1.msra.mxu0 0.0
    %6265 = vmatprep.subr.mxu0 0.0
    %6266 = vmatpush1.msra.mxu0 0.0
    %6267 = vmatprep.mubr.f32.mxu0 0.0
    %6268 = vmatmul.mubr.f32.gmra.mrb[0].mxu0 %v6131
    %v6269 = vpop.f32.mrb[0].mxu0
    %v6270 = vadd.f32 0.0, %v6269
    %v6271 = vpop.f32.mrb[0].mxu0
    %6272 = vdwg.mxu0
    %v6274 = vrot.slane %v6055, 6
    %v6276 = vadd.f32 %v4905, %v6274
    %v6277 = vmul.f32 %v6276, 0.5
    %v6278 = vtanh.pop %v6277
    %v6279 = vadd.f32 %v6278, 1.0
    %v6280 = vmul.f32 %v6279, 0.5
    %v6282 = vrot.slane %v6125, 6
    %6283 = vrot.lane.b32.xlu0 %v6282, 32
    %v6284 = vpop.permute.xlu0 %6283
    %v6286 = vadd.f32 %v4905, %v6284
    %v6287 = vmul.f32 %v6286, 0.5
    %v6288 = vtanh.pop %v6287
    %v6289 = vadd.f32 %v6288, 1.0
    %v6290 = vmul.f32 %v6289, 0.5
    %6291 = vmatprep.subr.mxu0 0.0
    %6292 = vmatpush1.msra.mxu0 %v5240
    %6293 = vmatprep.subr.mxu0 0.0
    %6294 = vmatpush1.msra.mxu0 %v5242
    %6295 = vmatprep.subr.mxu0 0.0
    %6296 = vmatpush1.msra.mxu0 %v5244
    %6297 = vmatprep.subr.mxu0 0.0
    %6298 = vmatpush1.msra.mxu0 %v5246
    %6299 = vmatprep.subr.mxu0 0.0
    %6300 = vmatpush1.msra.mxu0 0.0
    %6301 = vmatprep.subr.mxu0 0.0
    %6302 = vmatpush1.msra.mxu0 0.0
    %6303 = vmatprep.subr.mxu0 0.0
    %6304 = vmatpush1.msra.mxu0 0.0
    %6305 = vmatprep.subr.mxu0 0.0
    %6306 = vmatpush1.msra.mxu0 0.0
    %6307 = vmatprep.subr.mxu0 0.0
    %6308 = vmatpush1.msra.mxu0 0.0
    %6309 = vmatprep.subr.mxu0 0.0
    %6310 = vmatpush1.msra.mxu0 0.0
    %6311 = vmatprep.subr.mxu0 0.0
    %6312 = vmatpush1.msra.mxu0 0.0
    %6313 = vmatprep.subr.mxu0 0.0
    %6314 = vmatpush1.msra.mxu0 0.0
    %6315 = vmatprep.subr.mxu0 0.0
    %6316 = vmatpush1.msra.mxu0 0.0
    %6317 = vmatprep.subr.mxu0 0.0
    %6318 = vmatpush1.msra.mxu0 0.0
    %6319 = vmatprep.subr.mxu0 0.0
    %6320 = vmatpush1.msra.mxu0 0.0
    %6321 = vmatprep.subr.mxu0 0.0
    %6322 = vmatpush1.msra.mxu0 0.0
    %6323 = vmatprep.subr.mxu0 0.0
    %6324 = vmatpush1.msra.mxu0 0.0
    %6325 = vmatprep.subr.mxu0 0.0
    %6326 = vmatpush1.msra.mxu0 0.0
    %6327 = vmatprep.subr.mxu0 0.0
    %6328 = vmatpush1.msra.mxu0 0.0
    %6329 = vmatprep.subr.mxu0 0.0
    %6330 = vmatpush1.msra.mxu0 0.0
    %6331 = vmatprep.subr.mxu0 0.0
    %6332 = vmatpush1.msra.mxu0 0.0
    %6333 = vmatprep.subr.mxu0 0.0
    %6334 = vmatpush1.msra.mxu0 0.0
    %6335 = vmatprep.subr.mxu0 0.0
    %6336 = vmatpush1.msra.mxu0 0.0
    %6337 = vmatprep.subr.mxu0 0.0
    %6338 = vmatpush1.msra.mxu0 0.0
    %6339 = vmatprep.subr.mxu0 0.0
    %6340 = vmatpush1.msra.mxu0 0.0
    %6341 = vmatprep.subr.mxu0 0.0
    %6342 = vmatpush1.msra.mxu0 0.0
    %6343 = vmatprep.subr.mxu0 0.0
    %6344 = vmatpush1.msra.mxu0 0.0
    %6345 = vmatprep.subr.mxu0 0.0
    %6346 = vmatpush1.msra.mxu0 0.0
    %6347 = vmatprep.subr.mxu0 0.0
    %6348 = vmatpush1.msra.mxu0 0.0
    %6349 = vmatprep.subr.mxu0 0.0
    %6350 = vmatpush1.msra.mxu0 0.0
    %6351 = vmatprep.subr.mxu0 0.0
    %6352 = vmatpush1.msra.mxu0 0.0
    %6353 = vmatprep.subr.mxu0 0.0
    %6354 = vmatpush1.msra.mxu0 0.0
    %6355 = vmatprep.mubr.f32.mxu0 0.0
    %6356 = vmatmul.mubr.f32.gmra.mrb[0].mxu0 %v5986
    %v6357 = vpop.f32.mrb[0].mxu0
    %v6358 = vadd.f32 %v5252, %v6357
    %v6359 = vpop.f32.mrb[0].mxu0
    %6360 = vdwg.mxu0
    %v6362 = vrot.slane %v6358, 6
    %v6364 = vmul.f32 %v6280, %v6362
    %6366 = vrot.lane.b32.xlu0 %v6364, 64
    %v6367 = vpop.permute.xlu0 %6366
    %v6369 = vadd.f32 %v4740, %v6367
    %v6370 = vtanh.pop %v6369
    %v6371 = vsub.f32 1.0, %v6290
    %6373 = vrot.lane.b32.xlu0 %v6370, 96
    %v6374 = vpop.permute.xlu0 %6373
    %v6376 = vmul.f32 %v6371, %v6374
    %v6377 = vrot.slane %v5864, 7
    %v6379 = vmul.f32 %v6290, %v6377
    %v6380 = vadd.f32 %v6376, %v6379
    %v6382 = vrot.slane %v6200, 3
    %v6384 = vadd.f32 %v4912, %v6382
    %v6385 = vmul.f32 %v6384, 0.5
    %v6386 = vtanh.pop %v6385
    %v6387 = vadd.f32 %v6386, 1.0
    %v6388 = vmul.f32 %v6387, 0.5
    %v6390 = vrot.slane %v6270, 3
    %6391 = vrot.lane.b32.xlu0 %v6390, 32
    %v6392 = vpop.permute.xlu0 %6391
    %v6394 = vadd.f32 %v4912, %v6392
    %v6395 = vmul.f32 %v6394, 0.5
    %v6396 = vtanh.pop %v6395
    %v6397 = vadd.f32 %v6396, 1.0
    %v6398 = vmul.f32 %v6397, 0.5
    %6399 = vmatprep.subr.mxu0 0.0
    %6400 = vmatpush1.msra.mxu0 %v5358
    %6401 = vmatprep.subr.mxu0 0.0
    %6402 = vmatpush1.msra.mxu0 %v5360
    %6403 = vmatprep.subr.mxu0 0.0
    %6404 = vmatpush1.msra.mxu0 %v5362
    %6405 = vmatprep.subr.mxu0 0.0
    %6406 = vmatpush1.msra.mxu0 %v5364
    %6407 = vmatprep.subr.mxu0 0.0
    %6408 = vmatpush1.msra.mxu0 0.0
    %6409 = vmatprep.subr.mxu0 0.0
    %6410 = vmatpush1.msra.mxu0 0.0
    %6411 = vmatprep.subr.mxu0 0.0
    %6412 = vmatpush1.msra.mxu0 0.0
    %6413 = vmatprep.subr.mxu0 0.0
    %6414 = vmatpush1.msra.mxu0 0.0
    %6415 = vmatprep.subr.mxu0 0.0
    %6416 = vmatpush1.msra.mxu0 0.0
    %6417 = vmatprep.subr.mxu0 0.0
    %6418 = vmatpush1.msra.mxu0 0.0
    %6419 = vmatprep.subr.mxu0 0.0
    %6420 = vmatpush1.msra.mxu0 0.0
    %6421 = vmatprep.subr.mxu0 0.0
    %6422 = vmatpush1.msra.mxu0 0.0
    %6423 = vmatprep.subr.mxu0 0.0
    %6424 = vmatpush1.msra.mxu0 0.0
    %6425 = vmatprep.subr.mxu0 0.0
    %6426 = vmatpush1.msra.mxu0 0.0
    %6427 = vmatprep.subr.mxu0 0.0
    %6428 = vmatpush1.msra.mxu0 0.0
    %6429 = vmatprep.subr.mxu0 0.0
    %6430 = vmatpush1.msra.mxu0 0.0
    %6431 = vmatprep.subr.mxu0 0.0
    %6432 = vmatpush1.msra.mxu0 0.0
    %6433 = vmatprep.subr.mxu0 0.0
    %6434 = vmatpush1.msra.mxu0 0.0
    %6435 = vmatprep.subr.mxu0 0.0
    %6436 = vmatpush1.msra.mxu0 0.0
    %6437 = vmatprep.subr.mxu0 0.0
    %6438 = vmatpush1.msra.mxu0 0.0
    %6439 = vmatprep.subr.mxu0 0.0
    %6440 = vmatpush1.msra.mxu0 0.0
    %6441 = vmatprep.subr.mxu0 0.0
    %6442 = vmatpush1.msra.mxu0 0.0
    %6443 = vmatprep.subr.mxu0 0.0
    %6444 = vmatpush1.msra.mxu0 0.0
    %6445 = vmatprep.subr.mxu0 0.0
    %6446 = vmatpush1.msra.mxu0 0.0
    %6447 = vmatprep.subr.mxu0 0.0
    %6448 = vmatpush1.msra.mxu0 0.0
    %6449 = vmatprep.subr.mxu0 0.0
    %6450 = vmatpush1.msra.mxu0 0.0
    %6451 = vmatprep.subr.mxu0 0.0
    %6452 = vmatpush1.msra.mxu0 0.0
    %6453 = vmatprep.subr.mxu0 0.0
    %6454 = vmatpush1.msra.mxu0 0.0
    %6455 = vmatprep.subr.mxu0 0.0
    %6456 = vmatpush1.msra.mxu0 0.0
    %6457 = vmatprep.subr.mxu0 0.0
    %6458 = vmatpush1.msra.mxu0 0.0
    %6459 = vmatprep.subr.mxu0 0.0
    %6460 = vmatpush1.msra.mxu0 0.0
    %6461 = vmatprep.subr.mxu0 0.0
    %6462 = vmatpush1.msra.mxu0 0.0
    %6463 = vmatprep.mubr.f32.mxu0 0.0
    %6464 = vmatmul.mubr.f32.gmra.mrb[0].mxu0 %v6131
    %v6465 = vpop.f32.mrb[0].mxu0
    %v6466 = vadd.f32 %v5370, %v6465
    %v6467 = vpop.f32.mrb[0].mxu0
    %6468 = vdwg.mxu0
    %v6470 = vrot.slane %v6466, 3
    %v6472 = vmul.f32 %v6388, %v6470
    %6474 = vrot.lane.b32.xlu0 %v6472, 64
    %v6475 = vpop.permute.xlu0 %6474
    %v6477 = vadd.f32 %v4888, %v6475
    %v6478 = vtanh.pop %v6477
    %v6479 = vsub.f32 1.0, %v6398
    %6481 = vrot.lane.b32.xlu0 %v6478, 96
    %v6482 = vpop.permute.xlu0 %6481
    %v6484 = vmul.f32 %v6479, %v6482
    %v6485 = vrot.slane %v5972, 1
    %v6487 = vmul.f32 %v6398, %v6485
    %v6488 = vadd.f32 %v6484, %v6487
    %6490 = vrot.lane.b32.xlu0 %v6380, 96
    %v6491 = vpop.permute.xlu0 %6490
    %6493 = vst.msk [vmem:[#allocation4] sm:$0x4] %vm1987, %v6491
    %6495 = vrot.lane.b32.xlu0 %v6488, 96
    %v6496 = vpop.permute.xlu0 %6495
    %6498 = vst.msk [vmem:[#allocation5] sm:$0x20] %vm1993, %v6496
    %v6499 = vrot.slane %v6380, 2
    %6500 = vrot.lane.b32.xlu0 %v6499, 96
    %v6501 = vpop.permute.xlu0 %6500
    %v6502 = vsel %vm399, %v6501, 0
    %6504 = vmatprep.subr.mxu0 0.0
    %6505 = vmatpush1.msra.mxu0 %v4889
    %6506 = vmatprep.subr.mxu0 0.0
    %6507 = vmatpush1.msra.mxu0 %v4890
    %6508 = vmatprep.subr.mxu0 0.0
    %6509 = vmatpush1.msra.mxu0 %v4891
    %6510 = vmatprep.subr.mxu0 0.0
    %6511 = vmatpush1.msra.mxu0 %v4892
    %6512 = vmatprep.subr.mxu0 0.0
    %6513 = vmatpush1.msra.mxu0 0.0
    %6514 = vmatprep.subr.mxu0 0.0
    %6515 = vmatpush1.msra.mxu0 0.0
    %6516 = vmatprep.subr.mxu0 0.0
    %6517 = vmatpush1.msra.mxu0 0.0
    %6518 = vmatprep.subr.mxu0 0.0
    %6519 = vmatpush1.msra.mxu0 0.0
    %6520 = vmatprep.subr.mxu0 0.0
    %6521 = vmatpush1.msra.mxu0 0.0
    %6522 = vmatprep.subr.mxu0 0.0
    %6523 = vmatpush1.msra.mxu0 0.0
    %6524 = vmatprep.subr.mxu0 0.0
    %6525 = vmatpush1.msra.mxu0 0.0
    %6526 = vmatprep.subr.mxu0 0.0
    %6527 = vmatpush1.msra.mxu0 0.0
    %6528 = vmatprep.subr.mxu0 0.0
    %6529 = vmatpush1.msra.mxu0 0.0
    %6530 = vmatprep.subr.mxu0 0.0
    %6531 = vmatpush1.msra.mxu0 0.0
    %6532 = vmatprep.subr.mxu0 0.0
    %6533 = vmatpush1.msra.mxu0 0.0
    %6534 = vmatprep.subr.mxu0 0.0
    %6535 = vmatpush1.msra.mxu0 0.0
    %6536 = vmatprep.subr.mxu0 0.0
    %6537 = vmatpush1.msra.mxu0 0.0
    %6538 = vmatprep.subr.mxu0 0.0
    %6539 = vmatpush1.msra.mxu0 0.0
    %6540 = vmatprep.subr.mxu0 0.0
    %6541 = vmatpush1.msra.mxu0 0.0
    %6542 = vmatprep.subr.mxu0 0.0
    %6543 = vmatpush1.msra.mxu0 0.0
    %6544 = vmatprep.subr.mxu0 0.0
    %6545 = vmatpush1.msra.mxu0 0.0
    %6546 = vmatprep.subr.mxu0 0.0
    %6547 = vmatpush1.msra.mxu0 0.0
    %6548 = vmatprep.subr.mxu0 0.0
    %6549 = vmatpush1.msra.mxu0 0.0
    %6550 = vmatprep.subr.mxu0 0.0
    %6551 = vmatpush1.msra.mxu0 0.0
    %6552 = vmatprep.subr.mxu0 0.0
    %6553 = vmatpush1.msra.mxu0 0.0
    %6554 = vmatprep.subr.mxu0 0.0
    %6555 = vmatpush1.msra.mxu0 0.0
    %6556 = vmatprep.subr.mxu0 0.0
    %6557 = vmatpush1.msra.mxu0 0.0
    %6558 = vmatprep.subr.mxu0 0.0
    %6559 = vmatpush1.msra.mxu0 0.0
    %6560 = vmatprep.subr.mxu0 0.0
    %6561 = vmatpush1.msra.mxu0 0.0
    %6562 = vmatprep.subr.mxu0 0.0
    %6563 = vmatpush1.msra.mxu0 0.0
    %6564 = vmatprep.subr.mxu0 0.0
    %6565 = vmatpush1.msra.mxu0 0.0
    %6566 = vmatprep.subr.mxu0 0.0
    %6567 = vmatpush1.msra.mxu0 0.0
    %6568 = vmatprep.mubr.f32.mxu0 0.0
    %6569 = vmatmul.mubr.f32.gmra.mrb[0].mxu0 %v6502
    %v6570 = vpop.f32.mrb[0].mxu0
    %v6571 = vadd.f32 0.0, %v6570
    %v6572 = vpop.f32.mrb[0].mxu0
    %6573 = vdwg.mxu0
    %6574 = vmatprep.subr.mxu0 0.0
    %6575 = vmatpush1.msra.mxu0 %v4988
    %6576 = vmatprep.subr.mxu0 0.0
    %6577 = vmatpush1.msra.mxu0 %v4990
    %6578 = vmatprep.subr.mxu0 0.0
    %6579 = vmatpush1.msra.mxu0 %v4992
    %6580 = vmatprep.subr.mxu0 0.0
    %6581 = vmatpush1.msra.mxu0 %v4994
    %6582 = vmatprep.subr.mxu0 0.0
    %6583 = vmatpush1.msra.mxu0 0.0
    %6584 = vmatprep.subr.mxu0 0.0
    %6585 = vmatpush1.msra.mxu0 0.0
    %6586 = vmatprep.subr.mxu0 0.0
    %6587 = vmatpush1.msra.mxu0 0.0
    %6588 = vmatprep.subr.mxu0 0.0
    %6589 = vmatpush1.msra.mxu0 0.0
    %6590 = vmatprep.subr.mxu0 0.0
    %6591 = vmatpush1.msra.mxu0 0.0
    %6592 = vmatprep.subr.mxu0 0.0
    %6593 = vmatpush1.msra.mxu0 0.0
    %6594 = vmatprep.subr.mxu0 0.0
    %6595 = vmatpush1.msra.mxu0 0.0
    %6596 = vmatprep.subr.mxu0 0.0
    %6597 = vmatpush1.msra.mxu0 0.0
    %6598 = vmatprep.subr.mxu0 0.0
    %6599 = vmatpush1.msra.mxu0 0.0
    %6600 = vmatprep.subr.mxu0 0.0
    %6601 = vmatpush1.msra.mxu0 0.0
    %6602 = vmatprep.subr.mxu0 0.0
    %6603 = vmatpush1.msra.mxu0 0.0
    %6604 = vmatprep.subr.mxu0 0.0
    %6605 = vmatpush1.msra.mxu0 0.0
    %6606 = vmatprep.subr.mxu0 0.0
    %6607 = vmatpush1.msra.mxu0 0.0
    %6608 = vmatprep.subr.mxu0 0.0
    %6609 = vmatpush1.msra.mxu0 0.0
    %6610 = vmatprep.subr.mxu0 0.0
    %6611 = vmatpush1.msra.mxu0 0.0
    %6612 = vmatprep.subr.mxu0 0.0
    %6613 = vmatpush1.msra.mxu0 0.0
    %6614 = vmatprep.subr.mxu0 0.0
    %6615 = vmatpush1.msra.mxu0 0.0
    %6616 = vmatprep.subr.mxu0 0.0
    %6617 = vmatpush1.msra.mxu0 0.0
    %6618 = vmatprep.subr.mxu0 0.0
    %6619 = vmatpush1.msra.mxu0 0.0
    %6620 = vmatprep.subr.mxu0 0.0
    %6621 = vmatpush1.msra.mxu0 0.0
    %6622 = vmatprep.subr.mxu0 0.0
    %6623 = vmatpush1.msra.mxu0 0.0
    %6624 = vmatprep.subr.mxu0 0.0
    %6625 = vmatpush1.msra.mxu0 0.0
    %6626 = vmatprep.subr.mxu0 0.0
    %6627 = vmatpush1.msra.mxu0 0.0
    %6628 = vmatprep.subr.mxu0 0.0
    %6629 = vmatpush1.msra.mxu0 0.0
    %6630 = vmatprep.subr.mxu0 0.0
    %6631 = vmatpush1.msra.mxu0 0.0
    %6632 = vmatprep.subr.mxu0 0.0
    %6633 = vmatpush1.msra.mxu0 0.0
    %6634 = vmatprep.subr.mxu0 0.0
    %6635 = vmatpush1.msra.mxu0 0.0
    %6636 = vmatprep.subr.mxu0 0.0
    %6637 = vmatpush1.msra.mxu0 0.0
    %6638 = vmatprep.mubr.f32.mxu0 0.0
    %6639 = vmatmul.mubr.f32.gmra.mrb[0].mxu0 %v6502
    %v6640 = vpop.f32.mrb[0].mxu0
    %v6641 = vadd.f32 0.0, %v6640
    %v6642 = vpop.f32.mrb[0].mxu0
    %6643 = vdwg.mxu0
    %v6644 = vrot.slane %v6488, 5
    %6645 = vrot.lane.b32.xlu0 %v6644, 96
    %v6646 = vpop.permute.xlu0 %6645
    %v6647 = vsel %vm399, %v6646, 0
    %6649 = vmatprep.subr.mxu0 0.0
    %6650 = vmatpush1.msra.mxu0 %v4894
    %6651 = vmatprep.subr.mxu0 0.0
    %6652 = vmatpush1.msra.mxu0 %v4895
    %6653 = vmatprep.subr.mxu0 0.0
    %6654 = vmatpush1.msra.mxu0 %v4896
    %6655 = vmatprep.subr.mxu0 0.0
    %6656 = vmatpush1.msra.mxu0 %v4897
    %6657 = vmatprep.subr.mxu0 0.0
    %6658 = vmatpush1.msra.mxu0 0.0
    %6659 = vmatprep.subr.mxu0 0.0
    %6660 = vmatpush1.msra.mxu0 0.0
    %6661 = vmatprep.subr.mxu0 0.0
    %6662 = vmatpush1.msra.mxu0 0.0
    %6663 = vmatprep.subr.mxu0 0.0
    %6664 = vmatpush1.msra.mxu0 0.0
    %6665 = vmatprep.subr.mxu0 0.0
    %6666 = vmatpush1.msra.mxu0 0.0
    %6667 = vmatprep.subr.mxu0 0.0
    %6668 = vmatpush1.msra.mxu0 0.0
    %6669 = vmatprep.subr.mxu0 0.0
    %6670 = vmatpush1.msra.mxu0 0.0
    %6671 = vmatprep.subr.mxu0 0.0
    %6672 = vmatpush1.msra.mxu0 0.0
    %6673 = vmatprep.subr.mxu0 0.0
    %6674 = vmatpush1.msra.mxu0 0.0
    %6675 = vmatprep.subr.mxu0 0.0
    %6676 = vmatpush1.msra.mxu0 0.0
    %6677 = vmatprep.subr.mxu0 0.0
    %6678 = vmatpush1.msra.mxu0 0.0
    %6679 = vmatprep.subr.mxu0 0.0
    %6680 = vmatpush1.msra.mxu0 0.0
    %6681 = vmatprep.subr.mxu0 0.0
    %6682 = vmatpush1.msra.mxu0 0.0
    %6683 = vmatprep.subr.mxu0 0.0
    %6684 = vmatpush1.msra.mxu0 0.0
    %6685 = vmatprep.subr.mxu0 0.0
    %6686 = vmatpush1.msra.mxu0 0.0
    %6687 = vmatprep.subr.mxu0 0.0
    %6688 = vmatpush1.msra.mxu0 0.0
    %6689 = vmatprep.subr.mxu0 0.0
    %6690 = vmatpush1.msra.mxu0 0.0
    %6691 = vmatprep.subr.mxu0 0.0
    %6692 = vmatpush1.msra.mxu0 0.0
    %6693 = vmatprep.subr.mxu0 0.0
    %6694 = vmatpush1.msra.mxu0 0.0
    %6695 = vmatprep.subr.mxu0 0.0
    %6696 = vmatpush1.msra.mxu0 0.0
    %6697 = vmatprep.subr.mxu0 0.0
    %6698 = vmatpush1.msra.mxu0 0.0
    %6699 = vmatprep.subr.mxu0 0.0
    %6700 = vmatpush1.msra.mxu0 0.0
    %6701 = vmatprep.subr.mxu0 0.0
    %6702 = vmatpush1.msra.mxu0 0.0
    %6703 = vmatprep.subr.mxu0 0.0
    %6704 = vmatpush1.msra.mxu0 0.0
    %6705 = vmatprep.subr.mxu0 0.0
    %6706 = vmatpush1.msra.mxu0 0.0
    %6707 = vmatprep.subr.mxu0 0.0
    %6708 = vmatpush1.msra.mxu0 0.0
    %6709 = vmatprep.subr.mxu0 0.0
    %6710 = vmatpush1.msra.mxu0 0.0
    %6711 = vmatprep.subr.mxu0 0.0
    %6712 = vmatpush1.msra.mxu0 0.0
    %6713 = vmatprep.mubr.f32.mxu0 0.0
    %6714 = vmatmul.mubr.f32.gmra.mrb[0].mxu0 %v6647
    %v6715 = vpop.f32.mrb[0].mxu0
    %v6716 = vadd.f32 0.0, %v6715
    %v6717 = vpop.f32.mrb[0].mxu0
    %6718 = vdwg.mxu0
    %6719 = vmatprep.subr.mxu0 0.0
    %6720 = vmatpush1.msra.mxu0 %v5144
    %6721 = vmatprep.subr.mxu0 0.0
    %6722 = vmatpush1.msra.mxu0 %v5146
    %6723 = vmatprep.subr.mxu0 0.0
    %6724 = vmatpush1.msra.mxu0 %v5148
    %6725 = vmatprep.subr.mxu0 0.0
    %6726 = vmatpush1.msra.mxu0 %v5150
    %6727 = vmatprep.subr.mxu0 0.0
    %6728 = vmatpush1.msra.mxu0 0.0
    %6729 = vmatprep.subr.mxu0 0.0
    %6730 = vmatpush1.msra.mxu0 0.0
    %6731 = vmatprep.subr.mxu0 0.0
    %6732 = vmatpush1.msra.mxu0 0.0
    %6733 = vmatprep.subr.mxu0 0.0
    %6734 = vmatpush1.msra.mxu0 0.0
    %6735 = vmatprep.subr.mxu0 0.0
    %6736 = vmatpush1.msra.mxu0 0.0
    %6737 = vmatprep.subr.mxu0 0.0
    %6738 = vmatpush1.msra.mxu0 0.0
    %6739 = vmatprep.subr.mxu0 0.0
    %6740 = vmatpush1.msra.mxu0 0.0
    %6741 = vmatprep.subr.mxu0 0.0
    %6742 = vmatpush1.msra.mxu0 0.0
    %6743 = vmatprep.subr.mxu0 0.0
    %6744 = vmatpush1.msra.mxu0 0.0
    %6745 = vmatprep.subr.mxu0 0.0
    %6746 = vmatpush1.msra.mxu0 0.0
    %6747 = vmatprep.subr.mxu0 0.0
    %6748 = vmatpush1.msra.mxu0 0.0
    %6749 = vmatprep.subr.mxu0 0.0
    %6750 = vmatpush1.msra.mxu0 0.0
    %6751 = vmatprep.subr.mxu0 0.0
    %6752 = vmatpush1.msra.mxu0 0.0
    %6753 = vmatprep.subr.mxu0 0.0
    %6754 = vmatpush1.msra.mxu0 0.0
    %6755 = vmatprep.subr.mxu0 0.0
    %6756 = vmatpush1.msra.mxu0 0.0
    %6757 = vmatprep.subr.mxu0 0.0
    %6758 = vmatpush1.msra.mxu0 0.0
    %6759 = vmatprep.subr.mxu0 0.0
    %6760 = vmatpush1.msra.mxu0 0.0
    %6761 = vmatprep.subr.mxu0 0.0
    %6762 = vmatpush1.msra.mxu0 0.0
    %6763 = vmatprep.subr.mxu0 0.0
    %6764 = vmatpush1.msra.mxu0 0.0
    %6765 = vmatprep.subr.mxu0 0.0
    %6766 = vmatpush1.msra.mxu0 0.0
    %6767 = vmatprep.subr.mxu0 0.0
    %6768 = vmatpush1.msra.mxu0 0.0
    %6769 = vmatprep.subr.mxu0 0.0
    %6770 = vmatpush1.msra.mxu0 0.0
    %6771 = vmatprep.subr.mxu0 0.0
    %6772 = vmatpush1.msra.mxu0 0.0
    %6773 = vmatprep.subr.mxu0 0.0
    %6774 = vmatpush1.msra.mxu0 0.0
    %6775 = vmatprep.subr.mxu0 0.0
    %6776 = vmatpush1.msra.mxu0 0.0
    %6777 = vmatprep.subr.mxu0 0.0
    %6778 = vmatpush1.msra.mxu0 0.0
    %6779 = vmatprep.subr.mxu0 0.0
    %6780 = vmatpush1.msra.mxu0 0.0
    %6781 = vmatprep.subr.mxu0 0.0
    %6782 = vmatpush1.msra.mxu0 0.0
    %6783 = vmatprep.mubr.f32.mxu0 0.0
    %6784 = vmatmul.mubr.f32.gmra.mrb[0].mxu0 %v6647
    %v6785 = vpop.f32.mrb[0].mxu0
    %v6786 = vadd.f32 0.0, %v6785
    %v6787 = vpop.f32.mrb[0].mxu0
    %6788 = vdwg.mxu0
    %v6790 = vrot.slane %v6571, 5
    %v6792 = vadd.f32 %v4905, %v6790
    %v6793 = vmul.f32 %v6792, 0.5
    %v6794 = vtanh.pop %v6793
    %v6795 = vadd.f32 %v6794, 1.0
    %v6796 = vmul.f32 %v6795, 0.5
    %v6798 = vrot.slane %v6641, 5
    %6799 = vrot.lane.b32.xlu0 %v6798, 32
    %v6800 = vpop.permute.xlu0 %6799
    %v6802 = vadd.f32 %v4905, %v6800
    %v6803 = vmul.f32 %v6802, 0.5
    %v6804 = vtanh.pop %v6803
    %v6805 = vadd.f32 %v6804, 1.0
    %v6806 = vmul.f32 %v6805, 0.5
    %6807 = vmatprep.subr.mxu0 0.0
    %6808 = vmatpush1.msra.mxu0 %v5240
    %6809 = vmatprep.subr.mxu0 0.0
    %6810 = vmatpush1.msra.mxu0 %v5242
    %6811 = vmatprep.subr.mxu0 0.0
    %6812 = vmatpush1.msra.mxu0 %v5244
    %6813 = vmatprep.subr.mxu0 0.0
    %6814 = vmatpush1.msra.mxu0 %v5246
    %6815 = vmatprep.subr.mxu0 0.0
    %6816 = vmatpush1.msra.mxu0 0.0
    %6817 = vmatprep.subr.mxu0 0.0
    %6818 = vmatpush1.msra.mxu0 0.0
    %6819 = vmatprep.subr.mxu0 0.0
    %6820 = vmatpush1.msra.mxu0 0.0
    %6821 = vmatprep.subr.mxu0 0.0
    %6822 = vmatpush1.msra.mxu0 0.0
    %6823 = vmatprep.subr.mxu0 0.0
    %6824 = vmatpush1.msra.mxu0 0.0
    %6825 = vmatprep.subr.mxu0 0.0
    %6826 = vmatpush1.msra.mxu0 0.0
    %6827 = vmatprep.subr.mxu0 0.0
    %6828 = vmatpush1.msra.mxu0 0.0
    %6829 = vmatprep.subr.mxu0 0.0
    %6830 = vmatpush1.msra.mxu0 0.0
    %6831 = vmatprep.subr.mxu0 0.0
    %6832 = vmatpush1.msra.mxu0 0.0
    %6833 = vmatprep.subr.mxu0 0.0
    %6834 = vmatpush1.msra.mxu0 0.0
    %6835 = vmatprep.subr.mxu0 0.0
    %6836 = vmatpush1.msra.mxu0 0.0
    %6837 = vmatprep.subr.mxu0 0.0
    %6838 = vmatpush1.msra.mxu0 0.0
    %6839 = vmatprep.subr.mxu0 0.0
    %6840 = vmatpush1.msra.mxu0 0.0
    %6841 = vmatprep.subr.mxu0 0.0
    %6842 = vmatpush1.msra.mxu0 0.0
    %6843 = vmatprep.subr.mxu0 0.0
    %6844 = vmatpush1.msra.mxu0 0.0
    %6845 = vmatprep.subr.mxu0 0.0
    %6846 = vmatpush1.msra.mxu0 0.0
    %6847 = vmatprep.subr.mxu0 0.0
    %6848 = vmatpush1.msra.mxu0 0.0
    %6849 = vmatprep.subr.mxu0 0.0
    %6850 = vmatpush1.msra.mxu0 0.0
    %6851 = vmatprep.subr.mxu0 0.0
    %6852 = vmatpush1.msra.mxu0 0.0
    %6853 = vmatprep.subr.mxu0 0.0
    %6854 = vmatpush1.msra.mxu0 0.0
    %6855 = vmatprep.subr.mxu0 0.0
    %6856 = vmatpush1.msra.mxu0 0.0
    %6857 = vmatprep.subr.mxu0 0.0
    %6858 = vmatpush1.msra.mxu0 0.0
    %6859 = vmatprep.subr.mxu0 0.0
    %6860 = vmatpush1.msra.mxu0 0.0
    %6861 = vmatprep.subr.mxu0 0.0
    %6862 = vmatpush1.msra.mxu0 0.0
    %6863 = vmatprep.subr.mxu0 0.0
    %6864 = vmatpush1.msra.mxu0 0.0
    %6865 = vmatprep.subr.mxu0 0.0
    %6866 = vmatpush1.msra.mxu0 0.0
    %6867 = vmatprep.subr.mxu0 0.0
    %6868 = vmatpush1.msra.mxu0 0.0
    %6869 = vmatprep.subr.mxu0 0.0
    %6870 = vmatpush1.msra.mxu0 0.0
    %6871 = vmatprep.mubr.f32.mxu0 0.0
    %6872 = vmatmul.mubr.f32.gmra.mrb[0].mxu0 %v6502
    %v6873 = vpop.f32.mrb[0].mxu0
    %v6874 = vadd.f32 %v5252, %v6873
    %v6875 = vpop.f32.mrb[0].mxu0
    %6876 = vdwg.mxu0
    %v6878 = vrot.slane %v6874, 5
    %v6880 = vmul.f32 %v6796, %v6878
    %6882 = vrot.lane.b32.xlu0 %v6880, 64
    %v6883 = vpop.permute.xlu0 %6882
    %v6885 = vadd.f32 %v4740, %v6883
    %v6886 = vtanh.pop %v6885
    %v6887 = vsub.f32 1.0, %v6806
    %6889 = vrot.lane.b32.xlu0 %v6886, 96
    %v6890 = vpop.permute.xlu0 %6889
    %v6892 = vmul.f32 %v6887, %v6890
    %v6893 = vrot.slane %v6380, 7
    %v6895 = vmul.f32 %v6806, %v6893
    %v6896 = vadd.f32 %v6892, %v6895
    %v6898 = vrot.slane %v6716, 4
    %v6900 = vadd.f32 %v4912, %v6898
    %v6901 = vmul.f32 %v6900, 0.5
    %v6902 = vtanh.pop %v6901
    %v6903 = vadd.f32 %v6902, 1.0
    %v6904 = vmul.f32 %v6903, 0.5
    %v6906 = vrot.slane %v6786, 4
    %6907 = vrot.lane.b32.xlu0 %v6906, 32
    %v6908 = vpop.permute.xlu0 %6907
    %v6910 = vadd.f32 %v4912, %v6908
    %v6911 = vmul.f32 %v6910, 0.5
    %v6912 = vtanh.pop %v6911
    %v6913 = vadd.f32 %v6912, 1.0
    %v6914 = vmul.f32 %v6913, 0.5
    %6915 = vmatprep.subr.mxu0 0.0
    %6916 = vmatpush1.msra.mxu0 %v5358
    %6917 = vmatprep.subr.mxu0 0.0
    %6918 = vmatpush1.msra.mxu0 %v5360
    %6919 = vmatprep.subr.mxu0 0.0
    %6920 = vmatpush1.msra.mxu0 %v5362
    %6921 = vmatprep.subr.mxu0 0.0
    %6922 = vmatpush1.msra.mxu0 %v5364
    %6923 = vmatprep.subr.mxu0 0.0
    %6924 = vmatpush1.msra.mxu0 0.0
    %6925 = vmatprep.subr.mxu0 0.0
    %6926 = vmatpush1.msra.mxu0 0.0
    %6927 = vmatprep.subr.mxu0 0.0
    %6928 = vmatpush1.msra.mxu0 0.0
    %6929 = vmatprep.subr.mxu0 0.0
    %6930 = vmatpush1.msra.mxu0 0.0
    %6931 = vmatprep.subr.mxu0 0.0
    %6932 = vmatpush1.msra.mxu0 0.0
    %6933 = vmatprep.subr.mxu0 0.0
    %6934 = vmatpush1.msra.mxu0 0.0
    %6935 = vmatprep.subr.mxu0 0.0
    %6936 = vmatpush1.msra.mxu0 0.0
    %6937 = vmatprep.subr.mxu0 0.0
    %6938 = vmatpush1.msra.mxu0 0.0
    %6939 = vmatprep.subr.mxu0 0.0
    %6940 = vmatpush1.msra.mxu0 0.0
    %6941 = vmatprep.subr.mxu0 0.0
    %6942 = vmatpush1.msra.mxu0 0.0
    %6943 = vmatprep.subr.mxu0 0.0
    %6944 = vmatpush1.msra.mxu0 0.0
    %6945 = vmatprep.subr.mxu0 0.0
    %6946 = vmatpush1.msra.mxu0 0.0
    %6947 = vmatprep.subr.mxu0 0.0
    %6948 = vmatpush1.msra.mxu0 0.0
    %6949 = vmatprep.subr.mxu0 0.0
    %6950 = vmatpush1.msra.mxu0 0.0
    %6951 = vmatprep.subr.mxu0 0.0
    %6952 = vmatpush1.msra.mxu0 0.0
    %6953 = vmatprep.subr.mxu0 0.0
    %6954 = vmatpush1.msra.mxu0 0.0
    %6955 = vmatprep.subr.mxu0 0.0
    %6956 = vmatpush1.msra.mxu0 0.0
    %6957 = vmatprep.subr.mxu0 0.0
    %6958 = vmatpush1.msra.mxu0 0.0
    %6959 = vmatprep.subr.mxu0 0.0
    %6960 = vmatpush1.msra.mxu0 0.0
    %6961 = vmatprep.subr.mxu0 0.0
    %6962 = vmatpush1.msra.mxu0 0.0
    %6963 = vmatprep.subr.mxu0 0.0
    %6964 = vmatpush1.msra.mxu0 0.0
    %6965 = vmatprep.subr.mxu0 0.0
    %6966 = vmatpush1.msra.mxu0 0.0
    %6967 = vmatprep.subr.mxu0 0.0
    %6968 = vmatpush1.msra.mxu0 0.0
    %6969 = vmatprep.subr.mxu0 0.0
    %6970 = vmatpush1.msra.mxu0 0.0
    %6971 = vmatprep.subr.mxu0 0.0
    %6972 = vmatpush1.msra.mxu0 0.0
    %6973 = vmatprep.subr.mxu0 0.0
    %6974 = vmatpush1.msra.mxu0 0.0
    %6975 = vmatprep.subr.mxu0 0.0
    %6976 = vmatpush1.msra.mxu0 0.0
    %6977 = vmatprep.subr.mxu0 0.0
    %6978 = vmatpush1.msra.mxu0 0.0
    %6979 = vmatprep.mubr.f32.mxu0 0.0
    %6980 = vmatmul.mubr.f32.gmra.mrb[0].mxu0 %v6647
    %v6981 = vpop.f32.mrb[0].mxu0
    %v6982 = vadd.f32 %v5370, %v6981
    %v6983 = vpop.f32.mrb[0].mxu0
    %6984 = vdwg.mxu0
    %v6986 = vrot.slane %v6982, 4
    %v6988 = vmul.f32 %v6904, %v6986
    %6990 = vrot.lane.b32.xlu0 %v6988, 64
    %v6991 = vpop.permute.xlu0 %6990
    %v6993 = vadd.f32 %v4888, %v6991
    %v6994 = vtanh.pop %v6993
    %v6995 = vsub.f32 1.0, %v6914
    %6997 = vrot.lane.b32.xlu0 %v6994, 96
    %v6998 = vpop.permute.xlu0 %6997
    %v7000 = vmul.f32 %v6995, %v6998
    %v7001 = vrot.slane %v6488, 1
    %v7003 = vmul.f32 %v6914, %v7001
    %v7004 = vadd.f32 %v7000, %v7003
    %7006 = vrot.lane.b32.xlu0 %v6896, 96
    %v7007 = vpop.permute.xlu0 %7006
    %7009 = vst.msk [vmem:[#allocation4] sm:$0x8] %vm2505, %v7007
    %7011 = vrot.lane.b32.xlu0 %v7004, 96
    %v7012 = vpop.permute.xlu0 %7011
    %7014 = vst.msk [vmem:[#allocation5] sm:$0x10] %vm2511, %v7012
    %v7015 = vrot.slane %v6896, 3
    %7016 = vrot.lane.b32.xlu0 %v7015, 96
    %v7017 = vpop.permute.xlu0 %7016
    %v7018 = vsel %vm399, %v7017, 0
    %7020 = vmatprep.subr.mxu0 0.0
    %7021 = vmatpush1.msra.mxu0 %v4889
    %7022 = vmatprep.subr.mxu0 0.0
    %7023 = vmatpush1.msra.mxu0 %v4890
    %7024 = vmatprep.subr.mxu0 0.0
    %7025 = vmatpush1.msra.mxu0 %v4891
    %7026 = vmatprep.subr.mxu0 0.0
    %7027 = vmatpush1.msra.mxu0 %v4892
    %7028 = vmatprep.subr.mxu0 0.0
    %7029 = vmatpush1.msra.mxu0 0.0
    %7030 = vmatprep.subr.mxu0 0.0
    %7031 = vmatpush1.msra.mxu0 0.0
    %7032 = vmatprep.subr.mxu0 0.0
    %7033 = vmatpush1.msra.mxu0 0.0
    %7034 = vmatprep.subr.mxu0 0.0
    %7035 = vmatpush1.msra.mxu0 0.0
    %7036 = vmatprep.subr.mxu0 0.0
    %7037 = vmatpush1.msra.mxu0 0.0
    %7038 = vmatprep.subr.mxu0 0.0
    %7039 = vmatpush1.msra.mxu0 0.0
    %7040 = vmatprep.subr.mxu0 0.0
    %7041 = vmatpush1.msra.mxu0 0.0
    %7042 = vmatprep.subr.mxu0 0.0
    %7043 = vmatpush1.msra.mxu0 0.0
    %7044 = vmatprep.subr.mxu0 0.0
    %7045 = vmatpush1.msra.mxu0 0.0
    %7046 = vmatprep.subr.mxu0 0.0
    %7047 = vmatpush1.msra.mxu0 0.0
    %7048 = vmatprep.subr.mxu0 0.0
    %7049 = vmatpush1.msra.mxu0 0.0
    %7050 = vmatprep.subr.mxu0 0.0
    %7051 = vmatpush1.msra.mxu0 0.0
    %7052 = vmatprep.subr.mxu0 0.0
    %7053 = vmatpush1.msra.mxu0 0.0
    %7054 = vmatprep.subr.mxu0 0.0
    %7055 = vmatpush1.msra.mxu0 0.0
    %7056 = vmatprep.subr.mxu0 0.0
    %7057 = vmatpush1.msra.mxu0 0.0
    %7058 = vmatprep.subr.mxu0 0.0
    %7059 = vmatpush1.msra.mxu0 0.0
    %7060 = vmatprep.subr.mxu0 0.0
    %7061 = vmatpush1.msra.mxu0 0.0
    %7062 = vmatprep.subr.mxu0 0.0
    %7063 = vmatpush1.msra.mxu0 0.0
    %7064 = vmatprep.subr.mxu0 0.0
    %7065 = vmatpush1.msra.mxu0 0.0
    %7066 = vmatprep.subr.mxu0 0.0
    %7067 = vmatpush1.msra.mxu0 0.0
    %7068 = vmatprep.subr.mxu0 0.0
    %7069 = vmatpush1.msra.mxu0 0.0
    %7070 = vmatprep.subr.mxu0 0.0
    %7071 = vmatpush1.msra.mxu0 0.0
    %7072 = vmatprep.subr.mxu0 0.0
    %7073 = vmatpush1.msra.mxu0 0.0
    %7074 = vmatprep.subr.mxu0 0.0
    %7075 = vmatpush1.msra.mxu0 0.0
    %7076 = vmatprep.subr.mxu0 0.0
    %7077 = vmatpush1.msra.mxu0 0.0
    %7078 = vmatprep.subr.mxu0 0.0
    %7079 = vmatpush1.msra.mxu0 0.0
    %7080 = vmatprep.subr.mxu0 0.0
    %7081 = vmatpush1.msra.mxu0 0.0
    %7082 = vmatprep.subr.mxu0 0.0
    %7083 = vmatpush1.msra.mxu0 0.0
    %7084 = vmatprep.mubr.f32.mxu0 0.0
    %7085 = vmatmul.mubr.f32.gmra.mrb[0].mxu0 %v7018
    %v7086 = vpop.f32.mrb[0].mxu0
    %v7087 = vadd.f32 0.0, %v7086
    %v7088 = vpop.f32.mrb[0].mxu0
    %7089 = vdwg.mxu0
    %7090 = vmatprep.subr.mxu0 0.0
    %7091 = vmatpush1.msra.mxu0 %v4988
    %7092 = vmatprep.subr.mxu0 0.0
    %7093 = vmatpush1.msra.mxu0 %v4990
    %7094 = vmatprep.subr.mxu0 0.0
    %7095 = vmatpush1.msra.mxu0 %v4992
    %7096 = vmatprep.subr.mxu0 0.0
    %7097 = vmatpush1.msra.mxu0 %v4994
    %7098 = vmatprep.subr.mxu0 0.0
    %7099 = vmatpush1.msra.mxu0 0.0
    %7100 = vmatprep.subr.mxu0 0.0
    %7101 = vmatpush1.msra.mxu0 0.0
    %7102 = vmatprep.subr.mxu0 0.0
    %7103 = vmatpush1.msra.mxu0 0.0
    %7104 = vmatprep.subr.mxu0 0.0
    %7105 = vmatpush1.msra.mxu0 0.0
    %7106 = vmatprep.subr.mxu0 0.0
    %7107 = vmatpush1.msra.mxu0 0.0
    %7108 = vmatprep.subr.mxu0 0.0
    %7109 = vmatpush1.msra.mxu0 0.0
    %7110 = vmatprep.subr.mxu0 0.0
    %7111 = vmatpush1.msra.mxu0 0.0
    %7112 = vmatprep.subr.mxu0 0.0
    %7113 = vmatpush1.msra.mxu0 0.0
    %7114 = vmatprep.subr.mxu0 0.0
    %7115 = vmatpush1.msra.mxu0 0.0
    %7116 = vmatprep.subr.mxu0 0.0
    %7117 = vmatpush1.msra.mxu0 0.0
    %7118 = vmatprep.subr.mxu0 0.0
    %7119 = vmatpush1.msra.mxu0 0.0
    %7120 = vmatprep.subr.mxu0 0.0
    %7121 = vmatpush1.msra.mxu0 0.0
    %7122 = vmatprep.subr.mxu0 0.0
    %7123 = vmatpush1.msra.mxu0 0.0
    %7124 = vmatprep.subr.mxu0 0.0
    %7125 = vmatpush1.msra.mxu0 0.0
    %7126 = vmatprep.subr.mxu0 0.0
    %7127 = vmatpush1.msra.mxu0 0.0
    %7128 = vmatprep.subr.mxu0 0.0
    %7129 = vmatpush1.msra.mxu0 0.0
    %7130 = vmatprep.subr.mxu0 0.0
    %7131 = vmatpush1.msra.mxu0 0.0
    %7132 = vmatprep.subr.mxu0 0.0
    %7133 = vmatpush1.msra.mxu0 0.0
    %7134 = vmatprep.subr.mxu0 0.0
    %7135 = vmatpush1.msra.mxu0 0.0
    %7136 = vmatprep.subr.mxu0 0.0
    %7137 = vmatpush1.msra.mxu0 0.0
    %7138 = vmatprep.subr.mxu0 0.0
    %7139 = vmatpush1.msra.mxu0 0.0
    %7140 = vmatprep.subr.mxu0 0.0
    %7141 = vmatpush1.msra.mxu0 0.0
    %7142 = vmatprep.subr.mxu0 0.0
    %7143 = vmatpush1.msra.mxu0 0.0
    %7144 = vmatprep.subr.mxu0 0.0
    %7145 = vmatpush1.msra.mxu0 0.0
    %7146 = vmatprep.subr.mxu0 0.0
    %7147 = vmatpush1.msra.mxu0 0.0
    %7148 = vmatprep.subr.mxu0 0.0
    %7149 = vmatpush1.msra.mxu0 0.0
    %7150 = vmatprep.subr.mxu0 0.0
    %7151 = vmatpush1.msra.mxu0 0.0
    %7152 = vmatprep.subr.mxu0 0.0
    %7153 = vmatpush1.msra.mxu0 0.0
    %7154 = vmatprep.mubr.f32.mxu0 0.0
    %7155 = vmatmul.mubr.f32.gmra.mrb[0].mxu0 %v7018
    %v7156 = vpop.f32.mrb[0].mxu0
    %v7157 = vadd.f32 0.0, %v7156
    %v7158 = vpop.f32.mrb[0].mxu0
    %7159 = vdwg.mxu0
    %v7160 = vrot.slane %v7004, 4
    %7161 = vrot.lane.b32.xlu0 %v7160, 96
    %v7162 = vpop.permute.xlu0 %7161
    %v7163 = vsel %vm399, %v7162, 0
    %7165 = vmatprep.subr.mxu0 0.0
    %7166 = vmatpush1.msra.mxu0 %v4894
    %7167 = vmatprep.subr.mxu0 0.0
    %7168 = vmatpush1.msra.mxu0 %v4895
    %7169 = vmatprep.subr.mxu0 0.0
    %7170 = vmatpush1.msra.mxu0 %v4896
    %7171 = vmatprep.subr.mxu0 0.0
    %7172 = vmatpush1.msra.mxu0 %v4897
    %7173 = vmatprep.subr.mxu0 0.0
    %7174 = vmatpush1.msra.mxu0 0.0
    %7175 = vmatprep.subr.mxu0 0.0
    %7176 = vmatpush1.msra.mxu0 0.0
    %7177 = vmatprep.subr.mxu0 0.0
    %7178 = vmatpush1.msra.mxu0 0.0
    %7179 = vmatprep.subr.mxu0 0.0
    %7180 = vmatpush1.msra.mxu0 0.0
    %7181 = vmatprep.subr.mxu0 0.0
    %7182 = vmatpush1.msra.mxu0 0.0
    %7183 = vmatprep.subr.mxu0 0.0
    %7184 = vmatpush1.msra.mxu0 0.0
    %7185 = vmatprep.subr.mxu0 0.0
    %7186 = vmatpush1.msra.mxu0 0.0
    %7187 = vmatprep.subr.mxu0 0.0
    %7188 = vmatpush1.msra.mxu0 0.0
    %7189 = vmatprep.subr.mxu0 0.0
    %7190 = vmatpush1.msra.mxu0 0.0
    %7191 = vmatprep.subr.mxu0 0.0
    %7192 = vmatpush1.msra.mxu0 0.0
    %7193 = vmatprep.subr.mxu0 0.0
    %7194 = vmatpush1.msra.mxu0 0.0
    %7195 = vmatprep.subr.mxu0 0.0
    %7196 = vmatpush1.msra.mxu0 0.0
    %7197 = vmatprep.subr.mxu0 0.0
    %7198 = vmatpush1.msra.mxu0 0.0
    %7199 = vmatprep.subr.mxu0 0.0
    %7200 = vmatpush1.msra.mxu0 0.0
    %7201 = vmatprep.subr.mxu0 0.0
    %7202 = vmatpush1.msra.mxu0 0.0
    %7203 = vmatprep.subr.mxu0 0.0
    %7204 = vmatpush1.msra.mxu0 0.0
    %7205 = vmatprep.subr.mxu0 0.0
    %7206 = vmatpush1.msra.mxu0 0.0
    %7207 = vmatprep.subr.mxu0 0.0
    %7208 = vmatpush1.msra.mxu0 0.0
    %7209 = vmatprep.subr.mxu0 0.0
    %7210 = vmatpush1.msra.mxu0 0.0
    %7211 = vmatprep.subr.mxu0 0.0
    %7212 = vmatpush1.msra.mxu0 0.0
    %7213 = vmatprep.subr.mxu0 0.0
    %7214 = vmatpush1.msra.mxu0 0.0
    %7215 = vmatprep.subr.mxu0 0.0
    %7216 = vmatpush1.msra.mxu0 0.0
    %7217 = vmatprep.subr.mxu0 0.0
    %7218 = vmatpush1.msra.mxu0 0.0
    %7219 = vmatprep.subr.mxu0 0.0
    %7220 = vmatpush1.msra.mxu0 0.0
    %7221 = vmatprep.subr.mxu0 0.0
    %7222 = vmatpush1.msra.mxu0 0.0
    %7223 = vmatprep.subr.mxu0 0.0
    %7224 = vmatpush1.msra.mxu0 0.0
    %7225 = vmatprep.subr.mxu0 0.0
    %7226 = vmatpush1.msra.mxu0 0.0
    %7227 = vmatprep.subr.mxu0 0.0
    %7228 = vmatpush1.msra.mxu0 0.0
    %7229 = vmatprep.mubr.f32.mxu0 0.0
    %7230 = vmatmul.mubr.f32.gmra.mrb[0].mxu0 %v7163
    %v7231 = vpop.f32.mrb[0].mxu0
    %v7232 = vadd.f32 0.0, %v7231
    %v7233 = vpop.f32.mrb[0].mxu0
    %7234 = vdwg.mxu0
    %7235 = vmatprep.subr.mxu0 0.0
    %7236 = vmatpush1.msra.mxu0 %v5144
    %7237 = vmatprep.subr.mxu0 0.0
    %7238 = vmatpush1.msra.mxu0 %v5146
    %7239 = vmatprep.subr.mxu0 0.0
    %7240 = vmatpush1.msra.mxu0 %v5148
    %7241 = vmatprep.subr.mxu0 0.0
    %7242 = vmatpush1.msra.mxu0 %v5150
    %7243 = vmatprep.subr.mxu0 0.0
    %7244 = vmatpush1.msra.mxu0 0.0
    %7245 = vmatprep.subr.mxu0 0.0
    %7246 = vmatpush1.msra.mxu0 0.0
    %7247 = vmatprep.subr.mxu0 0.0
    %7248 = vmatpush1.msra.mxu0 0.0
    %7249 = vmatprep.subr.mxu0 0.0
    %7250 = vmatpush1.msra.mxu0 0.0
    %7251 = vmatprep.subr.mxu0 0.0
    %7252 = vmatpush1.msra.mxu0 0.0
    %7253 = vmatprep.subr.mxu0 0.0
    %7254 = vmatpush1.msra.mxu0 0.0
    %7255 = vmatprep.subr.mxu0 0.0
    %7256 = vmatpush1.msra.mxu0 0.0
    %7257 = vmatprep.subr.mxu0 0.0
    %7258 = vmatpush1.msra.mxu0 0.0
    %7259 = vmatprep.subr.mxu0 0.0
    %7260 = vmatpush1.msra.mxu0 0.0
    %7261 = vmatprep.subr.mxu0 0.0
    %7262 = vmatpush1.msra.mxu0 0.0
    %7263 = vmatprep.subr.mxu0 0.0
    %7264 = vmatpush1.msra.mxu0 0.0
    %7265 = vmatprep.subr.mxu0 0.0
    %7266 = vmatpush1.msra.mxu0 0.0
    %7267 = vmatprep.subr.mxu0 0.0
    %7268 = vmatpush1.msra.mxu0 0.0
    %7269 = vmatprep.subr.mxu0 0.0
    %7270 = vmatpush1.msra.mxu0 0.0
    %7271 = vmatprep.subr.mxu0 0.0
    %7272 = vmatpush1.msra.mxu0 0.0
    %7273 = vmatprep.subr.mxu0 0.0
    %7274 = vmatpush1.msra.mxu0 0.0
    %7275 = vmatprep.subr.mxu0 0.0
    %7276 = vmatpush1.msra.mxu0 0.0
    %7277 = vmatprep.subr.mxu0 0.0
    %7278 = vmatpush1.msra.mxu0 0.0
    %7279 = vmatprep.subr.mxu0 0.0
    %7280 = vmatpush1.msra.mxu0 0.0
    %7281 = vmatprep.subr.mxu0 0.0
    %7282 = vmatpush1.msra.mxu0 0.0
    %7283 = vmatprep.subr.mxu0 0.0
    %7284 = vmatpush1.msra.mxu0 0.0
    %7285 = vmatprep.subr.mxu0 0.0
    %7286 = vmatpush1.msra.mxu0 0.0
    %7287 = vmatprep.subr.mxu0 0.0
    %7288 = vmatpush1.msra.mxu0 0.0
    %7289 = vmatprep.subr.mxu0 0.0
    %7290 = vmatpush1.msra.mxu0 0.0
    %7291 = vmatprep.subr.mxu0 0.0
    %7292 = vmatpush1.msra.mxu0 0.0
    %7293 = vmatprep.subr.mxu0 0.0
    %7294 = vmatpush1.msra.mxu0 0.0
    %7295 = vmatprep.subr.mxu0 0.0
    %7296 = vmatpush1.msra.mxu0 0.0
    %7297 = vmatprep.subr.mxu0 0.0
    %7298 = vmatpush1.msra.mxu0 0.0
    %7299 = vmatprep.mubr.f32.mxu0 0.0
    %7300 = vmatmul.mubr.f32.gmra.mrb[0].mxu0 %v7163
    %v7301 = vpop.f32.mrb[0].mxu0
    %v7302 = vadd.f32 0.0, %v7301
    %v7303 = vpop.f32.mrb[0].mxu0
    %7304 = vdwg.mxu0
    %v7306 = vrot.slane %v7087, 4
    %v7308 = vadd.f32 %v4905, %v7306
    %v7309 = vmul.f32 %v7308, 0.5
    %v7310 = vtanh.pop %v7309
    %v7311 = vadd.f32 %v7310, 1.0
    %v7312 = vmul.f32 %v7311, 0.5
    %v7314 = vrot.slane %v7157, 4
    %7315 = vrot.lane.b32.xlu0 %v7314, 32
    %v7316 = vpop.permute.xlu0 %7315
    %v7318 = vadd.f32 %v4905, %v7316
    %v7319 = vmul.f32 %v7318, 0.5
    %v7320 = vtanh.pop %v7319
    %v7321 = vadd.f32 %v7320, 1.0
    %v7322 = vmul.f32 %v7321, 0.5
    %7323 = vmatprep.subr.mxu0 0.0
    %7324 = vmatpush1.msra.mxu0 %v5240
    %7325 = vmatprep.subr.mxu0 0.0
    %7326 = vmatpush1.msra.mxu0 %v5242
    %7327 = vmatprep.subr.mxu0 0.0
    %7328 = vmatpush1.msra.mxu0 %v5244
    %7329 = vmatprep.subr.mxu0 0.0
    %7330 = vmatpush1.msra.mxu0 %v5246
    %7331 = vmatprep.subr.mxu0 0.0
    %7332 = vmatpush1.msra.mxu0 0.0
    %7333 = vmatprep.subr.mxu0 0.0
    %7334 = vmatpush1.msra.mxu0 0.0
    %7335 = vmatprep.subr.mxu0 0.0
    %7336 = vmatpush1.msra.mxu0 0.0
    %7337 = vmatprep.subr.mxu0 0.0
    %7338 = vmatpush1.msra.mxu0 0.0
    %7339 = vmatprep.subr.mxu0 0.0
    %7340 = vmatpush1.msra.mxu0 0.0
    %7341 = vmatprep.subr.mxu0 0.0
    %7342 = vmatpush1.msra.mxu0 0.0
    %7343 = vmatprep.subr.mxu0 0.0
    %7344 = vmatpush1.msra.mxu0 0.0
    %7345 = vmatprep.subr.mxu0 0.0
    %7346 = vmatpush1.msra.mxu0 0.0
    %7347 = vmatprep.subr.mxu0 0.0
    %7348 = vmatpush1.msra.mxu0 0.0
    %7349 = vmatprep.subr.mxu0 0.0
    %7350 = vmatpush1.msra.mxu0 0.0
    %7351 = vmatprep.subr.mxu0 0.0
    %7352 = vmatpush1.msra.mxu0 0.0
    %7353 = vmatprep.subr.mxu0 0.0
    %7354 = vmatpush1.msra.mxu0 0.0
    %7355 = vmatprep.subr.mxu0 0.0
    %7356 = vmatpush1.msra.mxu0 0.0
    %7357 = vmatprep.subr.mxu0 0.0
    %7358 = vmatpush1.msra.mxu0 0.0
    %7359 = vmatprep.subr.mxu0 0.0
    %7360 = vmatpush1.msra.mxu0 0.0
    %7361 = vmatprep.subr.mxu0 0.0
    %7362 = vmatpush1.msra.mxu0 0.0
    %7363 = vmatprep.subr.mxu0 0.0
    %7364 = vmatpush1.msra.mxu0 0.0
    %7365 = vmatprep.subr.mxu0 0.0
    %7366 = vmatpush1.msra.mxu0 0.0
    %7367 = vmatprep.subr.mxu0 0.0
    %7368 = vmatpush1.msra.mxu0 0.0
    %7369 = vmatprep.subr.mxu0 0.0
    %7370 = vmatpush1.msra.mxu0 0.0
    %7371 = vmatprep.subr.mxu0 0.0
    %7372 = vmatpush1.msra.mxu0 0.0
    %7373 = vmatprep.subr.mxu0 0.0
    %7374 = vmatpush1.msra.mxu0 0.0
    %7375 = vmatprep.subr.mxu0 0.0
    %7376 = vmatpush1.msra.mxu0 0.0
    %7377 = vmatprep.subr.mxu0 0.0
    %7378 = vmatpush1.msra.mxu0 0.0
    %7379 = vmatprep.subr.mxu0 0.0
    %7380 = vmatpush1.msra.mxu0 0.0
    %7381 = vmatprep.subr.mxu0 0.0
    %7382 = vmatpush1.msra.mxu0 0.0
    %7383 = vmatprep.subr.mxu0 0.0
    %7384 = vmatpush1.msra.mxu0 0.0
    %7385 = vmatprep.subr.mxu0 0.0
    %7386 = vmatpush1.msra.mxu0 0.0
    %7387 = vmatprep.mubr.f32.mxu0 0.0
    %7388 = vmatmul.mubr.f32.gmra.mrb[0].mxu0 %v7018
    %v7389 = vpop.f32.mrb[0].mxu0
    %v7390 = vadd.f32 %v5252, %v7389
    %v7391 = vpop.f32.mrb[0].mxu0
    %7392 = vdwg.mxu0
    %v7394 = vrot.slane %v7390, 4
    %v7396 = vmul.f32 %v7312, %v7394
    %7398 = vrot.lane.b32.xlu0 %v7396, 64
    %v7399 = vpop.permute.xlu0 %7398
    %v7401 = vadd.f32 %v4740, %v7399
    %v7402 = vtanh.pop %v7401
    %v7403 = vsub.f32 1.0, %v7322
    %7405 = vrot.lane.b32.xlu0 %v7402, 96
    %v7406 = vpop.permute.xlu0 %7405
    %v7408 = vmul.f32 %v7403, %v7406
    %v7409 = vrot.slane %v6896, 7
    %v7411 = vmul.f32 %v7322, %v7409
    %v7412 = vadd.f32 %v7408, %v7411
    %v7414 = vrot.slane %v7232, 5
    %v7416 = vadd.f32 %v4912, %v7414
    %v7417 = vmul.f32 %v7416, 0.5
    %v7418 = vtanh.pop %v7417
    %v7419 = vadd.f32 %v7418, 1.0
    %v7420 = vmul.f32 %v7419, 0.5
    %v7422 = vrot.slane %v7302, 5
    %7423 = vrot.lane.b32.xlu0 %v7422, 32
    %v7424 = vpop.permute.xlu0 %7423
    %v7426 = vadd.f32 %v4912, %v7424
    %v7427 = vmul.f32 %v7426, 0.5
    %v7428 = vtanh.pop %v7427
    %v7429 = vadd.f32 %v7428, 1.0
    %v7430 = vmul.f32 %v7429, 0.5
    %7431 = vmatprep.subr.mxu0 0.0
    %7432 = vmatpush1.msra.mxu0 %v5358
    %7433 = vmatprep.subr.mxu0 0.0
    %7434 = vmatpush1.msra.mxu0 %v5360
    %7435 = vmatprep.subr.mxu0 0.0
    %7436 = vmatpush1.msra.mxu0 %v5362
    %7437 = vmatprep.subr.mxu0 0.0
    %7438 = vmatpush1.msra.mxu0 %v5364
    %7439 = vmatprep.subr.mxu0 0.0
    %7440 = vmatpush1.msra.mxu0 0.0
    %7441 = vmatprep.subr.mxu0 0.0
    %7442 = vmatpush1.msra.mxu0 0.0
    %7443 = vmatprep.subr.mxu0 0.0
    %7444 = vmatpush1.msra.mxu0 0.0
    %7445 = vmatprep.subr.mxu0 0.0
    %7446 = vmatpush1.msra.mxu0 0.0
    %7447 = vmatprep.subr.mxu0 0.0
    %7448 = vmatpush1.msra.mxu0 0.0
    %7449 = vmatprep.subr.mxu0 0.0
    %7450 = vmatpush1.msra.mxu0 0.0
    %7451 = vmatprep.subr.mxu0 0.0
    %7452 = vmatpush1.msra.mxu0 0.0
    %7453 = vmatprep.subr.mxu0 0.0
    %7454 = vmatpush1.msra.mxu0 0.0
    %7455 = vmatprep.subr.mxu0 0.0
    %7456 = vmatpush1.msra.mxu0 0.0
    %7457 = vmatprep.subr.mxu0 0.0
    %7458 = vmatpush1.msra.mxu0 0.0
    %7459 = vmatprep.subr.mxu0 0.0
    %7460 = vmatpush1.msra.mxu0 0.0
    %7461 = vmatprep.subr.mxu0 0.0
    %7462 = vmatpush1.msra.mxu0 0.0
    %7463 = vmatprep.subr.mxu0 0.0
    %7464 = vmatpush1.msra.mxu0 0.0
    %7465 = vmatprep.subr.mxu0 0.0
    %7466 = vmatpush1.msra.mxu0 0.0
    %7467 = vmatprep.subr.mxu0 0.0
    %7468 = vmatpush1.msra.mxu0 0.0
    %7469 = vmatprep.subr.mxu0 0.0
    %7470 = vmatpush1.msra.mxu0 0.0
    %7471 = vmatprep.subr.mxu0 0.0
    %7472 = vmatpush1.msra.mxu0 0.0
    %7473 = vmatprep.subr.mxu0 0.0
    %7474 = vmatpush1.msra.mxu0 0.0
    %7475 = vmatprep.subr.mxu0 0.0
    %7476 = vmatpush1.msra.mxu0 0.0
    %7477 = vmatprep.subr.mxu0 0.0
    %7478 = vmatpush1.msra.mxu0 0.0
    %7479 = vmatprep.subr.mxu0 0.0
    %7480 = vmatpush1.msra.mxu0 0.0
    %7481 = vmatprep.subr.mxu0 0.0
    %7482 = vmatpush1.msra.mxu0 0.0
    %7483 = vmatprep.subr.mxu0 0.0
    %7484 = vmatpush1.msra.mxu0 0.0
    %7485 = vmatprep.subr.mxu0 0.0
    %7486 = vmatpush1.msra.mxu0 0.0
    %7487 = vmatprep.subr.mxu0 0.0
    %7488 = vmatpush1.msra.mxu0 0.0
    %7489 = vmatprep.subr.mxu0 0.0
    %7490 = vmatpush1.msra.mxu0 0.0
    %7491 = vmatprep.subr.mxu0 0.0
    %7492 = vmatpush1.msra.mxu0 0.0
    %7493 = vmatprep.subr.mxu0 0.0
    %7494 = vmatpush1.msra.mxu0 0.0
    %7495 = vmatprep.mubr.f32.mxu0 0.0
    %7496 = vmatmul.mubr.f32.gmra.mrb[0].mxu0 %v7163
    %v7497 = vpop.f32.mrb[0].mxu0
    %v7498 = vadd.f32 %v5370, %v7497
    %v7499 = vpop.f32.mrb[0].mxu0
    %7500 = vdwg.mxu0
    %v7502 = vrot.slane %v7498, 5
    %v7504 = vmul.f32 %v7420, %v7502
    %7506 = vrot.lane.b32.xlu0 %v7504, 64
    %v7507 = vpop.permute.xlu0 %7506
    %v7509 = vadd.f32 %v4888, %v7507
    %v7510 = vtanh.pop %v7509
    %v7511 = vsub.f32 1.0, %v7430
    %7513 = vrot.lane.b32.xlu0 %v7510, 96
    %v7514 = vpop.permute.xlu0 %7513
    %v7516 = vmul.f32 %v7511, %v7514
    %v7517 = vrot.slane %v7004, 1
    %v7519 = vmul.f32 %v7430, %v7517
    %v7520 = vadd.f32 %v7516, %v7519
    %7522 = vrot.lane.b32.xlu0 %v7412, 96
    %v7523 = vpop.permute.xlu0 %7522
    %7525 = vst.msk [vmem:[#allocation4] sm:$0x10] %vm2511, %v7523
    %7527 = vrot.lane.b32.xlu0 %v7520, 96
    %v7528 = vpop.permute.xlu0 %7527
    %7530 = vst.msk [vmem:[#allocation5] sm:$0x8] %vm2505, %v7528
    %v7531 = vrot.slane %v7412, 4
    %7532 = vrot.lane.b32.xlu0 %v7531, 96
    %v7533 = vpop.permute.xlu0 %7532
    %v7534 = vsel %vm399, %v7533, 0
    %7536 = vmatprep.subr.mxu0 0.0
    %7537 = vmatpush1.msra.mxu0 %v4889
    %7538 = vmatprep.subr.mxu0 0.0
    %7539 = vmatpush1.msra.mxu0 %v4890
    %7540 = vmatprep.subr.mxu0 0.0
    %7541 = vmatpush1.msra.mxu0 %v4891
    %7542 = vmatprep.subr.mxu0 0.0
    %7543 = vmatpush1.msra.mxu0 %v4892
    %7544 = vmatprep.subr.mxu0 0.0
    %7545 = vmatpush1.msra.mxu0 0.0
    %7546 = vmatprep.subr.mxu0 0.0
    %7547 = vmatpush1.msra.mxu0 0.0
    %7548 = vmatprep.subr.mxu0 0.0
    %7549 = vmatpush1.msra.mxu0 0.0
    %7550 = vmatprep.subr.mxu0 0.0
    %7551 = vmatpush1.msra.mxu0 0.0
    %7552 = vmatprep.subr.mxu0 0.0
    %7553 = vmatpush1.msra.mxu0 0.0
    %7554 = vmatprep.subr.mxu0 0.0
    %7555 = vmatpush1.msra.mxu0 0.0
    %7556 = vmatprep.subr.mxu0 0.0
    %7557 = vmatpush1.msra.mxu0 0.0
    %7558 = vmatprep.subr.mxu0 0.0
    %7559 = vmatpush1.msra.mxu0 0.0
    %7560 = vmatprep.subr.mxu0 0.0
    %7561 = vmatpush1.msra.mxu0 0.0
    %7562 = vmatprep.subr.mxu0 0.0
    %7563 = vmatpush1.msra.mxu0 0.0
    %7564 = vmatprep.subr.mxu0 0.0
    %7565 = vmatpush1.msra.mxu0 0.0
    %7566 = vmatprep.subr.mxu0 0.0
    %7567 = vmatpush1.msra.mxu0 0.0
    %7568 = vmatprep.subr.mxu0 0.0
    %7569 = vmatpush1.msra.mxu0 0.0
    %7570 = vmatprep.subr.mxu0 0.0
    %7571 = vmatpush1.msra.mxu0 0.0
    %7572 = vmatprep.subr.mxu0 0.0
    %7573 = vmatpush1.msra.mxu0 0.0
    %7574 = vmatprep.subr.mxu0 0.0
    %7575 = vmatpush1.msra.mxu0 0.0
    %7576 = vmatprep.subr.mxu0 0.0
    %7577 = vmatpush1.msra.mxu0 0.0
    %7578 = vmatprep.subr.mxu0 0.0
    %7579 = vmatpush1.msra.mxu0 0.0
    %7580 = vmatprep.subr.mxu0 0.0
    %7581 = vmatpush1.msra.mxu0 0.0
    %7582 = vmatprep.subr.mxu0 0.0
    %7583 = vmatpush1.msra.mxu0 0.0
    %7584 = vmatprep.subr.mxu0 0.0
    %7585 = vmatpush1.msra.mxu0 0.0
    %7586 = vmatprep.subr.mxu0 0.0
    %7587 = vmatpush1.msra.mxu0 0.0
    %7588 = vmatprep.subr.mxu0 0.0
    %7589 = vmatpush1.msra.mxu0 0.0
    %7590 = vmatprep.subr.mxu0 0.0
    %7591 = vmatpush1.msra.mxu0 0.0
    %7592 = vmatprep.subr.mxu0 0.0
    %7593 = vmatpush1.msra.mxu0 0.0
    %7594 = vmatprep.subr.mxu0 0.0
    %7595 = vmatpush1.msra.mxu0 0.0
    %7596 = vmatprep.subr.mxu0 0.0
    %7597 = vmatpush1.msra.mxu0 0.0
    %7598 = vmatprep.subr.mxu0 0.0
    %7599 = vmatpush1.msra.mxu0 0.0
    %7600 = vmatprep.mubr.f32.mxu0 0.0
    %7601 = vmatmul.mubr.f32.gmra.mrb[0].mxu0 %v7534
    %v7602 = vpop.f32.mrb[0].mxu0
    %v7603 = vadd.f32 0.0, %v7602
    %v7604 = vpop.f32.mrb[0].mxu0
    %7605 = vdwg.mxu0
    %7606 = vmatprep.subr.mxu0 0.0
    %7607 = vmatpush1.msra.mxu0 %v4988
    %7608 = vmatprep.subr.mxu0 0.0
    %7609 = vmatpush1.msra.mxu0 %v4990
    %7610 = vmatprep.subr.mxu0 0.0
    %7611 = vmatpush1.msra.mxu0 %v4992
    %7612 = vmatprep.subr.mxu0 0.0
    %7613 = vmatpush1.msra.mxu0 %v4994
    %7614 = vmatprep.subr.mxu0 0.0
    %7615 = vmatpush1.msra.mxu0 0.0
    %7616 = vmatprep.subr.mxu0 0.0
    %7617 = vmatpush1.msra.mxu0 0.0
    %7618 = vmatprep.subr.mxu0 0.0
    %7619 = vmatpush1.msra.mxu0 0.0
    %7620 = vmatprep.subr.mxu0 0.0
    %7621 = vmatpush1.msra.mxu0 0.0
    %7622 = vmatprep.subr.mxu0 0.0
    %7623 = vmatpush1.msra.mxu0 0.0
    %7624 = vmatprep.subr.mxu0 0.0
    %7625 = vmatpush1.msra.mxu0 0.0
    %7626 = vmatprep.subr.mxu0 0.0
    %7627 = vmatpush1.msra.mxu0 0.0
    %7628 = vmatprep.subr.mxu0 0.0
    %7629 = vmatpush1.msra.mxu0 0.0
    %7630 = vmatprep.subr.mxu0 0.0
    %7631 = vmatpush1.msra.mxu0 0.0
    %7632 = vmatprep.subr.mxu0 0.0
    %7633 = vmatpush1.msra.mxu0 0.0
    %7634 = vmatprep.subr.mxu0 0.0
    %7635 = vmatpush1.msra.mxu0 0.0
    %7636 = vmatprep.subr.mxu0 0.0
    %7637 = vmatpush1.msra.mxu0 0.0
    %7638 = vmatprep.subr.mxu0 0.0
    %7639 = vmatpush1.msra.mxu0 0.0
    %7640 = vmatprep.subr.mxu0 0.0
    %7641 = vmatpush1.msra.mxu0 0.0
    %7642 = vmatprep.subr.mxu0 0.0
    %7643 = vmatpush1.msra.mxu0 0.0
    %7644 = vmatprep.subr.mxu0 0.0
    %7645 = vmatpush1.msra.mxu0 0.0
    %7646 = vmatprep.subr.mxu0 0.0
    %7647 = vmatpush1.msra.mxu0 0.0
    %7648 = vmatprep.subr.mxu0 0.0
    %7649 = vmatpush1.msra.mxu0 0.0
    %7650 = vmatprep.subr.mxu0 0.0
    %7651 = vmatpush1.msra.mxu0 0.0
    %7652 = vmatprep.subr.mxu0 0.0
    %7653 = vmatpush1.msra.mxu0 0.0
    %7654 = vmatprep.subr.mxu0 0.0
    %7655 = vmatpush1.msra.mxu0 0.0
    %7656 = vmatprep.subr.mxu0 0.0
    %7657 = vmatpush1.msra.mxu0 0.0
    %7658 = vmatprep.subr.mxu0 0.0
    %7659 = vmatpush1.msra.mxu0 0.0
    %7660 = vmatprep.subr.mxu0 0.0
    %7661 = vmatpush1.msra.mxu0 0.0
    %7662 = vmatprep.subr.mxu0 0.0
    %7663 = vmatpush1.msra.mxu0 0.0
    %7664 = vmatprep.subr.mxu0 0.0
    %7665 = vmatpush1.msra.mxu0 0.0
    %7666 = vmatprep.subr.mxu0 0.0
    %7667 = vmatpush1.msra.mxu0 0.0
    %7668 = vmatprep.subr.mxu0 0.0
    %7669 = vmatpush1.msra.mxu0 0.0
    %7670 = vmatprep.mubr.f32.mxu0 0.0
    %7671 = vmatmul.mubr.f32.gmra.mrb[0].mxu0 %v7534
    %v7672 = vpop.f32.mrb[0].mxu0
    %v7673 = vadd.f32 0.0, %v7672
    %v7674 = vpop.f32.mrb[0].mxu0
    %7675 = vdwg.mxu0
    %v7676 = vrot.slane %v7520, 3
    %7677 = vrot.lane.b32.xlu0 %v7676, 96
    %v7678 = vpop.permute.xlu0 %7677
    %v7679 = vsel %vm399, %v7678, 0
    %7681 = vmatprep.subr.mxu0 0.0
    %7682 = vmatpush1.msra.mxu0 %v4894
    %7683 = vmatprep.subr.mxu0 0.0
    %7684 = vmatpush1.msra.mxu0 %v4895
    %7685 = vmatprep.subr.mxu0 0.0
    %7686 = vmatpush1.msra.mxu0 %v4896
    %7687 = vmatprep.subr.mxu0 0.0
    %7688 = vmatpush1.msra.mxu0 %v4897
    %7689 = vmatprep.subr.mxu0 0.0
    %7690 = vmatpush1.msra.mxu0 0.0
    %7691 = vmatprep.subr.mxu0 0.0
    %7692 = vmatpush1.msra.mxu0 0.0
    %7693 = vmatprep.subr.mxu0 0.0
    %7694 = vmatpush1.msra.mxu0 0.0
    %7695 = vmatprep.subr.mxu0 0.0
    %7696 = vmatpush1.msra.mxu0 0.0
    %7697 = vmatprep.subr.mxu0 0.0
    %7698 = vmatpush1.msra.mxu0 0.0
    %7699 = vmatprep.subr.mxu0 0.0
    %7700 = vmatpush1.msra.mxu0 0.0
    %7701 = vmatprep.subr.mxu0 0.0
    %7702 = vmatpush1.msra.mxu0 0.0
    %7703 = vmatprep.subr.mxu0 0.0
    %7704 = vmatpush1.msra.mxu0 0.0
    %7705 = vmatprep.subr.mxu0 0.0
    %7706 = vmatpush1.msra.mxu0 0.0
    %7707 = vmatprep.subr.mxu0 0.0
    %7708 = vmatpush1.msra.mxu0 0.0
    %7709 = vmatprep.subr.mxu0 0.0
    %7710 = vmatpush1.msra.mxu0 0.0
    %7711 = vmatprep.subr.mxu0 0.0
    %7712 = vmatpush1.msra.mxu0 0.0
    %7713 = vmatprep.subr.mxu0 0.0
    %7714 = vmatpush1.msra.mxu0 0.0
    %7715 = vmatprep.subr.mxu0 0.0
    %7716 = vmatpush1.msra.mxu0 0.0
    %7717 = vmatprep.subr.mxu0 0.0
    %7718 = vmatpush1.msra.mxu0 0.0
    %7719 = vmatprep.subr.mxu0 0.0
    %7720 = vmatpush1.msra.mxu0 0.0
    %7721 = vmatprep.subr.mxu0 0.0
    %7722 = vmatpush1.msra.mxu0 0.0
    %7723 = vmatprep.subr.mxu0 0.0
    %7724 = vmatpush1.msra.mxu0 0.0
    %7725 = vmatprep.subr.mxu0 0.0
    %7726 = vmatpush1.msra.mxu0 0.0
    %7727 = vmatprep.subr.mxu0 0.0
    %7728 = vmatpush1.msra.mxu0 0.0
    %7729 = vmatprep.subr.mxu0 0.0
    %7730 = vmatpush1.msra.mxu0 0.0
    %7731 = vmatprep.subr.mxu0 0.0
    %7732 = vmatpush1.msra.mxu0 0.0
    %7733 = vmatprep.subr.mxu0 0.0
    %7734 = vmatpush1.msra.mxu0 0.0
    %7735 = vmatprep.subr.mxu0 0.0
    %7736 = vmatpush1.msra.mxu0 0.0
    %7737 = vmatprep.subr.mxu0 0.0
    %7738 = vmatpush1.msra.mxu0 0.0
    %7739 = vmatprep.subr.mxu0 0.0
    %7740 = vmatpush1.msra.mxu0 0.0
    %7741 = vmatprep.subr.mxu0 0.0
    %7742 = vmatpush1.msra.mxu0 0.0
    %7743 = vmatprep.subr.mxu0 0.0
    %7744 = vmatpush1.msra.mxu0 0.0
    %7745 = vmatprep.mubr.f32.mxu0 0.0
    %7746 = vmatmul.mubr.f32.gmra.mrb[0].mxu0 %v7679
    %v7747 = vpop.f32.mrb[0].mxu0
    %v7748 = vadd.f32 0.0, %v7747
    %v7749 = vpop.f32.mrb[0].mxu0
    %7750 = vdwg.mxu0
    %7751 = vmatprep.subr.mxu0 0.0
    %7752 = vmatpush1.msra.mxu0 %v5144
    %7753 = vmatprep.subr.mxu0 0.0
    %7754 = vmatpush1.msra.mxu0 %v5146
    %7755 = vmatprep.subr.mxu0 0.0
    %7756 = vmatpush1.msra.mxu0 %v5148
    %7757 = vmatprep.subr.mxu0 0.0
    %7758 = vmatpush1.msra.mxu0 %v5150
    %7759 = vmatprep.subr.mxu0 0.0
    %7760 = vmatpush1.msra.mxu0 0.0
    %7761 = vmatprep.subr.mxu0 0.0
    %7762 = vmatpush1.msra.mxu0 0.0
    %7763 = vmatprep.subr.mxu0 0.0
    %7764 = vmatpush1.msra.mxu0 0.0
    %7765 = vmatprep.subr.mxu0 0.0
    %7766 = vmatpush1.msra.mxu0 0.0
    %7767 = vmatprep.subr.mxu0 0.0
    %7768 = vmatpush1.msra.mxu0 0.0
    %7769 = vmatprep.subr.mxu0 0.0
    %7770 = vmatpush1.msra.mxu0 0.0
    %7771 = vmatprep.subr.mxu0 0.0
    %7772 = vmatpush1.msra.mxu0 0.0
    %7773 = vmatprep.subr.mxu0 0.0
    %7774 = vmatpush1.msra.mxu0 0.0
    %7775 = vmatprep.subr.mxu0 0.0
    %7776 = vmatpush1.msra.mxu0 0.0
    %7777 = vmatprep.subr.mxu0 0.0
    %7778 = vmatpush1.msra.mxu0 0.0
    %7779 = vmatprep.subr.mxu0 0.0
    %7780 = vmatpush1.msra.mxu0 0.0
    %7781 = vmatprep.subr.mxu0 0.0
    %7782 = vmatpush1.msra.mxu0 0.0
    %7783 = vmatprep.subr.mxu0 0.0
    %7784 = vmatpush1.msra.mxu0 0.0
    %7785 = vmatprep.subr.mxu0 0.0
    %7786 = vmatpush1.msra.mxu0 0.0
    %7787 = vmatprep.subr.mxu0 0.0
    %7788 = vmatpush1.msra.mxu0 0.0
    %7789 = vmatprep.subr.mxu0 0.0
    %7790 = vmatpush1.msra.mxu0 0.0
    %7791 = vmatprep.subr.mxu0 0.0
    %7792 = vmatpush1.msra.mxu0 0.0
    %7793 = vmatprep.subr.mxu0 0.0
    %7794 = vmatpush1.msra.mxu0 0.0
    %7795 = vmatprep.subr.mxu0 0.0
    %7796 = vmatpush1.msra.mxu0 0.0
    %7797 = vmatprep.subr.mxu0 0.0
    %7798 = vmatpush1.msra.mxu0 0.0
    %7799 = vmatprep.subr.mxu0 0.0
    %7800 = vmatpush1.msra.mxu0 0.0
    %7801 = vmatprep.subr.mxu0 0.0
    %7802 = vmatpush1.msra.mxu0 0.0
    %7803 = vmatprep.subr.mxu0 0.0
    %7804 = vmatpush1.msra.mxu0 0.0
    %7805 = vmatprep.subr.mxu0 0.0
    %7806 = vmatpush1.msra.mxu0 0.0
    %7807 = vmatprep.subr.mxu0 0.0
    %7808 = vmatpush1.msra.mxu0 0.0
    %7809 = vmatprep.subr.mxu0 0.0
    %7810 = vmatpush1.msra.mxu0 0.0
    %7811 = vmatprep.subr.mxu0 0.0
    %7812 = vmatpush1.msra.mxu0 0.0
    %7813 = vmatprep.subr.mxu0 0.0
    %7814 = vmatpush1.msra.mxu0 0.0
    %7815 = vmatprep.mubr.f32.mxu0 0.0
    %7816 = vmatmul.mubr.f32.gmra.mrb[0].mxu0 %v7679
    %v7817 = vpop.f32.mrb[0].mxu0
    %v7818 = vadd.f32 0.0, %v7817
    %v7819 = vpop.f32.mrb[0].mxu0
    %7820 = vdwg.mxu0
    %v7822 = vrot.slane %v7603, 3
    %v7824 = vadd.f32 %v4905, %v7822
    %v7825 = vmul.f32 %v7824, 0.5
    %v7826 = vtanh.pop %v7825
    %v7827 = vadd.f32 %v7826, 1.0
    %v7828 = vmul.f32 %v7827, 0.5
    %v7830 = vrot.slane %v7673, 3
    %7831 = vrot.lane.b32.xlu0 %v7830, 32
    %v7832 = vpop.permute.xlu0 %7831
    %v7834 = vadd.f32 %v4905, %v7832
    %v7835 = vmul.f32 %v7834, 0.5
    %v7836 = vtanh.pop %v7835
    %v7837 = vadd.f32 %v7836, 1.0
    %v7838 = vmul.f32 %v7837, 0.5
    %7839 = vmatprep.subr.mxu0 0.0
    %7840 = vmatpush1.msra.mxu0 %v5240
    %7841 = vmatprep.subr.mxu0 0.0
    %7842 = vmatpush1.msra.mxu0 %v5242
    %7843 = vmatprep.subr.mxu0 0.0
    %7844 = vmatpush1.msra.mxu0 %v5244
    %7845 = vmatprep.subr.mxu0 0.0
    %7846 = vmatpush1.msra.mxu0 %v5246
    %7847 = vmatprep.subr.mxu0 0.0
    %7848 = vmatpush1.msra.mxu0 0.0
    %7849 = vmatprep.subr.mxu0 0.0
    %7850 = vmatpush1.msra.mxu0 0.0
    %7851 = vmatprep.subr.mxu0 0.0
    %7852 = vmatpush1.msra.mxu0 0.0
    %7853 = vmatprep.subr.mxu0 0.0
    %7854 = vmatpush1.msra.mxu0 0.0
    %7855 = vmatprep.subr.mxu0 0.0
    %7856 = vmatpush1.msra.mxu0 0.0
    %7857 = vmatprep.subr.mxu0 0.0
    %7858 = vmatpush1.msra.mxu0 0.0
    %7859 = vmatprep.subr.mxu0 0.0
    %7860 = vmatpush1.msra.mxu0 0.0
    %7861 = vmatprep.subr.mxu0 0.0
    %7862 = vmatpush1.msra.mxu0 0.0
    %7863 = vmatprep.subr.mxu0 0.0
    %7864 = vmatpush1.msra.mxu0 0.0
    %7865 = vmatprep.subr.mxu0 0.0
    %7866 = vmatpush1.msra.mxu0 0.0
    %7867 = vmatprep.subr.mxu0 0.0
    %7868 = vmatpush1.msra.mxu0 0.0
    %7869 = vmatprep.subr.mxu0 0.0
    %7870 = vmatpush1.msra.mxu0 0.0
    %7871 = vmatprep.subr.mxu0 0.0
    %7872 = vmatpush1.msra.mxu0 0.0
    %7873 = vmatprep.subr.mxu0 0.0
    %7874 = vmatpush1.msra.mxu0 0.0
    %7875 = vmatprep.subr.mxu0 0.0
    %7876 = vmatpush1.msra.mxu0 0.0
    %7877 = vmatprep.subr.mxu0 0.0
    %7878 = vmatpush1.msra.mxu0 0.0
    %7879 = vmatprep.subr.mxu0 0.0
    %7880 = vmatpush1.msra.mxu0 0.0
    %7881 = vmatprep.subr.mxu0 0.0
    %7882 = vmatpush1.msra.mxu0 0.0
    %7883 = vmatprep.subr.mxu0 0.0
    %7884 = vmatpush1.msra.mxu0 0.0
    %7885 = vmatprep.subr.mxu0 0.0
    %7886 = vmatpush1.msra.mxu0 0.0
    %7887 = vmatprep.subr.mxu0 0.0
    %7888 = vmatpush1.msra.mxu0 0.0
    %7889 = vmatprep.subr.mxu0 0.0
    %7890 = vmatpush1.msra.mxu0 0.0
    %7891 = vmatprep.subr.mxu0 0.0
    %7892 = vmatpush1.msra.mxu0 0.0
    %7893 = vmatprep.subr.mxu0 0.0
    %7894 = vmatpush1.msra.mxu0 0.0
    %7895 = vmatprep.subr.mxu0 0.0
    %7896 = vmatpush1.msra.mxu0 0.0
    %7897 = vmatprep.subr.mxu0 0.0
    %7898 = vmatpush1.msra.mxu0 0.0
    %7899 = vmatprep.subr.mxu0 0.0
    %7900 = vmatpush1.msra.mxu0 0.0
    %7901 = vmatprep.subr.mxu0 0.0
    %7902 = vmatpush1.msra.mxu0 0.0
    %7903 = vmatprep.mubr.f32.mxu0 0.0
    %7904 = vmatmul.mubr.f32.gmra.mrb[0].mxu0 %v7534
    %v7905 = vpop.f32.mrb[0].mxu0
    %v7906 = vadd.f32 %v5252, %v7905
    %v7907 = vpop.f32.mrb[0].mxu0
    %7908 = vdwg.mxu0
    %v7910 = vrot.slane %v7906, 3
    %v7912 = vmul.f32 %v7828, %v7910
    %7914 = vrot.lane.b32.xlu0 %v7912, 64
    %v7915 = vpop.permute.xlu0 %7914
    %v7917 = vadd.f32 %v4740, %v7915
    %v7918 = vtanh.pop %v7917
    %v7919 = vsub.f32 1.0, %v7838
    %7921 = vrot.lane.b32.xlu0 %v7918, 96
    %v7922 = vpop.permute.xlu0 %7921
    %v7924 = vmul.f32 %v7919, %v7922
    %v7925 = vrot.slane %v7412, 7
    %v7927 = vmul.f32 %v7838, %v7925
    %v7928 = vadd.f32 %v7924, %v7927
    %v7930 = vrot.slane %v7748, 6
    %v7932 = vadd.f32 %v4912, %v7930
    %v7933 = vmul.f32 %v7932, 0.5
    %v7934 = vtanh.pop %v7933
    %v7935 = vadd.f32 %v7934, 1.0
    %v7936 = vmul.f32 %v7935, 0.5
    %v7938 = vrot.slane %v7818, 6
    %7939 = vrot.lane.b32.xlu0 %v7938, 32
    %v7940 = vpop.permute.xlu0 %7939
    %v7942 = vadd.f32 %v4912, %v7940
    %v7943 = vmul.f32 %v7942, 0.5
    %v7944 = vtanh.pop %v7943
    %v7945 = vadd.f32 %v7944, 1.0
    %v7946 = vmul.f32 %v7945, 0.5
    %7947 = vmatprep.subr.mxu0 0.0
    %7948 = vmatpush1.msra.mxu0 %v5358
    %7949 = vmatprep.subr.mxu0 0.0
    %7950 = vmatpush1.msra.mxu0 %v5360
    %7951 = vmatprep.subr.mxu0 0.0
    %7952 = vmatpush1.msra.mxu0 %v5362
    %7953 = vmatprep.subr.mxu0 0.0
    %7954 = vmatpush1.msra.mxu0 %v5364
    %7955 = vmatprep.subr.mxu0 0.0
    %7956 = vmatpush1.msra.mxu0 0.0
    %7957 = vmatprep.subr.mxu0 0.0
    %7958 = vmatpush1.msra.mxu0 0.0
    %7959 = vmatprep.subr.mxu0 0.0
    %7960 = vmatpush1.msra.mxu0 0.0
    %7961 = vmatprep.subr.mxu0 0.0
    %7962 = vmatpush1.msra.mxu0 0.0
    %7963 = vmatprep.subr.mxu0 0.0
    %7964 = vmatpush1.msra.mxu0 0.0
    %7965 = vmatprep.subr.mxu0 0.0
    %7966 = vmatpush1.msra.mxu0 0.0
    %7967 = vmatprep.subr.mxu0 0.0
    %7968 = vmatpush1.msra.mxu0 0.0
    %7969 = vmatprep.subr.mxu0 0.0
    %7970 = vmatpush1.msra.mxu0 0.0
    %7971 = vmatprep.subr.mxu0 0.0
    %7972 = vmatpush1.msra.mxu0 0.0
    %7973 = vmatprep.subr.mxu0 0.0
    %7974 = vmatpush1.msra.mxu0 0.0
    %7975 = vmatprep.subr.mxu0 0.0
    %7976 = vmatpush1.msra.mxu0 0.0
    %7977 = vmatprep.subr.mxu0 0.0
    %7978 = vmatpush1.msra.mxu0 0.0
    %7979 = vmatprep.subr.mxu0 0.0
    %7980 = vmatpush1.msra.mxu0 0.0
    %7981 = vmatprep.subr.mxu0 0.0
    %7982 = vmatpush1.msra.mxu0 0.0
    %7983 = vmatprep.subr.mxu0 0.0
    %7984 = vmatpush1.msra.mxu0 0.0
    %7985 = vmatprep.subr.mxu0 0.0
    %7986 = vmatpush1.msra.mxu0 0.0
    %7987 = vmatprep.subr.mxu0 0.0
    %7988 = vmatpush1.msra.mxu0 0.0
    %7989 = vmatprep.subr.mxu0 0.0
    %7990 = vmatpush1.msra.mxu0 0.0
    %7991 = vmatprep.subr.mxu0 0.0
    %7992 = vmatpush1.msra.mxu0 0.0
    %7993 = vmatprep.subr.mxu0 0.0
    %7994 = vmatpush1.msra.mxu0 0.0
    %7995 = vmatprep.subr.mxu0 0.0
    %7996 = vmatpush1.msra.mxu0 0.0
    %7997 = vmatprep.subr.mxu0 0.0
    %7998 = vmatpush1.msra.mxu0 0.0
    %7999 = vmatprep.subr.mxu0 0.0
    %8000 = vmatpush1.msra.mxu0 0.0
    %8001 = vmatprep.subr.mxu0 0.0
    %8002 = vmatpush1.msra.mxu0 0.0
    %8003 = vmatprep.subr.mxu0 0.0
    %8004 = vmatpush1.msra.mxu0 0.0
    %8005 = vmatprep.subr.mxu0 0.0
    %8006 = vmatpush1.msra.mxu0 0.0
    %8007 = vmatprep.subr.mxu0 0.0
    %8008 = vmatpush1.msra.mxu0 0.0
    %8009 = vmatprep.subr.mxu0 0.0
    %8010 = vmatpush1.msra.mxu0 0.0
    %8011 = vmatprep.mubr.f32.mxu0 0.0
    %8012 = vmatmul.mubr.f32.gmra.mrb[0].mxu0 %v7679
    %v8013 = vpop.f32.mrb[0].mxu0
    %v8014 = vadd.f32 %v5370, %v8013
    %v8015 = vpop.f32.mrb[0].mxu0
    %8016 = vdwg.mxu0
    %v8018 = vrot.slane %v8014, 6
    %v8020 = vmul.f32 %v7936, %v8018
    %8022 = vrot.lane.b32.xlu0 %v8020, 64
    %v8023 = vpop.permute.xlu0 %8022
    %v8025 = vadd.f32 %v4888, %v8023
    %v8026 = vtanh.pop %v8025
    %v8027 = vsub.f32 1.0, %v7946
    %8029 = vrot.lane.b32.xlu0 %v8026, 96
    %v8030 = vpop.permute.xlu0 %8029
    %v8032 = vmul.f32 %v8027, %v8030
    %v8033 = vrot.slane %v7520, 1
    %v8035 = vmul.f32 %v7946, %v8033
    %v8036 = vadd.f32 %v8032, %v8035
    %8038 = vrot.lane.b32.xlu0 %v7928, 96
    %v8039 = vpop.permute.xlu0 %8038
    %8041 = vst.msk [vmem:[#allocation4] sm:$0x20] %vm1993, %v8039
    %8043 = vrot.lane.b32.xlu0 %v8036, 96
    %v8044 = vpop.permute.xlu0 %8043
    %8046 = vst.msk [vmem:[#allocation5] sm:$0x4] %vm1987, %v8044
    %v8047 = vrot.slane %v7928, 5
    %8048 = vrot.lane.b32.xlu0 %v8047, 96
    %v8049 = vpop.permute.xlu0 %8048
    %v8050 = vsel %vm399, %v8049, 0
    %8052 = vmatprep.subr.mxu0 0.0
    %8053 = vmatpush1.msra.mxu0 %v4889
    %8054 = vmatprep.subr.mxu0 0.0
    %8055 = vmatpush1.msra.mxu0 %v4890
    %8056 = vmatprep.subr.mxu0 0.0
    %8057 = vmatpush1.msra.mxu0 %v4891
    %8058 = vmatprep.subr.mxu0 0.0
    %8059 = vmatpush1.msra.mxu0 %v4892
    %8060 = vmatprep.subr.mxu0 0.0
    %8061 = vmatpush1.msra.mxu0 0.0
    %8062 = vmatprep.subr.mxu0 0.0
    %8063 = vmatpush1.msra.mxu0 0.0
    %8064 = vmatprep.subr.mxu0 0.0
    %8065 = vmatpush1.msra.mxu0 0.0
    %8066 = vmatprep.subr.mxu0 0.0
    %8067 = vmatpush1.msra.mxu0 0.0
    %8068 = vmatprep.subr.mxu0 0.0
    %8069 = vmatpush1.msra.mxu0 0.0
    %8070 = vmatprep.subr.mxu0 0.0
    %8071 = vmatpush1.msra.mxu0 0.0
    %8072 = vmatprep.subr.mxu0 0.0
    %8073 = vmatpush1.msra.mxu0 0.0
    %8074 = vmatprep.subr.mxu0 0.0
    %8075 = vmatpush1.msra.mxu0 0.0
    %8076 = vmatprep.subr.mxu0 0.0
    %8077 = vmatpush1.msra.mxu0 0.0
    %8078 = vmatprep.subr.mxu0 0.0
    %8079 = vmatpush1.msra.mxu0 0.0
    %8080 = vmatprep.subr.mxu0 0.0
    %8081 = vmatpush1.msra.mxu0 0.0
    %8082 = vmatprep.subr.mxu0 0.0
    %8083 = vmatpush1.msra.mxu0 0.0
    %8084 = vmatprep.subr.mxu0 0.0
    %8085 = vmatpush1.msra.mxu0 0.0
    %8086 = vmatprep.subr.mxu0 0.0
    %8087 = vmatpush1.msra.mxu0 0.0
    %8088 = vmatprep.subr.mxu0 0.0
    %8089 = vmatpush1.msra.mxu0 0.0
    %8090 = vmatprep.subr.mxu0 0.0
    %8091 = vmatpush1.msra.mxu0 0.0
    %8092 = vmatprep.subr.mxu0 0.0
    %8093 = vmatpush1.msra.mxu0 0.0
    %8094 = vmatprep.subr.mxu0 0.0
    %8095 = vmatpush1.msra.mxu0 0.0
    %8096 = vmatprep.subr.mxu0 0.0
    %8097 = vmatpush1.msra.mxu0 0.0
    %8098 = vmatprep.subr.mxu0 0.0
    %8099 = vmatpush1.msra.mxu0 0.0
    %8100 = vmatprep.subr.mxu0 0.0
    %8101 = vmatpush1.msra.mxu0 0.0
    %8102 = vmatprep.subr.mxu0 0.0
    %8103 = vmatpush1.msra.mxu0 0.0
    %8104 = vmatprep.subr.mxu0 0.0
    %8105 = vmatpush1.msra.mxu0 0.0
    %8106 = vmatprep.subr.mxu0 0.0
    %8107 = vmatpush1.msra.mxu0 0.0
    %8108 = vmatprep.subr.mxu0 0.0
    %8109 = vmatpush1.msra.mxu0 0.0
    %8110 = vmatprep.subr.mxu0 0.0
    %8111 = vmatpush1.msra.mxu0 0.0
    %8112 = vmatprep.subr.mxu0 0.0
    %8113 = vmatpush1.msra.mxu0 0.0
    %8114 = vmatprep.subr.mxu0 0.0
    %8115 = vmatpush1.msra.mxu0 0.0
    %8116 = vmatprep.mubr.f32.mxu0 0.0
    %8117 = vmatmul.mubr.f32.gmra.mrb[0].mxu0 %v8050
    %v8118 = vpop.f32.mrb[0].mxu0
    %v8119 = vadd.f32 0.0, %v8118
    %v8120 = vpop.f32.mrb[0].mxu0
    %8121 = vdwg.mxu0
    %8122 = vmatprep.subr.mxu0 0.0
    %8123 = vmatpush1.msra.mxu0 %v4988
    %8124 = vmatprep.subr.mxu0 0.0
    %8125 = vmatpush1.msra.mxu0 %v4990
    %8126 = vmatprep.subr.mxu0 0.0
    %8127 = vmatpush1.msra.mxu0 %v4992
    %8128 = vmatprep.subr.mxu0 0.0
    %8129 = vmatpush1.msra.mxu0 %v4994
    %8130 = vmatprep.subr.mxu0 0.0
    %8131 = vmatpush1.msra.mxu0 0.0
    %8132 = vmatprep.subr.mxu0 0.0
    %8133 = vmatpush1.msra.mxu0 0.0
    %8134 = vmatprep.subr.mxu0 0.0
    %8135 = vmatpush1.msra.mxu0 0.0
    %8136 = vmatprep.subr.mxu0 0.0
    %8137 = vmatpush1.msra.mxu0 0.0
    %8138 = vmatprep.subr.mxu0 0.0
    %8139 = vmatpush1.msra.mxu0 0.0
    %8140 = vmatprep.subr.mxu0 0.0
    %8141 = vmatpush1.msra.mxu0 0.0
    %8142 = vmatprep.subr.mxu0 0.0
    %8143 = vmatpush1.msra.mxu0 0.0
    %8144 = vmatprep.subr.mxu0 0.0
    %8145 = vmatpush1.msra.mxu0 0.0
    %8146 = vmatprep.subr.mxu0 0.0
    %8147 = vmatpush1.msra.mxu0 0.0
    %8148 = vmatprep.subr.mxu0 0.0
    %8149 = vmatpush1.msra.mxu0 0.0
    %8150 = vmatprep.subr.mxu0 0.0
    %8151 = vmatpush1.msra.mxu0 0.0
    %8152 = vmatprep.subr.mxu0 0.0
    %8153 = vmatpush1.msra.mxu0 0.0
    %8154 = vmatprep.subr.mxu0 0.0
    %8155 = vmatpush1.msra.mxu0 0.0
    %8156 = vmatprep.subr.mxu0 0.0
    %8157 = vmatpush1.msra.mxu0 0.0
    %8158 = vmatprep.subr.mxu0 0.0
    %8159 = vmatpush1.msra.mxu0 0.0
    %8160 = vmatprep.subr.mxu0 0.0
    %8161 = vmatpush1.msra.mxu0 0.0
    %8162 = vmatprep.subr.mxu0 0.0
    %8163 = vmatpush1.msra.mxu0 0.0
    %8164 = vmatprep.subr.mxu0 0.0
    %8165 = vmatpush1.msra.mxu0 0.0
    %8166 = vmatprep.subr.mxu0 0.0
    %8167 = vmatpush1.msra.mxu0 0.0
    %8168 = vmatprep.subr.mxu0 0.0
    %8169 = vmatpush1.msra.mxu0 0.0
    %8170 = vmatprep.subr.mxu0 0.0
    %8171 = vmatpush1.msra.mxu0 0.0
    %8172 = vmatprep.subr.mxu0 0.0
    %8173 = vmatpush1.msra.mxu0 0.0
    %8174 = vmatprep.subr.mxu0 0.0
    %8175 = vmatpush1.msra.mxu0 0.0
    %8176 = vmatprep.subr.mxu0 0.0
    %8177 = vmatpush1.msra.mxu0 0.0
    %8178 = vmatprep.subr.mxu0 0.0
    %8179 = vmatpush1.msra.mxu0 0.0
    %8180 = vmatprep.subr.mxu0 0.0
    %8181 = vmatpush1.msra.mxu0 0.0
    %8182 = vmatprep.subr.mxu0 0.0
    %8183 = vmatpush1.msra.mxu0 0.0
    %8184 = vmatprep.subr.mxu0 0.0
    %8185 = vmatpush1.msra.mxu0 0.0
    %8186 = vmatprep.mubr.f32.mxu0 0.0
    %8187 = vmatmul.mubr.f32.gmra.mrb[0].mxu0 %v8050
    %v8188 = vpop.f32.mrb[0].mxu0
    %v8189 = vadd.f32 0.0, %v8188
    %v8190 = vpop.f32.mrb[0].mxu0
    %8191 = vdwg.mxu0
    %v8192 = vrot.slane %v8036, 2
    %8193 = vrot.lane.b32.xlu0 %v8192, 96
    %v8194 = vpop.permute.xlu0 %8193
    %v8195 = vsel %vm399, %v8194, 0
    %8197 = vmatprep.subr.mxu0 0.0
    %8198 = vmatpush1.msra.mxu0 %v4894
    %8199 = vmatprep.subr.mxu0 0.0
    %8200 = vmatpush1.msra.mxu0 %v4895
    %8201 = vmatprep.subr.mxu0 0.0
    %8202 = vmatpush1.msra.mxu0 %v4896
    %8203 = vmatprep.subr.mxu0 0.0
    %8204 = vmatpush1.msra.mxu0 %v4897
    %8205 = vmatprep.subr.mxu0 0.0
    %8206 = vmatpush1.msra.mxu0 0.0
    %8207 = vmatprep.subr.mxu0 0.0
    %8208 = vmatpush1.msra.mxu0 0.0
    %8209 = vmatprep.subr.mxu0 0.0
    %8210 = vmatpush1.msra.mxu0 0.0
    %8211 = vmatprep.subr.mxu0 0.0
    %8212 = vmatpush1.msra.mxu0 0.0
    %8213 = vmatprep.subr.mxu0 0.0
    %8214 = vmatpush1.msra.mxu0 0.0
    %8215 = vmatprep.subr.mxu0 0.0
    %8216 = vmatpush1.msra.mxu0 0.0
    %8217 = vmatprep.subr.mxu0 0.0
    %8218 = vmatpush1.msra.mxu0 0.0
    %8219 = vmatprep.subr.mxu0 0.0
    %8220 = vmatpush1.msra.mxu0 0.0
    %8221 = vmatprep.subr.mxu0 0.0
    %8222 = vmatpush1.msra.mxu0 0.0
    %8223 = vmatprep.subr.mxu0 0.0
    %8224 = vmatpush1.msra.mxu0 0.0
    %8225 = vmatprep.subr.mxu0 0.0
    %8226 = vmatpush1.msra.mxu0 0.0
    %8227 = vmatprep.subr.mxu0 0.0
    %8228 = vmatpush1.msra.mxu0 0.0
    %8229 = vmatprep.subr.mxu0 0.0
    %8230 = vmatpush1.msra.mxu0 0.0
    %8231 = vmatprep.subr.mxu0 0.0
    %8232 = vmatpush1.msra.mxu0 0.0
    %8233 = vmatprep.subr.mxu0 0.0
    %8234 = vmatpush1.msra.mxu0 0.0
    %8235 = vmatprep.subr.mxu0 0.0
    %8236 = vmatpush1.msra.mxu0 0.0
    %8237 = vmatprep.subr.mxu0 0.0
    %8238 = vmatpush1.msra.mxu0 0.0
    %8239 = vmatprep.subr.mxu0 0.0
    %8240 = vmatpush1.msra.mxu0 0.0
    %8241 = vmatprep.subr.mxu0 0.0
    %8242 = vmatpush1.msra.mxu0 0.0
    %8243 = vmatprep.subr.mxu0 0.0
    %8244 = vmatpush1.msra.mxu0 0.0
    %8245 = vmatprep.subr.mxu0 0.0
    %8246 = vmatpush1.msra.mxu0 0.0
    %8247 = vmatprep.subr.mxu0 0.0
    %8248 = vmatpush1.msra.mxu0 0.0
    %8249 = vmatprep.subr.mxu0 0.0
    %8250 = vmatpush1.msra.mxu0 0.0
    %8251 = vmatprep.subr.mxu0 0.0
    %8252 = vmatpush1.msra.mxu0 0.0
    %8253 = vmatprep.subr.mxu0 0.0
    %8254 = vmatpush1.msra.mxu0 0.0
    %8255 = vmatprep.subr.mxu0 0.0
    %8256 = vmatpush1.msra.mxu0 0.0
    %8257 = vmatprep.subr.mxu0 0.0
    %8258 = vmatpush1.msra.mxu0 0.0
    %8259 = vmatprep.subr.mxu0 0.0
    %8260 = vmatpush1.msra.mxu0 0.0
    %8261 = vmatprep.mubr.f32.mxu0 0.0
    %8262 = vmatmul.mubr.f32.gmra.mrb[0].mxu0 %v8195
    %v8263 = vpop.f32.mrb[0].mxu0
    %v8264 = vadd.f32 0.0, %v8263
    %v8265 = vpop.f32.mrb[0].mxu0
    %8266 = vdwg.mxu0
    %8267 = vmatprep.subr.mxu0 0.0
    %8268 = vmatpush1.msra.mxu0 %v5144
    %8269 = vmatprep.subr.mxu0 0.0
    %8270 = vmatpush1.msra.mxu0 %v5146
    %8271 = vmatprep.subr.mxu0 0.0
    %8272 = vmatpush1.msra.mxu0 %v5148
    %8273 = vmatprep.subr.mxu0 0.0
    %8274 = vmatpush1.msra.mxu0 %v5150
    %8275 = vmatprep.subr.mxu0 0.0
    %8276 = vmatpush1.msra.mxu0 0.0
    %8277 = vmatprep.subr.mxu0 0.0
    %8278 = vmatpush1.msra.mxu0 0.0
    %8279 = vmatprep.subr.mxu0 0.0
    %8280 = vmatpush1.msra.mxu0 0.0
    %8281 = vmatprep.subr.mxu0 0.0
    %8282 = vmatpush1.msra.mxu0 0.0
    %8283 = vmatprep.subr.mxu0 0.0
    %8284 = vmatpush1.msra.mxu0 0.0
    %8285 = vmatprep.subr.mxu0 0.0
    %8286 = vmatpush1.msra.mxu0 0.0
    %8287 = vmatprep.subr.mxu0 0.0
    %8288 = vmatpush1.msra.mxu0 0.0
    %8289 = vmatprep.subr.mxu0 0.0
    %8290 = vmatpush1.msra.mxu0 0.0
    %8291 = vmatprep.subr.mxu0 0.0
    %8292 = vmatpush1.msra.mxu0 0.0
    %8293 = vmatprep.subr.mxu0 0.0
    %8294 = vmatpush1.msra.mxu0 0.0
    %8295 = vmatprep.subr.mxu0 0.0
    %8296 = vmatpush1.msra.mxu0 0.0
    %8297 = vmatprep.subr.mxu0 0.0
    %8298 = vmatpush1.msra.mxu0 0.0
    %8299 = vmatprep.subr.mxu0 0.0
    %8300 = vmatpush1.msra.mxu0 0.0
    %8301 = vmatprep.subr.mxu0 0.0
    %8302 = vmatpush1.msra.mxu0 0.0
    %8303 = vmatprep.subr.mxu0 0.0
    %8304 = vmatpush1.msra.mxu0 0.0
    %8305 = vmatprep.subr.mxu0 0.0
    %8306 = vmatpush1.msra.mxu0 0.0
    %8307 = vmatprep.subr.mxu0 0.0
    %8308 = vmatpush1.msra.mxu0 0.0
    %8309 = vmatprep.subr.mxu0 0.0
    %8310 = vmatpush1.msra.mxu0 0.0
    %8311 = vmatprep.subr.mxu0 0.0
    %8312 = vmatpush1.msra.mxu0 0.0
    %8313 = vmatprep.subr.mxu0 0.0
    %8314 = vmatpush1.msra.mxu0 0.0
    %8315 = vmatprep.subr.mxu0 0.0
    %8316 = vmatpush1.msra.mxu0 0.0
    %8317 = vmatprep.subr.mxu0 0.0
    %8318 = vmatpush1.msra.mxu0 0.0
    %8319 = vmatprep.subr.mxu0 0.0
    %8320 = vmatpush1.msra.mxu0 0.0
    %8321 = vmatprep.subr.mxu0 0.0
    %8322 = vmatpush1.msra.mxu0 0.0
    %8323 = vmatprep.subr.mxu0 0.0
    %8324 = vmatpush1.msra.mxu0 0.0
    %8325 = vmatprep.subr.mxu0 0.0
    %8326 = vmatpush1.msra.mxu0 0.0
    %8327 = vmatprep.subr.mxu0 0.0
    %8328 = vmatpush1.msra.mxu0 0.0
    %8329 = vmatprep.subr.mxu0 0.0
    %8330 = vmatpush1.msra.mxu0 0.0
    %8331 = vmatprep.mubr.f32.mxu0 0.0
    %8332 = vmatmul.mubr.f32.gmra.mrb[0].mxu0 %v8195
    %v8333 = vpop.f32.mrb[0].mxu0
    %v8334 = vadd.f32 0.0, %v8333
    %v8335 = vpop.f32.mrb[0].mxu0
    %8336 = vdwg.mxu0
    %v8338 = vrot.slane %v8119, 2
    %v8340 = vadd.f32 %v4905, %v8338
    %v8341 = vmul.f32 %v8340, 0.5
    %v8342 = vtanh.pop %v8341
    %v8343 = vadd.f32 %v8342, 1.0
    %v8344 = vmul.f32 %v8343, 0.5
    %v8346 = vrot.slane %v8189, 2
    %8347 = vrot.lane.b32.xlu0 %v8346, 32
    %v8348 = vpop.permute.xlu0 %8347
    %v8350 = vadd.f32 %v4905, %v8348
    %v8351 = vmul.f32 %v8350, 0.5
    %v8352 = vtanh.pop %v8351
    %v8353 = vadd.f32 %v8352, 1.0
    %v8354 = vmul.f32 %v8353, 0.5
    %8355 = vmatprep.subr.mxu0 0.0
    %8356 = vmatpush1.msra.mxu0 %v5240
    %8357 = vmatprep.subr.mxu0 0.0
    %8358 = vmatpush1.msra.mxu0 %v5242
    %8359 = vmatprep.subr.mxu0 0.0
    %8360 = vmatpush1.msra.mxu0 %v5244
    %8361 = vmatprep.subr.mxu0 0.0
    %8362 = vmatpush1.msra.mxu0 %v5246
    %8363 = vmatprep.subr.mxu0 0.0
    %8364 = vmatpush1.msra.mxu0 0.0
    %8365 = vmatprep.subr.mxu0 0.0
    %8366 = vmatpush1.msra.mxu0 0.0
    %8367 = vmatprep.subr.mxu0 0.0
    %8368 = vmatpush1.msra.mxu0 0.0
    %8369 = vmatprep.subr.mxu0 0.0
    %8370 = vmatpush1.msra.mxu0 0.0
    %8371 = vmatprep.subr.mxu0 0.0
    %8372 = vmatpush1.msra.mxu0 0.0
    %8373 = vmatprep.subr.mxu0 0.0
    %8374 = vmatpush1.msra.mxu0 0.0
    %8375 = vmatprep.subr.mxu0 0.0
    %8376 = vmatpush1.msra.mxu0 0.0
    %8377 = vmatprep.subr.mxu0 0.0
    %8378 = vmatpush1.msra.mxu0 0.0
    %8379 = vmatprep.subr.mxu0 0.0
    %8380 = vmatpush1.msra.mxu0 0.0
    %8381 = vmatprep.subr.mxu0 0.0
    %8382 = vmatpush1.msra.mxu0 0.0
    %8383 = vmatprep.subr.mxu0 0.0
    %8384 = vmatpush1.msra.mxu0 0.0
    %8385 = vmatprep.subr.mxu0 0.0
    %8386 = vmatpush1.msra.mxu0 0.0
    %8387 = vmatprep.subr.mxu0 0.0
    %8388 = vmatpush1.msra.mxu0 0.0
    %8389 = vmatprep.subr.mxu0 0.0
    %8390 = vmatpush1.msra.mxu0 0.0
    %8391 = vmatprep.subr.mxu0 0.0
    %8392 = vmatpush1.msra.mxu0 0.0
    %8393 = vmatprep.subr.mxu0 0.0
    %8394 = vmatpush1.msra.mxu0 0.0
    %8395 = vmatprep.subr.mxu0 0.0
    %8396 = vmatpush1.msra.mxu0 0.0
    %8397 = vmatprep.subr.mxu0 0.0
    %8398 = vmatpush1.msra.mxu0 0.0
    %8399 = vmatprep.subr.mxu0 0.0
    %8400 = vmatpush1.msra.mxu0 0.0
    %8401 = vmatprep.subr.mxu0 0.0
    %8402 = vmatpush1.msra.mxu0 0.0
    %8403 = vmatprep.subr.mxu0 0.0
    %8404 = vmatpush1.msra.mxu0 0.0
    %8405 = vmatprep.subr.mxu0 0.0
    %8406 = vmatpush1.msra.mxu0 0.0
    %8407 = vmatprep.subr.mxu0 0.0
    %8408 = vmatpush1.msra.mxu0 0.0
    %8409 = vmatprep.subr.mxu0 0.0
    %8410 = vmatpush1.msra.mxu0 0.0
    %8411 = vmatprep.subr.mxu0 0.0
    %8412 = vmatpush1.msra.mxu0 0.0
    %8413 = vmatprep.subr.mxu0 0.0
    %8414 = vmatpush1.msra.mxu0 0.0
    %8415 = vmatprep.subr.mxu0 0.0
    %8416 = vmatpush1.msra.mxu0 0.0
    %8417 = vmatprep.subr.mxu0 0.0
    %8418 = vmatpush1.msra.mxu0 0.0
    %8419 = vmatprep.mubr.f32.mxu0 0.0
    %8420 = vmatmul.mubr.f32.gmra.mrb[0].mxu0 %v8050
    %v8421 = vpop.f32.mrb[0].mxu0
    %v8422 = vadd.f32 %v5252, %v8421
    %v8423 = vpop.f32.mrb[0].mxu0
    %8424 = vdwg.mxu0
    %v8426 = vrot.slane %v8422, 2
    %v8428 = vmul.f32 %v8344, %v8426
    %8430 = vrot.lane.b32.xlu0 %v8428, 64
    %v8431 = vpop.permute.xlu0 %8430
    %v8433 = vadd.f32 %v4740, %v8431
    %v8434 = vtanh.pop %v8433
    %v8435 = vsub.f32 1.0, %v8354
    %8437 = vrot.lane.b32.xlu0 %v8434, 96
    %v8438 = vpop.permute.xlu0 %8437
    %v8440 = vmul.f32 %v8435, %v8438
    %v8441 = vrot.slane %v7928, 7
    %v8443 = vmul.f32 %v8354, %v8441
    %v8444 = vadd.f32 %v8440, %v8443
    %v8446 = vrot.slane %v8264, 7
    %v8448 = vadd.f32 %v4912, %v8446
    %v8449 = vmul.f32 %v8448, 0.5
    %v8450 = vtanh.pop %v8449
    %v8451 = vadd.f32 %v8450, 1.0
    %v8452 = vmul.f32 %v8451, 0.5
    %v8454 = vrot.slane %v8334, 7
    %8455 = vrot.lane.b32.xlu0 %v8454, 32
    %v8456 = vpop.permute.xlu0 %8455
    %v8458 = vadd.f32 %v4912, %v8456
    %v8459 = vmul.f32 %v8458, 0.5
    %v8460 = vtanh.pop %v8459
    %v8461 = vadd.f32 %v8460, 1.0
    %v8462 = vmul.f32 %v8461, 0.5
    %8463 = vmatprep.subr.mxu0 0.0
    %8464 = vmatpush1.msra.mxu0 %v5358
    %8465 = vmatprep.subr.mxu0 0.0
    %8466 = vmatpush1.msra.mxu0 %v5360
    %8467 = vmatprep.subr.mxu0 0.0
    %8468 = vmatpush1.msra.mxu0 %v5362
    %8469 = vmatprep.subr.mxu0 0.0
    %8470 = vmatpush1.msra.mxu0 %v5364
    %8471 = vmatprep.subr.mxu0 0.0
    %8472 = vmatpush1.msra.mxu0 0.0
    %8473 = vmatprep.subr.mxu0 0.0
    %8474 = vmatpush1.msra.mxu0 0.0
    %8475 = vmatprep.subr.mxu0 0.0
    %8476 = vmatpush1.msra.mxu0 0.0
    %8477 = vmatprep.subr.mxu0 0.0
    %8478 = vmatpush1.msra.mxu0 0.0
    %8479 = vmatprep.subr.mxu0 0.0
    %8480 = vmatpush1.msra.mxu0 0.0
    %8481 = vmatprep.subr.mxu0 0.0
    %8482 = vmatpush1.msra.mxu0 0.0
    %8483 = vmatprep.subr.mxu0 0.0
    %8484 = vmatpush1.msra.mxu0 0.0
    %8485 = vmatprep.subr.mxu0 0.0
    %8486 = vmatpush1.msra.mxu0 0.0
    %8487 = vmatprep.subr.mxu0 0.0
    %8488 = vmatpush1.msra.mxu0 0.0
    %8489 = vmatprep.subr.mxu0 0.0
    %8490 = vmatpush1.msra.mxu0 0.0
    %8491 = vmatprep.subr.mxu0 0.0
    %8492 = vmatpush1.msra.mxu0 0.0
    %8493 = vmatprep.subr.mxu0 0.0
    %8494 = vmatpush1.msra.mxu0 0.0
    %8495 = vmatprep.subr.mxu0 0.0
    %8496 = vmatpush1.msra.mxu0 0.0
    %8497 = vmatprep.subr.mxu0 0.0
    %8498 = vmatpush1.msra.mxu0 0.0
    %8499 = vmatprep.subr.mxu0 0.0
    %8500 = vmatpush1.msra.mxu0 0.0
    %8501 = vmatprep.subr.mxu0 0.0
    %8502 = vmatpush1.msra.mxu0 0.0
    %8503 = vmatprep.subr.mxu0 0.0
    %8504 = vmatpush1.msra.mxu0 0.0
    %8505 = vmatprep.subr.mxu0 0.0
    %8506 = vmatpush1.msra.mxu0 0.0
    %8507 = vmatprep.subr.mxu0 0.0
    %8508 = vmatpush1.msra.mxu0 0.0
    %8509 = vmatprep.subr.mxu0 0.0
    %8510 = vmatpush1.msra.mxu0 0.0
    %8511 = vmatprep.subr.mxu0 0.0
    %8512 = vmatpush1.msra.mxu0 0.0
    %8513 = vmatprep.subr.mxu0 0.0
    %8514 = vmatpush1.msra.mxu0 0.0
    %8515 = vmatprep.subr.mxu0 0.0
    %8516 = vmatpush1.msra.mxu0 0.0
    %8517 = vmatprep.subr.mxu0 0.0
    %8518 = vmatpush1.msra.mxu0 0.0
    %8519 = vmatprep.subr.mxu0 0.0
    %8520 = vmatpush1.msra.mxu0 0.0
    %8521 = vmatprep.subr.mxu0 0.0
    %8522 = vmatpush1.msra.mxu0 0.0
    %8523 = vmatprep.subr.mxu0 0.0
    %8524 = vmatpush1.msra.mxu0 0.0
    %8525 = vmatprep.subr.mxu0 0.0
    %8526 = vmatpush1.msra.mxu0 0.0
    %8527 = vmatprep.mubr.f32.mxu0 0.0
    %8528 = vmatmul.mubr.f32.gmra.mrb[0].mxu0 %v8195
    %v8529 = vpop.f32.mrb[0].mxu0
    %v8530 = vadd.f32 %v5370, %v8529
    %v8531 = vpop.f32.mrb[0].mxu0
    %8532 = vdwg.mxu0
    %v8534 = vrot.slane %v8530, 7
    %v8536 = vmul.f32 %v8452, %v8534
    %8538 = vrot.lane.b32.xlu0 %v8536, 64
    %v8539 = vpop.permute.xlu0 %8538
    %v8541 = vadd.f32 %v4888, %v8539
    %v8542 = vtanh.pop %v8541
    %v8543 = vsub.f32 1.0, %v8462
    %8545 = vrot.lane.b32.xlu0 %v8542, 96
    %v8546 = vpop.permute.xlu0 %8545
    %v8548 = vmul.f32 %v8543, %v8546
    %v8549 = vrot.slane %v8036, 1
    %v8551 = vmul.f32 %v8462, %v8549
    %v8552 = vadd.f32 %v8548, %v8551
    %8554 = vrot.lane.b32.xlu0 %v8444, 96
    %v8555 = vpop.permute.xlu0 %8554
    %8557 = vst.msk [vmem:[#allocation4] sm:$0x40] %vm1475, %v8555
    %8559 = vrot.lane.b32.xlu0 %v8552, 96
    %v8560 = vpop.permute.xlu0 %8559
    %8562 = vst.msk [vmem:[#allocation5] sm:$0x2] %vm1469, %v8560
    %v8563 = vrot.slane %v8444, 6
    %8564 = vrot.lane.b32.xlu0 %v8563, 96
    %v8565 = vpop.permute.xlu0 %8564
    %v8566 = vsel %vm399, %v8565, 0
    %8568 = vmatprep.subr.mxu0 0.0
    %8569 = vmatpush1.msra.mxu0 %v4889
    %8570 = vmatprep.subr.mxu0 0.0
    %8571 = vmatpush1.msra.mxu0 %v4890
    %8572 = vmatprep.subr.mxu0 0.0
    %8573 = vmatpush1.msra.mxu0 %v4891
    %8574 = vmatprep.subr.mxu0 0.0
    %8575 = vmatpush1.msra.mxu0 %v4892
    %8576 = vmatprep.subr.mxu0 0.0
    %8577 = vmatpush1.msra.mxu0 0.0
    %8578 = vmatprep.subr.mxu0 0.0
    %8579 = vmatpush1.msra.mxu0 0.0
    %8580 = vmatprep.subr.mxu0 0.0
    %8581 = vmatpush1.msra.mxu0 0.0
    %8582 = vmatprep.subr.mxu0 0.0
    %8583 = vmatpush1.msra.mxu0 0.0
    %8584 = vmatprep.subr.mxu0 0.0
    %8585 = vmatpush1.msra.mxu0 0.0
    %8586 = vmatprep.subr.mxu0 0.0
    %8587 = vmatpush1.msra.mxu0 0.0
    %8588 = vmatprep.subr.mxu0 0.0
    %8589 = vmatpush1.msra.mxu0 0.0
    %8590 = vmatprep.subr.mxu0 0.0
    %8591 = vmatpush1.msra.mxu0 0.0
    %8592 = vmatprep.subr.mxu0 0.0
    %8593 = vmatpush1.msra.mxu0 0.0
    %8594 = vmatprep.subr.mxu0 0.0
    %8595 = vmatpush1.msra.mxu0 0.0
    %8596 = vmatprep.subr.mxu0 0.0
    %8597 = vmatpush1.msra.mxu0 0.0
    %8598 = vmatprep.subr.mxu0 0.0
    %8599 = vmatpush1.msra.mxu0 0.0
    %8600 = vmatprep.subr.mxu0 0.0
    %8601 = vmatpush1.msra.mxu0 0.0
    %8602 = vmatprep.subr.mxu0 0.0
    %8603 = vmatpush1.msra.mxu0 0.0
    %8604 = vmatprep.subr.mxu0 0.0
    %8605 = vmatpush1.msra.mxu0 0.0
    %8606 = vmatprep.subr.mxu0 0.0
    %8607 = vmatpush1.msra.mxu0 0.0
    %8608 = vmatprep.subr.mxu0 0.0
    %8609 = vmatpush1.msra.mxu0 0.0
    %8610 = vmatprep.subr.mxu0 0.0
    %8611 = vmatpush1.msra.mxu0 0.0
    %8612 = vmatprep.subr.mxu0 0.0
    %8613 = vmatpush1.msra.mxu0 0.0
    %8614 = vmatprep.subr.mxu0 0.0
    %8615 = vmatpush1.msra.mxu0 0.0
    %8616 = vmatprep.subr.mxu0 0.0
    %8617 = vmatpush1.msra.mxu0 0.0
    %8618 = vmatprep.subr.mxu0 0.0
    %8619 = vmatpush1.msra.mxu0 0.0
    %8620 = vmatprep.subr.mxu0 0.0
    %8621 = vmatpush1.msra.mxu0 0.0
    %8622 = vmatprep.subr.mxu0 0.0
    %8623 = vmatpush1.msra.mxu0 0.0
    %8624 = vmatprep.subr.mxu0 0.0
    %8625 = vmatpush1.msra.mxu0 0.0
    %8626 = vmatprep.subr.mxu0 0.0
    %8627 = vmatpush1.msra.mxu0 0.0
    %8628 = vmatprep.subr.mxu0 0.0
    %8629 = vmatpush1.msra.mxu0 0.0
    %8630 = vmatprep.subr.mxu0 0.0
    %8631 = vmatpush1.msra.mxu0 0.0
    %8632 = vmatprep.mubr.f32.mxu0 0.0
    %8633 = vmatmul.mubr.f32.gmra.mrb[0].mxu0 %v8566
    %v8634 = vpop.f32.mrb[0].mxu0
    %v8635 = vadd.f32 0.0, %v8634
    %v8636 = vpop.f32.mrb[0].mxu0
    %8637 = vdwg.mxu0
    %8638 = vmatprep.subr.mxu0 0.0
    %8639 = vmatpush1.msra.mxu0 %v4988
    %8640 = vmatprep.subr.mxu0 0.0
    %8641 = vmatpush1.msra.mxu0 %v4990
    %8642 = vmatprep.subr.mxu0 0.0
    %8643 = vmatpush1.msra.mxu0 %v4992
    %8644 = vmatprep.subr.mxu0 0.0
    %8645 = vmatpush1.msra.mxu0 %v4994
    %8646 = vmatprep.subr.mxu0 0.0
    %8647 = vmatpush1.msra.mxu0 0.0
    %8648 = vmatprep.subr.mxu0 0.0
    %8649 = vmatpush1.msra.mxu0 0.0
    %8650 = vmatprep.subr.mxu0 0.0
    %8651 = vmatpush1.msra.mxu0 0.0
    %8652 = vmatprep.subr.mxu0 0.0
    %8653 = vmatpush1.msra.mxu0 0.0
    %8654 = vmatprep.subr.mxu0 0.0
    %8655 = vmatpush1.msra.mxu0 0.0
    %8656 = vmatprep.subr.mxu0 0.0
    %8657 = vmatpush1.msra.mxu0 0.0
    %8658 = vmatprep.subr.mxu0 0.0
    %8659 = vmatpush1.msra.mxu0 0.0
    %8660 = vmatprep.subr.mxu0 0.0
    %8661 = vmatpush1.msra.mxu0 0.0
    %8662 = vmatprep.subr.mxu0 0.0
    %8663 = vmatpush1.msra.mxu0 0.0
    %8664 = vmatprep.subr.mxu0 0.0
    %8665 = vmatpush1.msra.mxu0 0.0
    %8666 = vmatprep.subr.mxu0 0.0
    %8667 = vmatpush1.msra.mxu0 0.0
    %8668 = vmatprep.subr.mxu0 0.0
    %8669 = vmatpush1.msra.mxu0 0.0
    %8670 = vmatprep.subr.mxu0 0.0
    %8671 = vmatpush1.msra.mxu0 0.0
    %8672 = vmatprep.subr.mxu0 0.0
    %8673 = vmatpush1.msra.mxu0 0.0
    %8674 = vmatprep.subr.mxu0 0.0
    %8675 = vmatpush1.msra.mxu0 0.0
    %8676 = vmatprep.subr.mxu0 0.0
    %8677 = vmatpush1.msra.mxu0 0.0
    %8678 = vmatprep.subr.mxu0 0.0
    %8679 = vmatpush1.msra.mxu0 0.0
    %8680 = vmatprep.subr.mxu0 0.0
    %8681 = vmatpush1.msra.mxu0 0.0
    %8682 = vmatprep.subr.mxu0 0.0
    %8683 = vmatpush1.msra.mxu0 0.0
    %8684 = vmatprep.subr.mxu0 0.0
    %8685 = vmatpush1.msra.mxu0 0.0
    %8686 = vmatprep.subr.mxu0 0.0
    %8687 = vmatpush1.msra.mxu0 0.0
    %8688 = vmatprep.subr.mxu0 0.0
    %8689 = vmatpush1.msra.mxu0 0.0
    %8690 = vmatprep.subr.mxu0 0.0
    %8691 = vmatpush1.msra.mxu0 0.0
    %8692 = vmatprep.subr.mxu0 0.0
    %8693 = vmatpush1.msra.mxu0 0.0
    %8694 = vmatprep.subr.mxu0 0.0
    %8695 = vmatpush1.msra.mxu0 0.0
    %8696 = vmatprep.subr.mxu0 0.0
    %8697 = vmatpush1.msra.mxu0 0.0
    %8698 = vmatprep.subr.mxu0 0.0
    %8699 = vmatpush1.msra.mxu0 0.0
    %8700 = vmatprep.subr.mxu0 0.0
    %8701 = vmatpush1.msra.mxu0 0.0
    %8702 = vmatprep.mubr.f32.mxu0 0.0
    %8703 = vmatmul.mubr.f32.gmra.mrb[0].mxu0 %v8566
    %v8704 = vpop.f32.mrb[0].mxu0
    %v8705 = vadd.f32 0.0, %v8704
    %v8706 = vpop.f32.mrb[0].mxu0
    %8707 = vdwg.mxu0
    %v8708 = vrot.slane %v8552, 1
    %8709 = vrot.lane.b32.xlu0 %v8708, 96
    %v8710 = vpop.permute.xlu0 %8709
    %v8711 = vsel %vm399, %v8710, 0
    %8713 = vmatprep.subr.mxu0 0.0
    %8714 = vmatpush1.msra.mxu0 %v4894
    %8715 = vmatprep.subr.mxu0 0.0
    %8716 = vmatpush1.msra.mxu0 %v4895
    %8717 = vmatprep.subr.mxu0 0.0
    %8718 = vmatpush1.msra.mxu0 %v4896
    %8719 = vmatprep.subr.mxu0 0.0
    %8720 = vmatpush1.msra.mxu0 %v4897
    %8721 = vmatprep.subr.mxu0 0.0
    %8722 = vmatpush1.msra.mxu0 0.0
    %8723 = vmatprep.subr.mxu0 0.0
    %8724 = vmatpush1.msra.mxu0 0.0
    %8725 = vmatprep.subr.mxu0 0.0
    %8726 = vmatpush1.msra.mxu0 0.0
    %8727 = vmatprep.subr.mxu0 0.0
    %8728 = vmatpush1.msra.mxu0 0.0
    %8729 = vmatprep.subr.mxu0 0.0
    %8730 = vmatpush1.msra.mxu0 0.0
    %8731 = vmatprep.subr.mxu0 0.0
    %8732 = vmatpush1.msra.mxu0 0.0
    %8733 = vmatprep.subr.mxu0 0.0
    %8734 = vmatpush1.msra.mxu0 0.0
    %8735 = vmatprep.subr.mxu0 0.0
    %8736 = vmatpush1.msra.mxu0 0.0
    %8737 = vmatprep.subr.mxu0 0.0
    %8738 = vmatpush1.msra.mxu0 0.0
    %8739 = vmatprep.subr.mxu0 0.0
    %8740 = vmatpush1.msra.mxu0 0.0
    %8741 = vmatprep.subr.mxu0 0.0
    %8742 = vmatpush1.msra.mxu0 0.0
    %8743 = vmatprep.subr.mxu0 0.0
    %8744 = vmatpush1.msra.mxu0 0.0
    %8745 = vmatprep.subr.mxu0 0.0
    %8746 = vmatpush1.msra.mxu0 0.0
    %8747 = vmatprep.subr.mxu0 0.0
    %8748 = vmatpush1.msra.mxu0 0.0
    %8749 = vmatprep.subr.mxu0 0.0
    %8750 = vmatpush1.msra.mxu0 0.0
    %8751 = vmatprep.subr.mxu0 0.0
    %8752 = vmatpush1.msra.mxu0 0.0
    %8753 = vmatprep.subr.mxu0 0.0
    %8754 = vmatpush1.msra.mxu0 0.0
    %8755 = vmatprep.subr.mxu0 0.0
    %8756 = vmatpush1.msra.mxu0 0.0
    %8757 = vmatprep.subr.mxu0 0.0
    %8758 = vmatpush1.msra.mxu0 0.0
    %8759 = vmatprep.subr.mxu0 0.0
    %8760 = vmatpush1.msra.mxu0 0.0
    %8761 = vmatprep.subr.mxu0 0.0
    %8762 = vmatpush1.msra.mxu0 0.0
    %8763 = vmatprep.subr.mxu0 0.0
    %8764 = vmatpush1.msra.mxu0 0.0
    %8765 = vmatprep.subr.mxu0 0.0
    %8766 = vmatpush1.msra.mxu0 0.0
    %8767 = vmatprep.subr.mxu0 0.0
    %8768 = vmatpush1.msra.mxu0 0.0
    %8769 = vmatprep.subr.mxu0 0.0
    %8770 = vmatpush1.msra.mxu0 0.0
    %8771 = vmatprep.subr.mxu0 0.0
    %8772 = vmatpush1.msra.mxu0 0.0
    %8773 = vmatprep.subr.mxu0 0.0
    %8774 = vmatpush1.msra.mxu0 0.0
    %8775 = vmatprep.subr.mxu0 0.0
    %8776 = vmatpush1.msra.mxu0 0.0
    %8777 = vmatprep.mubr.f32.mxu0 0.0
    %8778 = vmatmul.mubr.f32.gmra.mrb[0].mxu0 %v8711
    %v8779 = vpop.f32.mrb[0].mxu0
    %v8780 = vadd.f32 0.0, %v8779
    %v8781 = vpop.f32.mrb[0].mxu0
    %8782 = vdwg.mxu0
    %8783 = vmatprep.subr.mxu0 0.0
    %8784 = vmatpush1.msra.mxu0 %v5144
    %8785 = vmatprep.subr.mxu0 0.0
    %8786 = vmatpush1.msra.mxu0 %v5146
    %8787 = vmatprep.subr.mxu0 0.0
    %8788 = vmatpush1.msra.mxu0 %v5148
    %8789 = vmatprep.subr.mxu0 0.0
    %8790 = vmatpush1.msra.mxu0 %v5150
    %8791 = vmatprep.subr.mxu0 0.0
    %8792 = vmatpush1.msra.mxu0 0.0
    %8793 = vmatprep.subr.mxu0 0.0
    %8794 = vmatpush1.msra.mxu0 0.0
    %8795 = vmatprep.subr.mxu0 0.0
    %8796 = vmatpush1.msra.mxu0 0.0
    %8797 = vmatprep.subr.mxu0 0.0
    %8798 = vmatpush1.msra.mxu0 0.0
    %8799 = vmatprep.subr.mxu0 0.0
    %8800 = vmatpush1.msra.mxu0 0.0
    %8801 = vmatprep.subr.mxu0 0.0
    %8802 = vmatpush1.msra.mxu0 0.0
    %8803 = vmatprep.subr.mxu0 0.0
    %8804 = vmatpush1.msra.mxu0 0.0
    %8805 = vmatprep.subr.mxu0 0.0
    %8806 = vmatpush1.msra.mxu0 0.0
    %8807 = vmatprep.subr.mxu0 0.0
    %8808 = vmatpush1.msra.mxu0 0.0
    %8809 = vmatprep.subr.mxu0 0.0
    %8810 = vmatpush1.msra.mxu0 0.0
    %8811 = vmatprep.subr.mxu0 0.0
    %8812 = vmatpush1.msra.mxu0 0.0
    %8813 = vmatprep.subr.mxu0 0.0
    %8814 = vmatpush1.msra.mxu0 0.0
    %8815 = vmatprep.subr.mxu0 0.0
    %8816 = vmatpush1.msra.mxu0 0.0
    %8817 = vmatprep.subr.mxu0 0.0
    %8818 = vmatpush1.msra.mxu0 0.0
    %8819 = vmatprep.subr.mxu0 0.0
    %8820 = vmatpush1.msra.mxu0 0.0
    %8821 = vmatprep.subr.mxu0 0.0
    %8822 = vmatpush1.msra.mxu0 0.0
    %8823 = vmatprep.subr.mxu0 0.0
    %8824 = vmatpush1.msra.mxu0 0.0
    %8825 = vmatprep.subr.mxu0 0.0
    %8826 = vmatpush1.msra.mxu0 0.0
    %8827 = vmatprep.subr.mxu0 0.0
    %8828 = vmatpush1.msra.mxu0 0.0
    %8829 = vmatprep.subr.mxu0 0.0
    %8830 = vmatpush1.msra.mxu0 0.0
    %8831 = vmatprep.subr.mxu0 0.0
    %8832 = vmatpush1.msra.mxu0 0.0
    %8833 = vmatprep.subr.mxu0 0.0
    %8834 = vmatpush1.msra.mxu0 0.0
    %8835 = vmatprep.subr.mxu0 0.0
    %8836 = vmatpush1.msra.mxu0 0.0
    %8837 = vmatprep.subr.mxu0 0.0
    %8838 = vmatpush1.msra.mxu0 0.0
    %8839 = vmatprep.subr.mxu0 0.0
    %8840 = vmatpush1.msra.mxu0 0.0
    %8841 = vmatprep.subr.mxu0 0.0
    %8842 = vmatpush1.msra.mxu0 0.0
    %8843 = vmatprep.subr.mxu0 0.0
    %8844 = vmatpush1.msra.mxu0 0.0
    %8845 = vmatprep.subr.mxu0 0.0
    %8846 = vmatpush1.msra.mxu0 0.0
    %8847 = vmatprep.mubr.f32.mxu0 0.0
    %8848 = vmatmul.mubr.f32.gmra.mrb[0].mxu0 %v8711
    %v8849 = vpop.f32.mrb[0].mxu0
    %v8850 = vadd.f32 0.0, %v8849
    %v8851 = vpop.f32.mrb[0].mxu0
    %8852 = vdwg.mxu0
    %v8854 = vrot.slane %v8635, 1
    %v8856 = vadd.f32 %v4905, %v8854
    %v8857 = vmul.f32 %v8856, 0.5
    %v8858 = vtanh.pop %v8857
    %v8859 = vadd.f32 %v8858, 1.0
    %v8860 = vmul.f32 %v8859, 0.5
    %v8862 = vrot.slane %v8705, 1
    %8863 = vrot.lane.b32.xlu0 %v8862, 32
    %v8864 = vpop.permute.xlu0 %8863
    %v8866 = vadd.f32 %v4905, %v8864
    %v8867 = vmul.f32 %v8866, 0.5
    %v8868 = vtanh.pop %v8867
    %v8869 = vadd.f32 %v8868, 1.0
    %v8870 = vmul.f32 %v8869, 0.5
    %8871 = vmatprep.subr.mxu0 0.0
    %8872 = vmatpush1.msra.mxu0 %v5240
    %8873 = vmatprep.subr.mxu0 0.0
    %8874 = vmatpush1.msra.mxu0 %v5242
    %8875 = vmatprep.subr.mxu0 0.0
    %8876 = vmatpush1.msra.mxu0 %v5244
    %8877 = vmatprep.subr.mxu0 0.0
    %8878 = vmatpush1.msra.mxu0 %v5246
    %8879 = vmatprep.subr.mxu0 0.0
    %8880 = vmatpush1.msra.mxu0 0.0
    %8881 = vmatprep.subr.mxu0 0.0
    %8882 = vmatpush1.msra.mxu0 0.0
    %8883 = vmatprep.subr.mxu0 0.0
    %8884 = vmatpush1.msra.mxu0 0.0
    %8885 = vmatprep.subr.mxu0 0.0
    %8886 = vmatpush1.msra.mxu0 0.0
    %8887 = vmatprep.subr.mxu0 0.0
    %8888 = vmatpush1.msra.mxu0 0.0
    %8889 = vmatprep.subr.mxu0 0.0
    %8890 = vmatpush1.msra.mxu0 0.0
    %8891 = vmatprep.subr.mxu0 0.0
    %8892 = vmatpush1.msra.mxu0 0.0
    %8893 = vmatprep.subr.mxu0 0.0
    %8894 = vmatpush1.msra.mxu0 0.0
    %8895 = vmatprep.subr.mxu0 0.0
    %8896 = vmatpush1.msra.mxu0 0.0
    %8897 = vmatprep.subr.mxu0 0.0
    %8898 = vmatpush1.msra.mxu0 0.0
    %8899 = vmatprep.subr.mxu0 0.0
    %8900 = vmatpush1.msra.mxu0 0.0
    %8901 = vmatprep.subr.mxu0 0.0
    %8902 = vmatpush1.msra.mxu0 0.0
    %8903 = vmatprep.subr.mxu0 0.0
    %8904 = vmatpush1.msra.mxu0 0.0
    %8905 = vmatprep.subr.mxu0 0.0
    %8906 = vmatpush1.msra.mxu0 0.0
    %8907 = vmatprep.subr.mxu0 0.0
    %8908 = vmatpush1.msra.mxu0 0.0
    %8909 = vmatprep.subr.mxu0 0.0
    %8910 = vmatpush1.msra.mxu0 0.0
    %8911 = vmatprep.subr.mxu0 0.0
    %8912 = vmatpush1.msra.mxu0 0.0
    %8913 = vmatprep.subr.mxu0 0.0
    %8914 = vmatpush1.msra.mxu0 0.0
    %8915 = vmatprep.subr.mxu0 0.0
    %8916 = vmatpush1.msra.mxu0 0.0
    %8917 = vmatprep.subr.mxu0 0.0
    %8918 = vmatpush1.msra.mxu0 0.0
    %8919 = vmatprep.subr.mxu0 0.0
    %8920 = vmatpush1.msra.mxu0 0.0
    %8921 = vmatprep.subr.mxu0 0.0
    %8922 = vmatpush1.msra.mxu0 0.0
    %8923 = vmatprep.subr.mxu0 0.0
    %8924 = vmatpush1.msra.mxu0 0.0
    %8925 = vmatprep.subr.mxu0 0.0
    %8926 = vmatpush1.msra.mxu0 0.0
    %8927 = vmatprep.subr.mxu0 0.0
    %8928 = vmatpush1.msra.mxu0 0.0
    %8929 = vmatprep.subr.mxu0 0.0
    %8930 = vmatpush1.msra.mxu0 0.0
    %8931 = vmatprep.subr.mxu0 0.0
    %8932 = vmatpush1.msra.mxu0 0.0
    %8933 = vmatprep.subr.mxu0 0.0
    %8934 = vmatpush1.msra.mxu0 0.0
    %8935 = vmatprep.mubr.f32.mxu0 0.0
    %8936 = vmatmul.mubr.f32.gmra.mrb[0].mxu0 %v8566
    %v8937 = vpop.f32.mrb[0].mxu0
    %v8938 = vadd.f32 %v5252, %v8937
    %v8939 = vpop.f32.mrb[0].mxu0
    %8940 = vdwg.mxu0
    %v8942 = vrot.slane %v8938, 1
    %v8944 = vmul.f32 %v8860, %v8942
    %8946 = vrot.lane.b32.xlu0 %v8944, 64
    %v8947 = vpop.permute.xlu0 %8946
    %v8949 = vadd.f32 %v4740, %v8947
    %v8950 = vtanh.pop %v8949
    %v8951 = vsub.f32 1.0, %v8870
    %8953 = vrot.lane.b32.xlu0 %v8950, 96
    %v8954 = vpop.permute.xlu0 %8953
    %v8956 = vmul.f32 %v8951, %v8954
    %v8957 = vrot.slane %v8444, 7
    %v8959 = vmul.f32 %v8870, %v8957
    %v8960 = vadd.f32 %v8956, %v8959
    %v8961 = vadd.f32 %v4912, %v8780
    %v8962 = vmul.f32 %v8961, 0.5
    %v8963 = vtanh.pop %v8962
    %v8964 = vadd.f32 %v8963, 1.0
    %v8965 = vmul.f32 %v8964, 0.5
    %8967 = vrot.lane.b32.xlu0 %v8850, 32
    %v8968 = vpop.permute.xlu0 %8967
    %v8970 = vadd.f32 %v4912, %v8968
    %v8971 = vmul.f32 %v8970, 0.5
    %v8972 = vtanh.pop %v8971
    %v8973 = vadd.f32 %v8972, 1.0
    %v8974 = vmul.f32 %v8973, 0.5
    %8975 = vmatprep.subr.mxu0 0.0
    %8976 = vmatpush1.msra.mxu0 %v5358
    %8977 = vmatprep.subr.mxu0 0.0
    %8978 = vmatpush1.msra.mxu0 %v5360
    %8979 = vmatprep.subr.mxu0 0.0
    %8980 = vmatpush1.msra.mxu0 %v5362
    %8981 = vmatprep.subr.mxu0 0.0
    %8982 = vmatpush1.msra.mxu0 %v5364
    %8983 = vmatprep.subr.mxu0 0.0
    %8984 = vmatpush1.msra.mxu0 0.0
    %8985 = vmatprep.subr.mxu0 0.0
    %8986 = vmatpush1.msra.mxu0 0.0
    %8987 = vmatprep.subr.mxu0 0.0
    %8988 = vmatpush1.msra.mxu0 0.0
    %8989 = vmatprep.subr.mxu0 0.0
    %8990 = vmatpush1.msra.mxu0 0.0
    %8991 = vmatprep.subr.mxu0 0.0
    %8992 = vmatpush1.msra.mxu0 0.0
    %8993 = vmatprep.subr.mxu0 0.0
    %8994 = vmatpush1.msra.mxu0 0.0
    %8995 = vmatprep.subr.mxu0 0.0
    %8996 = vmatpush1.msra.mxu0 0.0
    %8997 = vmatprep.subr.mxu0 0.0
    %8998 = vmatpush1.msra.mxu0 0.0
    %8999 = vmatprep.subr.mxu0 0.0
    %9000 = vmatpush1.msra.mxu0 0.0
    %9001 = vmatprep.subr.mxu0 0.0
    %9002 = vmatpush1.msra.mxu0 0.0
    %9003 = vmatprep.subr.mxu0 0.0
    %9004 = vmatpush1.msra.mxu0 0.0
    %9005 = vmatprep.subr.mxu0 0.0
    %9006 = vmatpush1.msra.mxu0 0.0
    %9007 = vmatprep.subr.mxu0 0.0
    %9008 = vmatpush1.msra.mxu0 0.0
    %9009 = vmatprep.subr.mxu0 0.0
    %9010 = vmatpush1.msra.mxu0 0.0
    %9011 = vmatprep.subr.mxu0 0.0
    %9012 = vmatpush1.msra.mxu0 0.0
    %9013 = vmatprep.subr.mxu0 0.0
    %9014 = vmatpush1.msra.mxu0 0.0
    %9015 = vmatprep.subr.mxu0 0.0
    %9016 = vmatpush1.msra.mxu0 0.0
    %9017 = vmatprep.subr.mxu0 0.0
    %9018 = vmatpush1.msra.mxu0 0.0
    %9019 = vmatprep.subr.mxu0 0.0
    %9020 = vmatpush1.msra.mxu0 0.0
    %9021 = vmatprep.subr.mxu0 0.0
    %9022 = vmatpush1.msra.mxu0 0.0
    %9023 = vmatprep.subr.mxu0 0.0
    %9024 = vmatpush1.msra.mxu0 0.0
    %9025 = vmatprep.subr.mxu0 0.0
    %9026 = vmatpush1.msra.mxu0 0.0
    %9027 = vmatprep.subr.mxu0 0.0
    %9028 = vmatpush1.msra.mxu0 0.0
    %9029 = vmatprep.subr.mxu0 0.0
    %9030 = vmatpush1.msra.mxu0 0.0
    %9031 = vmatprep.subr.mxu0 0.0
    %9032 = vmatpush1.msra.mxu0 0.0
    %9033 = vmatprep.subr.mxu0 0.0
    %9034 = vmatpush1.msra.mxu0 0.0
    %9035 = vmatprep.subr.mxu0 0.0
    %9036 = vmatpush1.msra.mxu0 0.0
    %9037 = vmatprep.subr.mxu0 0.0
    %9038 = vmatpush1.msra.mxu0 0.0
    %9039 = vmatprep.mubr.f32.mxu0 0.0
    %9040 = vmatmul.mubr.f32.gmra.mrb[0].mxu0 %v8711
    %v9041 = vpop.f32.mrb[0].mxu0
    %v9042 = vadd.f32 %v5370, %v9041
    %v9043 = vpop.f32.mrb[0].mxu0
    %9044 = vdwg.mxu0
    %v9045 = vmul.f32 %v8965, %v9042
    %9047 = vrot.lane.b32.xlu0 %v9045, 64
    %v9048 = vpop.permute.xlu0 %9047
    %v9050 = vadd.f32 %v4888, %v9048
    %v9051 = vtanh.pop %v9050
    %v9052 = vsub.f32 1.0, %v8974
    %9054 = vrot.lane.b32.xlu0 %v9051, 96
    %v9055 = vpop.permute.xlu0 %9054
    %v9057 = vmul.f32 %v9052, %v9055
    %v9059 = vmul.f32 %v8974, %v8708
    %v9060 = vadd.f32 %v9057, %v9059
    %9062 = vrot.lane.b32.xlu0 %v8960, 96
    %v9063 = vpop.permute.xlu0 %9062
    %9065 = vst.msk [vmem:[#allocation4] sm:$0x80] %vm960, %v9063
    %9067 = vrot.lane.b32.xlu0 %v9060, 96
    %v9068 = vpop.permute.xlu0 %9067
    %9070 = vst.msk [vmem:[#allocation5] sm:$0x1] %vm954, %v9068
    %v9071 = vld [vmem:[#allocation4] sm:$0xff]
    %v9072 = vld [vmem:[#allocation5] sm:$0xff]
    %v9073 = vadd.f32 %v9071, %v9072
    %v9074 = vld [vmem:[%s17] sm:$0xff]
    %v9075 = vld [vmem:[%s17 + $0x8] sm:$0xff]
    %v9076 = vld [vmem:[%s17 + $0x10] sm:$0xff]
    %v9077 = vld [vmem:[%s17 + $0x18] sm:$0xff]
    %v9078 = vld [vmem:[#allocation6] sm:$0x1]
    %v9080 = vlaneseq
    %v9081 = vshrl.u32 %v9080, 7
    %v9082 = vsub.s32 0, %v9081
    %v9083 = vrot.slane %v9078, %v9082
    %v9086 = vsel %vm399, %v9073, 0
    %9088 = vmatprep.subr.mxu0 0.0
    %9089 = vmatpush1.msra.mxu0 %v9074
    %9090 = vmatprep.subr.mxu0 0.0
    %9091 = vmatpush1.msra.mxu0 %v9075
    %9092 = vmatprep.subr.mxu0 0.0
    %9093 = vmatpush1.msra.mxu0 %v9076
    %9094 = vmatprep.subr.mxu0 0.0
    %9095 = vmatpush1.msra.mxu0 %v9077
    %9096 = vmatprep.subr.mxu0 0.0
    %9097 = vmatpush1.msra.mxu0 0.0
    %9098 = vmatprep.subr.mxu0 0.0
    %9099 = vmatpush1.msra.mxu0 0.0
    %9100 = vmatprep.subr.mxu0 0.0
    %9101 = vmatpush1.msra.mxu0 0.0
    %9102 = vmatprep.subr.mxu0 0.0
    %9103 = vmatpush1.msra.mxu0 0.0
    %9104 = vmatprep.subr.mxu0 0.0
    %9105 = vmatpush1.msra.mxu0 0.0
    %9106 = vmatprep.subr.mxu0 0.0
    %9107 = vmatpush1.msra.mxu0 0.0
    %9108 = vmatprep.subr.mxu0 0.0
    %9109 = vmatpush1.msra.mxu0 0.0
    %9110 = vmatprep.subr.mxu0 0.0
    %9111 = vmatpush1.msra.mxu0 0.0
    %9112 = vmatprep.subr.mxu0 0.0
    %9113 = vmatpush1.msra.mxu0 0.0
    %9114 = vmatprep.subr.mxu0 0.0
    %9115 = vmatpush1.msra.mxu0 0.0
    %9116 = vmatprep.subr.mxu0 0.0
    %9117 = vmatpush1.msra.mxu0 0.0
    %9118 = vmatprep.subr.mxu0 0.0
    %9119 = vmatpush1.msra.mxu0 0.0
    %9120 = vmatprep.subr.mxu0 0.0
    %9121 = vmatpush1.msra.mxu0 0.0
    %9122 = vmatprep.subr.mxu0 0.0
    %9123 = vmatpush1.msra.mxu0 0.0
    %9124 = vmatprep.subr.mxu0 0.0
    %9125 = vmatpush1.msra.mxu0 0.0
    %9126 = vmatprep.subr.mxu0 0.0
    %9127 = vmatpush1.msra.mxu0 0.0
    %9128 = vmatprep.subr.mxu0 0.0
    %9129 = vmatpush1.msra.mxu0 0.0
    %9130 = vmatprep.subr.mxu0 0.0
    %9131 = vmatpush1.msra.mxu0 0.0
    %9132 = vmatprep.subr.mxu0 0.0
    %9133 = vmatpush1.msra.mxu0 0.0
    %9134 = vmatprep.subr.mxu0 0.0
    %9135 = vmatpush1.msra.mxu0 0.0
    %9136 = vmatprep.subr.mxu0 0.0
    %9137 = vmatpush1.msra.mxu0 0.0
    %9138 = vmatprep.subr.mxu0 0.0
    %9139 = vmatpush1.msra.mxu0 0.0
    %9140 = vmatprep.subr.mxu0 0.0
    %9141 = vmatpush1.msra.mxu0 0.0
    %9142 = vmatprep.subr.mxu0 0.0
    %9143 = vmatpush1.msra.mxu0 0.0
    %9144 = vmatprep.subr.mxu0 0.0
    %9145 = vmatpush1.msra.mxu0 0.0
    %9146 = vmatprep.subr.mxu0 0.0
    %9147 = vmatpush1.msra.mxu0 0.0
    %9148 = vmatprep.subr.mxu0 0.0
    %9149 = vmatpush1.msra.mxu0 0.0
    %9150 = vmatprep.subr.mxu0 0.0
    %9151 = vmatpush1.msra.mxu0 0.0
    %9152 = vmatprep.mubr.f32.mxu0 0.0
    %9153 = vmatmul.mubr.f32.gmra.mrb[0].mxu0 %v9086
    %v9154 = vpop.f32.mrb[0].mxu0
    %v9155 = vadd.f32 %v9083, %v9154
    %v9156 = vpop.f32.mrb[0].mxu0
    %9157 = vdwg.mxu0
    %v9158 = vld [vmem:[%s19] sm:$0x1]
    %v9159 = vld [vmem:[#allocation7] sm:$0x1]
    %vm9160 = vcmask 64512
    %v9162 = vsel %vm9160, %v9158, 0
    %9164 = vmatprep.subr.mxu0 0.0
    %9165 = vmatpush1.msra.mxu0 %v9155
    %9166 = vmatprep.subr.mxu0 0.0
    %9167 = vmatpush1.msra.mxu0 0.0
    %9168 = vmatprep.subr.mxu0 0.0
    %9169 = vmatpush1.msra.mxu0 0.0
    %9170 = vmatprep.subr.mxu0 0.0
    %9171 = vmatpush1.msra.mxu0 0.0
    %9172 = vmatprep.subr.mxu0 0.0
    %9173 = vmatpush1.msra.mxu0 0.0
    %9174 = vmatprep.subr.mxu0 0.0
    %9175 = vmatpush1.msra.mxu0 0.0
    %9176 = vmatprep.subr.mxu0 0.0
    %9177 = vmatpush1.msra.mxu0 0.0
    %9178 = vmatprep.subr.mxu0 0.0
    %9179 = vmatpush1.msra.mxu0 0.0
    %9180 = vmatprep.subr.mxu0 0.0
    %9181 = vmatpush1.msra.mxu0 0.0
    %9182 = vmatprep.subr.mxu0 0.0
    %9183 = vmatpush1.msra.mxu0 0.0
    %9184 = vmatprep.subr.mxu0 0.0
    %9185 = vmatpush1.msra.mxu0 0.0
    %9186 = vmatprep.subr.mxu0 0.0
    %9187 = vmatpush1.msra.mxu0 0.0
    %9188 = vmatprep.subr.mxu0 0.0
    %9189 = vmatpush1.msra.mxu0 0.0
    %9190 = vmatprep.subr.mxu0 0.0
    %9191 = vmatpush1.msra.mxu0 0.0
    %9192 = vmatprep.subr.mxu0 0.0
    %9193 = vmatpush1.msra.mxu0 0.0
    %9194 = vmatprep.subr.mxu0 0.0
    %9195 = vmatpush1.msra.mxu0 0.0
    %9196 = vmatprep.subr.mxu0 0.0
    %9197 = vmatpush1.msra.mxu0 0.0
    %9198 = vmatprep.subr.mxu0 0.0
    %9199 = vmatpush1.msra.mxu0 0.0
    %9200 = vmatprep.subr.mxu0 0.0
    %9201 = vmatpush1.msra.mxu0 0.0
    %9202 = vmatprep.subr.mxu0 0.0
    %9203 = vmatpush1.msra.mxu0 0.0
    %9204 = vmatprep.subr.mxu0 0.0
    %9205 = vmatpush1.msra.mxu0 0.0
    %9206 = vmatprep.subr.mxu0 0.0
    %9207 = vmatpush1.msra.mxu0 0.0
    %9208 = vmatprep.subr.mxu0 0.0
    %9209 = vmatpush1.msra.mxu0 0.0
    %9210 = vmatprep.subr.mxu0 0.0
    %9211 = vmatpush1.msra.mxu0 0.0
    %9212 = vmatprep.subr.mxu0 0.0
    %9213 = vmatpush1.msra.mxu0 0.0
    %9214 = vmatprep.subr.mxu0 0.0
    %9215 = vmatpush1.msra.mxu0 0.0
    %9216 = vmatprep.subr.mxu0 0.0
    %9217 = vmatpush1.msra.mxu0 0.0
    %9218 = vmatprep.subr.mxu0 0.0
    %9219 = vmatpush1.msra.mxu0 0.0
    %9220 = vmatprep.subr.mxu0 0.0
    %9221 = vmatpush1.msra.mxu0 0.0
    %9222 = vmatprep.subr.mxu0 0.0
    %9223 = vmatpush1.msra.mxu0 0.0
    %9224 = vmatprep.subr.mxu0 0.0
    %9225 = vmatpush1.msra.mxu0 0.0
    %9226 = vmatprep.subr.mxu0 0.0
    %9227 = vmatpush1.msra.mxu0 0.0
    %9228 = vmatprep.mubr.f32.mxu0 0.0
    %9229 = vmatmul.mubr.f32.gmra.mrb[0].mxu0 %v9162
    %v9230 = vpop.f32.mrb[0].mxu0
    %v9231 = vadd.f32 %v9159, %v9230
    %v9232 = vpop.f32.mrb[0].mxu0
    %9233 = vdwg.mxu0
    %v9234 = vmul.f32 %v9231, 0.5
    %v9235 = vtanh.pop %v9234
    %v9236 = vadd.f32 %v9235, 1.0
    %v9237 = vmul.f32 %v9236, 0.5
    %vm9238 = vcmask 0
    %9239 = vst.msk [vmem:[#allocation26] sm:$0x1] %vm9238, %v9237
    // Predicated region
    $region130: #{network_forward.1} parent=1 // pred_check
      _
    $region131: #{network_forward.1} parent=1 // pred_check_branch
      %9241 = sbr.rel (0) target = $region133
    $region132: #{network_forward.1} parent=1 // pred_region
      %s9243 = ssub.s32 16, 16
      %9244 = vsyncadd [#allocation10], %s9243
      %s9246 = sshll.u32 [#allocation26], 4
      %s9247 = int_to_ptr.vmem [resolvable:$true] %s9246
      %9249 = dma.vmem_to_hbm [thread:$0]  %s9247, 16, %s21, [#allocation10]
    $region133: #{network_forward.1} parent=1 // pred_fallthru
      _
    // Predicated region
    $region134: #{network_forward.1} parent=1 // pred_check
      _
    $region135: #{network_forward.1} parent=1 // pred_check_branch
      %9251 = sbr.rel (0) target = $region137
    $region136: #{network_forward.1} parent=1 // pred_region
      %9252 = dma.done [#allocation10], 16
    $region137: #{network_forward.1} parent=1 // pred_fallthru
      _
    %9253 = vsyncpa [#allocation9], 1
    %9254 = vsyncpa [#allocation12], 1
    %9255 = vsyncpa [#allocation15], 1
    %9256 = vsyncpa [#allocation18], 1
    %9257 = vsyncpa [#allocation21], 1
    %9258 = vsyncpa [#allocation24], 1
    %9259 = vsyncpa [#allocation10], 1

</llo_original>
